<compile_context>
chip_gen: v5e
topology: v5e:2x2
jax: 0.10.0
libtpu: 0.0.40
codegen_flags: <defaults>
</compile_context>

<pallas_src>
import jax
import jax.numpy as jnp
from jax import lax
from jax.experimental import pallas as pl
from jax.experimental.pallas import tpu as pltpu


def _maxpool2x2(y, b, h, w, c):
    """2x2 stride-2 max pool.  `y` holds b*h*w rows (row-major b,h,w) of c channels.

    Only leading-dim splits/merges are used (rank <= 4 everywhere); the sublane dim is
    never split by a reshape inside a single step.
    """
    y = y.reshape(b * (h // 2), 2, w, c)
    y = jnp.maximum(y[:, 0], y[:, 1])                    # pool H  -> (b*h/2, w, c)
    y = y.reshape(b * (h // 2), w // 2, 2, c)
    y = jnp.maximum(y[:, :, 0], y[:, :, 1])              # pool W  -> (b*h/2, w/2, c)
    return y.reshape(b, h // 2, w // 2, c)


def _convnet4_kernel(p1_ref,
                     w1_ref, w2_ref, w3_ref, w4_ref,
                     s1_ref, s2_ref, s3_ref, s4_ref,
                     out_ref,
                     pad2_ref, pad3_ref, pad4_ref):
    """Fully fused ConvNet4 forward for a block of `bb` images.

    Layer 1 consumes a pre-built im2col patch matrix (built in the wrapper).  For
    layers 2-4: zero only the 1-px border of the padded-activation VMEM scratch, write
    the interior, then accumulate 9 K=Cin bf16 MXU matmuls (f32 accumulator) whose LHS
    is sliced tap-by-tap straight from the padded ref.  BN scale is folded into the
    weights; the kernel adds the per-channel shift and applies ReLU.  All inter-layer
    activations stay in VMEM / registers; the only HBM write is the final output.
    """
    bb = out_ref.shape[0]

    # ----------------- layer 1: one (bb*H*W, K1) x (K1, C1) MXU matmul -----------------
    hh1 = 2 * (pad2_ref.shape[1] - 2)                    # layer-1 spatial H
    ww1 = 2 * (pad2_ref.shape[2] - 2)                    # layer-1 spatial W
    c1 = w1_ref.shape[-1]
    y = jnp.dot(p1_ref[...].astype(jnp.bfloat16), w1_ref[...],
                preferred_element_type=jnp.float32)      # (bb*H*W, C1) f32
    y = jnp.maximum(y + s1_ref[...], 0.0)                # folded conv-bias+BN shift, ReLU
    x = _maxpool2x2(y, bb, hh1, ww1, c1)                 # (bb, H/2, W/2, C1)

    # -------------- layers 2-4: 9 accumulated K=Cin matmuls, taps from pad ref ---------
    for w_ref, s_ref, pad_ref in ((w2_ref, s2_ref, pad2_ref),
                                  (w3_ref, s3_ref, pad3_ref),
                                  (w4_ref, s4_ref, pad4_ref)):
        hh = pad_ref.shape[1] - 2
        ww = pad_ref.shape[2] - 2
        cin = pad_ref.shape[3]
        cout = w_ref.shape[-1]

        # Border-only zeroing (interior is fully overwritten every grid step).
        pad_ref[:, 0:1, :, :] = jnp.zeros((bb, 1, ww + 2, cin), jnp.float32)
        pad_ref[:, hh + 1:hh + 2, :, :] = jnp.zeros((bb, 1, ww + 2, cin), jnp.float32)
        pad_ref[:, 1:hh + 1, 0:1, :] = jnp.zeros((bb, hh, 1, cin), jnp.float32)
        pad_ref[:, 1:hh + 1, ww + 1:ww + 2, :] = jnp.zeros((bb, hh, 1, cin), jnp.float32)
        pad_ref[:, 1:hh + 1, 1:ww + 1, :] = x            # padded activation (f32)

        # 9 taps read straight from the padded ref; bf16 MXU operands, f32 accumulate.
        acc = None
        for t in range(9):
            dy, dx = divmod(t, 3)
            tap = pad_ref[:, dy:dy + hh, dx:dx + ww, :].reshape(bb * hh * ww, cin)
            part = jnp.dot(tap.astype(jnp.bfloat16), w_ref[t],
                           preferred_element_type=jnp.float32)
            acc = part if acc is None else acc + part    # (bb*hh*ww, cout) f32

        y = jnp.maximum(acc + s_ref[...], 0.0)           # shift + ReLU (f32 VPU path)
        x = _maxpool2x2(y, bb, hh, ww, cout)             # (bb, hh/2, ww/2, cout)

    out_ref[...] = x.reshape(out_ref.shape).astype(out_ref.dtype)


def _pick_batch_block(n):
    """Images per grid step: fatten matmul M, but keep grid length >= 2 (v7x, 2 TCs)."""
    for bb in (16, 8, 4, 2, 1):
        if n % bb == 0 and n // bb >= 2:
            return bb
    return n


def _prep_params(params):
    """Fold conv bias + BN (eval mode) into per-channel scale/shift; pre-pack weights."""
    w1, sc1, sh1 = params[0]
    kh, kw, c0, c1 = w1.shape
    k1 = kh * kw * c0
    k1_pad = ((k1 + 31) // 32) * 32                      # 27 -> 32
    w1f = (w1 * sc1.reshape(1, 1, 1, c1)).reshape(k1, c1)
    w1f = jnp.pad(w1f, ((0, k1_pad - k1), (0, 0))).astype(jnp.bfloat16)
    shifts = [sh1.reshape(1, c1).astype(jnp.float32)]
    w_taps = []
    for w, sc, sh in params[1:]:
        _, _, cin, cout = w.shape
        wf = (w * sc.reshape(1, 1, 1, cout)).reshape(9, cin, cout).astype(jnp.bfloat16)
        w_taps.append(wf)
        shifts.append(sh.reshape(1, cout).astype(jnp.float32))
    return w1f, w_taps, shifts, k1_pad


def _layer1_im2col(x_nhwc, k1_pad):
    """XLA-side im2col for layer 1 (Cin=3): (N, H, W, C0) -> (N*H*W, k1_pad) f32."""
    n, h, w, c0 = x_nhwc.shape
    xp = jnp.pad(x_nhwc, ((0, 0), (1, 1), (1, 1), (0, 0)))
    taps = [xp[:, dy:dy + h, dx:dx + w, :] for dy in range(3) for dx in range(3)]
    pat = jnp.concatenate(taps, axis=-1)                 # (N, H, W, 9*C0)
    pat = jnp.pad(pat, ((0, 0), (0, 0), (0, 0), (0, k1_pad - 9 * c0)))
    return pat.reshape(n * h * w, k1_pad)


def _convnet4_pallas(x_nhwc, params):
    """x_nhwc: (N, H, W, C0) f32.  params: list of (w_HWIO, scale(1,C), shift(1,C))."""
    n, h, w, c0 = x_nhwc.shape
    assert h == w and h % 16 == 0, (h, w)
    assert params[0][0].shape[2] == c0

    w1f, w_taps, shifts, k1_pad = _prep_params(params)
    chans = [c0] + [p[0].shape[3] for p in params]       # e.g. [3, 64, 64, 64, 640]
    cz = chans[-1]
    hf, wf = h // 16, w // 16

    bb = _pick_batch_block(n)
    grid = (n // bb,)
    hw = h * w

    pat1 = _layer1_im2col(x_nhwc, k1_pad)                # (N*H*W, k1_pad) f32

    const = dict(pipeline_mode=pl.Buffered(buffer_count=1))   # resident weights/shifts
    in_specs = [
        pl.BlockSpec((bb * hw, k1_pad), lambda i: (i, 0)),
        pl.BlockSpec(w1f.shape, lambda i: (0, 0), **const),
        pl.BlockSpec(w_taps[0].shape, lambda i: (0, 0, 0), **const),
        pl.BlockSpec(w_taps[1].shape, lambda i: (0, 0, 0), **const),
        pl.BlockSpec(w_taps[2].shape, lambda i: (0, 0, 0), **const),
        pl.BlockSpec(shifts[0].shape, lambda i: (0, 0), **const),
        pl.BlockSpec(shifts[1].shape, lambda i: (0, 0), **const),
        pl.BlockSpec(shifts[2].shape, lambda i: (0, 0), **const),
        pl.BlockSpec(shifts[3].shape, lambda i: (0, 0), **const),
    ]

    # Padded-activation VMEM scratch for layers 2-4 (input spatial h/2, h/4, h/8).
    scratch = [
        pltpu.VMEM((bb, h // 2 + 2, w // 2 + 2, chans[1]), jnp.float32),
        pltpu.VMEM((bb, h // 4 + 2, w // 4 + 2, chans[2]), jnp.float32),
        pltpu.VMEM((bb, h // 8 + 2, w // 8 + 2, chans[3]), jnp.float32),
    ]

    out = pl.pallas_call(
        _convnet4_kernel,
        out_shape=jax.ShapeDtypeStruct((n, hf * wf, cz), jnp.float32),
        grid_spec=pltpu.PrefetchScalarGridSpec(
            num_scalar_prefetch=0,
            grid=grid,
            in_specs=in_specs,
            out_specs=pl.BlockSpec((bb, hf * wf, cz), lambda i: (i, 0, 0)),
            scratch_shapes=scratch,
        ),
        compiler_params=pltpu.CompilerParams(
            dimension_semantics=("parallel",)),           # feeds both TCs on v7x
    )(pat1, w1f, *w_taps, *shifts)

    return out.reshape(n, hf, wf, cz)


def init_params(key, x_dim=3, hid_dim=64, z_dim=640, eps=1e-5):
    """Deterministic synthetic parameters for the 4 conv blocks.

    Returns list of (w_HWIO, scale_(1,Cout), shift_(1,Cout)) with conv bias and
    BatchNorm (gamma, beta, running_mean, running_var) folded into scale/shift.
    """
    chans = [x_dim, hid_dim, hid_dim, hid_dim, z_dim]
    params = []
    for i in range(4):
        cin, cout = chans[i], chans[i + 1]
        key, kw, kb, kg, kbt, km, kv = jax.random.split(key, 7)
        fan_in = cin * 9
        w = jax.random.normal(kw, (3, 3, cin, cout), jnp.float32) / jnp.sqrt(
            jnp.float32(fan_in))
        b = 0.1 * jax.random.normal(kb, (cout,), jnp.float32)
        gamma = 1.0 + 0.1 * jax.random.normal(kg, (cout,), jnp.float32)
        beta = 0.1 * jax.random.normal(kbt, (cout,), jnp.float32)
        mean = 0.1 * jax.random.normal(km, (cout,), jnp.float32)
        var = 1.0 + 0.5 * jax.random.uniform(kv, (cout,), jnp.float32)
        scale = gamma / jnp.sqrt(var + eps)
        shift = (b - mean) * scale + beta
        params.append((w, scale.reshape(1, cout), shift.reshape(1, cout)))
    return params


def convnet4_forward(x_nchw, params):
    """ConvNet4.forward: NCHW in (PyTorch convention), NCHW out."""
    x = jnp.transpose(x_nchw, (0, 2, 3, 1))              # NCHW -> NHWC
    y = _convnet4_pallas(x, params)                      # (N, Hf, Wf, Cz)
    return jnp.transpose(y, (0, 3, 1, 2))                # NHWC -> NCHW


def convnet4_reference(x_nchw, params):
    """Pure-JAX f32 reference (same eval-mode BN folding) for verification."""
    x = x_nchw
    for w, scale, shift in params:
        y = lax.conv_general_dilated(
            x, w, window_strides=(1, 1), padding=((1, 1), (1, 1)),
            dimension_numbers=("NCHW", "HWIO", "NCHW"),
            precision=lax.Precision.HIGHEST)
        y = y * scale.reshape(1, -1, 1, 1) + shift.reshape(1, -1, 1, 1)
        y = jnp.maximum(y, 0.0)
        x = lax.reduce_window(y, -jnp.inf, lax.max,
                              (1, 1, 2, 2), (1, 1, 2, 2), "VALID")
    return x


if __name__ == "__main__":
    key = jax.random.PRNGKey(0)
    kx, kp = jax.random.split(key)

    # Small shapes consistent with the module: x_dim=3 input channels, 16x16 spatial.
    # Batch 4 -> bb=2 images per grid step, grid length 2 (exercises batch blocking).
    x = jax.random.normal(kx, (4, 3, 16, 16), jnp.float32)   # NCHW, like PyTorch
    params = init_params(kp, x_dim=3, hid_dim=64, z_dim=640)

    fwd = jax.jit(convnet4_forward)
    out = jax.block_until_ready(fwd(x, params))

    assert out.shape == (4, 640, 1, 1), out.shape
    assert bool(jnp.all(jnp.isfinite(out)))
    ref = convnet4_reference(x, params)
    # Tolerance accounts for bf16 MXU operands (f32 accumulation) vs f32 reference.
    assert jnp.allclose(out, ref, rtol=4e-2, atol=4e-2), float(
        jnp.max(jnp.abs(out - ref)))

    print("KERNEL_OK")
</pallas_src>

<mosaic_0001>
module attributes {stable_mosaic.version = 11 : i64} {
  func.func @_convnet4_kernel(%arg0: i32, %arg1: memref<512x32xf32, #tpu.memory_space<vmem>>, %arg2: memref<32x64xbf16, #tpu.memory_space<vmem>>, %arg3: memref<9x64x64xbf16, #tpu.memory_space<vmem>>, %arg4: memref<9x64x64xbf16, #tpu.memory_space<vmem>>, %arg5: memref<9x64x640xbf16, #tpu.memory_space<vmem>>, %arg6: memref<1x64xf32, #tpu.memory_space<vmem>>, %arg7: memref<1x64xf32, #tpu.memory_space<vmem>>, %arg8: memref<1x64xf32, #tpu.memory_space<vmem>>, %arg9: memref<1x640xf32, #tpu.memory_space<vmem>>, %arg10: memref<2x1x640xf32, #tpu.memory_space<vmem>>, %arg11: memref<2x10x10x64xf32, #tpu.memory_space<vmem>>, %arg12: memref<2x6x6x64xf32, #tpu.memory_space<vmem>>, %arg13: memref<2x4x4x64xf32, #tpu.memory_space<vmem>>) attributes {dimension_semantics = [#tpu.dimension_semantics<parallel>], iteration_bounds = array<i64: 2>, scalar_prefetch = 0 : i64, scratch_operands = 3 : i64, tpu.core_type = #tpu.core_type<tc>, window_params = [{transform_indices = @transform_0, window_bounds = array<i64: 512, 32>}, {pipeline_mode = #tpu.pipeline_mode<synchronous>, transform_indices = @transform_1, window_bounds = array<i64: 32, 64>}, {pipeline_mode = #tpu.pipeline_mode<synchronous>, transform_indices = @transform_2, window_bounds = array<i64: 9, 64, 64>}, {pipeline_mode = #tpu.pipeline_mode<synchronous>, transform_indices = @transform_3, window_bounds = array<i64: 9, 64, 64>}, {pipeline_mode = #tpu.pipeline_mode<synchronous>, transform_indices = @transform_4, window_bounds = array<i64: 9, 64, 640>}, {pipeline_mode = #tpu.pipeline_mode<synchronous>, transform_indices = @transform_5, window_bounds = array<i64: 1, 64>}, {pipeline_mode = #tpu.pipeline_mode<synchronous>, transform_indices = @transform_6, window_bounds = array<i64: 1, 64>}, {pipeline_mode = #tpu.pipeline_mode<synchronous>, transform_indices = @transform_7, window_bounds = array<i64: 1, 64>}, {pipeline_mode = #tpu.pipeline_mode<synchronous>, transform_indices = @transform_8, window_bounds = array<i64: 1, 640>}, {transform_indices = @transform_9, window_bounds = array<i64: 2, 1, 640>}]} {
    %c0 = arith.constant 0 : index
    %c0_0 = arith.constant 0 : index
    %0 = vector.load %arg1[%c0, %c0_0] : memref<512x32xf32, #tpu.memory_space<vmem>>, vector<512x32xf32>
    %1 = arith.truncf %0 : vector<512x32xf32> to vector<512x32xbf16>
    %c0_1 = arith.constant 0 : index
    %c0_2 = arith.constant 0 : index
    %2 = vector.load %arg2[%c0_1, %c0_2] : memref<32x64xbf16, #tpu.memory_space<vmem>>, vector<32x64xbf16>
    %cst = arith.constant dense<0.000000e+00> : vector<512x64xf32>
    %3 = tpu.matmul %1, %2, %cst {dimension_numbers = #tpu.dot_dimension_numbers<[1], [0], [0], [1], [0, 0, 1, 1], [], []>} : vector<512x32xbf16>, vector<32x64xbf16>, vector<512x64xf32> -> vector<512x64xf32>
    %c0_3 = arith.constant 0 : index
    %c0_4 = arith.constant 0 : index
    %4 = vector.load %arg6[%c0_3, %c0_4] : memref<1x64xf32, #tpu.memory_space<vmem>>, vector<1x64xf32>
    %5 = vector.broadcast %4 : vector<1x64xf32> to vector<512x64xf32>
    %6 = arith.addf %3, %5 : vector<512x64xf32>
    %cst_5 = arith.constant 0.000000e+00 : f32
    %7 = vector.broadcast %cst_5 : f32 to vector<512x64xf32>
    %8 = arith.maximumf %6, %7 : vector<512x64xf32>
    %9 = vector.shape_cast %8 : vector<512x64xf32> to vector<16x2x16x64xf32>
    %10 = vector.extract_strided_slice %9 {offsets = [0, 0, 0, 0], sizes = [16, 1, 16, 64], strides = [1, 1, 1, 1]} : vector<16x2x16x64xf32> to vector<16x1x16x64xf32>
    %11 = vector.shape_cast %10 : vector<16x1x16x64xf32> to vector<16x16x64xf32>
    %12 = vector.extract_strided_slice %9 {offsets = [0, 1, 0, 0], sizes = [16, 1, 16, 64], strides = [1, 1, 1, 1]} : vector<16x2x16x64xf32> to vector<16x1x16x64xf32>
    %13 = vector.shape_cast %12 : vector<16x1x16x64xf32> to vector<16x16x64xf32>
    %14 = arith.maximumf %11, %13 : vector<16x16x64xf32>
    %15 = vector.shape_cast %14 : vector<16x16x64xf32> to vector<16x8x2x64xf32>
    %16 = vector.extract_strided_slice %15 {offsets = [0, 0, 0, 0], sizes = [16, 8, 1, 64], strides = [1, 1, 1, 1]} : vector<16x8x2x64xf32> to vector<16x8x1x64xf32>
    %17 = vector.shape_cast %16 : vector<16x8x1x64xf32> to vector<16x8x64xf32>
    %18 = vector.extract_strided_slice %15 {offsets = [0, 0, 1, 0], sizes = [16, 8, 1, 64], strides = [1, 1, 1, 1]} : vector<16x8x2x64xf32> to vector<16x8x1x64xf32>
    %19 = vector.shape_cast %18 : vector<16x8x1x64xf32> to vector<16x8x64xf32>
    %20 = arith.maximumf %17, %19 : vector<16x8x64xf32>
    %21 = vector.shape_cast %20 : vector<16x8x64xf32> to vector<2x8x8x64xf32>
    %cst_6 = arith.constant 0.000000e+00 : f32
    %22 = vector.broadcast %cst_6 : f32 to vector<2x1x10x64xf32>
    %c0_7 = arith.constant 0 : index
    %c0_8 = arith.constant 0 : index
    %c0_9 = arith.constant 0 : index
    %c0_10 = arith.constant 0 : index
    %23 = vector.load %arg11[%c0_7, %c0_8, %c0_9, %c0_10] : memref<2x10x10x64xf32, #tpu.memory_space<vmem>>, vector<2x1x10x64xf32>
    tpu.vector_store %arg11[%c0_7, %c0_8, %c0_9, %c0_10], %22 {strides = array<i32>} : memref<2x10x10x64xf32, #tpu.memory_space<vmem>>, vector<2x1x10x64xf32>,
    %cst_11 = arith.constant 0.000000e+00 : f32
    %24 = vector.broadcast %cst_11 : f32 to vector<2x1x10x64xf32>
    %c0_12 = arith.constant 0 : index
    %c9 = arith.constant 9 : index
    %c0_13 = arith.constant 0 : index
    %c0_14 = arith.constant 0 : index
    %25 = vector.load %arg11[%c0_12, %c9, %c0_13, %c0_14] : memref<2x10x10x64xf32, #tpu.memory_space<vmem>>, vector<2x1x10x64xf32>
    tpu.vector_store %arg11[%c0_12, %c9, %c0_13, %c0_14], %24 {strides = array<i32>} : memref<2x10x10x64xf32, #tpu.memory_space<vmem>>, vector<2x1x10x64xf32>,
    %cst_15 = arith.constant 0.000000e+00 : f32
    %26 = vector.broadcast %cst_15 : f32 to vector<2x8x1x64xf32>
    %c0_16 = arith.constant 0 : index
    %c1 = arith.constant 1 : index
    %c0_17 = arith.constant 0 : index
    %c0_18 = arith.constant 0 : index
    %27 = vector.load %arg11[%c0_16, %c1, %c0_17, %c0_18] : memref<2x10x10x64xf32, #tpu.memory_space<vmem>>, vector<2x8x1x64xf32>
    tpu.vector_store %arg11[%c0_16, %c1, %c0_17, %c0_18], %26 {strides = array<i32>} : memref<2x10x10x64xf32, #tpu.memory_space<vmem>>, vector<2x8x1x64xf32>,
    %cst_19 = arith.constant 0.000000e+00 : f32
    %28 = vector.broadcast %cst_19 : f32 to vector<2x8x1x64xf32>
    %c0_20 = arith.constant 0 : index
    %c1_21 = arith.constant 1 : index
    %c9_22 = arith.constant 9 : index
    %c0_23 = arith.constant 0 : index
    %29 = vector.load %arg11[%c0_20, %c1_21, %c9_22, %c0_23] : memref<2x10x10x64xf32, #tpu.memory_space<vmem>>, vector<2x8x1x64xf32>
    tpu.vector_store %arg11[%c0_20, %c1_21, %c9_22, %c0_23], %28 {strides = array<i32>} : memref<2x10x10x64xf32, #tpu.memory_space<vmem>>, vector<2x8x1x64xf32>,
    %c0_24 = arith.constant 0 : index
    %c1_25 = arith.constant 1 : index
    %c1_26 = arith.constant 1 : index
    %c0_27 = arith.constant 0 : index
    %30 = vector.load %arg11[%c0_24, %c1_25, %c1_26, %c0_27] : memref<2x10x10x64xf32, #tpu.memory_space<vmem>>, vector<2x8x8x64xf32>
    tpu.vector_store %arg11[%c0_24, %c1_25, %c1_26, %c0_27], %21 {strides = array<i32>} : memref<2x10x10x64xf32, #tpu.memory_space<vmem>>, vector<2x8x8x64xf32>,
    %c0_28 = arith.constant 0 : index
    %c0_29 = arith.constant 0 : index
    %c0_30 = arith.constant 0 : index
    %c0_31 = arith.constant 0 : index
    %31 = vector.load %arg11[%c0_28, %c0_29, %c0_30, %c0_31] : memref<2x10x10x64xf32, #tpu.memory_space<vmem>>, vector<2x8x8x64xf32>
    %32 = vector.shape_cast %31 : vector<2x8x8x64xf32> to vector<128x64xf32>
    %33 = arith.truncf %32 : vector<128x64xf32> to vector<128x64xbf16>
    %c0_32 = arith.constant 0 : index
    %c0_33 = arith.constant 0 : index
    %c0_34 = arith.constant 0 : index
    %34 = vector.load %arg3[%c0_32, %c0_33, %c0_34] : memref<9x64x64xbf16, #tpu.memory_space<vmem>>, vector<1x64x64xbf16>
    %35 = vector.shape_cast %34 : vector<1x64x64xbf16> to vector<64x64xbf16>
    %cst_35 = arith.constant dense<0.000000e+00> : vector<128x64xf32>
    %36 = tpu.matmul %33, %35, %cst_35 {dimension_numbers = #tpu.dot_dimension_numbers<[1], [0], [0], [1], [0, 0, 1, 1], [], []>} : vector<128x64xbf16>, vector<64x64xbf16>, vector<128x64xf32> -> vector<128x64xf32>
    %c0_36 = arith.constant 0 : index
    %c0_37 = arith.constant 0 : index
    %c1_38 = arith.constant 1 : index
    %c0_39 = arith.constant 0 : index
    %37 = vector.load %arg11[%c0_36, %c0_37, %c1_38, %c0_39] : memref<2x10x10x64xf32, #tpu.memory_space<vmem>>, vector<2x8x8x64xf32>
    %38 = vector.shape_cast %37 : vector<2x8x8x64xf32> to vector<128x64xf32>
    %39 = arith.truncf %38 : vector<128x64xf32> to vector<128x64xbf16>
    %c1_40 = arith.constant 1 : index
    %c0_41 = arith.constant 0 : index
    %c0_42 = arith.constant 0 : index
    %40 = vector.load %arg3[%c1_40, %c0_41, %c0_42] : memref<9x64x64xbf16, #tpu.memory_space<vmem>>, vector<1x64x64xbf16>
    %41 = vector.shape_cast %40 : vector<1x64x64xbf16> to vector<64x64xbf16>
    %cst_43 = arith.constant dense<0.000000e+00> : vector<128x64xf32>
    %42 = tpu.matmul %39, %41, %cst_43 {dimension_numbers = #tpu.dot_dimension_numbers<[1], [0], [0], [1], [0, 0, 1, 1], [], []>} : vector<128x64xbf16>, vector<64x64xbf16>, vector<128x64xf32> -> vector<128x64xf32>
    %43 = arith.addf %36, %42 : vector<128x64xf32>
    %c0_44 = arith.constant 0 : index
    %c0_45 = arith.constant 0 : index
    %c2 = arith.constant 2 : index
    %c0_46 = arith.constant 0 : index
    %44 = vector.load %arg11[%c0_44, %c0_45, %c2, %c0_46] : memref<2x10x10x64xf32, #tpu.memory_space<vmem>>, vector<2x8x8x64xf32>
    %45 = vector.shape_cast %44 : vector<2x8x8x64xf32> to vector<128x64xf32>
    %46 = arith.truncf %45 : vector<128x64xf32> to vector<128x64xbf16>
    %c2_47 = arith.constant 2 : index
    %c0_48 = arith.constant 0 : index
    %c0_49 = arith.constant 0 : index
    %47 = vector.load %arg3[%c2_47, %c0_48, %c0_49] : memref<9x64x64xbf16, #tpu.memory_space<vmem>>, vector<1x64x64xbf16>
    %48 = vector.shape_cast %47 : vector<1x64x64xbf16> to vector<64x64xbf16>
    %cst_50 = arith.constant dense<0.000000e+00> : vector<128x64xf32>
    %49 = tpu.matmul %46, %48, %cst_50 {dimension_numbers = #tpu.dot_dimension_numbers<[1], [0], [0], [1], [0, 0, 1, 1], [], []>} : vector<128x64xbf16>, vector<64x64xbf16>, vector<128x64xf32> -> vector<128x64xf32>
    %50 = arith.addf %43, %49 : vector<128x64xf32>
    %c0_51 = arith.constant 0 : index
    %c1_52 = arith.constant 1 : index
    %c0_53 = arith.constant 0 : index
    %c0_54 = arith.constant 0 : index
    %51 = vector.load %arg11[%c0_51, %c1_52, %c0_53, %c0_54] : memref<2x10x10x64xf32, #tpu.memory_space<vmem>>, vector<2x8x8x64xf32>
    %52 = vector.shape_cast %51 : vector<2x8x8x64xf32> to vector<128x64xf32>
    %53 = arith.truncf %52 : vector<128x64xf32> to vector<128x64xbf16>
    %c3 = arith.constant 3 : index
    %c0_55 = arith.constant 0 : index
    %c0_56 = arith.constant 0 : index
    %54 = vector.load %arg3[%c3, %c0_55, %c0_56] : memref<9x64x64xbf16, #tpu.memory_space<vmem>>, vector<1x64x64xbf16>
    %55 = vector.shape_cast %54 : vector<1x64x64xbf16> to vector<64x64xbf16>
    %cst_57 = arith.constant dense<0.000000e+00> : vector<128x64xf32>
    %56 = tpu.matmul %53, %55, %cst_57 {dimension_numbers = #tpu.dot_dimension_numbers<[1], [0], [0], [1], [0, 0, 1, 1], [], []>} : vector<128x64xbf16>, vector<64x64xbf16>, vector<128x64xf32> -> vector<128x64xf32>
    %57 = arith.addf %50, %56 : vector<128x64xf32>
    %c0_58 = arith.constant 0 : index
    %c1_59 = arith.constant 1 : index
    %c1_60 = arith.constant 1 : index
    %c0_61 = arith.constant 0 : index
    %58 = vector.load %arg11[%c0_58, %c1_59, %c1_60, %c0_61] : memref<2x10x10x64xf32, #tpu.memory_space<vmem>>, vector<2x8x8x64xf32>
    %59 = vector.shape_cast %58 : vector<2x8x8x64xf32> to vector<128x64xf32>
    %60 = arith.truncf %59 : vector<128x64xf32> to vector<128x64xbf16>
    %c4 = arith.constant 4 : index
    %c0_62 = arith.constant 0 : index
    %c0_63 = arith.constant 0 : index
    %61 = vector.load %arg3[%c4, %c0_62, %c0_63] : memref<9x64x64xbf16, #tpu.memory_space<vmem>>, vector<1x64x64xbf16>
    %62 = vector.shape_cast %61 : vector<1x64x64xbf16> to vector<64x64xbf16>
    %cst_64 = arith.constant dense<0.000000e+00> : vector<128x64xf32>
    %63 = tpu.matmul %60, %62, %cst_64 {dimension_numbers = #tpu.dot_dimension_numbers<[1], [0], [0], [1], [0, 0, 1, 1], [], []>} : vector<128x64xbf16>, vector<64x64xbf16>, vector<128x64xf32> -> vector<128x64xf32>
    %64 = arith.addf %57, %63 : vector<128x64xf32>
    %c0_65 = arith.constant 0 : index
    %c1_66 = arith.constant 1 : index
    %c2_67 = arith.constant 2 : index
    %c0_68 = arith.constant 0 : index
    %65 = vector.load %arg11[%c0_65, %c1_66, %c2_67, %c0_68] : memref<2x10x10x64xf32, #tpu.memory_space<vmem>>, vector<2x8x8x64xf32>
    %66 = vector.shape_cast %65 : vector<2x8x8x64xf32> to vector<128x64xf32>
    %67 = arith.truncf %66 : vector<128x64xf32> to vector<128x64xbf16>
    %c5 = arith.constant 5 : index
    %c0_69 = arith.constant 0 : index
    %c0_70 = arith.constant 0 : index
    %68 = vector.load %arg3[%c5, %c0_69, %c0_70] : memref<9x64x64xbf16, #tpu.memory_space<vmem>>, vector<1x64x64xbf16>
    %69 = vector.shape_cast %68 : vector<1x64x64xbf16> to vector<64x64xbf16>
    %cst_71 = arith.constant dense<0.000000e+00> : vector<128x64xf32>
    %70 = tpu.matmul %67, %69, %cst_71 {dimension_numbers = #tpu.dot_dimension_numbers<[1], [0], [0], [1], [0, 0, 1, 1], [], []>} : vector<128x64xbf16>, vector<64x64xbf16>, vector<128x64xf32> -> vector<128x64xf32>
    %71 = arith.addf %64, %70 : vector<128x64xf32>
    %c0_72 = arith.constant 0 : index
    %c2_73 = arith.constant 2 : index
    %c0_74 = arith.constant 0 : index
    %c0_75 = arith.constant 0 : index
    %72 = vector.load %arg11[%c0_72, %c2_73, %c0_74, %c0_75] : memref<2x10x10x64xf32, #tpu.memory_space<vmem>>, vector<2x8x8x64xf32>
    %73 = vector.shape_cast %72 : vector<2x8x8x64xf32> to vector<128x64xf32>
    %74 = arith.truncf %73 : vector<128x64xf32> to vector<128x64xbf16>
    %c6 = arith.constant 6 : index
    %c0_76 = arith.constant 0 : index
    %c0_77 = arith.constant 0 : index
    %75 = vector.load %arg3[%c6, %c0_76, %c0_77] : memref<9x64x64xbf16, #tpu.memory_space<vmem>>, vector<1x64x64xbf16>
    %76 = vector.shape_cast %75 : vector<1x64x64xbf16> to vector<64x64xbf16>
    %cst_78 = arith.constant dense<0.000000e+00> : vector<128x64xf32>
    %77 = tpu.matmul %74, %76, %cst_78 {dimension_numbers = #tpu.dot_dimension_numbers<[1], [0], [0], [1], [0, 0, 1, 1], [], []>} : vector<128x64xbf16>, vector<64x64xbf16>, vector<128x64xf32> -> vector<128x64xf32>
    %78 = arith.addf %71, %77 : vector<128x64xf32>
    %c0_79 = arith.constant 0 : index
    %c2_80 = arith.constant 2 : index
    %c1_81 = arith.constant 1 : index
    %c0_82 = arith.constant 0 : index
    %79 = vector.load %arg11[%c0_79, %c2_80, %c1_81, %c0_82] : memref<2x10x10x64xf32, #tpu.memory_space<vmem>>, vector<2x8x8x64xf32>
    %80 = vector.shape_cast %79 : vector<2x8x8x64xf32> to vector<128x64xf32>
    %81 = arith.truncf %80 : vector<128x64xf32> to vector<128x64xbf16>
    %c7 = arith.constant 7 : index
    %c0_83 = arith.constant 0 : index
    %c0_84 = arith.constant 0 : index
    %82 = vector.load %arg3[%c7, %c0_83, %c0_84] : memref<9x64x64xbf16, #tpu.memory_space<vmem>>, vector<1x64x64xbf16>
    %83 = vector.shape_cast %82 : vector<1x64x64xbf16> to vector<64x64xbf16>
    %cst_85 = arith.constant dense<0.000000e+00> : vector<128x64xf32>
    %84 = tpu.matmul %81, %83, %cst_85 {dimension_numbers = #tpu.dot_dimension_numbers<[1], [0], [0], [1], [0, 0, 1, 1], [], []>} : vector<128x64xbf16>, vector<64x64xbf16>, vector<128x64xf32> -> vector<128x64xf32>
    %85 = arith.addf %78, %84 : vector<128x64xf32>
    %c0_86 = arith.constant 0 : index
    %c2_87 = arith.constant 2 : index
    %c2_88 = arith.constant 2 : index
    %c0_89 = arith.constant 0 : index
    %86 = vector.load %arg11[%c0_86, %c2_87, %c2_88, %c0_89] : memref<2x10x10x64xf32, #tpu.memory_space<vmem>>, vector<2x8x8x64xf32>
    %87 = vector.shape_cast %86 : vector<2x8x8x64xf32> to vector<128x64xf32>
    %88 = arith.truncf %87 : vector<128x64xf32> to vector<128x64xbf16>
    %c8 = arith.constant 8 : index
    %c0_90 = arith.constant 0 : index
    %c0_91 = arith.constant 0 : index
    %89 = vector.load %arg3[%c8, %c0_90, %c0_91] : memref<9x64x64xbf16, #tpu.memory_space<vmem>>, vector<1x64x64xbf16>
    %90 = vector.shape_cast %89 : vector<1x64x64xbf16> to vector<64x64xbf16>
    %cst_92 = arith.constant dense<0.000000e+00> : vector<128x64xf32>
    %91 = tpu.matmul %88, %90, %cst_92 {dimension_numbers = #tpu.dot_dimension_numbers<[1], [0], [0], [1], [0, 0, 1, 1], [], []>} : vector<128x64xbf16>, vector<64x64xbf16>, vector<128x64xf32> -> vector<128x64xf32>
    %92 = arith.addf %85, %91 : vector<128x64xf32>
    %c0_93 = arith.constant 0 : index
    %c0_94 = arith.constant 0 : index
    %93 = vector.load %arg7[%c0_93, %c0_94] : memref<1x64xf32, #tpu.memory_space<vmem>>, vector<1x64xf32>
    %94 = vector.broadcast %93 : vector<1x64xf32> to vector<128x64xf32>
    %95 = arith.addf %92, %94 : vector<128x64xf32>
    %cst_95 = arith.constant 0.000000e+00 : f32
    %96 = vector.broadcast %cst_95 : f32 to vector<128x64xf32>
    %97 = arith.maximumf %95, %96 : vector<128x64xf32>
    %98 = vector.shape_cast %97 : vector<128x64xf32> to vector<8x2x8x64xf32>
    %99 = vector.extract_strided_slice %98 {offsets = [0, 0, 0, 0], sizes = [8, 1, 8, 64], strides = [1, 1, 1, 1]} : vector<8x2x8x64xf32> to vector<8x1x8x64xf32>
    %100 = vector.shape_cast %99 : vector<8x1x8x64xf32> to vector<8x8x64xf32>
    %101 = vector.extract_strided_slice %98 {offsets = [0, 1, 0, 0], sizes = [8, 1, 8, 64], strides = [1, 1, 1, 1]} : vector<8x2x8x64xf32> to vector<8x1x8x64xf32>
    %102 = vector.shape_cast %101 : vector<8x1x8x64xf32> to vector<8x8x64xf32>
    %103 = arith.maximumf %100, %102 : vector<8x8x64xf32>
    %104 = vector.shape_cast %103 : vector<8x8x64xf32> to vector<8x4x2x64xf32>
    %105 = vector.extract_strided_slice %104 {offsets = [0, 0, 0, 0], sizes = [8, 4, 1, 64], strides = [1, 1, 1, 1]} : vector<8x4x2x64xf32> to vector<8x4x1x64xf32>
    %106 = vector.shape_cast %105 : vector<8x4x1x64xf32> to vector<8x4x64xf32>
    %107 = vector.extract_strided_slice %104 {offsets = [0, 0, 1, 0], sizes = [8, 4, 1, 64], strides = [1, 1, 1, 1]} : vector<8x4x2x64xf32> to vector<8x4x1x64xf32>
    %108 = vector.shape_cast %107 : vector<8x4x1x64xf32> to vector<8x4x64xf32>
    %109 = arith.maximumf %106, %108 : vector<8x4x64xf32>
    %110 = vector.shape_cast %109 : vector<8x4x64xf32> to vector<2x4x4x64xf32>
    %cst_96 = arith.constant 0.000000e+00 : f32
    %111 = vector.broadcast %cst_96 : f32 to vector<2x1x6x64xf32>
    %c0_97 = arith.constant 0 : index
    %c0_98 = arith.constant 0 : index
    %c0_99 = arith.constant 0 : index
    %c0_100 = arith.constant 0 : index
    %112 = vector.load %arg12[%c0_97, %c0_98, %c0_99, %c0_100] : memref<2x6x6x64xf32, #tpu.memory_space<vmem>>, vector<2x1x6x64xf32>
    tpu.vector_store %arg12[%c0_97, %c0_98, %c0_99, %c0_100], %111 {strides = array<i32>} : memref<2x6x6x64xf32, #tpu.memory_space<vmem>>, vector<2x1x6x64xf32>,
    %cst_101 = arith.constant 0.000000e+00 : f32
    %113 = vector.broadcast %cst_101 : f32 to vector<2x1x6x64xf32>
    %c0_102 = arith.constant 0 : index
    %c5_103 = arith.constant 5 : index
    %c0_104 = arith.constant 0 : index
    %c0_105 = arith.constant 0 : index
    %114 = vector.load %arg12[%c0_102, %c5_103, %c0_104, %c0_105] : memref<2x6x6x64xf32, #tpu.memory_space<vmem>>, vector<2x1x6x64xf32>
    tpu.vector_store %arg12[%c0_102, %c5_103, %c0_104, %c0_105], %113 {strides = array<i32>} : memref<2x6x6x64xf32, #tpu.memory_space<vmem>>, vector<2x1x6x64xf32>,
    %cst_106 = arith.constant 0.000000e+00 : f32
    %115 = vector.broadcast %cst_106 : f32 to vector<2x4x1x64xf32>
    %c0_107 = arith.constant 0 : index
    %c1_108 = arith.constant 1 : index
    %c0_109 = arith.constant 0 : index
    %c0_110 = arith.constant 0 : index
    %116 = vector.load %arg12[%c0_107, %c1_108, %c0_109, %c0_110] : memref<2x6x6x64xf32, #tpu.memory_space<vmem>>, vector<2x4x1x64xf32>
    tpu.vector_store %arg12[%c0_107, %c1_108, %c0_109, %c0_110], %115 {strides = array<i32>} : memref<2x6x6x64xf32, #tpu.memory_space<vmem>>, vector<2x4x1x64xf32>,
    %cst_111 = arith.constant 0.000000e+00 : f32
    %117 = vector.broadcast %cst_111 : f32 to vector<2x4x1x64xf32>
    %c0_112 = arith.constant 0 : index
    %c1_113 = arith.constant 1 : index
    %c5_114 = arith.constant 5 : index
    %c0_115 = arith.constant 0 : index
    %118 = vector.load %arg12[%c0_112, %c1_113, %c5_114, %c0_115] : memref<2x6x6x64xf32, #tpu.memory_space<vmem>>, vector<2x4x1x64xf32>
    tpu.vector_store %arg12[%c0_112, %c1_113, %c5_114, %c0_115], %117 {strides = array<i32>} : memref<2x6x6x64xf32, #tpu.memory_space<vmem>>, vector<2x4x1x64xf32>,
    %c0_116 = arith.constant 0 : index
    %c1_117 = arith.constant 1 : index
    %c1_118 = arith.constant 1 : index
    %c0_119 = arith.constant 0 : index
    %119 = vector.load %arg12[%c0_116, %c1_117, %c1_118, %c0_119] : memref<2x6x6x64xf32, #tpu.memory_space<vmem>>, vector<2x4x4x64xf32>
    tpu.vector_store %arg12[%c0_116, %c1_117, %c1_118, %c0_119], %110 {strides = array<i32>} : memref<2x6x6x64xf32, #tpu.memory_space<vmem>>, vector<2x4x4x64xf32>,
    %c0_120 = arith.constant 0 : index
    %c0_121 = arith.constant 0 : index
    %c0_122 = arith.constant 0 : index
    %c0_123 = arith.constant 0 : index
    %120 = vector.load %arg12[%c0_120, %c0_121, %c0_122, %c0_123] : memref<2x6x6x64xf32, #tpu.memory_space<vmem>>, vector<2x4x4x64xf32>
    %121 = vector.shape_cast %120 : vector<2x4x4x64xf32> to vector<32x64xf32>
    %122 = arith.truncf %121 : vector<32x64xf32> to vector<32x64xbf16>
    %c0_124 = arith.constant 0 : index
    %c0_125 = arith.constant 0 : index
    %c0_126 = arith.constant 0 : index
    %123 = vector.load %arg4[%c0_124, %c0_125, %c0_126] : memref<9x64x64xbf16, #tpu.memory_space<vmem>>, vector<1x64x64xbf16>
    %124 = vector.shape_cast %123 : vector<1x64x64xbf16> to vector<64x64xbf16>
    %cst_127 = arith.constant dense<0.000000e+00> : vector<32x64xf32>
    %125 = tpu.matmul %122, %124, %cst_127 {dimension_numbers = #tpu.dot_dimension_numbers<[1], [0], [0], [1], [0, 0, 1, 1], [], []>} : vector<32x64xbf16>, vector<64x64xbf16>, vector<32x64xf32> -> vector<32x64xf32>
    %c0_128 = arith.constant 0 : index
    %c0_129 = arith.constant 0 : index
    %c1_130 = arith.constant 1 : index
    %c0_131 = arith.constant 0 : index
    %126 = vector.load %arg12[%c0_128, %c0_129, %c1_130, %c0_131] : memref<2x6x6x64xf32, #tpu.memory_space<vmem>>, vector<2x4x4x64xf32>
    %127 = vector.shape_cast %126 : vector<2x4x4x64xf32> to vector<32x64xf32>
    %128 = arith.truncf %127 : vector<32x64xf32> to vector<32x64xbf16>
    %c1_132 = arith.constant 1 : index
    %c0_133 = arith.constant 0 : index
    %c0_134 = arith.constant 0 : index
    %129 = vector.load %arg4[%c1_132, %c0_133, %c0_134] : memref<9x64x64xbf16, #tpu.memory_space<vmem>>, vector<1x64x64xbf16>
    %130 = vector.shape_cast %129 : vector<1x64x64xbf16> to vector<64x64xbf16>
    %cst_135 = arith.constant dense<0.000000e+00> : vector<32x64xf32>
    %131 = tpu.matmul %128, %130, %cst_135 {dimension_numbers = #tpu.dot_dimension_numbers<[1], [0], [0], [1], [0, 0, 1, 1], [], []>} : vector<32x64xbf16>, vector<64x64xbf16>, vector<32x64xf32> -> vector<32x64xf32>
    %132 = arith.addf %125, %131 : vector<32x64xf32>
    %c0_136 = arith.constant 0 : index
    %c0_137 = arith.constant 0 : index
    %c2_138 = arith.constant 2 : index
    %c0_139 = arith.constant 0 : index
    %133 = vector.load %arg12[%c0_136, %c0_137, %c2_138, %c0_139] : memref<2x6x6x64xf32, #tpu.memory_space<vmem>>, vector<2x4x4x64xf32>
    %134 = vector.shape_cast %133 : vector<2x4x4x64xf32> to vector<32x64xf32>
    %135 = arith.truncf %134 : vector<32x64xf32> to vector<32x64xbf16>
    %c2_140 = arith.constant 2 : index
    %c0_141 = arith.constant 0 : index
    %c0_142 = arith.constant 0 : index
    %136 = vector.load %arg4[%c2_140, %c0_141, %c0_142] : memref<9x64x64xbf16, #tpu.memory_space<vmem>>, vector<1x64x64xbf16>
    %137 = vector.shape_cast %136 : vector<1x64x64xbf16> to vector<64x64xbf16>
    %cst_143 = arith.constant dense<0.000000e+00> : vector<32x64xf32>
    %138 = tpu.matmul %135, %137, %cst_143 {dimension_numbers = #tpu.dot_dimension_numbers<[1], [0], [0], [1], [0, 0, 1, 1], [], []>} : vector<32x64xbf16>, vector<64x64xbf16>, vector<32x64xf32> -> vector<32x64xf32>
    %139 = arith.addf %132, %138 : vector<32x64xf32>
    %c0_144 = arith.constant 0 : index
    %c1_145 = arith.constant 1 : index
    %c0_146 = arith.constant 0 : index
    %c0_147 = arith.constant 0 : index
    %140 = vector.load %arg12[%c0_144, %c1_145, %c0_146, %c0_147] : memref<2x6x6x64xf32, #tpu.memory_space<vmem>>, vector<2x4x4x64xf32>
    %141 = vector.shape_cast %140 : vector<2x4x4x64xf32> to vector<32x64xf32>
    %142 = arith.truncf %141 : vector<32x64xf32> to vector<32x64xbf16>
    %c3_148 = arith.constant 3 : index
    %c0_149 = arith.constant 0 : index
    %c0_150 = arith.constant 0 : index
    %143 = vector.load %arg4[%c3_148, %c0_149, %c0_150] : memref<9x64x64xbf16, #tpu.memory_space<vmem>>, vector<1x64x64xbf16>
    %144 = vector.shape_cast %143 : vector<1x64x64xbf16> to vector<64x64xbf16>
    %cst_151 = arith.constant dense<0.000000e+00> : vector<32x64xf32>
    %145 = tpu.matmul %142, %144, %cst_151 {dimension_numbers = #tpu.dot_dimension_numbers<[1], [0], [0], [1], [0, 0, 1, 1], [], []>} : vector<32x64xbf16>, vector<64x64xbf16>, vector<32x64xf32> -> vector<32x64xf32>
    %146 = arith.addf %139, %145 : vector<32x64xf32>
    %c0_152 = arith.constant 0 : index
    %c1_153 = arith.constant 1 : index
    %c1_154 = arith.constant 1 : index
    %c0_155 = arith.constant 0 : index
    %147 = vector.load %arg12[%c0_152, %c1_153, %c1_154, %c0_155] : memref<2x6x6x64xf32, #tpu.memory_space<vmem>>, vector<2x4x4x64xf32>
    %148 = vector.shape_cast %147 : vector<2x4x4x64xf32> to vector<32x64xf32>
    %149 = arith.truncf %148 : vector<32x64xf32> to vector<32x64xbf16>
    %c4_156 = arith.constant 4 : index
    %c0_157 = arith.constant 0 : index
    %c0_158 = arith.constant 0 : index
    %150 = vector.load %arg4[%c4_156, %c0_157, %c0_158] : memref<9x64x64xbf16, #tpu.memory_space<vmem>>, vector<1x64x64xbf16>
    %151 = vector.shape_cast %150 : vector<1x64x64xbf16> to vector<64x64xbf16>
    %cst_159 = arith.constant dense<0.000000e+00> : vector<32x64xf32>
    %152 = tpu.matmul %149, %151, %cst_159 {dimension_numbers = #tpu.dot_dimension_numbers<[1], [0], [0], [1], [0, 0, 1, 1], [], []>} : vector<32x64xbf16>, vector<64x64xbf16>, vector<32x64xf32> -> vector<32x64xf32>
    %153 = arith.addf %146, %152 : vector<32x64xf32>
    %c0_160 = arith.constant 0 : index
    %c1_161 = arith.constant 1 : index
    %c2_162 = arith.constant 2 : index
    %c0_163 = arith.constant 0 : index
    %154 = vector.load %arg12[%c0_160, %c1_161, %c2_162, %c0_163] : memref<2x6x6x64xf32, #tpu.memory_space<vmem>>, vector<2x4x4x64xf32>
    %155 = vector.shape_cast %154 : vector<2x4x4x64xf32> to vector<32x64xf32>
    %156 = arith.truncf %155 : vector<32x64xf32> to vector<32x64xbf16>
    %c5_164 = arith.constant 5 : index
    %c0_165 = arith.constant 0 : index
    %c0_166 = arith.constant 0 : index
    %157 = vector.load %arg4[%c5_164, %c0_165, %c0_166] : memref<9x64x64xbf16, #tpu.memory_space<vmem>>, vector<1x64x64xbf16>
    %158 = vector.shape_cast %157 : vector<1x64x64xbf16> to vector<64x64xbf16>
    %cst_167 = arith.constant dense<0.000000e+00> : vector<32x64xf32>
    %159 = tpu.matmul %156, %158, %cst_167 {dimension_numbers = #tpu.dot_dimension_numbers<[1], [0], [0], [1], [0, 0, 1, 1], [], []>} : vector<32x64xbf16>, vector<64x64xbf16>, vector<32x64xf32> -> vector<32x64xf32>
    %160 = arith.addf %153, %159 : vector<32x64xf32>
    %c0_168 = arith.constant 0 : index
    %c2_169 = arith.constant 2 : index
    %c0_170 = arith.constant 0 : index
    %c0_171 = arith.constant 0 : index
    %161 = vector.load %arg12[%c0_168, %c2_169, %c0_170, %c0_171] : memref<2x6x6x64xf32, #tpu.memory_space<vmem>>, vector<2x4x4x64xf32>
    %162 = vector.shape_cast %161 : vector<2x4x4x64xf32> to vector<32x64xf32>
    %163 = arith.truncf %162 : vector<32x64xf32> to vector<32x64xbf16>
    %c6_172 = arith.constant 6 : index
    %c0_173 = arith.constant 0 : index
    %c0_174 = arith.constant 0 : index
    %164 = vector.load %arg4[%c6_172, %c0_173, %c0_174] : memref<9x64x64xbf16, #tpu.memory_space<vmem>>, vector<1x64x64xbf16>
    %165 = vector.shape_cast %164 : vector<1x64x64xbf16> to vector<64x64xbf16>
    %cst_175 = arith.constant dense<0.000000e+00> : vector<32x64xf32>
    %166 = tpu.matmul %163, %165, %cst_175 {dimension_numbers = #tpu.dot_dimension_numbers<[1], [0], [0], [1], [0, 0, 1, 1], [], []>} : vector<32x64xbf16>, vector<64x64xbf16>, vector<32x64xf32> -> vector<32x64xf32>
    %167 = arith.addf %160, %166 : vector<32x64xf32>
    %c0_176 = arith.constant 0 : index
    %c2_177 = arith.constant 2 : index
    %c1_178 = arith.constant 1 : index
    %c0_179 = arith.constant 0 : index
    %168 = vector.load %arg12[%c0_176, %c2_177, %c1_178, %c0_179] : memref<2x6x6x64xf32, #tpu.memory_space<vmem>>, vector<2x4x4x64xf32>
    %169 = vector.shape_cast %168 : vector<2x4x4x64xf32> to vector<32x64xf32>
    %170 = arith.truncf %169 : vector<32x64xf32> to vector<32x64xbf16>
    %c7_180 = arith.constant 7 : index
    %c0_181 = arith.constant 0 : index
    %c0_182 = arith.constant 0 : index
    %171 = vector.load %arg4[%c7_180, %c0_181, %c0_182] : memref<9x64x64xbf16, #tpu.memory_space<vmem>>, vector<1x64x64xbf16>
    %172 = vector.shape_cast %171 : vector<1x64x64xbf16> to vector<64x64xbf16>
    %cst_183 = arith.constant dense<0.000000e+00> : vector<32x64xf32>
    %173 = tpu.matmul %170, %172, %cst_183 {dimension_numbers = #tpu.dot_dimension_numbers<[1], [0], [0], [1], [0, 0, 1, 1], [], []>} : vector<32x64xbf16>, vector<64x64xbf16>, vector<32x64xf32> -> vector<32x64xf32>
    %174 = arith.addf %167, %173 : vector<32x64xf32>
    %c0_184 = arith.constant 0 : index
    %c2_185 = arith.constant 2 : index
    %c2_186 = arith.constant 2 : index
    %c0_187 = arith.constant 0 : index
    %175 = vector.load %arg12[%c0_184, %c2_185, %c2_186, %c0_187] : memref<2x6x6x64xf32, #tpu.memory_space<vmem>>, vector<2x4x4x64xf32>
    %176 = vector.shape_cast %175 : vector<2x4x4x64xf32> to vector<32x64xf32>
    %177 = arith.truncf %176 : vector<32x64xf32> to vector<32x64xbf16>
    %c8_188 = arith.constant 8 : index
    %c0_189 = arith.constant 0 : index
    %c0_190 = arith.constant 0 : index
    %178 = vector.load %arg4[%c8_188, %c0_189, %c0_190] : memref<9x64x64xbf16, #tpu.memory_space<vmem>>, vector<1x64x64xbf16>
    %179 = vector.shape_cast %178 : vector<1x64x64xbf16> to vector<64x64xbf16>
    %cst_191 = arith.constant dense<0.000000e+00> : vector<32x64xf32>
    %180 = tpu.matmul %177, %179, %cst_191 {dimension_numbers = #tpu.dot_dimension_numbers<[1], [0], [0], [1], [0, 0, 1, 1], [], []>} : vector<32x64xbf16>, vector<64x64xbf16>, vector<32x64xf32> -> vector<32x64xf32>
    %181 = arith.addf %174, %180 : vector<32x64xf32>
    %c0_192 = arith.constant 0 : index
    %c0_193 = arith.constant 0 : index
    %182 = vector.load %arg8[%c0_192, %c0_193] : memref<1x64xf32, #tpu.memory_space<vmem>>, vector<1x64xf32>
    %183 = vector.broadcast %182 : vector<1x64xf32> to vector<32x64xf32>
    %184 = arith.addf %181, %183 : vector<32x64xf32>
    %cst_194 = arith.constant 0.000000e+00 : f32
    %185 = vector.broadcast %cst_194 : f32 to vector<32x64xf32>
    %186 = arith.maximumf %184, %185 : vector<32x64xf32>
    %187 = vector.shape_cast %186 : vector<32x64xf32> to vector<4x2x4x64xf32>
    %188 = vector.extract_strided_slice %187 {offsets = [0, 0, 0, 0], sizes = [4, 1, 4, 64], strides = [1, 1, 1, 1]} : vector<4x2x4x64xf32> to vector<4x1x4x64xf32>
    %189 = vector.shape_cast %188 : vector<4x1x4x64xf32> to vector<4x4x64xf32>
    %190 = vector.extract_strided_slice %187 {offsets = [0, 1, 0, 0], sizes = [4, 1, 4, 64], strides = [1, 1, 1, 1]} : vector<4x2x4x64xf32> to vector<4x1x4x64xf32>
    %191 = vector.shape_cast %190 : vector<4x1x4x64xf32> to vector<4x4x64xf32>
    %192 = arith.maximumf %189, %191 : vector<4x4x64xf32>
    %193 = vector.shape_cast %192 : vector<4x4x64xf32> to vector<4x2x2x64xf32>
    %194 = vector.extract_strided_slice %193 {offsets = [0, 0, 0, 0], sizes = [4, 2, 1, 64], strides = [1, 1, 1, 1]} : vector<4x2x2x64xf32> to vector<4x2x1x64xf32>
    %195 = vector.shape_cast %194 : vector<4x2x1x64xf32> to vector<4x2x64xf32>
    %196 = vector.extract_strided_slice %193 {offsets = [0, 0, 1, 0], sizes = [4, 2, 1, 64], strides = [1, 1, 1, 1]} : vector<4x2x2x64xf32> to vector<4x2x1x64xf32>
    %197 = vector.shape_cast %196 : vector<4x2x1x64xf32> to vector<4x2x64xf32>
    %198 = arith.maximumf %195, %197 : vector<4x2x64xf32>
    %199 = vector.shape_cast %198 : vector<4x2x64xf32> to vector<2x2x2x64xf32>
    %cst_195 = arith.constant 0.000000e+00 : f32
    %200 = vector.broadcast %cst_195 : f32 to vector<2x1x4x64xf32>
    %c0_196 = arith.constant 0 : index
    %c0_197 = arith.constant 0 : index
    %c0_198 = arith.constant 0 : index
    %c0_199 = arith.constant 0 : index
    %201 = vector.load %arg13[%c0_196, %c0_197, %c0_198, %c0_199] : memref<2x4x4x64xf32, #tpu.memory_space<vmem>>, vector<2x1x4x64xf32>
    tpu.vector_store %arg13[%c0_196, %c0_197, %c0_198, %c0_199], %200 {strides = array<i32>} : memref<2x4x4x64xf32, #tpu.memory_space<vmem>>, vector<2x1x4x64xf32>,
    %cst_200 = arith.constant 0.000000e+00 : f32
    %202 = vector.broadcast %cst_200 : f32 to vector<2x1x4x64xf32>
    %c0_201 = arith.constant 0 : index
    %c3_202 = arith.constant 3 : index
    %c0_203 = arith.constant 0 : index
    %c0_204 = arith.constant 0 : index
    %203 = vector.load %arg13[%c0_201, %c3_202, %c0_203, %c0_204] : memref<2x4x4x64xf32, #tpu.memory_space<vmem>>, vector<2x1x4x64xf32>
    tpu.vector_store %arg13[%c0_201, %c3_202, %c0_203, %c0_204], %202 {strides = array<i32>} : memref<2x4x4x64xf32, #tpu.memory_space<vmem>>, vector<2x1x4x64xf32>,
    %cst_205 = arith.constant 0.000000e+00 : f32
    %204 = vector.broadcast %cst_205 : f32 to vector<2x2x1x64xf32>
    %c0_206 = arith.constant 0 : index
    %c1_207 = arith.constant 1 : index
    %c0_208 = arith.constant 0 : index
    %c0_209 = arith.constant 0 : index
    %205 = vector.load %arg13[%c0_206, %c1_207, %c0_208, %c0_209] : memref<2x4x4x64xf32, #tpu.memory_space<vmem>>, vector<2x2x1x64xf32>
    tpu.vector_store %arg13[%c0_206, %c1_207, %c0_208, %c0_209], %204 {strides = array<i32>} : memref<2x4x4x64xf32, #tpu.memory_space<vmem>>, vector<2x2x1x64xf32>,
    %cst_210 = arith.constant 0.000000e+00 : f32
    %206 = vector.broadcast %cst_210 : f32 to vector<2x2x1x64xf32>
    %c0_211 = arith.constant 0 : index
    %c1_212 = arith.constant 1 : index
    %c3_213 = arith.constant 3 : index
    %c0_214 = arith.constant 0 : index
    %207 = vector.load %arg13[%c0_211, %c1_212, %c3_213, %c0_214] : memref<2x4x4x64xf32, #tpu.memory_space<vmem>>, vector<2x2x1x64xf32>
    tpu.vector_store %arg13[%c0_211, %c1_212, %c3_213, %c0_214], %206 {strides = array<i32>} : memref<2x4x4x64xf32, #tpu.memory_space<vmem>>, vector<2x2x1x64xf32>,
    %c0_215 = arith.constant 0 : index
    %c1_216 = arith.constant 1 : index
    %c1_217 = arith.constant 1 : index
    %c0_218 = arith.constant 0 : index
    %208 = vector.load %arg13[%c0_215, %c1_216, %c1_217, %c0_218] : memref<2x4x4x64xf32, #tpu.memory_space<vmem>>, vector<2x2x2x64xf32>
    tpu.vector_store %arg13[%c0_215, %c1_216, %c1_217, %c0_218], %199 {strides = array<i32>} : memref<2x4x4x64xf32, #tpu.memory_space<vmem>>, vector<2x2x2x64xf32>,
    %c0_219 = arith.constant 0 : index
    %c0_220 = arith.constant 0 : index
    %c0_221 = arith.constant 0 : index
    %c0_222 = arith.constant 0 : index
    %209 = vector.load %arg13[%c0_219, %c0_220, %c0_221, %c0_222] : memref<2x4x4x64xf32, #tpu.memory_space<vmem>>, vector<2x2x2x64xf32>
    %210 = vector.shape_cast %209 : vector<2x2x2x64xf32> to vector<8x64xf32>
    %211 = arith.truncf %210 : vector<8x64xf32> to vector<8x64xbf16>
    %c0_223 = arith.constant 0 : index
    %c0_224 = arith.constant 0 : index
    %c0_225 = arith.constant 0 : index
    %212 = vector.load %arg5[%c0_223, %c0_224, %c0_225] : memref<9x64x640xbf16, #tpu.memory_space<vmem>>, vector<1x64x640xbf16>
    %213 = vector.shape_cast %212 : vector<1x64x640xbf16> to vector<64x640xbf16>
    %cst_226 = arith.constant dense<0.000000e+00> : vector<8x640xf32>
    %214 = tpu.matmul %211, %213, %cst_226 {dimension_numbers = #tpu.dot_dimension_numbers<[1], [0], [0], [1], [0, 0, 1, 1], [], []>} : vector<8x64xbf16>, vector<64x640xbf16>, vector<8x640xf32> -> vector<8x640xf32>
    %c0_227 = arith.constant 0 : index
    %c0_228 = arith.constant 0 : index
    %c1_229 = arith.constant 1 : index
    %c0_230 = arith.constant 0 : index
    %215 = vector.load %arg13[%c0_227, %c0_228, %c1_229, %c0_230] : memref<2x4x4x64xf32, #tpu.memory_space<vmem>>, vector<2x2x2x64xf32>
    %216 = vector.shape_cast %215 : vector<2x2x2x64xf32> to vector<8x64xf32>
    %217 = arith.truncf %216 : vector<8x64xf32> to vector<8x64xbf16>
    %c1_231 = arith.constant 1 : index
    %c0_232 = arith.constant 0 : index
    %c0_233 = arith.constant 0 : index
    %218 = vector.load %arg5[%c1_231, %c0_232, %c0_233] : memref<9x64x640xbf16, #tpu.memory_space<vmem>>, vector<1x64x640xbf16>
    %219 = vector.shape_cast %218 : vector<1x64x640xbf16> to vector<64x640xbf16>
    %cst_234 = arith.constant dense<0.000000e+00> : vector<8x640xf32>
    %220 = tpu.matmul %217, %219, %cst_234 {dimension_numbers = #tpu.dot_dimension_numbers<[1], [0], [0], [1], [0, 0, 1, 1], [], []>} : vector<8x64xbf16>, vector<64x640xbf16>, vector<8x640xf32> -> vector<8x640xf32>
    %221 = arith.addf %214, %220 : vector<8x640xf32>
    %c0_235 = arith.constant 0 : index
    %c0_236 = arith.constant 0 : index
    %c2_237 = arith.constant 2 : index
    %c0_238 = arith.constant 0 : index
    %222 = vector.load %arg13[%c0_235, %c0_236, %c2_237, %c0_238] : memref<2x4x4x64xf32, #tpu.memory_space<vmem>>, vector<2x2x2x64xf32>
    %223 = vector.shape_cast %222 : vector<2x2x2x64xf32> to vector<8x64xf32>
    %224 = arith.truncf %223 : vector<8x64xf32> to vector<8x64xbf16>
    %c2_239 = arith.constant 2 : index
    %c0_240 = arith.constant 0 : index
    %c0_241 = arith.constant 0 : index
    %225 = vector.load %arg5[%c2_239, %c0_240, %c0_241] : memref<9x64x640xbf16, #tpu.memory_space<vmem>>, vector<1x64x640xbf16>
    %226 = vector.shape_cast %225 : vector<1x64x640xbf16> to vector<64x640xbf16>
    %cst_242 = arith.constant dense<0.000000e+00> : vector<8x640xf32>
    %227 = tpu.matmul %224, %226, %cst_242 {dimension_numbers = #tpu.dot_dimension_numbers<[1], [0], [0], [1], [0, 0, 1, 1], [], []>} : vector<8x64xbf16>, vector<64x640xbf16>, vector<8x640xf32> -> vector<8x640xf32>
    %228 = arith.addf %221, %227 : vector<8x640xf32>
    %c0_243 = arith.constant 0 : index
    %c1_244 = arith.constant 1 : index
    %c0_245 = arith.constant 0 : index
    %c0_246 = arith.constant 0 : index
    %229 = vector.load %arg13[%c0_243, %c1_244, %c0_245, %c0_246] : memref<2x4x4x64xf32, #tpu.memory_space<vmem>>, vector<2x2x2x64xf32>
    %230 = vector.shape_cast %229 : vector<2x2x2x64xf32> to vector<8x64xf32>
    %231 = arith.truncf %230 : vector<8x64xf32> to vector<8x64xbf16>
    %c3_247 = arith.constant 3 : index
    %c0_248 = arith.constant 0 : index
    %c0_249 = arith.constant 0 : index
    %232 = vector.load %arg5[%c3_247, %c0_248, %c0_249] : memref<9x64x640xbf16, #tpu.memory_space<vmem>>, vector<1x64x640xbf16>
    %233 = vector.shape_cast %232 : vector<1x64x640xbf16> to vector<64x640xbf16>
    %cst_250 = arith.constant dense<0.000000e+00> : vector<8x640xf32>
    %234 = tpu.matmul %231, %233, %cst_250 {dimension_numbers = #tpu.dot_dimension_numbers<[1], [0], [0], [1], [0, 0, 1, 1], [], []>} : vector<8x64xbf16>, vector<64x640xbf16>, vector<8x640xf32> -> vector<8x640xf32>
    %235 = arith.addf %228, %234 : vector<8x640xf32>
    %c0_251 = arith.constant 0 : index
    %c1_252 = arith.constant 1 : index
    %c1_253 = arith.constant 1 : index
    %c0_254 = arith.constant 0 : index
    %236 = vector.load %arg13[%c0_251, %c1_252, %c1_253, %c0_254] : memref<2x4x4x64xf32, #tpu.memory_space<vmem>>, vector<2x2x2x64xf32>
    %237 = vector.shape_cast %236 : vector<2x2x2x64xf32> to vector<8x64xf32>
    %238 = arith.truncf %237 : vector<8x64xf32> to vector<8x64xbf16>
    %c4_255 = arith.constant 4 : index
    %c0_256 = arith.constant 0 : index
    %c0_257 = arith.constant 0 : index
    %239 = vector.load %arg5[%c4_255, %c0_256, %c0_257] : memref<9x64x640xbf16, #tpu.memory_space<vmem>>, vector<1x64x640xbf16>
    %240 = vector.shape_cast %239 : vector<1x64x640xbf16> to vector<64x640xbf16>
    %cst_258 = arith.constant dense<0.000000e+00> : vector<8x640xf32>
    %241 = tpu.matmul %238, %240, %cst_258 {dimension_numbers = #tpu.dot_dimension_numbers<[1], [0], [0], [1], [0, 0, 1, 1], [], []>} : vector<8x64xbf16>, vector<64x640xbf16>, vector<8x640xf32> -> vector<8x640xf32>
    %242 = arith.addf %235, %241 : vector<8x640xf32>
    %c0_259 = arith.constant 0 : index
    %c1_260 = arith.constant 1 : index
    %c2_261 = arith.constant 2 : index
    %c0_262 = arith.constant 0 : index
    %243 = vector.load %arg13[%c0_259, %c1_260, %c2_261, %c0_262] : memref<2x4x4x64xf32, #tpu.memory_space<vmem>>, vector<2x2x2x64xf32>
    %244 = vector.shape_cast %243 : vector<2x2x2x64xf32> to vector<8x64xf32>
    %245 = arith.truncf %244 : vector<8x64xf32> to vector<8x64xbf16>
    %c5_263 = arith.constant 5 : index
    %c0_264 = arith.constant 0 : index
    %c0_265 = arith.constant 0 : index
    %246 = vector.load %arg5[%c5_263, %c0_264, %c0_265] : memref<9x64x640xbf16, #tpu.memory_space<vmem>>, vector<1x64x640xbf16>
    %247 = vector.shape_cast %246 : vector<1x64x640xbf16> to vector<64x640xbf16>
    %cst_266 = arith.constant dense<0.000000e+00> : vector<8x640xf32>
    %248 = tpu.matmul %245, %247, %cst_266 {dimension_numbers = #tpu.dot_dimension_numbers<[1], [0], [0], [1], [0, 0, 1, 1], [], []>} : vector<8x64xbf16>, vector<64x640xbf16>, vector<8x640xf32> -> vector<8x640xf32>
    %249 = arith.addf %242, %248 : vector<8x640xf32>
    %c0_267 = arith.constant 0 : index
    %c2_268 = arith.constant 2 : index
    %c0_269 = arith.constant 0 : index
    %c0_270 = arith.constant 0 : index
    %250 = vector.load %arg13[%c0_267, %c2_268, %c0_269, %c0_270] : memref<2x4x4x64xf32, #tpu.memory_space<vmem>>, vector<2x2x2x64xf32>
    %251 = vector.shape_cast %250 : vector<2x2x2x64xf32> to vector<8x64xf32>
    %252 = arith.truncf %251 : vector<8x64xf32> to vector<8x64xbf16>
    %c6_271 = arith.constant 6 : index
    %c0_272 = arith.constant 0 : index
    %c0_273 = arith.constant 0 : index
    %253 = vector.load %arg5[%c6_271, %c0_272, %c0_273] : memref<9x64x640xbf16, #tpu.memory_space<vmem>>, vector<1x64x640xbf16>
    %254 = vector.shape_cast %253 : vector<1x64x640xbf16> to vector<64x640xbf16>
    %cst_274 = arith.constant dense<0.000000e+00> : vector<8x640xf32>
    %255 = tpu.matmul %252, %254, %cst_274 {dimension_numbers = #tpu.dot_dimension_numbers<[1], [0], [0], [1], [0, 0, 1, 1], [], []>} : vector<8x64xbf16>, vector<64x640xbf16>, vector<8x640xf32> -> vector<8x640xf32>
    %256 = arith.addf %249, %255 : vector<8x640xf32>
    %c0_275 = arith.constant 0 : index
    %c2_276 = arith.constant 2 : index
    %c1_277 = arith.constant 1 : index
    %c0_278 = arith.constant 0 : index
    %257 = vector.load %arg13[%c0_275, %c2_276, %c1_277, %c0_278] : memref<2x4x4x64xf32, #tpu.memory_space<vmem>>, vector<2x2x2x64xf32>
    %258 = vector.shape_cast %257 : vector<2x2x2x64xf32> to vector<8x64xf32>
    %259 = arith.truncf %258 : vector<8x64xf32> to vector<8x64xbf16>
    %c7_279 = arith.constant 7 : index
    %c0_280 = arith.constant 0 : index
    %c0_281 = arith.constant 0 : index
    %260 = vector.load %arg5[%c7_279, %c0_280, %c0_281] : memref<9x64x640xbf16, #tpu.memory_space<vmem>>, vector<1x64x640xbf16>
    %261 = vector.shape_cast %260 : vector<1x64x640xbf16> to vector<64x640xbf16>
    %cst_282 = arith.constant dense<0.000000e+00> : vector<8x640xf32>
    %262 = tpu.matmul %259, %261, %cst_282 {dimension_numbers = #tpu.dot_dimension_numbers<[1], [0], [0], [1], [0, 0, 1, 1], [], []>} : vector<8x64xbf16>, vector<64x640xbf16>, vector<8x640xf32> -> vector<8x640xf32>
    %263 = arith.addf %256, %262 : vector<8x640xf32>
    %c0_283 = arith.constant 0 : index
    %c2_284 = arith.constant 2 : index
    %c2_285 = arith.constant 2 : index
    %c0_286 = arith.constant 0 : index
    %264 = vector.load %arg13[%c0_283, %c2_284, %c2_285, %c0_286] : memref<2x4x4x64xf32, #tpu.memory_space<vmem>>, vector<2x2x2x64xf32>
    %265 = vector.shape_cast %264 : vector<2x2x2x64xf32> to vector<8x64xf32>
    %266 = arith.truncf %265 : vector<8x64xf32> to vector<8x64xbf16>
    %c8_287 = arith.constant 8 : index
    %c0_288 = arith.constant 0 : index
    %c0_289 = arith.constant 0 : index
    %267 = vector.load %arg5[%c8_287, %c0_288, %c0_289] : memref<9x64x640xbf16, #tpu.memory_space<vmem>>, vector<1x64x640xbf16>
    %268 = vector.shape_cast %267 : vector<1x64x640xbf16> to vector<64x640xbf16>
    %cst_290 = arith.constant dense<0.000000e+00> : vector<8x640xf32>
    %269 = tpu.matmul %266, %268, %cst_290 {dimension_numbers = #tpu.dot_dimension_numbers<[1], [0], [0], [1], [0, 0, 1, 1], [], []>} : vector<8x64xbf16>, vector<64x640xbf16>, vector<8x640xf32> -> vector<8x640xf32>
    %270 = arith.addf %263, %269 : vector<8x640xf32>
    %c0_291 = arith.constant 0 : index
    %c0_292 = arith.constant 0 : index
    %271 = vector.load %arg9[%c0_291, %c0_292] : memref<1x640xf32, #tpu.memory_space<vmem>>, vector<1x640xf32>
    %272 = vector.broadcast %271 : vector<1x640xf32> to vector<8x640xf32>
    %273 = arith.addf %270, %272 : vector<8x640xf32>
    %cst_293 = arith.constant 0.000000e+00 : f32
    %274 = vector.broadcast %cst_293 : f32 to vector<8x640xf32>
    %275 = arith.maximumf %273, %274 : vector<8x640xf32>
    %276 = vector.shape_cast %275 : vector<8x640xf32> to vector<2x2x2x640xf32>
    %277 = vector.extract_strided_slice %276 {offsets = [0, 0, 0, 0], sizes = [2, 1, 2, 640], strides = [1, 1, 1, 1]} : vector<2x2x2x640xf32> to vector<2x1x2x640xf32>
    %278 = vector.shape_cast %277 : vector<2x1x2x640xf32> to vector<2x2x640xf32>
    %279 = vector.extract_strided_slice %276 {offsets = [0, 1, 0, 0], sizes = [2, 1, 2, 640], strides = [1, 1, 1, 1]} : vector<2x2x2x640xf32> to vector<2x1x2x640xf32>
    %280 = vector.shape_cast %279 : vector<2x1x2x640xf32> to vector<2x2x640xf32>
    %281 = arith.maximumf %278, %280 : vector<2x2x640xf32>
    %282 = vector.shape_cast %281 : vector<2x2x640xf32> to vector<2x1x2x640xf32>
    %283 = vector.extract_strided_slice %282 {offsets = [0, 0, 0, 0], sizes = [2, 1, 1, 640], strides = [1, 1, 1, 1]} : vector<2x1x2x640xf32> to vector<2x1x1x640xf32>
    %284 = vector.shape_cast %283 : vector<2x1x1x640xf32> to vector<2x1x640xf32>
    %285 = vector.extract_strided_slice %282 {offsets = [0, 0, 1, 0], sizes = [2, 1, 1, 640], strides = [1, 1, 1, 1]} : vector<2x1x2x640xf32> to vector<2x1x1x640xf32>
    %286 = vector.shape_cast %285 : vector<2x1x1x640xf32> to vector<2x1x640xf32>
    %287 = arith.maximumf %284, %286 : vector<2x1x640xf32>
    %288 = vector.shape_cast %287 : vector<2x1x640xf32> to vector<2x1x1x640xf32>
    %289 = vector.shape_cast %288 : vector<2x1x1x640xf32> to vector<2x1x640xf32>
    %c0_294 = arith.constant 0 : index
    %c0_295 = arith.constant 0 : index
    %c0_296 = arith.constant 0 : index
    %290 = vector.load %arg10[%c0_294, %c0_295, %c0_296] : memref<2x1x640xf32, #tpu.memory_space<vmem>>, vector<2x1x640xf32>
    tpu.vector_store %arg10[%c0_294, %c0_295, %c0_296], %289 {strides = array<i32>} : memref<2x1x640xf32, #tpu.memory_space<vmem>>, vector<2x1x640xf32>,
    return
  }
  func.func @transform_0(%arg0: i32) -> (i32, i32) {
    %c0_i32 = arith.constant 0 : i32
    %c0_i32_0 = arith.constant 0 : i32
    return %arg0, %c0_i32 : i32, i32
  }
  func.func @transform_1(%arg0: i32) -> (i32, i32) {
    %c0_i32 = arith.constant 0 : i32
    %c0_i32_0 = arith.constant 0 : i32
    %c0_i32_1 = arith.constant 0 : i32
    return %c0_i32, %c0_i32_0 : i32, i32
  }
  func.func @transform_2(%arg0: i32) -> (i32, i32, i32) {
    %c0_i32 = arith.constant 0 : i32
    %c0_i32_0 = arith.constant 0 : i32
    %c0_i32_1 = arith.constant 0 : i32
    %c0_i32_2 = arith.constant 0 : i32
    return %c0_i32, %c0_i32_0, %c0_i32_1 : i32, i32, i32
  }
  func.func @transform_3(%arg0: i32) -> (i32, i32, i32) {
    %c0_i32 = arith.constant 0 : i32
    %c0_i32_0 = arith.constant 0 : i32
    %c0_i32_1 = arith.constant 0 : i32
    %c0_i32_2 = arith.constant 0 : i32
    return %c0_i32, %c0_i32_0, %c0_i32_1 : i32, i32, i32
  }
  func.func @transform_4(%arg0: i32) -> (i32, i32, i32) {
    %c0_i32 = arith.constant 0 : i32
    %c0_i32_0 = arith.constant 0 : i32
    %c0_i32_1 = arith.constant 0 : i32
    %c0_i32_2 = arith.constant 0 : i32
    return %c0_i32, %c0_i32_0, %c0_i32_1 : i32, i32, i32
  }
  func.func @transform_5(%arg0: i32) -> (i32, i32) {
    %c0_i32 = arith.constant 0 : i32
    %c0_i32_0 = arith.constant 0 : i32
    %c0_i32_1 = arith.constant 0 : i32
    return %c0_i32, %c0_i32_0 : i32, i32
  }
  func.func @transform_6(%arg0: i32) -> (i32, i32) {
    %c0_i32 = arith.constant 0 : i32
    %c0_i32_0 = arith.constant 0 : i32
    %c0_i32_1 = arith.constant 0 : i32
    return %c0_i32, %c0_i32_0 : i32, i32
  }
  func.func @transform_7(%arg0: i32) -> (i32, i32) {
    %c0_i32 = arith.constant 0 : i32
    %c0_i32_0 = arith.constant 0 : i32
    %c0_i32_1 = arith.constant 0 : i32
    return %c0_i32, %c0_i32_0 : i32, i32
  }
  func.func @transform_8(%arg0: i32) -> (i32, i32) {
    %c0_i32 = arith.constant 0 : i32
    %c0_i32_0 = arith.constant 0 : i32
    %c0_i32_1 = arith.constant 0 : i32
    return %c0_i32, %c0_i32_0 : i32, i32
  }
  func.func @transform_9(%arg0: i32) -> (i32, i32, i32) {
    %c0_i32 = arith.constant 0 : i32
    %c0_i32_0 = arith.constant 0 : i32
    %c0_i32_1 = arith.constant 0 : i32
    return %arg0, %c0_i32, %c0_i32_0 : i32, i32, i32
  }
}

</mosaic_0001>

<llo_original>
// kernel: convnet4_forward.1
$region0: #{convnet4_forward.1}
  #allocation0 [shape = 'u32[]', space=smem, size = 0x4, offset = 0x4, fixed_abs, tag = 'smem constant byte address 0x4 - core index']
  #allocation1 [shape = 'u32[72,128]{1,0:T(1,128)}', space=vmem, size = 0x9000, scoped, tag = 'internal scratch']
  #allocation2 [shape = 'f32[2,10,10,64]{3,2,1,0:T(8,128)}', space=vmem, size = 0x28000, scoped, tag = 'scratch operand']
  #allocation3 [shape = 'f32[2,6,6,64]{3,2,1,0:T(8,128)}', space=vmem, size = 0xc000, scoped, tag = 'scratch operand']
  #allocation4 [shape = 'f32[2,4,4,64]{3,2,1,0:T(4,128)}', space=vmem, size = 0x4000, scoped, tag = 'scratch operand']
  %s0 = inlined_call_operand.vmem [shape: f32[1024,32], index: 0, kind: input, shape index: {}]
  %s1 = inlined_call_operand.vmem [shape: bf16[32,64], index: 1, kind: input, shape index: {}]
  %s2 = inlined_call_operand.vmem [shape: bf16[9,64,64], index: 2, kind: input, shape index: {}]
  %s3 = inlined_call_operand.vmem [shape: bf16[9,64,64], index: 3, kind: input, shape index: {}]
  %s4 = inlined_call_operand.vmem [shape: bf16[9,64,640], index: 4, kind: input, shape index: {}]
  %s5 = inlined_call_operand.vmem [shape: f32[1,64], index: 5, kind: input, shape index: {}]
  %s6 = inlined_call_operand.vmem [shape: f32[1,64], index: 6, kind: input, shape index: {}]
  %s7 = inlined_call_operand.vmem [shape: f32[1,64], index: 7, kind: input, shape index: {}]
  %s8 = inlined_call_operand.vmem [shape: f32[1,640], index: 8, kind: input, shape index: {}]
  %s9 = inlined_call_operand.hbm [shape: f32[4,1,640], index: 9, kind: output, shape index: {}]
  %s10 = sld [smem:[#allocation0]]
  $region69: #{convnet4_forward.1} parent=0
    _
  %s12 = ssub.s32 1, %s10
  %s13 = scalar_select 0, %s12, %s10
  $region1: #{convnet4_forward.1} parent=0
    #allocation5 [shape = 'u8[10240]{0}', space=vmem, size = 0x2800, scoped, tag = 'output window, operand 0']
    #allocation6 [shape = 's32[2]{0}', space=sflag, size = 0x8, scoped, tag = 'scoped memory for convnet4_forward.1']
    %14 = vsyncpa [#allocation6], 0
    %s15 = scalar_lea.sflag [#allocation6], 1
    %16 = vsyncpa %s15, 0
    loop: start=0, step=1, limit=4
    $region2: #{convnet4_forward.1} parent=1 // loop_pre_header
      _
    $region3: #{convnet4_forward.1} parent=1 // loop_header
      %s18 = sphi 0, %s22
      %p19 = scmp.ge.s32.totalorder %s18, 4
      %s28 = sphi 0, %s30
      %s31 = sphi 0, %s28
      %s32 = sphi 0, %s31
      %s48 = sphi 0, %s32
      %s52 = sphi 0, %s52
      %s54 = sphi 0, %s52
      %s55 = sphi 0, %s54
      %s69 = sphi 0, %s55
      %s73 = sphi 0, %s73
      %s75 = sphi 0, %s73
      %s76 = sphi 0, %s75
      %s90 = sphi 0, %s76
      %s94 = sphi 0, %s94
      %s96 = sphi 0, %s94
      %s97 = sphi 0, %s96
      %s111 = sphi 0, %s97
      %s115 = sphi 0, %s115
      %s117 = sphi 0, %s115
      %s118 = sphi 0, %s117
      %s132 = sphi 0, %s118
      %s136 = sphi 0, %s136
      %s138 = sphi 0, %s136
      %s139 = sphi 0, %s138
      %s153 = sphi 0, %s139
      %s157 = sphi 0, %s157
      %s159 = sphi 0, %s157
      %s160 = sphi 0, %s159
      %s174 = sphi 0, %s160
      %s178 = sphi 0, %s178
      %s180 = sphi 0, %s178
      %s181 = sphi 0, %s180
      %s195 = sphi 0, %s181
      %s199 = sphi 0, %s199
      %s201 = sphi 0, %s199
      %s202 = sphi 0, %s201
      %s216 = sphi 0, %s202
      %s222 = sphi 0, %s224
      %s225 = sphi 0, %s222
      %s226 = sphi 0, %s225
      %s242 = sphi 0, %s226
    $region4: #{convnet4_forward.1} parent=1 // loop_header_branch
      %21 = sbr.rel (%p19) target = $region8
    $region5: #{convnet4_forward.1} parent=1 // loop_body
      %s23 = ssub.s32 %s18, 1
      %s24 = ssub.s32 %s18, 2
      %s25 = sadd.s32 %s18, 1
      %s26 = ssub.s32 %s18, %s25
      %p27 = scmp.eq.s32.totalorder %s26, 0
      %s29 = sadd.s32 %s28, 1
      %s30 = scalar_select %p27, %s28, %s29
      %p33 = pneg %p27
      %p34 = scmp.eq.s32.totalorder %s18, 1
      %p35 = por %p33, %p34
      %p36 = scmp.ne.s32.totalorder %s28, %s31
      %p37 = scmp.eq.s32.totalorder %s18, 0
      %p38 = por %p36, %p37
      %p39 = scmp.ne.s32.totalorder %s28, %s31
      %p40 = scmp.eq.s32.totalorder %s23, 1
      %p41 = por %p39, %p40
      %p42 = scmp.ne.s32.totalorder %s31, %s32
      %p43 = scmp.eq.s32.totalorder %s23, 0
      %p44 = por %p42, %p43
      %p45 = scmp.ne.s32.totalorder %s31, %s32
      %p46 = scmp.eq.s32.totalorder %s24, 1
      %p47 = por %p45, %p46
      %p49 = scmp.ne.s32.totalorder %s32, %s48
      %p50 = scmp.eq.s32.totalorder %s24, 0
      %p51 = por %p49, %p50
      %s53 = sadd.s32 %s52, 1
      %p56 = scmp.eq.s32.totalorder %s18, 1
      %p57 = scmp.ne.s32.totalorder %s52, %s54
      %p58 = scmp.eq.s32.totalorder %s18, 0
      %p59 = por %p57, %p58
      %p60 = scmp.ne.s32.totalorder %s52, %s54
      %p61 = scmp.eq.s32.totalorder %s23, 1
      %p62 = por %p60, %p61
      %p63 = scmp.ne.s32.totalorder %s54, %s55
      %p64 = scmp.eq.s32.totalorder %s23, 0
      %p65 = por %p63, %p64
      %p66 = scmp.ne.s32.totalorder %s54, %s55
      %p67 = scmp.eq.s32.totalorder %s24, 1
      %p68 = por %p66, %p67
      %p70 = scmp.ne.s32.totalorder %s55, %s69
      %p71 = scmp.eq.s32.totalorder %s24, 0
      %p72 = por %p70, %p71
      %s74 = sadd.s32 %s73, 1
      %p77 = scmp.eq.s32.totalorder %s18, 1
      %p78 = scmp.ne.s32.totalorder %s73, %s75
      %p79 = scmp.eq.s32.totalorder %s18, 0
      %p80 = por %p78, %p79
      %p81 = scmp.ne.s32.totalorder %s73, %s75
      %p82 = scmp.eq.s32.totalorder %s23, 1
      %p83 = por %p81, %p82
      %p84 = scmp.ne.s32.totalorder %s75, %s76
      %p85 = scmp.eq.s32.totalorder %s23, 0
      %p86 = por %p84, %p85
      %p87 = scmp.ne.s32.totalorder %s75, %s76
      %p88 = scmp.eq.s32.totalorder %s24, 1
      %p89 = por %p87, %p88
      %p91 = scmp.ne.s32.totalorder %s76, %s90
      %p92 = scmp.eq.s32.totalorder %s24, 0
      %p93 = por %p91, %p92
      %s95 = sadd.s32 %s94, 1
      %p98 = scmp.eq.s32.totalorder %s18, 1
      %p99 = scmp.ne.s32.totalorder %s94, %s96
      %p100 = scmp.eq.s32.totalorder %s18, 0
      %p101 = por %p99, %p100
      %p102 = scmp.ne.s32.totalorder %s94, %s96
      %p103 = scmp.eq.s32.totalorder %s23, 1
      %p104 = por %p102, %p103
      %p105 = scmp.ne.s32.totalorder %s96, %s97
      %p106 = scmp.eq.s32.totalorder %s23, 0
      %p107 = por %p105, %p106
      %p108 = scmp.ne.s32.totalorder %s96, %s97
      %p109 = scmp.eq.s32.totalorder %s24, 1
      %p110 = por %p108, %p109
      %p112 = scmp.ne.s32.totalorder %s97, %s111
      %p113 = scmp.eq.s32.totalorder %s24, 0
      %p114 = por %p112, %p113
      %s116 = sadd.s32 %s115, 1
      %p119 = scmp.eq.s32.totalorder %s18, 1
      %p120 = scmp.ne.s32.totalorder %s115, %s117
      %p121 = scmp.eq.s32.totalorder %s18, 0
      %p122 = por %p120, %p121
      %p123 = scmp.ne.s32.totalorder %s115, %s117
      %p124 = scmp.eq.s32.totalorder %s23, 1
      %p125 = por %p123, %p124
      %p126 = scmp.ne.s32.totalorder %s117, %s118
      %p127 = scmp.eq.s32.totalorder %s23, 0
      %p128 = por %p126, %p127
      %p129 = scmp.ne.s32.totalorder %s117, %s118
      %p130 = scmp.eq.s32.totalorder %s24, 1
      %p131 = por %p129, %p130
      %p133 = scmp.ne.s32.totalorder %s118, %s132
      %p134 = scmp.eq.s32.totalorder %s24, 0
      %p135 = por %p133, %p134
      %s137 = sadd.s32 %s136, 1
      %p140 = scmp.eq.s32.totalorder %s18, 1
      %p141 = scmp.ne.s32.totalorder %s136, %s138
      %p142 = scmp.eq.s32.totalorder %s18, 0
      %p143 = por %p141, %p142
      %p144 = scmp.ne.s32.totalorder %s136, %s138
      %p145 = scmp.eq.s32.totalorder %s23, 1
      %p146 = por %p144, %p145
      %p147 = scmp.ne.s32.totalorder %s138, %s139
      %p148 = scmp.eq.s32.totalorder %s23, 0
      %p149 = por %p147, %p148
      %p150 = scmp.ne.s32.totalorder %s138, %s139
      %p151 = scmp.eq.s32.totalorder %s24, 1
      %p152 = por %p150, %p151
      %p154 = scmp.ne.s32.totalorder %s139, %s153
      %p155 = scmp.eq.s32.totalorder %s24, 0
      %p156 = por %p154, %p155
      %s158 = sadd.s32 %s157, 1
      %p161 = scmp.eq.s32.totalorder %s18, 1
      %p162 = scmp.ne.s32.totalorder %s157, %s159
      %p163 = scmp.eq.s32.totalorder %s18, 0
      %p164 = por %p162, %p163
      %p165 = scmp.ne.s32.totalorder %s157, %s159
      %p166 = scmp.eq.s32.totalorder %s23, 1
      %p167 = por %p165, %p166
      %p168 = scmp.ne.s32.totalorder %s159, %s160
      %p169 = scmp.eq.s32.totalorder %s23, 0
      %p170 = por %p168, %p169
      %p171 = scmp.ne.s32.totalorder %s159, %s160
      %p172 = scmp.eq.s32.totalorder %s24, 1
      %p173 = por %p171, %p172
      %p175 = scmp.ne.s32.totalorder %s160, %s174
      %p176 = scmp.eq.s32.totalorder %s24, 0
      %p177 = por %p175, %p176
      %s179 = sadd.s32 %s178, 1
      %p182 = scmp.eq.s32.totalorder %s18, 1
      %p183 = scmp.ne.s32.totalorder %s178, %s180
      %p184 = scmp.eq.s32.totalorder %s18, 0
      %p185 = por %p183, %p184
      %p186 = scmp.ne.s32.totalorder %s178, %s180
      %p187 = scmp.eq.s32.totalorder %s23, 1
      %p188 = por %p186, %p187
      %p189 = scmp.ne.s32.totalorder %s180, %s181
      %p190 = scmp.eq.s32.totalorder %s23, 0
      %p191 = por %p189, %p190
      %p192 = scmp.ne.s32.totalorder %s180, %s181
      %p193 = scmp.eq.s32.totalorder %s24, 1
      %p194 = por %p192, %p193
      %p196 = scmp.ne.s32.totalorder %s181, %s195
      %p197 = scmp.eq.s32.totalorder %s24, 0
      %p198 = por %p196, %p197
      %s200 = sadd.s32 %s199, 1
      %p203 = scmp.eq.s32.totalorder %s18, 1
      %p204 = scmp.ne.s32.totalorder %s199, %s201
      %p205 = scmp.eq.s32.totalorder %s18, 0
      %p206 = por %p204, %p205
      %p207 = scmp.ne.s32.totalorder %s199, %s201
      %p208 = scmp.eq.s32.totalorder %s23, 1
      %p209 = por %p207, %p208
      %p210 = scmp.ne.s32.totalorder %s201, %s202
      %p211 = scmp.eq.s32.totalorder %s23, 0
      %p212 = por %p210, %p211
      %p213 = scmp.ne.s32.totalorder %s201, %s202
      %p214 = scmp.eq.s32.totalorder %s24, 1
      %p215 = por %p213, %p214
      %p217 = scmp.ne.s32.totalorder %s202, %s216
      %p218 = scmp.eq.s32.totalorder %s24, 0
      %p219 = por %p217, %p218
      %s220 = ssub.s32 %s18, %s25
      %p221 = scmp.eq.s32.totalorder %s220, 0
      %s223 = sadd.s32 %s222, 1
      %s224 = scalar_select %p221, %s222, %s223
      %p227 = pneg %p221
      %p228 = scmp.eq.s32.totalorder %s18, 1
      %p229 = por %p227, %p228
      %p230 = scmp.ne.s32.totalorder %s222, %s225
      %p231 = scmp.eq.s32.totalorder %s18, 0
      %p232 = por %p230, %p231
      %p233 = scmp.ne.s32.totalorder %s222, %s225
      %p234 = scmp.eq.s32.totalorder %s23, 1
      %p235 = por %p233, %p234
      %p236 = scmp.ne.s32.totalorder %s225, %s226
      %p237 = scmp.eq.s32.totalorder %s23, 0
      %p238 = por %p236, %p237
      %p239 = scmp.ne.s32.totalorder %s225, %s226
      %p240 = scmp.eq.s32.totalorder %s24, 1
      %p241 = por %p239, %p240
      %p243 = scmp.ne.s32.totalorder %s226, %s242
      %p244 = scmp.eq.s32.totalorder %s24, 0
      %p245 = por %p243, %p244
      %p246 = scmp.le.s32.totalorder 1, %s18
      %p247 = scmp.lt.s32.totalorder %s18, 3
      %p248 = pnand %p246, %p247
      %p249 = pneg %p248
      // Predicated region
      $region9: #{convnet4_forward.1} parent=5 // pred_check
        _
      $region10: #{convnet4_forward.1} parent=5 // pred_check_branch
        %251 = sbr.rel (%p248) target = $region12
      $region11: #{convnet4_forward.1} parent=5 // pred_region
        %s252 = ssub.s32 %s18, 1
        // Predicated region
        $region13: #{convnet4_forward.1} parent=11 // pred_check
          %p253 = pneg %p65
        $region14: #{convnet4_forward.1} parent=11 // pred_check_branch
          %255 = sbr.rel (%p253) target = $region16
        $region15: #{convnet4_forward.1} parent=11 // pred_region
          _
        $region16: #{convnet4_forward.1} parent=11 // pred_fallthru
          _
        // Predicated region
        $region17: #{convnet4_forward.1} parent=11 // pred_check
          %p256 = pneg %p86
        $region18: #{convnet4_forward.1} parent=11 // pred_check_branch
          %258 = sbr.rel (%p256) target = $region20
        $region19: #{convnet4_forward.1} parent=11 // pred_region
          _
        $region20: #{convnet4_forward.1} parent=11 // pred_fallthru
          _
        // Predicated region
        $region21: #{convnet4_forward.1} parent=11 // pred_check
          %p259 = pneg %p107
        $region22: #{convnet4_forward.1} parent=11 // pred_check_branch
          %261 = sbr.rel (%p259) target = $region24
        $region23: #{convnet4_forward.1} parent=11 // pred_region
          _
        $region24: #{convnet4_forward.1} parent=11 // pred_fallthru
          _
        // Predicated region
        $region25: #{convnet4_forward.1} parent=11 // pred_check
          %p262 = pneg %p128
        $region26: #{convnet4_forward.1} parent=11 // pred_check_branch
          %264 = sbr.rel (%p262) target = $region28
        $region27: #{convnet4_forward.1} parent=11 // pred_region
          _
        $region28: #{convnet4_forward.1} parent=11 // pred_fallthru
          _
        // Predicated region
        $region29: #{convnet4_forward.1} parent=11 // pred_check
          %p265 = pneg %p149
        $region30: #{convnet4_forward.1} parent=11 // pred_check_branch
          %267 = sbr.rel (%p265) target = $region32
        $region31: #{convnet4_forward.1} parent=11 // pred_region
          _
        $region32: #{convnet4_forward.1} parent=11 // pred_fallthru
          _
        // Predicated region
        $region33: #{convnet4_forward.1} parent=11 // pred_check
          %p268 = pneg %p170
        $region34: #{convnet4_forward.1} parent=11 // pred_check_branch
          %270 = sbr.rel (%p268) target = $region36
        $region35: #{convnet4_forward.1} parent=11 // pred_region
          _
        $region36: #{convnet4_forward.1} parent=11 // pred_fallthru
          _
        // Predicated region
        $region37: #{convnet4_forward.1} parent=11 // pred_check
          %p271 = pneg %p191
        $region38: #{convnet4_forward.1} parent=11 // pred_check_branch
          %273 = sbr.rel (%p271) target = $region40
        $region39: #{convnet4_forward.1} parent=11 // pred_region
          _
        $region40: #{convnet4_forward.1} parent=11 // pred_fallthru
          _
        // Predicated region
        $region41: #{convnet4_forward.1} parent=11 // pred_check
          %p274 = pneg %p212
        $region42: #{convnet4_forward.1} parent=11 // pred_check_branch
          %276 = sbr.rel (%p274) target = $region44
        $region43: #{convnet4_forward.1} parent=11 // pred_region
          _
        $region44: #{convnet4_forward.1} parent=11 // pred_fallthru
          _
      $region12: #{convnet4_forward.1} parent=5 // pred_fallthru
        _
      %p277 = scmp.lt.s32.totalorder %s18, 2
      // Predicated region
      $region45: #{convnet4_forward.1} parent=5 // pred_check
        %p278 = pneg %p277
      $region46: #{convnet4_forward.1} parent=5 // pred_check_branch
        %280 = sbr.rel (%p278) target = $region48
      $region47: #{convnet4_forward.1} parent=5 // pred_region
        // Predicated region
        $region49: #{convnet4_forward.1} parent=47 // pred_check
          %p281 = pneg %p38
        $region50: #{convnet4_forward.1} parent=47 // pred_check_branch
          %283 = sbr.rel (%p281) target = $region52
        $region51: #{convnet4_forward.1} parent=47 // pred_region
          %s284 = smul.u32 64, %s18
          %p285 = scmp.lt.s32.totalorder %s284, 127
          %s286 = scalar_select %p285, %s284, 127
          %s287 = smul.addr %s286, 8
          %s288 = scalar_lea.vmem %s0, %s287
          %s289 = smul.u32 64, %s18
        $region52: #{convnet4_forward.1} parent=47 // pred_fallthru
          _
      $region48: #{convnet4_forward.1} parent=5 // pred_fallthru
        _
      %p290 = scmp.le.s32.totalorder 1, %s18
      %p291 = scmp.lt.s32.totalorder %s18, 3
      %p292 = pnand %p290, %p291
      %p293 = pneg %p292
      // Predicated region
      $region53: #{convnet4_forward.1} parent=5 // pred_check
        _
      $region54: #{convnet4_forward.1} parent=5 // pred_check_branch
        %295 = sbr.rel (%p292) target = $region56
      $region55: #{convnet4_forward.1} parent=5 // pred_region
        %s296 = ssub.s32 %s18, 1
        %s297 = smul.u32 64, %s23
        %p298 = scmp.lt.s32.totalorder %s297, 127
        %s299 = scalar_select %p298, %s297, 127
        %s300 = smul.addr %s299, 8
        %s301 = scalar_lea.vmem %s0, %s300
        %p302 = pneg %p44
        %p303 = pneg %p41
        %p304 = pneg %p65
        %p305 = pneg %p62
        %p306 = pneg %p86
        %p307 = pneg %p83
        %p308 = pneg %p107
        %p309 = pneg %p104
        %p310 = pneg %p128
        %p311 = pneg %p125
        %p312 = pneg %p149
        %p313 = pneg %p146
        %p314 = pneg %p170
        %p315 = pneg %p167
        %p316 = pneg %p191
        %p317 = pneg %p188
        %p318 = pneg %p212
        %p319 = pneg %p209
        %p320 = pneg %p238
        %p321 = pneg %p235
        %s322 = sand.u32 %s225, 1
        %s323 = scalar_lea.sflag [#allocation6], %s322
        %s324 = sand.u32 %s225, 1
        %s325 = smul.addr %s324, 10
        %s326 = scalar_lea.vmem [#allocation5], %s325
        %s327 = smul.u32 64, %s23
        %p328 = scmp.lt.s32.totalorder %s327, 127
        %s329 = scalar_select %p328, %s327, 127
        %s330 = smul.addr %s329, 8
        %s331 = scalar_lea.vmem %s0, %s330
        %s332 = smul.u32 64, %s23
        %s333 = smul.u32 2, %s23
        %v335 = vld [vmem:[%s331] sm:$0xff]
        %v336 = vld [vmem:[%s331 + $0x8] sm:$0xff]
        %v337 = vld [vmem:[%s331 + $0x10] sm:$0xff]
        %v338 = vld [vmem:[%s331 + $0x18] sm:$0xff]
        %v339 = vld [vmem:[%s331 + $0x20] sm:$0xff]
        %v340 = vld [vmem:[%s331 + $0x28] sm:$0xff]
        %v341 = vld [vmem:[%s331 + $0x30] sm:$0xff]
        %v342 = vld [vmem:[%s331 + $0x38] sm:$0xff]
        %v343 = vld [vmem:[%s331 + $0x40] sm:$0xff]
        %v344 = vld [vmem:[%s331 + $0x48] sm:$0xff]
        %v345 = vld [vmem:[%s331 + $0x50] sm:$0xff]
        %v346 = vld [vmem:[%s331 + $0x58] sm:$0xff]
        %v347 = vld [vmem:[%s331 + $0x60] sm:$0xff]
        %v348 = vld [vmem:[%s331 + $0x68] sm:$0xff]
        %v349 = vld [vmem:[%s331 + $0x70] sm:$0xff]
        %v350 = vld [vmem:[%s331 + $0x78] sm:$0xff]
        %v351 = vld [vmem:[%s331 + $0x80] sm:$0xff]
        %v352 = vld [vmem:[%s331 + $0x88] sm:$0xff]
        %v353 = vld [vmem:[%s331 + $0x90] sm:$0xff]
        %v354 = vld [vmem:[%s331 + $0x98] sm:$0xff]
        %v355 = vld [vmem:[%s331 + $0xa0] sm:$0xff]
        %v356 = vld [vmem:[%s331 + $0xa8] sm:$0xff]
        %v357 = vld [vmem:[%s331 + $0xb0] sm:$0xff]
        %v358 = vld [vmem:[%s331 + $0xb8] sm:$0xff]
        %v359 = vld [vmem:[%s331 + $0xc0] sm:$0xff]
        %v360 = vld [vmem:[%s331 + $0xc8] sm:$0xff]
        %v361 = vld [vmem:[%s331 + $0xd0] sm:$0xff]
        %v362 = vld [vmem:[%s331 + $0xd8] sm:$0xff]
        %v363 = vld [vmem:[%s331 + $0xe0] sm:$0xff]
        %v364 = vld [vmem:[%s331 + $0xe8] sm:$0xff]
        %v365 = vld [vmem:[%s331 + $0xf0] sm:$0xff]
        %v366 = vld [vmem:[%s331 + $0xf8] sm:$0xff]
        %v367 = vld [vmem:[%s331 + $0x100] sm:$0xff]
        %v368 = vld [vmem:[%s331 + $0x108] sm:$0xff]
        %v369 = vld [vmem:[%s331 + $0x110] sm:$0xff]
        %v370 = vld [vmem:[%s331 + $0x118] sm:$0xff]
        %v371 = vld [vmem:[%s331 + $0x120] sm:$0xff]
        %v372 = vld [vmem:[%s331 + $0x128] sm:$0xff]
        %v373 = vld [vmem:[%s331 + $0x130] sm:$0xff]
        %v374 = vld [vmem:[%s331 + $0x138] sm:$0xff]
        %v375 = vld [vmem:[%s331 + $0x140] sm:$0xff]
        %v376 = vld [vmem:[%s331 + $0x148] sm:$0xff]
        %v377 = vld [vmem:[%s331 + $0x150] sm:$0xff]
        %v378 = vld [vmem:[%s331 + $0x158] sm:$0xff]
        %v379 = vld [vmem:[%s331 + $0x160] sm:$0xff]
        %v380 = vld [vmem:[%s331 + $0x168] sm:$0xff]
        %v381 = vld [vmem:[%s331 + $0x170] sm:$0xff]
        %v382 = vld [vmem:[%s331 + $0x178] sm:$0xff]
        %v383 = vld [vmem:[%s331 + $0x180] sm:$0xff]
        %v384 = vld [vmem:[%s331 + $0x188] sm:$0xff]
        %v385 = vld [vmem:[%s331 + $0x190] sm:$0xff]
        %v386 = vld [vmem:[%s331 + $0x198] sm:$0xff]
        %v387 = vld [vmem:[%s331 + $0x1a0] sm:$0xff]
        %v388 = vld [vmem:[%s331 + $0x1a8] sm:$0xff]
        %v389 = vld [vmem:[%s331 + $0x1b0] sm:$0xff]
        %v390 = vld [vmem:[%s331 + $0x1b8] sm:$0xff]
        %v391 = vld [vmem:[%s331 + $0x1c0] sm:$0xff]
        %v392 = vld [vmem:[%s331 + $0x1c8] sm:$0xff]
        %v393 = vld [vmem:[%s331 + $0x1d0] sm:$0xff]
        %v394 = vld [vmem:[%s331 + $0x1d8] sm:$0xff]
        %v395 = vld [vmem:[%s331 + $0x1e0] sm:$0xff]
        %v396 = vld [vmem:[%s331 + $0x1e8] sm:$0xff]
        %v397 = vld [vmem:[%s331 + $0x1f0] sm:$0xff]
        %v398 = vld [vmem:[%s331 + $0x1f8] sm:$0xff]
        %v399 = vpack.c.bf16 %v336, %v335
        %v400 = vpack.c.bf16 %v338, %v337
        %v401 = vpack.c.bf16 %v340, %v339
        %v402 = vpack.c.bf16 %v342, %v341
        %v403 = vpack.c.bf16 %v344, %v343
        %v404 = vpack.c.bf16 %v346, %v345
        %v405 = vpack.c.bf16 %v348, %v347
        %v406 = vpack.c.bf16 %v350, %v349
        %v407 = vpack.c.bf16 %v352, %v351
        %v408 = vpack.c.bf16 %v354, %v353
        %v409 = vpack.c.bf16 %v356, %v355
        %v410 = vpack.c.bf16 %v358, %v357
        %v411 = vpack.c.bf16 %v360, %v359
        %v412 = vpack.c.bf16 %v362, %v361
        %v413 = vpack.c.bf16 %v364, %v363
        %v414 = vpack.c.bf16 %v366, %v365
        %v415 = vpack.c.bf16 %v368, %v367
        %v416 = vpack.c.bf16 %v370, %v369
        %v417 = vpack.c.bf16 %v372, %v371
        %v418 = vpack.c.bf16 %v374, %v373
        %v419 = vpack.c.bf16 %v376, %v375
        %v420 = vpack.c.bf16 %v378, %v377
        %v421 = vpack.c.bf16 %v380, %v379
        %v422 = vpack.c.bf16 %v382, %v381
        %v423 = vpack.c.bf16 %v384, %v383
        %v424 = vpack.c.bf16 %v386, %v385
        %v425 = vpack.c.bf16 %v388, %v387
        %v426 = vpack.c.bf16 %v390, %v389
        %v427 = vpack.c.bf16 %v392, %v391
        %v428 = vpack.c.bf16 %v394, %v393
        %v429 = vpack.c.bf16 %v396, %v395
        %v430 = vpack.c.bf16 %v398, %v397
        %v431 = vld [vmem:[%s1] sm:$0xf]
        %v432 = vld [vmem:[%s1 + $0x4] sm:$0xf]
        %v433 = vld [vmem:[%s1 + $0x8] sm:$0xf]
        %v434 = vld [vmem:[%s1 + $0xc] sm:$0xf]
        %v435 = vld [vmem:[%s5] sm:$0x1]
        %v437 = vperm.slane %v435, 0
        %v443 = vunpack.c.l.b16 %v431
        %v444 = vunpack.c.l.b16 %v432
        %v445 = vunpack.c.l.b16 %v433
        %v446 = vunpack.c.l.b16 %v434
        %v447 = vpack.c.b16 %v444, %v443
        %v448 = vpack.c.b16 %v446, %v445
        %vm451 = vcmask 261120
        %v453 = vsel %vm451, %v399, 0
        %v456 = vsel %vm451, %v400, 0
        %v459 = vsel %vm451, %v401, 0
        %v462 = vsel %vm451, %v402, 0
        %v465 = vsel %vm451, %v403, 0
        %v468 = vsel %vm451, %v404, 0
        %v471 = vsel %vm451, %v405, 0
        %v474 = vsel %vm451, %v406, 0
        %v477 = vsel %vm451, %v407, 0
        %v480 = vsel %vm451, %v408, 0
        %v483 = vsel %vm451, %v409, 0
        %v486 = vsel %vm451, %v410, 0
        %v489 = vsel %vm451, %v411, 0
        %v492 = vsel %vm451, %v412, 0
        %v495 = vsel %vm451, %v413, 0
        %v498 = vsel %vm451, %v414, 0
        %v501 = vsel %vm451, %v415, 0
        %v504 = vsel %vm451, %v416, 0
        %v507 = vsel %vm451, %v417, 0
        %v510 = vsel %vm451, %v418, 0
        %v513 = vsel %vm451, %v419, 0
        %v516 = vsel %vm451, %v420, 0
        %v519 = vsel %vm451, %v421, 0
        %v522 = vsel %vm451, %v422, 0
        %v525 = vsel %vm451, %v423, 0
        %v528 = vsel %vm451, %v424, 0
        %v531 = vsel %vm451, %v425, 0
        %v534 = vsel %vm451, %v426, 0
        %v537 = vsel %vm451, %v427, 0
        %v540 = vsel %vm451, %v428, 0
        %v543 = vsel %vm451, %v429, 0
        %v546 = vsel %vm451, %v430, 0
        %548 = vmatpush.bf16.msra.mxu0 0
        %549 = vmatpush.bf16.msra.mxu0 0
        %550 = vmatpush.bf16.msra.mxu0 0
        %551 = vmatpush.bf16.msra.mxu0 0
        %552 = vmatpush.bf16.msra.mxu0 0
        %553 = vmatpush.bf16.msra.mxu0 0
        %554 = vmatpush.bf16.msra.mxu0 %v448
        %555 = vmatpush.bf16.msra.mxu0 %v447
        %556 = vmatmul.bf16.gmra.mxu0 %v453
        %v557 = vpop.f32.mrf.mxu0
        %v558 = vadd.f32 %v437, %v557
        %v559 = vpop.f32.mrf.mxu0
        %v560 = vadd.f32 %v437, %v559
        %561 = vmatmul.bf16.gmra.mxu0 %v456
        %v562 = vpop.f32.mrf.mxu0
        %v563 = vadd.f32 %v437, %v562
        %v564 = vpop.f32.mrf.mxu0
        %v565 = vadd.f32 %v437, %v564
        %566 = vmatmul.bf16.gmra.mxu0 %v459
        %v567 = vpop.f32.mrf.mxu0
        %v568 = vadd.f32 %v437, %v567
        %v569 = vpop.f32.mrf.mxu0
        %v570 = vadd.f32 %v437, %v569
        %571 = vmatmul.bf16.gmra.mxu0 %v462
        %v572 = vpop.f32.mrf.mxu0
        %v573 = vadd.f32 %v437, %v572
        %v574 = vpop.f32.mrf.mxu0
        %v575 = vadd.f32 %v437, %v574
        %576 = vmatmul.bf16.gmra.mxu0 %v465
        %v577 = vpop.f32.mrf.mxu0
        %v578 = vadd.f32 %v437, %v577
        %v579 = vpop.f32.mrf.mxu0
        %v580 = vadd.f32 %v437, %v579
        %581 = vmatmul.bf16.gmra.mxu0 %v468
        %v582 = vpop.f32.mrf.mxu0
        %v583 = vadd.f32 %v437, %v582
        %v584 = vpop.f32.mrf.mxu0
        %v585 = vadd.f32 %v437, %v584
        %586 = vmatmul.bf16.gmra.mxu0 %v471
        %v587 = vpop.f32.mrf.mxu0
        %v588 = vadd.f32 %v437, %v587
        %v589 = vpop.f32.mrf.mxu0
        %v590 = vadd.f32 %v437, %v589
        %591 = vmatmul.bf16.gmra.mxu0 %v474
        %v592 = vpop.f32.mrf.mxu0
        %v593 = vadd.f32 %v437, %v592
        %v594 = vpop.f32.mrf.mxu0
        %v595 = vadd.f32 %v437, %v594
        %596 = vmatmul.bf16.gmra.mxu0 %v477
        %v597 = vpop.f32.mrf.mxu0
        %v598 = vadd.f32 %v437, %v597
        %v599 = vpop.f32.mrf.mxu0
        %v600 = vadd.f32 %v437, %v599
        %601 = vmatmul.bf16.gmra.mxu0 %v480
        %v602 = vpop.f32.mrf.mxu0
        %v603 = vadd.f32 %v437, %v602
        %v604 = vpop.f32.mrf.mxu0
        %v605 = vadd.f32 %v437, %v604
        %606 = vmatmul.bf16.gmra.mxu0 %v483
        %v607 = vpop.f32.mrf.mxu0
        %v608 = vadd.f32 %v437, %v607
        %v609 = vpop.f32.mrf.mxu0
        %v610 = vadd.f32 %v437, %v609
        %611 = vmatmul.bf16.gmra.mxu0 %v486
        %v612 = vpop.f32.mrf.mxu0
        %v613 = vadd.f32 %v437, %v612
        %v614 = vpop.f32.mrf.mxu0
        %v615 = vadd.f32 %v437, %v614
        %616 = vmatmul.bf16.gmra.mxu0 %v489
        %v617 = vpop.f32.mrf.mxu0
        %v618 = vadd.f32 %v437, %v617
        %v619 = vpop.f32.mrf.mxu0
        %v620 = vadd.f32 %v437, %v619
        %621 = vmatmul.bf16.gmra.mxu0 %v492
        %v622 = vpop.f32.mrf.mxu0
        %v623 = vadd.f32 %v437, %v622
        %v624 = vpop.f32.mrf.mxu0
        %v625 = vadd.f32 %v437, %v624
        %626 = vmatmul.bf16.gmra.mxu0 %v495
        %v627 = vpop.f32.mrf.mxu0
        %v628 = vadd.f32 %v437, %v627
        %v629 = vpop.f32.mrf.mxu0
        %v630 = vadd.f32 %v437, %v629
        %631 = vmatmul.bf16.gmra.mxu0 %v498
        %v632 = vpop.f32.mrf.mxu0
        %v633 = vadd.f32 %v437, %v632
        %v634 = vpop.f32.mrf.mxu0
        %v635 = vadd.f32 %v437, %v634
        %636 = vmatmul.bf16.gmra.mxu0 %v501
        %v637 = vpop.f32.mrf.mxu0
        %v638 = vadd.f32 %v437, %v637
        %v639 = vpop.f32.mrf.mxu0
        %v640 = vadd.f32 %v437, %v639
        %641 = vmatmul.bf16.gmra.mxu0 %v504
        %v642 = vpop.f32.mrf.mxu0
        %v643 = vadd.f32 %v437, %v642
        %v644 = vpop.f32.mrf.mxu0
        %v645 = vadd.f32 %v437, %v644
        %646 = vmatmul.bf16.gmra.mxu0 %v507
        %v647 = vpop.f32.mrf.mxu0
        %v648 = vadd.f32 %v437, %v647
        %v649 = vpop.f32.mrf.mxu0
        %v650 = vadd.f32 %v437, %v649
        %651 = vmatmul.bf16.gmra.mxu0 %v510
        %v652 = vpop.f32.mrf.mxu0
        %v653 = vadd.f32 %v437, %v652
        %v654 = vpop.f32.mrf.mxu0
        %v655 = vadd.f32 %v437, %v654
        %656 = vmatmul.bf16.gmra.mxu0 %v513
        %v657 = vpop.f32.mrf.mxu0
        %v658 = vadd.f32 %v437, %v657
        %v659 = vpop.f32.mrf.mxu0
        %v660 = vadd.f32 %v437, %v659
        %661 = vmatmul.bf16.gmra.mxu0 %v516
        %v662 = vpop.f32.mrf.mxu0
        %v663 = vadd.f32 %v437, %v662
        %v664 = vpop.f32.mrf.mxu0
        %v665 = vadd.f32 %v437, %v664
        %666 = vmatmul.bf16.gmra.mxu0 %v519
        %v667 = vpop.f32.mrf.mxu0
        %v668 = vadd.f32 %v437, %v667
        %v669 = vpop.f32.mrf.mxu0
        %v670 = vadd.f32 %v437, %v669
        %671 = vmatmul.bf16.gmra.mxu0 %v522
        %v672 = vpop.f32.mrf.mxu0
        %v673 = vadd.f32 %v437, %v672
        %v674 = vpop.f32.mrf.mxu0
        %v675 = vadd.f32 %v437, %v674
        %676 = vmatmul.bf16.gmra.mxu0 %v525
        %v677 = vpop.f32.mrf.mxu0
        %v678 = vadd.f32 %v437, %v677
        %v679 = vpop.f32.mrf.mxu0
        %v680 = vadd.f32 %v437, %v679
        %681 = vmatmul.bf16.gmra.mxu0 %v528
        %v682 = vpop.f32.mrf.mxu0
        %v683 = vadd.f32 %v437, %v682
        %v684 = vpop.f32.mrf.mxu0
        %v685 = vadd.f32 %v437, %v684
        %686 = vmatmul.bf16.gmra.mxu0 %v531
        %v687 = vpop.f32.mrf.mxu0
        %v688 = vadd.f32 %v437, %v687
        %v689 = vpop.f32.mrf.mxu0
        %v690 = vadd.f32 %v437, %v689
        %691 = vmatmul.bf16.gmra.mxu0 %v534
        %v692 = vpop.f32.mrf.mxu0
        %v693 = vadd.f32 %v437, %v692
        %v694 = vpop.f32.mrf.mxu0
        %v695 = vadd.f32 %v437, %v694
        %696 = vmatmul.bf16.gmra.mxu0 %v537
        %v697 = vpop.f32.mrf.mxu0
        %v698 = vadd.f32 %v437, %v697
        %v699 = vpop.f32.mrf.mxu0
        %v700 = vadd.f32 %v437, %v699
        %701 = vmatmul.bf16.gmra.mxu0 %v540
        %v702 = vpop.f32.mrf.mxu0
        %v703 = vadd.f32 %v437, %v702
        %v704 = vpop.f32.mrf.mxu0
        %v705 = vadd.f32 %v437, %v704
        %706 = vmatmul.bf16.gmra.mxu0 %v543
        %v707 = vpop.f32.mrf.mxu0
        %v708 = vadd.f32 %v437, %v707
        %v709 = vpop.f32.mrf.mxu0
        %v710 = vadd.f32 %v437, %v709
        %711 = vmatmul.bf16.gmra.mxu0 %v546
        %v712 = vpop.f32.mrf.mxu0
        %v713 = vadd.f32 %v437, %v712
        %v714 = vpop.f32.mrf.mxu0
        %v715 = vadd.f32 %v437, %v714
        %716 = vdwg.mxu0
        %v717 = vmax.f32 %v558, 0.0
        %v718 = vmax.f32 %v560, 0.0
        %v719 = vmax.f32 %v563, 0.0
        %v720 = vmax.f32 %v565, 0.0
        %v721 = vmax.f32 %v568, 0.0
        %v722 = vmax.f32 %v570, 0.0
        %v723 = vmax.f32 %v573, 0.0
        %v724 = vmax.f32 %v575, 0.0
        %v725 = vmax.f32 %v578, 0.0
        %v726 = vmax.f32 %v580, 0.0
        %v727 = vmax.f32 %v583, 0.0
        %v728 = vmax.f32 %v585, 0.0
        %v729 = vmax.f32 %v588, 0.0
        %v730 = vmax.f32 %v590, 0.0
        %v731 = vmax.f32 %v593, 0.0
        %v732 = vmax.f32 %v595, 0.0
        %v733 = vmax.f32 %v598, 0.0
        %v734 = vmax.f32 %v600, 0.0
        %v735 = vmax.f32 %v603, 0.0
        %v736 = vmax.f32 %v605, 0.0
        %v737 = vmax.f32 %v608, 0.0
        %v738 = vmax.f32 %v610, 0.0
        %v739 = vmax.f32 %v613, 0.0
        %v740 = vmax.f32 %v615, 0.0
        %v741 = vmax.f32 %v618, 0.0
        %v742 = vmax.f32 %v620, 0.0
        %v743 = vmax.f32 %v623, 0.0
        %v744 = vmax.f32 %v625, 0.0
        %v745 = vmax.f32 %v628, 0.0
        %v746 = vmax.f32 %v630, 0.0
        %v747 = vmax.f32 %v633, 0.0
        %v748 = vmax.f32 %v635, 0.0
        %v749 = vmax.f32 %v638, 0.0
        %v750 = vmax.f32 %v640, 0.0
        %v751 = vmax.f32 %v643, 0.0
        %v752 = vmax.f32 %v645, 0.0
        %v753 = vmax.f32 %v648, 0.0
        %v754 = vmax.f32 %v650, 0.0
        %v755 = vmax.f32 %v653, 0.0
        %v756 = vmax.f32 %v655, 0.0
        %v757 = vmax.f32 %v658, 0.0
        %v758 = vmax.f32 %v660, 0.0
        %v759 = vmax.f32 %v663, 0.0
        %v760 = vmax.f32 %v665, 0.0
        %v761 = vmax.f32 %v668, 0.0
        %v762 = vmax.f32 %v670, 0.0
        %v763 = vmax.f32 %v673, 0.0
        %v764 = vmax.f32 %v675, 0.0
        %v765 = vmax.f32 %v678, 0.0
        %v766 = vmax.f32 %v680, 0.0
        %v767 = vmax.f32 %v683, 0.0
        %v768 = vmax.f32 %v685, 0.0
        %v769 = vmax.f32 %v688, 0.0
        %v770 = vmax.f32 %v690, 0.0
        %v771 = vmax.f32 %v693, 0.0
        %v772 = vmax.f32 %v695, 0.0
        %v773 = vmax.f32 %v698, 0.0
        %v774 = vmax.f32 %v700, 0.0
        %v775 = vmax.f32 %v703, 0.0
        %v776 = vmax.f32 %v705, 0.0
        %v777 = vmax.f32 %v708, 0.0
        %v778 = vmax.f32 %v710, 0.0
        %v779 = vmax.f32 %v713, 0.0
        %v780 = vmax.f32 %v715, 0.0
        %v781 = vmax.f32 %v717, %v719
        %v782 = vmax.f32 %v718, %v720
        %v783 = vmax.f32 %v721, %v723
        %v784 = vmax.f32 %v722, %v724
        %v785 = vmax.f32 %v725, %v727
        %v786 = vmax.f32 %v726, %v728
        %v787 = vmax.f32 %v729, %v731
        %v788 = vmax.f32 %v730, %v732
        %v789 = vmax.f32 %v733, %v735
        %v790 = vmax.f32 %v734, %v736
        %v791 = vmax.f32 %v737, %v739
        %v792 = vmax.f32 %v738, %v740
        %v793 = vmax.f32 %v741, %v743
        %v794 = vmax.f32 %v742, %v744
        %v795 = vmax.f32 %v745, %v747
        %v796 = vmax.f32 %v746, %v748
        %v797 = vmax.f32 %v749, %v751
        %v798 = vmax.f32 %v750, %v752
        %v799 = vmax.f32 %v753, %v755
        %v800 = vmax.f32 %v754, %v756
        %v801 = vmax.f32 %v757, %v759
        %v802 = vmax.f32 %v758, %v760
        %v803 = vmax.f32 %v761, %v763
        %v804 = vmax.f32 %v762, %v764
        %v805 = vmax.f32 %v765, %v767
        %v806 = vmax.f32 %v766, %v768
        %v807 = vmax.f32 %v769, %v771
        %v808 = vmax.f32 %v770, %v772
        %v809 = vmax.f32 %v773, %v775
        %v810 = vmax.f32 %v774, %v776
        %v811 = vmax.f32 %v777, %v779
        %v812 = vmax.f32 %v778, %v780
        %v845 = vrot.slane %v781, 2
        %v846 = vrot.slane %v781, 4
        %v847 = vrot.slane %v781, 6
        %v848 = vrot.slane %v782, 2
        %v849 = vrot.slane %v782, 4
        %v850 = vrot.slane %v782, 6
        %v851 = vrot.slane %v783, 2
        %v852 = vrot.slane %v783, 4
        %v853 = vrot.slane %v783, 6
        %v854 = vrot.slane %v784, 2
        %v855 = vrot.slane %v784, 4
        %v856 = vrot.slane %v784, 6
        %v857 = vrot.slane %v785, 2
        %v858 = vrot.slane %v785, 4
        %v859 = vrot.slane %v785, 6
        %v860 = vrot.slane %v786, 2
        %v861 = vrot.slane %v786, 4
        %v862 = vrot.slane %v786, 6
        %v863 = vrot.slane %v787, 2
        %v864 = vrot.slane %v787, 4
        %v865 = vrot.slane %v787, 6
        %v866 = vrot.slane %v788, 2
        %v867 = vrot.slane %v788, 4
        %v868 = vrot.slane %v788, 6
        %v869 = vrot.slane %v789, 2
        %v870 = vrot.slane %v789, 4
        %v871 = vrot.slane %v789, 6
        %v872 = vrot.slane %v790, 2
        %v873 = vrot.slane %v790, 4
        %v874 = vrot.slane %v790, 6
        %v875 = vrot.slane %v791, 2
        %v876 = vrot.slane %v791, 4
        %v877 = vrot.slane %v791, 6
        %v878 = vrot.slane %v792, 2
        %v879 = vrot.slane %v792, 4
        %v880 = vrot.slane %v792, 6
        %v881 = vrot.slane %v793, 2
        %v882 = vrot.slane %v793, 4
        %v883 = vrot.slane %v793, 6
        %v884 = vrot.slane %v794, 2
        %v885 = vrot.slane %v794, 4
        %v886 = vrot.slane %v794, 6
        %v887 = vrot.slane %v795, 2
        %v888 = vrot.slane %v795, 4
        %v889 = vrot.slane %v795, 6
        %v890 = vrot.slane %v796, 2
        %v891 = vrot.slane %v796, 4
        %v892 = vrot.slane %v796, 6
        %v893 = vrot.slane %v797, 2
        %v894 = vrot.slane %v797, 4
        %v895 = vrot.slane %v797, 6
        %v896 = vrot.slane %v798, 2
        %v897 = vrot.slane %v798, 4
        %v898 = vrot.slane %v798, 6
        %v899 = vrot.slane %v799, 2
        %v900 = vrot.slane %v799, 4
        %v901 = vrot.slane %v799, 6
        %v902 = vrot.slane %v800, 2
        %v903 = vrot.slane %v800, 4
        %v904 = vrot.slane %v800, 6
        %v905 = vrot.slane %v801, 2
        %v906 = vrot.slane %v801, 4
        %v907 = vrot.slane %v801, 6
        %v908 = vrot.slane %v802, 2
        %v909 = vrot.slane %v802, 4
        %v910 = vrot.slane %v802, 6
        %v911 = vrot.slane %v803, 2
        %v912 = vrot.slane %v803, 4
        %v913 = vrot.slane %v803, 6
        %v914 = vrot.slane %v804, 2
        %v915 = vrot.slane %v804, 4
        %v916 = vrot.slane %v804, 6
        %v917 = vrot.slane %v805, 2
        %v918 = vrot.slane %v805, 4
        %v919 = vrot.slane %v805, 6
        %v920 = vrot.slane %v806, 2
        %v921 = vrot.slane %v806, 4
        %v922 = vrot.slane %v806, 6
        %v923 = vrot.slane %v807, 2
        %v924 = vrot.slane %v807, 4
        %v925 = vrot.slane %v807, 6
        %v926 = vrot.slane %v808, 2
        %v927 = vrot.slane %v808, 4
        %v928 = vrot.slane %v808, 6
        %v929 = vrot.slane %v809, 2
        %v930 = vrot.slane %v809, 4
        %v931 = vrot.slane %v809, 6
        %v932 = vrot.slane %v810, 2
        %v933 = vrot.slane %v810, 4
        %v934 = vrot.slane %v810, 6
        %v935 = vrot.slane %v811, 2
        %v936 = vrot.slane %v811, 4
        %v937 = vrot.slane %v811, 6
        %v938 = vrot.slane %v812, 2
        %v939 = vrot.slane %v812, 4
        %v940 = vrot.slane %v812, 6
        %v1037 = vrot.slane %v781, 7
        %v1038 = vrot.slane %v1037, 2
        %v1039 = vrot.slane %v845, 7
        %v1040 = vrot.slane %v1039, 2
        %v1041 = vrot.slane %v846, 7
        %v1042 = vrot.slane %v1041, 2
        %v1043 = vrot.slane %v847, 7
        %v1044 = vrot.slane %v1043, 2
        %v1045 = vrot.slane %v782, 7
        %v1046 = vrot.slane %v1045, 2
        %v1047 = vrot.slane %v848, 7
        %v1048 = vrot.slane %v1047, 2
        %v1049 = vrot.slane %v849, 7
        %v1050 = vrot.slane %v1049, 2
        %v1051 = vrot.slane %v850, 7
        %v1052 = vrot.slane %v1051, 2
        %v1053 = vrot.slane %v783, 7
        %v1054 = vrot.slane %v1053, 2
        %v1055 = vrot.slane %v851, 7
        %v1056 = vrot.slane %v1055, 2
        %v1057 = vrot.slane %v852, 7
        %v1058 = vrot.slane %v1057, 2
        %v1059 = vrot.slane %v853, 7
        %v1060 = vrot.slane %v1059, 2
        %v1061 = vrot.slane %v784, 7
        %v1062 = vrot.slane %v1061, 2
        %v1063 = vrot.slane %v854, 7
        %v1064 = vrot.slane %v1063, 2
        %v1065 = vrot.slane %v855, 7
        %v1066 = vrot.slane %v1065, 2
        %v1067 = vrot.slane %v856, 7
        %v1068 = vrot.slane %v1067, 2
        %v1069 = vrot.slane %v785, 7
        %v1070 = vrot.slane %v1069, 2
        %v1071 = vrot.slane %v857, 7
        %v1072 = vrot.slane %v1071, 2
        %v1073 = vrot.slane %v858, 7
        %v1074 = vrot.slane %v1073, 2
        %v1075 = vrot.slane %v859, 7
        %v1076 = vrot.slane %v1075, 2
        %v1077 = vrot.slane %v786, 7
        %v1078 = vrot.slane %v1077, 2
        %v1079 = vrot.slane %v860, 7
        %v1080 = vrot.slane %v1079, 2
        %v1081 = vrot.slane %v861, 7
        %v1082 = vrot.slane %v1081, 2
        %v1083 = vrot.slane %v862, 7
        %v1084 = vrot.slane %v1083, 2
        %v1085 = vrot.slane %v787, 7
        %v1086 = vrot.slane %v1085, 2
        %v1087 = vrot.slane %v863, 7
        %v1088 = vrot.slane %v1087, 2
        %v1089 = vrot.slane %v864, 7
        %v1090 = vrot.slane %v1089, 2
        %v1091 = vrot.slane %v865, 7
        %v1092 = vrot.slane %v1091, 2
        %v1093 = vrot.slane %v788, 7
        %v1094 = vrot.slane %v1093, 2
        %v1095 = vrot.slane %v866, 7
        %v1096 = vrot.slane %v1095, 2
        %v1097 = vrot.slane %v867, 7
        %v1098 = vrot.slane %v1097, 2
        %v1099 = vrot.slane %v868, 7
        %v1100 = vrot.slane %v1099, 2
        %v1101 = vrot.slane %v789, 7
        %v1102 = vrot.slane %v1101, 2
        %v1103 = vrot.slane %v869, 7
        %v1104 = vrot.slane %v1103, 2
        %v1105 = vrot.slane %v870, 7
        %v1106 = vrot.slane %v1105, 2
        %v1107 = vrot.slane %v871, 7
        %v1108 = vrot.slane %v1107, 2
        %v1109 = vrot.slane %v790, 7
        %v1110 = vrot.slane %v1109, 2
        %v1111 = vrot.slane %v872, 7
        %v1112 = vrot.slane %v1111, 2
        %v1113 = vrot.slane %v873, 7
        %v1114 = vrot.slane %v1113, 2
        %v1115 = vrot.slane %v874, 7
        %v1116 = vrot.slane %v1115, 2
        %v1117 = vrot.slane %v791, 7
        %v1118 = vrot.slane %v1117, 2
        %v1119 = vrot.slane %v875, 7
        %v1120 = vrot.slane %v1119, 2
        %v1121 = vrot.slane %v876, 7
        %v1122 = vrot.slane %v1121, 2
        %v1123 = vrot.slane %v877, 7
        %v1124 = vrot.slane %v1123, 2
        %v1125 = vrot.slane %v792, 7
        %v1126 = vrot.slane %v1125, 2
        %v1127 = vrot.slane %v878, 7
        %v1128 = vrot.slane %v1127, 2
        %v1129 = vrot.slane %v879, 7
        %v1130 = vrot.slane %v1129, 2
        %v1131 = vrot.slane %v880, 7
        %v1132 = vrot.slane %v1131, 2
        %v1133 = vrot.slane %v793, 7
        %v1134 = vrot.slane %v1133, 2
        %v1135 = vrot.slane %v881, 7
        %v1136 = vrot.slane %v1135, 2
        %v1137 = vrot.slane %v882, 7
        %v1138 = vrot.slane %v1137, 2
        %v1139 = vrot.slane %v883, 7
        %v1140 = vrot.slane %v1139, 2
        %v1141 = vrot.slane %v794, 7
        %v1142 = vrot.slane %v1141, 2
        %v1143 = vrot.slane %v884, 7
        %v1144 = vrot.slane %v1143, 2
        %v1145 = vrot.slane %v885, 7
        %v1146 = vrot.slane %v1145, 2
        %v1147 = vrot.slane %v886, 7
        %v1148 = vrot.slane %v1147, 2
        %v1149 = vrot.slane %v795, 7
        %v1150 = vrot.slane %v1149, 2
        %v1151 = vrot.slane %v887, 7
        %v1152 = vrot.slane %v1151, 2
        %v1153 = vrot.slane %v888, 7
        %v1154 = vrot.slane %v1153, 2
        %v1155 = vrot.slane %v889, 7
        %v1156 = vrot.slane %v1155, 2
        %v1157 = vrot.slane %v796, 7
        %v1158 = vrot.slane %v1157, 2
        %v1159 = vrot.slane %v890, 7
        %v1160 = vrot.slane %v1159, 2
        %v1161 = vrot.slane %v891, 7
        %v1162 = vrot.slane %v1161, 2
        %v1163 = vrot.slane %v892, 7
        %v1164 = vrot.slane %v1163, 2
        %v1165 = vrot.slane %v797, 7
        %v1166 = vrot.slane %v1165, 2
        %v1167 = vrot.slane %v893, 7
        %v1168 = vrot.slane %v1167, 2
        %v1169 = vrot.slane %v894, 7
        %v1170 = vrot.slane %v1169, 2
        %v1171 = vrot.slane %v895, 7
        %v1172 = vrot.slane %v1171, 2
        %v1173 = vrot.slane %v798, 7
        %v1174 = vrot.slane %v1173, 2
        %v1175 = vrot.slane %v896, 7
        %v1176 = vrot.slane %v1175, 2
        %v1177 = vrot.slane %v897, 7
        %v1178 = vrot.slane %v1177, 2
        %v1179 = vrot.slane %v898, 7
        %v1180 = vrot.slane %v1179, 2
        %v1181 = vrot.slane %v799, 7
        %v1182 = vrot.slane %v1181, 2
        %v1183 = vrot.slane %v899, 7
        %v1184 = vrot.slane %v1183, 2
        %v1185 = vrot.slane %v900, 7
        %v1186 = vrot.slane %v1185, 2
        %v1187 = vrot.slane %v901, 7
        %v1188 = vrot.slane %v1187, 2
        %v1189 = vrot.slane %v800, 7
        %v1190 = vrot.slane %v1189, 2
        %v1191 = vrot.slane %v902, 7
        %v1192 = vrot.slane %v1191, 2
        %v1193 = vrot.slane %v903, 7
        %v1194 = vrot.slane %v1193, 2
        %v1195 = vrot.slane %v904, 7
        %v1196 = vrot.slane %v1195, 2
        %v1197 = vrot.slane %v801, 7
        %v1198 = vrot.slane %v1197, 2
        %v1199 = vrot.slane %v905, 7
        %v1200 = vrot.slane %v1199, 2
        %v1201 = vrot.slane %v906, 7
        %v1202 = vrot.slane %v1201, 2
        %v1203 = vrot.slane %v907, 7
        %v1204 = vrot.slane %v1203, 2
        %v1205 = vrot.slane %v802, 7
        %v1206 = vrot.slane %v1205, 2
        %v1207 = vrot.slane %v908, 7
        %v1208 = vrot.slane %v1207, 2
        %v1209 = vrot.slane %v909, 7
        %v1210 = vrot.slane %v1209, 2
        %v1211 = vrot.slane %v910, 7
        %v1212 = vrot.slane %v1211, 2
        %v1213 = vrot.slane %v803, 7
        %v1214 = vrot.slane %v1213, 2
        %v1215 = vrot.slane %v911, 7
        %v1216 = vrot.slane %v1215, 2
        %v1217 = vrot.slane %v912, 7
        %v1218 = vrot.slane %v1217, 2
        %v1219 = vrot.slane %v913, 7
        %v1220 = vrot.slane %v1219, 2
        %v1221 = vrot.slane %v804, 7
        %v1222 = vrot.slane %v1221, 2
        %v1223 = vrot.slane %v914, 7
        %v1224 = vrot.slane %v1223, 2
        %v1225 = vrot.slane %v915, 7
        %v1226 = vrot.slane %v1225, 2
        %v1227 = vrot.slane %v916, 7
        %v1228 = vrot.slane %v1227, 2
        %v1229 = vrot.slane %v805, 7
        %v1230 = vrot.slane %v1229, 2
        %v1231 = vrot.slane %v917, 7
        %v1232 = vrot.slane %v1231, 2
        %v1233 = vrot.slane %v918, 7
        %v1234 = vrot.slane %v1233, 2
        %v1235 = vrot.slane %v919, 7
        %v1236 = vrot.slane %v1235, 2
        %v1237 = vrot.slane %v806, 7
        %v1238 = vrot.slane %v1237, 2
        %v1239 = vrot.slane %v920, 7
        %v1240 = vrot.slane %v1239, 2
        %v1241 = vrot.slane %v921, 7
        %v1242 = vrot.slane %v1241, 2
        %v1243 = vrot.slane %v922, 7
        %v1244 = vrot.slane %v1243, 2
        %v1245 = vrot.slane %v807, 7
        %v1246 = vrot.slane %v1245, 2
        %v1247 = vrot.slane %v923, 7
        %v1248 = vrot.slane %v1247, 2
        %v1249 = vrot.slane %v924, 7
        %v1250 = vrot.slane %v1249, 2
        %v1251 = vrot.slane %v925, 7
        %v1252 = vrot.slane %v1251, 2
        %v1253 = vrot.slane %v808, 7
        %v1254 = vrot.slane %v1253, 2
        %v1255 = vrot.slane %v926, 7
        %v1256 = vrot.slane %v1255, 2
        %v1257 = vrot.slane %v927, 7
        %v1258 = vrot.slane %v1257, 2
        %v1259 = vrot.slane %v928, 7
        %v1260 = vrot.slane %v1259, 2
        %v1261 = vrot.slane %v809, 7
        %v1262 = vrot.slane %v1261, 2
        %v1263 = vrot.slane %v929, 7
        %v1264 = vrot.slane %v1263, 2
        %v1265 = vrot.slane %v930, 7
        %v1266 = vrot.slane %v1265, 2
        %v1267 = vrot.slane %v931, 7
        %v1268 = vrot.slane %v1267, 2
        %v1269 = vrot.slane %v810, 7
        %v1270 = vrot.slane %v1269, 2
        %v1271 = vrot.slane %v932, 7
        %v1272 = vrot.slane %v1271, 2
        %v1273 = vrot.slane %v933, 7
        %v1274 = vrot.slane %v1273, 2
        %v1275 = vrot.slane %v934, 7
        %v1276 = vrot.slane %v1275, 2
        %v1277 = vrot.slane %v811, 7
        %v1278 = vrot.slane %v1277, 2
        %v1279 = vrot.slane %v935, 7
        %v1280 = vrot.slane %v1279, 2
        %v1281 = vrot.slane %v936, 7
        %v1282 = vrot.slane %v1281, 2
        %v1283 = vrot.slane %v937, 7
        %v1284 = vrot.slane %v1283, 2
        %v1285 = vrot.slane %v812, 7
        %v1286 = vrot.slane %v1285, 2
        %v1287 = vrot.slane %v938, 7
        %v1288 = vrot.slane %v1287, 2
        %v1289 = vrot.slane %v939, 7
        %v1290 = vrot.slane %v1289, 2
        %v1291 = vrot.slane %v940, 7
        %v1292 = vrot.slane %v1291, 2
        %v1421 = vmax.f32 %v781, %v1038
        %v1422 = vmax.f32 %v845, %v1040
        %v1423 = vmax.f32 %v846, %v1042
        %v1424 = vmax.f32 %v847, %v1044
        %v1425 = vmax.f32 %v782, %v1046
        %v1426 = vmax.f32 %v848, %v1048
        %v1427 = vmax.f32 %v849, %v1050
        %v1428 = vmax.f32 %v850, %v1052
        %v1429 = vmax.f32 %v783, %v1054
        %v1430 = vmax.f32 %v851, %v1056
        %v1431 = vmax.f32 %v852, %v1058
        %v1432 = vmax.f32 %v853, %v1060
        %v1433 = vmax.f32 %v784, %v1062
        %v1434 = vmax.f32 %v854, %v1064
        %v1435 = vmax.f32 %v855, %v1066
        %v1436 = vmax.f32 %v856, %v1068
        %v1437 = vmax.f32 %v785, %v1070
        %v1438 = vmax.f32 %v857, %v1072
        %v1439 = vmax.f32 %v858, %v1074
        %v1440 = vmax.f32 %v859, %v1076
        %v1441 = vmax.f32 %v786, %v1078
        %v1442 = vmax.f32 %v860, %v1080
        %v1443 = vmax.f32 %v861, %v1082
        %v1444 = vmax.f32 %v862, %v1084
        %v1445 = vmax.f32 %v787, %v1086
        %v1446 = vmax.f32 %v863, %v1088
        %v1447 = vmax.f32 %v864, %v1090
        %v1448 = vmax.f32 %v865, %v1092
        %v1449 = vmax.f32 %v788, %v1094
        %v1450 = vmax.f32 %v866, %v1096
        %v1451 = vmax.f32 %v867, %v1098
        %v1452 = vmax.f32 %v868, %v1100
        %v1453 = vmax.f32 %v789, %v1102
        %v1454 = vmax.f32 %v869, %v1104
        %v1455 = vmax.f32 %v870, %v1106
        %v1456 = vmax.f32 %v871, %v1108
        %v1457 = vmax.f32 %v790, %v1110
        %v1458 = vmax.f32 %v872, %v1112
        %v1459 = vmax.f32 %v873, %v1114
        %v1460 = vmax.f32 %v874, %v1116
        %v1461 = vmax.f32 %v791, %v1118
        %v1462 = vmax.f32 %v875, %v1120
        %v1463 = vmax.f32 %v876, %v1122
        %v1464 = vmax.f32 %v877, %v1124
        %v1465 = vmax.f32 %v792, %v1126
        %v1466 = vmax.f32 %v878, %v1128
        %v1467 = vmax.f32 %v879, %v1130
        %v1468 = vmax.f32 %v880, %v1132
        %v1469 = vmax.f32 %v793, %v1134
        %v1470 = vmax.f32 %v881, %v1136
        %v1471 = vmax.f32 %v882, %v1138
        %v1472 = vmax.f32 %v883, %v1140
        %v1473 = vmax.f32 %v794, %v1142
        %v1474 = vmax.f32 %v884, %v1144
        %v1475 = vmax.f32 %v885, %v1146
        %v1476 = vmax.f32 %v886, %v1148
        %v1477 = vmax.f32 %v795, %v1150
        %v1478 = vmax.f32 %v887, %v1152
        %v1479 = vmax.f32 %v888, %v1154
        %v1480 = vmax.f32 %v889, %v1156
        %v1481 = vmax.f32 %v796, %v1158
        %v1482 = vmax.f32 %v890, %v1160
        %v1483 = vmax.f32 %v891, %v1162
        %v1484 = vmax.f32 %v892, %v1164
        %v1485 = vmax.f32 %v797, %v1166
        %v1486 = vmax.f32 %v893, %v1168
        %v1487 = vmax.f32 %v894, %v1170
        %v1488 = vmax.f32 %v895, %v1172
        %v1489 = vmax.f32 %v798, %v1174
        %v1490 = vmax.f32 %v896, %v1176
        %v1491 = vmax.f32 %v897, %v1178
        %v1492 = vmax.f32 %v898, %v1180
        %v1493 = vmax.f32 %v799, %v1182
        %v1494 = vmax.f32 %v899, %v1184
        %v1495 = vmax.f32 %v900, %v1186
        %v1496 = vmax.f32 %v901, %v1188
        %v1497 = vmax.f32 %v800, %v1190
        %v1498 = vmax.f32 %v902, %v1192
        %v1499 = vmax.f32 %v903, %v1194
        %v1500 = vmax.f32 %v904, %v1196
        %v1501 = vmax.f32 %v801, %v1198
        %v1502 = vmax.f32 %v905, %v1200
        %v1503 = vmax.f32 %v906, %v1202
        %v1504 = vmax.f32 %v907, %v1204
        %v1505 = vmax.f32 %v802, %v1206
        %v1506 = vmax.f32 %v908, %v1208
        %v1507 = vmax.f32 %v909, %v1210
        %v1508 = vmax.f32 %v910, %v1212
        %v1509 = vmax.f32 %v803, %v1214
        %v1510 = vmax.f32 %v911, %v1216
        %v1511 = vmax.f32 %v912, %v1218
        %v1512 = vmax.f32 %v913, %v1220
        %v1513 = vmax.f32 %v804, %v1222
        %v1514 = vmax.f32 %v914, %v1224
        %v1515 = vmax.f32 %v915, %v1226
        %v1516 = vmax.f32 %v916, %v1228
        %v1517 = vmax.f32 %v805, %v1230
        %v1518 = vmax.f32 %v917, %v1232
        %v1519 = vmax.f32 %v918, %v1234
        %v1520 = vmax.f32 %v919, %v1236
        %v1521 = vmax.f32 %v806, %v1238
        %v1522 = vmax.f32 %v920, %v1240
        %v1523 = vmax.f32 %v921, %v1242
        %v1524 = vmax.f32 %v922, %v1244
        %v1525 = vmax.f32 %v807, %v1246
        %v1526 = vmax.f32 %v923, %v1248
        %v1527 = vmax.f32 %v924, %v1250
        %v1528 = vmax.f32 %v925, %v1252
        %v1529 = vmax.f32 %v808, %v1254
        %v1530 = vmax.f32 %v926, %v1256
        %v1531 = vmax.f32 %v927, %v1258
        %v1532 = vmax.f32 %v928, %v1260
        %v1533 = vmax.f32 %v809, %v1262
        %v1534 = vmax.f32 %v929, %v1264
        %v1535 = vmax.f32 %v930, %v1266
        %v1536 = vmax.f32 %v931, %v1268
        %v1537 = vmax.f32 %v810, %v1270
        %v1538 = vmax.f32 %v932, %v1272
        %v1539 = vmax.f32 %v933, %v1274
        %v1540 = vmax.f32 %v934, %v1276
        %v1541 = vmax.f32 %v811, %v1278
        %v1542 = vmax.f32 %v935, %v1280
        %v1543 = vmax.f32 %v936, %v1282
        %v1544 = vmax.f32 %v937, %v1284
        %v1545 = vmax.f32 %v812, %v1286
        %v1546 = vmax.f32 %v938, %v1288
        %v1547 = vmax.f32 %v939, %v1290
        %v1548 = vmax.f32 %v940, %v1292
        %vm1549 = vcmask 523264
        %1550 = vst.msk [vmem:[#allocation2] sm:$0xff] %vm1549, 0.0
        %vm1551 = vcmask 517120
        %1552 = vst.msk [vmem:[#allocation2 + $0x8] sm:$0x3] %vm1551, 0.0
        %1553 = vst.msk [vmem:[#allocation2 + $0xa0] sm:$0xff] %vm1549, 0.0
        %1554 = vst.msk [vmem:[#allocation2 + $0xa8] sm:$0x3] %vm1551, 0.0
        %s1555 = scalar_lea.vmem [#allocation2], 144
        %1556 = vst.msk [vmem:[%s1555] sm:$0xff] %vm1549, 0.0
        %1557 = vst.msk [vmem:[%s1555 + $0x8] sm:$0x3] %vm1551, 0.0
        %1558 = vst.msk [vmem:[%s1555 + $0xa0] sm:$0xff] %vm1549, 0.0
        %1559 = vst.msk [vmem:[%s1555 + $0xa8] sm:$0x3] %vm1551, 0.0
        %s1560 = scalar_lea.vmem [#allocation2], 16
        %vm1561 = vcmask 516096
        %1562 = vst.msk [vmem:[%s1560] sm:$0x1] %vm1561, 0.0
        %1563 = vst.msk [vmem:[%s1560 + $0x10] sm:$0x1] %vm1561, 0.0
        %1564 = vst.msk [vmem:[%s1560 + $0x20] sm:$0x1] %vm1561, 0.0
        %1565 = vst.msk [vmem:[%s1560 + $0x30] sm:$0x1] %vm1561, 0.0
        %1566 = vst.msk [vmem:[%s1560 + $0x40] sm:$0x1] %vm1561, 0.0
        %1567 = vst.msk [vmem:[%s1560 + $0x50] sm:$0x1] %vm1561, 0.0
        %1568 = vst.msk [vmem:[%s1560 + $0x60] sm:$0x1] %vm1561, 0.0
        %1569 = vst.msk [vmem:[%s1560 + $0x70] sm:$0x1] %vm1561, 0.0
        %1570 = vst.msk [vmem:[%s1560 + $0xa0] sm:$0x1] %vm1561, 0.0
        %1571 = vst.msk [vmem:[%s1560 + $0xb0] sm:$0x1] %vm1561, 0.0
        %1572 = vst.msk [vmem:[%s1560 + $0xc0] sm:$0x1] %vm1561, 0.0
        %1573 = vst.msk [vmem:[%s1560 + $0xd0] sm:$0x1] %vm1561, 0.0
        %1574 = vst.msk [vmem:[%s1560 + $0xe0] sm:$0x1] %vm1561, 0.0
        %1575 = vst.msk [vmem:[%s1560 + $0xf0] sm:$0x1] %vm1561, 0.0
        %1576 = vst.msk [vmem:[%s1560 + $0x100] sm:$0x1] %vm1561, 0.0
        %1577 = vst.msk [vmem:[%s1560 + $0x110] sm:$0x1] %vm1561, 0.0
        %1578 = vst.msk [vmem:[%s1560 + $0x9] sm:$0x1] %vm1561, 0.0
        %1579 = vst.msk [vmem:[%s1560 + $0x19] sm:$0x1] %vm1561, 0.0
        %1580 = vst.msk [vmem:[%s1560 + $0x29] sm:$0x1] %vm1561, 0.0
        %1581 = vst.msk [vmem:[%s1560 + $0x39] sm:$0x1] %vm1561, 0.0
        %1582 = vst.msk [vmem:[%s1560 + $0x49] sm:$0x1] %vm1561, 0.0
        %1583 = vst.msk [vmem:[%s1560 + $0x59] sm:$0x1] %vm1561, 0.0
        %1584 = vst.msk [vmem:[%s1560 + $0x69] sm:$0x1] %vm1561, 0.0
        %1585 = vst.msk [vmem:[%s1560 + $0x79] sm:$0x1] %vm1561, 0.0
        %1586 = vst.msk [vmem:[%s1560 + $0xa9] sm:$0x1] %vm1561, 0.0
        %1587 = vst.msk [vmem:[%s1560 + $0xb9] sm:$0x1] %vm1561, 0.0
        %1588 = vst.msk [vmem:[%s1560 + $0xc9] sm:$0x1] %vm1561, 0.0
        %1589 = vst.msk [vmem:[%s1560 + $0xd9] sm:$0x1] %vm1561, 0.0
        %1590 = vst.msk [vmem:[%s1560 + $0xe9] sm:$0x1] %vm1561, 0.0
        %1591 = vst.msk [vmem:[%s1560 + $0xf9] sm:$0x1] %vm1561, 0.0
        %1592 = vst.msk [vmem:[%s1560 + $0x109] sm:$0x1] %vm1561, 0.0
        %1593 = vst.msk [vmem:[%s1560 + $0x119] sm:$0x1] %vm1561, 0.0
        %v1722 = vperm.slane %v1421, 0
        %v1723 = vperm.slane %v1422, 0
        %v1724 = vperm.slane %v1423, 0
        %v1725 = vperm.slane %v1424, 0
        %v1726 = vperm.slane %v1425, 0
        %v1727 = vperm.slane %v1426, 0
        %v1728 = vperm.slane %v1427, 0
        %v1729 = vperm.slane %v1428, 0
        %v1730 = vperm.slane %v1429, 0
        %v1731 = vperm.slane %v1430, 0
        %v1732 = vperm.slane %v1431, 0
        %v1733 = vperm.slane %v1432, 0
        %v1734 = vperm.slane %v1433, 0
        %v1735 = vperm.slane %v1434, 0
        %v1736 = vperm.slane %v1435, 0
        %v1737 = vperm.slane %v1436, 0
        %v1738 = vperm.slane %v1437, 0
        %v1739 = vperm.slane %v1438, 0
        %v1740 = vperm.slane %v1439, 0
        %v1741 = vperm.slane %v1440, 0
        %v1742 = vperm.slane %v1441, 0
        %v1743 = vperm.slane %v1442, 0
        %v1744 = vperm.slane %v1443, 0
        %v1745 = vperm.slane %v1444, 0
        %v1746 = vperm.slane %v1445, 0
        %v1747 = vperm.slane %v1446, 0
        %v1748 = vperm.slane %v1447, 0
        %v1749 = vperm.slane %v1448, 0
        %v1750 = vperm.slane %v1449, 0
        %v1751 = vperm.slane %v1450, 0
        %v1752 = vperm.slane %v1451, 0
        %v1753 = vperm.slane %v1452, 0
        %v1754 = vperm.slane %v1453, 0
        %v1755 = vperm.slane %v1454, 0
        %v1756 = vperm.slane %v1455, 0
        %v1757 = vperm.slane %v1456, 0
        %v1758 = vperm.slane %v1457, 0
        %v1759 = vperm.slane %v1458, 0
        %v1760 = vperm.slane %v1459, 0
        %v1761 = vperm.slane %v1460, 0
        %v1762 = vperm.slane %v1461, 0
        %v1763 = vperm.slane %v1462, 0
        %v1764 = vperm.slane %v1463, 0
        %v1765 = vperm.slane %v1464, 0
        %v1766 = vperm.slane %v1465, 0
        %v1767 = vperm.slane %v1466, 0
        %v1768 = vperm.slane %v1467, 0
        %v1769 = vperm.slane %v1468, 0
        %v1770 = vperm.slane %v1469, 0
        %v1771 = vperm.slane %v1470, 0
        %v1772 = vperm.slane %v1471, 0
        %v1773 = vperm.slane %v1472, 0
        %v1774 = vperm.slane %v1473, 0
        %v1775 = vperm.slane %v1474, 0
        %v1776 = vperm.slane %v1475, 0
        %v1777 = vperm.slane %v1476, 0
        %v1778 = vperm.slane %v1477, 0
        %v1779 = vperm.slane %v1478, 0
        %v1780 = vperm.slane %v1479, 0
        %v1781 = vperm.slane %v1480, 0
        %v1782 = vperm.slane %v1481, 0
        %v1783 = vperm.slane %v1482, 0
        %v1784 = vperm.slane %v1483, 0
        %v1785 = vperm.slane %v1484, 0
        %v1786 = vperm.slane %v1485, 0
        %v1787 = vperm.slane %v1486, 0
        %v1788 = vperm.slane %v1487, 0
        %v1789 = vperm.slane %v1488, 0
        %v1790 = vperm.slane %v1489, 0
        %v1791 = vperm.slane %v1490, 0
        %v1792 = vperm.slane %v1491, 0
        %v1793 = vperm.slane %v1492, 0
        %v1794 = vperm.slane %v1493, 0
        %v1795 = vperm.slane %v1494, 0
        %v1796 = vperm.slane %v1495, 0
        %v1797 = vperm.slane %v1496, 0
        %v1798 = vperm.slane %v1497, 0
        %v1799 = vperm.slane %v1498, 0
        %v1800 = vperm.slane %v1499, 0
        %v1801 = vperm.slane %v1500, 0
        %v1802 = vperm.slane %v1501, 0
        %v1803 = vperm.slane %v1502, 0
        %v1804 = vperm.slane %v1503, 0
        %v1805 = vperm.slane %v1504, 0
        %v1806 = vperm.slane %v1505, 0
        %v1807 = vperm.slane %v1506, 0
        %v1808 = vperm.slane %v1507, 0
        %v1809 = vperm.slane %v1508, 0
        %v1810 = vperm.slane %v1509, 0
        %v1811 = vperm.slane %v1510, 0
        %v1812 = vperm.slane %v1511, 0
        %v1813 = vperm.slane %v1512, 0
        %v1814 = vperm.slane %v1513, 0
        %v1815 = vperm.slane %v1514, 0
        %v1816 = vperm.slane %v1515, 0
        %v1817 = vperm.slane %v1516, 0
        %v1818 = vperm.slane %v1517, 0
        %v1819 = vperm.slane %v1518, 0
        %v1820 = vperm.slane %v1519, 0
        %v1821 = vperm.slane %v1520, 0
        %v1822 = vperm.slane %v1521, 0
        %v1823 = vperm.slane %v1522, 0
        %v1824 = vperm.slane %v1523, 0
        %v1825 = vperm.slane %v1524, 0
        %v1826 = vperm.slane %v1525, 0
        %v1827 = vperm.slane %v1526, 0
        %v1828 = vperm.slane %v1527, 0
        %v1829 = vperm.slane %v1528, 0
        %v1830 = vperm.slane %v1529, 0
        %v1831 = vperm.slane %v1530, 0
        %v1832 = vperm.slane %v1531, 0
        %v1833 = vperm.slane %v1532, 0
        %v1834 = vperm.slane %v1533, 0
        %v1835 = vperm.slane %v1534, 0
        %v1836 = vperm.slane %v1535, 0
        %v1837 = vperm.slane %v1536, 0
        %v1838 = vperm.slane %v1537, 0
        %v1839 = vperm.slane %v1538, 0
        %v1840 = vperm.slane %v1539, 0
        %v1841 = vperm.slane %v1540, 0
        %v1842 = vperm.slane %v1541, 0
        %v1843 = vperm.slane %v1542, 0
        %v1844 = vperm.slane %v1543, 0
        %v1845 = vperm.slane %v1544, 0
        %v1846 = vperm.slane %v1545, 0
        %v1847 = vperm.slane %v1546, 0
        %v1848 = vperm.slane %v1547, 0
        %v1849 = vperm.slane %v1548, 0
        %vm1850 = vcmask 1041409
        %v1851 = vsel %vm1850, %v1723, %v1722
        %vm1852 = vcmask 1042434
        %v1853 = vsel %vm1852, %v1724, %v1851
        %vm1854 = vcmask 1043459
        %v1855 = vsel %vm1854, %v1725, %v1853
        %vm1856 = vcmask 1044484
        %v1857 = vsel %vm1856, %v1726, %v1855
        %vm1858 = vcmask 1045509
        %v1859 = vsel %vm1858, %v1727, %v1857
        %vm1860 = vcmask 1046534
        %v1861 = vsel %vm1860, %v1728, %v1859
        %vm1862 = vcmask 1047559
        %v1863 = vsel %vm1862, %v1729, %v1861
        %v1864 = vsel %vm1850, %v1731, %v1730
        %v1865 = vsel %vm1852, %v1732, %v1864
        %v1866 = vsel %vm1854, %v1733, %v1865
        %v1867 = vsel %vm1856, %v1734, %v1866
        %v1868 = vsel %vm1858, %v1735, %v1867
        %v1869 = vsel %vm1860, %v1736, %v1868
        %v1870 = vsel %vm1862, %v1737, %v1869
        %v1871 = vsel %vm1850, %v1739, %v1738
        %v1872 = vsel %vm1852, %v1740, %v1871
        %v1873 = vsel %vm1854, %v1741, %v1872
        %v1874 = vsel %vm1856, %v1742, %v1873
        %v1875 = vsel %vm1858, %v1743, %v1874
        %v1876 = vsel %vm1860, %v1744, %v1875
        %v1877 = vsel %vm1862, %v1745, %v1876
        %v1878 = vsel %vm1850, %v1747, %v1746
        %v1879 = vsel %vm1852, %v1748, %v1878
        %v1880 = vsel %vm1854, %v1749, %v1879
        %v1881 = vsel %vm1856, %v1750, %v1880
        %v1882 = vsel %vm1858, %v1751, %v1881
        %v1883 = vsel %vm1860, %v1752, %v1882
        %v1884 = vsel %vm1862, %v1753, %v1883
        %v1885 = vsel %vm1850, %v1755, %v1754
        %v1886 = vsel %vm1852, %v1756, %v1885
        %v1887 = vsel %vm1854, %v1757, %v1886
        %v1888 = vsel %vm1856, %v1758, %v1887
        %v1889 = vsel %vm1858, %v1759, %v1888
        %v1890 = vsel %vm1860, %v1760, %v1889
        %v1891 = vsel %vm1862, %v1761, %v1890
        %v1892 = vsel %vm1850, %v1763, %v1762
        %v1893 = vsel %vm1852, %v1764, %v1892
        %v1894 = vsel %vm1854, %v1765, %v1893
        %v1895 = vsel %vm1856, %v1766, %v1894
        %v1896 = vsel %vm1858, %v1767, %v1895
        %v1897 = vsel %vm1860, %v1768, %v1896
        %v1898 = vsel %vm1862, %v1769, %v1897
        %v1899 = vsel %vm1850, %v1771, %v1770
        %v1900 = vsel %vm1852, %v1772, %v1899
        %v1901 = vsel %vm1854, %v1773, %v1900
        %v1902 = vsel %vm1856, %v1774, %v1901
        %v1903 = vsel %vm1858, %v1775, %v1902
        %v1904 = vsel %vm1860, %v1776, %v1903
        %v1905 = vsel %vm1862, %v1777, %v1904
        %v1906 = vsel %vm1850, %v1779, %v1778
        %v1907 = vsel %vm1852, %v1780, %v1906
        %v1908 = vsel %vm1854, %v1781, %v1907
        %v1909 = vsel %vm1856, %v1782, %v1908
        %v1910 = vsel %vm1858, %v1783, %v1909
        %v1911 = vsel %vm1860, %v1784, %v1910
        %v1912 = vsel %vm1862, %v1785, %v1911
        %v1913 = vsel %vm1850, %v1787, %v1786
        %v1914 = vsel %vm1852, %v1788, %v1913
        %v1915 = vsel %vm1854, %v1789, %v1914
        %v1916 = vsel %vm1856, %v1790, %v1915
        %v1917 = vsel %vm1858, %v1791, %v1916
        %v1918 = vsel %vm1860, %v1792, %v1917
        %v1919 = vsel %vm1862, %v1793, %v1918
        %v1920 = vsel %vm1850, %v1795, %v1794
        %v1921 = vsel %vm1852, %v1796, %v1920
        %v1922 = vsel %vm1854, %v1797, %v1921
        %v1923 = vsel %vm1856, %v1798, %v1922
        %v1924 = vsel %vm1858, %v1799, %v1923
        %v1925 = vsel %vm1860, %v1800, %v1924
        %v1926 = vsel %vm1862, %v1801, %v1925
        %v1927 = vsel %vm1850, %v1803, %v1802
        %v1928 = vsel %vm1852, %v1804, %v1927
        %v1929 = vsel %vm1854, %v1805, %v1928
        %v1930 = vsel %vm1856, %v1806, %v1929
        %v1931 = vsel %vm1858, %v1807, %v1930
        %v1932 = vsel %vm1860, %v1808, %v1931
        %v1933 = vsel %vm1862, %v1809, %v1932
        %v1934 = vsel %vm1850, %v1811, %v1810
        %v1935 = vsel %vm1852, %v1812, %v1934
        %v1936 = vsel %vm1854, %v1813, %v1935
        %v1937 = vsel %vm1856, %v1814, %v1936
        %v1938 = vsel %vm1858, %v1815, %v1937
        %v1939 = vsel %vm1860, %v1816, %v1938
        %v1940 = vsel %vm1862, %v1817, %v1939
        %v1941 = vsel %vm1850, %v1819, %v1818
        %v1942 = vsel %vm1852, %v1820, %v1941
        %v1943 = vsel %vm1854, %v1821, %v1942
        %v1944 = vsel %vm1856, %v1822, %v1943
        %v1945 = vsel %vm1858, %v1823, %v1944
        %v1946 = vsel %vm1860, %v1824, %v1945
        %v1947 = vsel %vm1862, %v1825, %v1946
        %v1948 = vsel %vm1850, %v1827, %v1826
        %v1949 = vsel %vm1852, %v1828, %v1948
        %v1950 = vsel %vm1854, %v1829, %v1949
        %v1951 = vsel %vm1856, %v1830, %v1950
        %v1952 = vsel %vm1858, %v1831, %v1951
        %v1953 = vsel %vm1860, %v1832, %v1952
        %v1954 = vsel %vm1862, %v1833, %v1953
        %v1955 = vsel %vm1850, %v1835, %v1834
        %v1956 = vsel %vm1852, %v1836, %v1955
        %v1957 = vsel %vm1854, %v1837, %v1956
        %v1958 = vsel %vm1856, %v1838, %v1957
        %v1959 = vsel %vm1858, %v1839, %v1958
        %v1960 = vsel %vm1860, %v1840, %v1959
        %v1961 = vsel %vm1862, %v1841, %v1960
        %v1962 = vsel %vm1850, %v1843, %v1842
        %v1963 = vsel %vm1852, %v1844, %v1962
        %v1964 = vsel %vm1854, %v1845, %v1963
        %v1965 = vsel %vm1856, %v1846, %v1964
        %v1966 = vsel %vm1858, %v1847, %v1965
        %v1967 = vsel %vm1860, %v1848, %v1966
        %v1968 = vsel %vm1862, %v1849, %v1967
        %1985 = vst.msk [vmem:[%s1560 + $0x1] sm:$0xff] %vm1549, %v1863
        %1986 = vst.msk [vmem:[%s1560 + $0x11] sm:$0xff] %vm1549, %v1870
        %1987 = vst.msk [vmem:[%s1560 + $0x21] sm:$0xff] %vm1549, %v1877
        %1988 = vst.msk [vmem:[%s1560 + $0x31] sm:$0xff] %vm1549, %v1884
        %1989 = vst.msk [vmem:[%s1560 + $0x41] sm:$0xff] %vm1549, %v1891
        %1990 = vst.msk [vmem:[%s1560 + $0x51] sm:$0xff] %vm1549, %v1898
        %1991 = vst.msk [vmem:[%s1560 + $0x61] sm:$0xff] %vm1549, %v1905
        %1992 = vst.msk [vmem:[%s1560 + $0x71] sm:$0xff] %vm1549, %v1912
        %1993 = vst.msk [vmem:[%s1560 + $0xa1] sm:$0xff] %vm1549, %v1919
        %1994 = vst.msk [vmem:[%s1560 + $0xb1] sm:$0xff] %vm1549, %v1926
        %1995 = vst.msk [vmem:[%s1560 + $0xc1] sm:$0xff] %vm1549, %v1933
        %1996 = vst.msk [vmem:[%s1560 + $0xd1] sm:$0xff] %vm1549, %v1940
        %1997 = vst.msk [vmem:[%s1560 + $0xe1] sm:$0xff] %vm1549, %v1947
        %1998 = vst.msk [vmem:[%s1560 + $0xf1] sm:$0xff] %vm1549, %v1954
        %1999 = vst.msk [vmem:[%s1560 + $0x101] sm:$0xff] %vm1549, %v1961
        %2000 = vst.msk [vmem:[%s1560 + $0x111] sm:$0xff] %vm1549, %v1968
        %v2001 = vld [vmem:[#allocation2] sm:$0xff]
        %v2002 = vld [vmem:[#allocation2 + $0x10] sm:$0xff]
        %v2003 = vld [vmem:[#allocation2 + $0x20] sm:$0xff]
        %v2004 = vld [vmem:[#allocation2 + $0x30] sm:$0xff]
        %v2005 = vld [vmem:[#allocation2 + $0x40] sm:$0xff]
        %v2006 = vld [vmem:[#allocation2 + $0x50] sm:$0xff]
        %v2007 = vld [vmem:[#allocation2 + $0x60] sm:$0xff]
        %v2008 = vld [vmem:[#allocation2 + $0x70] sm:$0xff]
        %v2009 = vld [vmem:[#allocation2 + $0xa0] sm:$0xff]
        %v2010 = vld [vmem:[#allocation2 + $0xb0] sm:$0xff]
        %v2011 = vld [vmem:[#allocation2 + $0xc0] sm:$0xff]
        %v2012 = vld [vmem:[#allocation2 + $0xd0] sm:$0xff]
        %v2013 = vld [vmem:[#allocation2 + $0xe0] sm:$0xff]
        %v2014 = vld [vmem:[#allocation2 + $0xf0] sm:$0xff]
        %v2015 = vld [vmem:[#allocation2 + $0x100] sm:$0xff]
        %v2016 = vld [vmem:[#allocation2 + $0x110] sm:$0xff]
        %v2017 = vpack.c.bf16 %v2002, %v2001
        %v2018 = vpack.c.bf16 %v2004, %v2003
        %v2019 = vpack.c.bf16 %v2006, %v2005
        %v2020 = vpack.c.bf16 %v2008, %v2007
        %v2021 = vpack.c.bf16 %v2010, %v2009
        %v2022 = vpack.c.bf16 %v2012, %v2011
        %v2023 = vpack.c.bf16 %v2014, %v2013
        %v2024 = vpack.c.bf16 %v2016, %v2015
        %v2025 = vld [vmem:[%s2] sm:$0xf]
        %v2026 = vld [vmem:[%s2 + $0x4] sm:$0xf]
        %v2027 = vld [vmem:[%s2 + $0x8] sm:$0xf]
        %v2028 = vld [vmem:[%s2 + $0xc] sm:$0xf]
        %v2029 = vld [vmem:[%s2 + $0x10] sm:$0xf]
        %v2030 = vld [vmem:[%s2 + $0x14] sm:$0xf]
        %v2031 = vld [vmem:[%s2 + $0x18] sm:$0xf]
        %v2032 = vld [vmem:[%s2 + $0x1c] sm:$0xf]
        %v2033 = vld [vmem:[#allocation2 + $0x1] sm:$0xff]
        %v2034 = vld [vmem:[#allocation2 + $0x11] sm:$0xff]
        %v2035 = vld [vmem:[#allocation2 + $0x21] sm:$0xff]
        %v2036 = vld [vmem:[#allocation2 + $0x31] sm:$0xff]
        %v2037 = vld [vmem:[#allocation2 + $0x41] sm:$0xff]
        %v2038 = vld [vmem:[#allocation2 + $0x51] sm:$0xff]
        %v2039 = vld [vmem:[#allocation2 + $0x61] sm:$0xff]
        %v2040 = vld [vmem:[#allocation2 + $0x71] sm:$0xff]
        %v2041 = vld [vmem:[#allocation2 + $0xa1] sm:$0xff]
        %v2042 = vld [vmem:[#allocation2 + $0xb1] sm:$0xff]
        %v2043 = vld [vmem:[#allocation2 + $0xc1] sm:$0xff]
        %v2044 = vld [vmem:[#allocation2 + $0xd1] sm:$0xff]
        %v2045 = vld [vmem:[#allocation2 + $0xe1] sm:$0xff]
        %v2046 = vld [vmem:[#allocation2 + $0xf1] sm:$0xff]
        %v2047 = vld [vmem:[#allocation2 + $0x101] sm:$0xff]
        %v2048 = vld [vmem:[#allocation2 + $0x111] sm:$0xff]
        %v2049 = vpack.c.bf16 %v2034, %v2033
        %v2050 = vpack.c.bf16 %v2036, %v2035
        %v2051 = vpack.c.bf16 %v2038, %v2037
        %v2052 = vpack.c.bf16 %v2040, %v2039
        %v2053 = vpack.c.bf16 %v2042, %v2041
        %v2054 = vpack.c.bf16 %v2044, %v2043
        %v2055 = vpack.c.bf16 %v2046, %v2045
        %v2056 = vpack.c.bf16 %v2048, %v2047
        %s2057 = scalar_lea.vmem %s2, 32
        %v2058 = vld [vmem:[%s2057] sm:$0xf]
        %v2059 = vld [vmem:[%s2057 + $0x4] sm:$0xf]
        %v2060 = vld [vmem:[%s2057 + $0x8] sm:$0xf]
        %v2061 = vld [vmem:[%s2057 + $0xc] sm:$0xf]
        %v2062 = vld [vmem:[%s2057 + $0x10] sm:$0xf]
        %v2063 = vld [vmem:[%s2057 + $0x14] sm:$0xf]
        %v2064 = vld [vmem:[%s2057 + $0x18] sm:$0xf]
        %v2065 = vld [vmem:[%s2057 + $0x1c] sm:$0xf]
        %v2074 = vunpack.c.l.b16 %v2058
        %v2075 = vunpack.c.l.b16 %v2059
        %v2076 = vunpack.c.l.b16 %v2060
        %v2077 = vunpack.c.l.b16 %v2061
        %v2078 = vunpack.c.l.b16 %v2062
        %v2079 = vunpack.c.l.b16 %v2063
        %v2080 = vunpack.c.l.b16 %v2064
        %v2081 = vunpack.c.l.b16 %v2065
        %v2082 = vpack.c.b16 %v2075, %v2074
        %v2083 = vpack.c.b16 %v2077, %v2076
        %v2084 = vpack.c.b16 %v2079, %v2078
        %v2085 = vpack.c.b16 %v2081, %v2080
        %v2091 = vsel %vm1549, %v2049, 0
        %v2094 = vsel %vm1549, %v2050, 0
        %v2097 = vsel %vm1549, %v2051, 0
        %v2100 = vsel %vm1549, %v2052, 0
        %v2103 = vsel %vm1549, %v2053, 0
        %v2106 = vsel %vm1549, %v2054, 0
        %v2109 = vsel %vm1549, %v2055, 0
        %v2112 = vsel %vm1549, %v2056, 0
        %2114 = vmatpush.bf16.msra.mxu0 0
        %2115 = vmatpush.bf16.msra.mxu0 0
        %2116 = vmatpush.bf16.msra.mxu0 0
        %2117 = vmatpush.bf16.msra.mxu0 0
        %2118 = vmatpush.bf16.msra.mxu0 %v2085
        %2119 = vmatpush.bf16.msra.mxu0 %v2084
        %2120 = vmatpush.bf16.msra.mxu0 %v2083
        %2121 = vmatpush.bf16.msra.mxu0 %v2082
        %2122 = vmatmul.bf16.gmra.mxu0 %v2091
        %v2123 = vpop.f32.mrf.mxu0
        %v2124 = vadd.f32 0.0, %v2123
        %v2125 = vpop.f32.mrf.mxu0
        %v2126 = vadd.f32 0.0, %v2125
        %2127 = vmatmul.bf16.gmra.mxu0 %v2094
        %v2128 = vpop.f32.mrf.mxu0
        %v2129 = vadd.f32 0.0, %v2128
        %v2130 = vpop.f32.mrf.mxu0
        %v2131 = vadd.f32 0.0, %v2130
        %2132 = vmatmul.bf16.gmra.mxu0 %v2097
        %v2133 = vpop.f32.mrf.mxu0
        %v2134 = vadd.f32 0.0, %v2133
        %v2135 = vpop.f32.mrf.mxu0
        %v2136 = vadd.f32 0.0, %v2135
        %2137 = vmatmul.bf16.gmra.mxu0 %v2100
        %v2138 = vpop.f32.mrf.mxu0
        %v2139 = vadd.f32 0.0, %v2138
        %v2140 = vpop.f32.mrf.mxu0
        %v2141 = vadd.f32 0.0, %v2140
        %2142 = vmatmul.bf16.gmra.mxu0 %v2103
        %v2143 = vpop.f32.mrf.mxu0
        %v2144 = vadd.f32 0.0, %v2143
        %v2145 = vpop.f32.mrf.mxu0
        %v2146 = vadd.f32 0.0, %v2145
        %2147 = vmatmul.bf16.gmra.mxu0 %v2106
        %v2148 = vpop.f32.mrf.mxu0
        %v2149 = vadd.f32 0.0, %v2148
        %v2150 = vpop.f32.mrf.mxu0
        %v2151 = vadd.f32 0.0, %v2150
        %2152 = vmatmul.bf16.gmra.mxu0 %v2109
        %v2153 = vpop.f32.mrf.mxu0
        %v2154 = vadd.f32 0.0, %v2153
        %v2155 = vpop.f32.mrf.mxu0
        %v2156 = vadd.f32 0.0, %v2155
        %2157 = vmatmul.bf16.gmra.mxu0 %v2112
        %v2158 = vpop.f32.mrf.mxu0
        %v2159 = vadd.f32 0.0, %v2158
        %v2160 = vpop.f32.mrf.mxu0
        %v2161 = vadd.f32 0.0, %v2160
        %2162 = vdwg.mxu0
        %v2171 = vunpack.c.l.b16 %v2025
        %v2172 = vunpack.c.l.b16 %v2026
        %v2173 = vunpack.c.l.b16 %v2027
        %v2174 = vunpack.c.l.b16 %v2028
        %v2175 = vunpack.c.l.b16 %v2029
        %v2176 = vunpack.c.l.b16 %v2030
        %v2177 = vunpack.c.l.b16 %v2031
        %v2178 = vunpack.c.l.b16 %v2032
        %v2179 = vpack.c.b16 %v2172, %v2171
        %v2180 = vpack.c.b16 %v2174, %v2173
        %v2181 = vpack.c.b16 %v2176, %v2175
        %v2182 = vpack.c.b16 %v2178, %v2177
        %v2188 = vsel %vm1549, %v2017, 0
        %v2191 = vsel %vm1549, %v2018, 0
        %v2194 = vsel %vm1549, %v2019, 0
        %v2197 = vsel %vm1549, %v2020, 0
        %v2200 = vsel %vm1549, %v2021, 0
        %v2203 = vsel %vm1549, %v2022, 0
        %v2206 = vsel %vm1549, %v2023, 0
        %v2209 = vsel %vm1549, %v2024, 0
        %2211 = vmatpush.bf16.msra.mxu0 0
        %2212 = vmatpush.bf16.msra.mxu0 0
        %2213 = vmatpush.bf16.msra.mxu0 0
        %2214 = vmatpush.bf16.msra.mxu0 0
        %2215 = vmatpush.bf16.msra.mxu0 %v2182
        %2216 = vmatpush.bf16.msra.mxu0 %v2181
        %2217 = vmatpush.bf16.msra.mxu0 %v2180
        %2218 = vmatpush.bf16.msra.mxu0 %v2179
        %2219 = vmatmul.bf16.gmra.mxu0 %v2188
        %v2220 = vpop.f32.mrf.mxu0
        %v2221 = vadd.f32 %v2124, %v2220
        %v2222 = vpop.f32.mrf.mxu0
        %v2223 = vadd.f32 %v2126, %v2222
        %2224 = vmatmul.bf16.gmra.mxu0 %v2191
        %v2225 = vpop.f32.mrf.mxu0
        %v2226 = vadd.f32 %v2129, %v2225
        %v2227 = vpop.f32.mrf.mxu0
        %v2228 = vadd.f32 %v2131, %v2227
        %2229 = vmatmul.bf16.gmra.mxu0 %v2194
        %v2230 = vpop.f32.mrf.mxu0
        %v2231 = vadd.f32 %v2134, %v2230
        %v2232 = vpop.f32.mrf.mxu0
        %v2233 = vadd.f32 %v2136, %v2232
        %2234 = vmatmul.bf16.gmra.mxu0 %v2197
        %v2235 = vpop.f32.mrf.mxu0
        %v2236 = vadd.f32 %v2139, %v2235
        %v2237 = vpop.f32.mrf.mxu0
        %v2238 = vadd.f32 %v2141, %v2237
        %2239 = vmatmul.bf16.gmra.mxu0 %v2200
        %v2240 = vpop.f32.mrf.mxu0
        %v2241 = vadd.f32 %v2144, %v2240
        %v2242 = vpop.f32.mrf.mxu0
        %v2243 = vadd.f32 %v2146, %v2242
        %2244 = vmatmul.bf16.gmra.mxu0 %v2203
        %v2245 = vpop.f32.mrf.mxu0
        %v2246 = vadd.f32 %v2149, %v2245
        %v2247 = vpop.f32.mrf.mxu0
        %v2248 = vadd.f32 %v2151, %v2247
        %2249 = vmatmul.bf16.gmra.mxu0 %v2206
        %v2250 = vpop.f32.mrf.mxu0
        %v2251 = vadd.f32 %v2154, %v2250
        %v2252 = vpop.f32.mrf.mxu0
        %v2253 = vadd.f32 %v2156, %v2252
        %2254 = vmatmul.bf16.gmra.mxu0 %v2209
        %v2255 = vpop.f32.mrf.mxu0
        %v2256 = vadd.f32 %v2159, %v2255
        %v2257 = vpop.f32.mrf.mxu0
        %v2258 = vadd.f32 %v2161, %v2257
        %2259 = vdwg.mxu0
        %v2260 = vld [vmem:[#allocation2 + $0x2] sm:$0xff]
        %v2261 = vld [vmem:[#allocation2 + $0x12] sm:$0xff]
        %v2262 = vld [vmem:[#allocation2 + $0x22] sm:$0xff]
        %v2263 = vld [vmem:[#allocation2 + $0x32] sm:$0xff]
        %v2264 = vld [vmem:[#allocation2 + $0x42] sm:$0xff]
        %v2265 = vld [vmem:[#allocation2 + $0x52] sm:$0xff]
        %v2266 = vld [vmem:[#allocation2 + $0x62] sm:$0xff]
        %v2267 = vld [vmem:[#allocation2 + $0x72] sm:$0xff]
        %v2268 = vld [vmem:[#allocation2 + $0xa2] sm:$0xff]
        %v2269 = vld [vmem:[#allocation2 + $0xb2] sm:$0xff]
        %v2270 = vld [vmem:[#allocation2 + $0xc2] sm:$0xff]
        %v2271 = vld [vmem:[#allocation2 + $0xd2] sm:$0xff]
        %v2272 = vld [vmem:[#allocation2 + $0xe2] sm:$0xff]
        %v2273 = vld [vmem:[#allocation2 + $0xf2] sm:$0xff]
        %v2274 = vld [vmem:[#allocation2 + $0x102] sm:$0xff]
        %v2275 = vld [vmem:[#allocation2 + $0x112] sm:$0xff]
        %v2276 = vpack.c.bf16 %v2261, %v2260
        %v2277 = vpack.c.bf16 %v2263, %v2262
        %v2278 = vpack.c.bf16 %v2265, %v2264
        %v2279 = vpack.c.bf16 %v2267, %v2266
        %v2280 = vpack.c.bf16 %v2269, %v2268
        %v2281 = vpack.c.bf16 %v2271, %v2270
        %v2282 = vpack.c.bf16 %v2273, %v2272
        %v2283 = vpack.c.bf16 %v2275, %v2274
        %s2284 = scalar_lea.vmem %s2, 64
        %v2285 = vld [vmem:[%s2284] sm:$0xf]
        %v2286 = vld [vmem:[%s2284 + $0x4] sm:$0xf]
        %v2287 = vld [vmem:[%s2284 + $0x8] sm:$0xf]
        %v2288 = vld [vmem:[%s2284 + $0xc] sm:$0xf]
        %v2289 = vld [vmem:[%s2284 + $0x10] sm:$0xf]
        %v2290 = vld [vmem:[%s2284 + $0x14] sm:$0xf]
        %v2291 = vld [vmem:[%s2284 + $0x18] sm:$0xf]
        %v2292 = vld [vmem:[%s2284 + $0x1c] sm:$0xf]
        %v2301 = vunpack.c.l.b16 %v2285
        %v2302 = vunpack.c.l.b16 %v2286
        %v2303 = vunpack.c.l.b16 %v2287
        %v2304 = vunpack.c.l.b16 %v2288
        %v2305 = vunpack.c.l.b16 %v2289
        %v2306 = vunpack.c.l.b16 %v2290
        %v2307 = vunpack.c.l.b16 %v2291
        %v2308 = vunpack.c.l.b16 %v2292
        %v2309 = vpack.c.b16 %v2302, %v2301
        %v2310 = vpack.c.b16 %v2304, %v2303
        %v2311 = vpack.c.b16 %v2306, %v2305
        %v2312 = vpack.c.b16 %v2308, %v2307
        %v2318 = vsel %vm1549, %v2276, 0
        %v2321 = vsel %vm1549, %v2277, 0
        %v2324 = vsel %vm1549, %v2278, 0
        %v2327 = vsel %vm1549, %v2279, 0
        %v2330 = vsel %vm1549, %v2280, 0
        %v2333 = vsel %vm1549, %v2281, 0
        %v2336 = vsel %vm1549, %v2282, 0
        %v2339 = vsel %vm1549, %v2283, 0
        %2341 = vmatpush.bf16.msra.mxu0 0
        %2342 = vmatpush.bf16.msra.mxu0 0
        %2343 = vmatpush.bf16.msra.mxu0 0
        %2344 = vmatpush.bf16.msra.mxu0 0
        %2345 = vmatpush.bf16.msra.mxu0 %v2312
        %2346 = vmatpush.bf16.msra.mxu0 %v2311
        %2347 = vmatpush.bf16.msra.mxu0 %v2310
        %2348 = vmatpush.bf16.msra.mxu0 %v2309
        %2349 = vmatmul.bf16.gmra.mxu0 %v2318
        %v2350 = vpop.f32.mrf.mxu0
        %v2351 = vadd.f32 0.0, %v2350
        %v2352 = vpop.f32.mrf.mxu0
        %v2353 = vadd.f32 0.0, %v2352
        %2354 = vmatmul.bf16.gmra.mxu0 %v2321
        %v2355 = vpop.f32.mrf.mxu0
        %v2356 = vadd.f32 0.0, %v2355
        %v2357 = vpop.f32.mrf.mxu0
        %v2358 = vadd.f32 0.0, %v2357
        %2359 = vmatmul.bf16.gmra.mxu0 %v2324
        %v2360 = vpop.f32.mrf.mxu0
        %v2361 = vadd.f32 0.0, %v2360
        %v2362 = vpop.f32.mrf.mxu0
        %v2363 = vadd.f32 0.0, %v2362
        %2364 = vmatmul.bf16.gmra.mxu0 %v2327
        %v2365 = vpop.f32.mrf.mxu0
        %v2366 = vadd.f32 0.0, %v2365
        %v2367 = vpop.f32.mrf.mxu0
        %v2368 = vadd.f32 0.0, %v2367
        %2369 = vmatmul.bf16.gmra.mxu0 %v2330
        %v2370 = vpop.f32.mrf.mxu0
        %v2371 = vadd.f32 0.0, %v2370
        %v2372 = vpop.f32.mrf.mxu0
        %v2373 = vadd.f32 0.0, %v2372
        %2374 = vmatmul.bf16.gmra.mxu0 %v2333
        %v2375 = vpop.f32.mrf.mxu0
        %v2376 = vadd.f32 0.0, %v2375
        %v2377 = vpop.f32.mrf.mxu0
        %v2378 = vadd.f32 0.0, %v2377
        %2379 = vmatmul.bf16.gmra.mxu0 %v2336
        %v2380 = vpop.f32.mrf.mxu0
        %v2381 = vadd.f32 0.0, %v2380
        %v2382 = vpop.f32.mrf.mxu0
        %v2383 = vadd.f32 0.0, %v2382
        %2384 = vmatmul.bf16.gmra.mxu0 %v2339
        %v2385 = vpop.f32.mrf.mxu0
        %v2386 = vadd.f32 0.0, %v2385
        %v2387 = vpop.f32.mrf.mxu0
        %v2388 = vadd.f32 0.0, %v2387
        %2389 = vdwg.mxu0
        %v2390 = vadd.f32 %v2221, %v2351
        %v2391 = vadd.f32 %v2223, %v2353
        %v2392 = vadd.f32 %v2226, %v2356
        %v2393 = vadd.f32 %v2228, %v2358
        %v2394 = vadd.f32 %v2231, %v2361
        %v2395 = vadd.f32 %v2233, %v2363
        %v2396 = vadd.f32 %v2236, %v2366
        %v2397 = vadd.f32 %v2238, %v2368
        %v2398 = vadd.f32 %v2241, %v2371
        %v2399 = vadd.f32 %v2243, %v2373
        %v2400 = vadd.f32 %v2246, %v2376
        %v2401 = vadd.f32 %v2248, %v2378
        %v2402 = vadd.f32 %v2251, %v2381
        %v2403 = vadd.f32 %v2253, %v2383
        %v2404 = vadd.f32 %v2256, %v2386
        %v2405 = vadd.f32 %v2258, %v2388
        %v2406 = vld [vmem:[%s1560] sm:$0xff]
        %v2407 = vld [vmem:[%s1560 + $0x10] sm:$0xff]
        %v2408 = vld [vmem:[%s1560 + $0x20] sm:$0xff]
        %v2409 = vld [vmem:[%s1560 + $0x30] sm:$0xff]
        %v2410 = vld [vmem:[%s1560 + $0x40] sm:$0xff]
        %v2411 = vld [vmem:[%s1560 + $0x50] sm:$0xff]
        %v2412 = vld [vmem:[%s1560 + $0x60] sm:$0xff]
        %v2413 = vld [vmem:[%s1560 + $0x70] sm:$0xff]
        %v2414 = vld [vmem:[%s1560 + $0xa0] sm:$0xff]
        %v2415 = vld [vmem:[%s1560 + $0xb0] sm:$0xff]
        %v2416 = vld [vmem:[%s1560 + $0xc0] sm:$0xff]
        %v2417 = vld [vmem:[%s1560 + $0xd0] sm:$0xff]
        %v2418 = vld [vmem:[%s1560 + $0xe0] sm:$0xff]
        %v2419 = vld [vmem:[%s1560 + $0xf0] sm:$0xff]
        %v2420 = vld [vmem:[%s1560 + $0x100] sm:$0xff]
        %v2421 = vld [vmem:[%s1560 + $0x110] sm:$0xff]
        %v2422 = vpack.c.bf16 %v2407, %v2406
        %v2423 = vpack.c.bf16 %v2409, %v2408
        %v2424 = vpack.c.bf16 %v2411, %v2410
        %v2425 = vpack.c.bf16 %v2413, %v2412
        %v2426 = vpack.c.bf16 %v2415, %v2414
        %v2427 = vpack.c.bf16 %v2417, %v2416
        %v2428 = vpack.c.bf16 %v2419, %v2418
        %v2429 = vpack.c.bf16 %v2421, %v2420
        %s2430 = scalar_lea.vmem %s2, 96
        %v2431 = vld [vmem:[%s2430] sm:$0xf]
        %v2432 = vld [vmem:[%s2430 + $0x4] sm:$0xf]
        %v2433 = vld [vmem:[%s2430 + $0x8] sm:$0xf]
        %v2434 = vld [vmem:[%s2430 + $0xc] sm:$0xf]
        %v2435 = vld [vmem:[%s2430 + $0x10] sm:$0xf]
        %v2436 = vld [vmem:[%s2430 + $0x14] sm:$0xf]
        %v2437 = vld [vmem:[%s2430 + $0x18] sm:$0xf]
        %v2438 = vld [vmem:[%s2430 + $0x1c] sm:$0xf]
        %v2447 = vunpack.c.l.b16 %v2431
        %v2448 = vunpack.c.l.b16 %v2432
        %v2449 = vunpack.c.l.b16 %v2433
        %v2450 = vunpack.c.l.b16 %v2434
        %v2451 = vunpack.c.l.b16 %v2435
        %v2452 = vunpack.c.l.b16 %v2436
        %v2453 = vunpack.c.l.b16 %v2437
        %v2454 = vunpack.c.l.b16 %v2438
        %v2455 = vpack.c.b16 %v2448, %v2447
        %v2456 = vpack.c.b16 %v2450, %v2449
        %v2457 = vpack.c.b16 %v2452, %v2451
        %v2458 = vpack.c.b16 %v2454, %v2453
        %v2464 = vsel %vm1549, %v2422, 0
        %v2467 = vsel %vm1549, %v2423, 0
        %v2470 = vsel %vm1549, %v2424, 0
        %v2473 = vsel %vm1549, %v2425, 0
        %v2476 = vsel %vm1549, %v2426, 0
        %v2479 = vsel %vm1549, %v2427, 0
        %v2482 = vsel %vm1549, %v2428, 0
        %v2485 = vsel %vm1549, %v2429, 0
        %2487 = vmatpush.bf16.msra.mxu0 0
        %2488 = vmatpush.bf16.msra.mxu0 0
        %2489 = vmatpush.bf16.msra.mxu0 0
        %2490 = vmatpush.bf16.msra.mxu0 0
        %2491 = vmatpush.bf16.msra.mxu0 %v2458
        %2492 = vmatpush.bf16.msra.mxu0 %v2457
        %2493 = vmatpush.bf16.msra.mxu0 %v2456
        %2494 = vmatpush.bf16.msra.mxu0 %v2455
        %2495 = vmatmul.bf16.gmra.mxu0 %v2464
        %v2496 = vpop.f32.mrf.mxu0
        %v2497 = vadd.f32 0.0, %v2496
        %v2498 = vpop.f32.mrf.mxu0
        %v2499 = vadd.f32 0.0, %v2498
        %2500 = vmatmul.bf16.gmra.mxu0 %v2467
        %v2501 = vpop.f32.mrf.mxu0
        %v2502 = vadd.f32 0.0, %v2501
        %v2503 = vpop.f32.mrf.mxu0
        %v2504 = vadd.f32 0.0, %v2503
        %2505 = vmatmul.bf16.gmra.mxu0 %v2470
        %v2506 = vpop.f32.mrf.mxu0
        %v2507 = vadd.f32 0.0, %v2506
        %v2508 = vpop.f32.mrf.mxu0
        %v2509 = vadd.f32 0.0, %v2508
        %2510 = vmatmul.bf16.gmra.mxu0 %v2473
        %v2511 = vpop.f32.mrf.mxu0
        %v2512 = vadd.f32 0.0, %v2511
        %v2513 = vpop.f32.mrf.mxu0
        %v2514 = vadd.f32 0.0, %v2513
        %2515 = vmatmul.bf16.gmra.mxu0 %v2476
        %v2516 = vpop.f32.mrf.mxu0
        %v2517 = vadd.f32 0.0, %v2516
        %v2518 = vpop.f32.mrf.mxu0
        %v2519 = vadd.f32 0.0, %v2518
        %2520 = vmatmul.bf16.gmra.mxu0 %v2479
        %v2521 = vpop.f32.mrf.mxu0
        %v2522 = vadd.f32 0.0, %v2521
        %v2523 = vpop.f32.mrf.mxu0
        %v2524 = vadd.f32 0.0, %v2523
        %2525 = vmatmul.bf16.gmra.mxu0 %v2482
        %v2526 = vpop.f32.mrf.mxu0
        %v2527 = vadd.f32 0.0, %v2526
        %v2528 = vpop.f32.mrf.mxu0
        %v2529 = vadd.f32 0.0, %v2528
        %2530 = vmatmul.bf16.gmra.mxu0 %v2485
        %v2531 = vpop.f32.mrf.mxu0
        %v2532 = vadd.f32 0.0, %v2531
        %v2533 = vpop.f32.mrf.mxu0
        %v2534 = vadd.f32 0.0, %v2533
        %2535 = vdwg.mxu0
        %v2536 = vadd.f32 %v2390, %v2497
        %v2537 = vadd.f32 %v2391, %v2499
        %v2538 = vadd.f32 %v2392, %v2502
        %v2539 = vadd.f32 %v2393, %v2504
        %v2540 = vadd.f32 %v2394, %v2507
        %v2541 = vadd.f32 %v2395, %v2509
        %v2542 = vadd.f32 %v2396, %v2512
        %v2543 = vadd.f32 %v2397, %v2514
        %v2544 = vadd.f32 %v2398, %v2517
        %v2545 = vadd.f32 %v2399, %v2519
        %v2546 = vadd.f32 %v2400, %v2522
        %v2547 = vadd.f32 %v2401, %v2524
        %v2548 = vadd.f32 %v2402, %v2527
        %v2549 = vadd.f32 %v2403, %v2529
        %v2550 = vadd.f32 %v2404, %v2532
        %v2551 = vadd.f32 %v2405, %v2534
        %v2552 = vld [vmem:[%s1560 + $0x1] sm:$0xff]
        %v2553 = vld [vmem:[%s1560 + $0x11] sm:$0xff]
        %v2554 = vld [vmem:[%s1560 + $0x21] sm:$0xff]
        %v2555 = vld [vmem:[%s1560 + $0x31] sm:$0xff]
        %v2556 = vld [vmem:[%s1560 + $0x41] sm:$0xff]
        %v2557 = vld [vmem:[%s1560 + $0x51] sm:$0xff]
        %v2558 = vld [vmem:[%s1560 + $0x61] sm:$0xff]
        %v2559 = vld [vmem:[%s1560 + $0x71] sm:$0xff]
        %v2560 = vld [vmem:[%s1560 + $0xa1] sm:$0xff]
        %v2561 = vld [vmem:[%s1560 + $0xb1] sm:$0xff]
        %v2562 = vld [vmem:[%s1560 + $0xc1] sm:$0xff]
        %v2563 = vld [vmem:[%s1560 + $0xd1] sm:$0xff]
        %v2564 = vld [vmem:[%s1560 + $0xe1] sm:$0xff]
        %v2565 = vld [vmem:[%s1560 + $0xf1] sm:$0xff]
        %v2566 = vld [vmem:[%s1560 + $0x101] sm:$0xff]
        %v2567 = vld [vmem:[%s1560 + $0x111] sm:$0xff]
        %v2568 = vpack.c.bf16 %v2553, %v2552
        %v2569 = vpack.c.bf16 %v2555, %v2554
        %v2570 = vpack.c.bf16 %v2557, %v2556
        %v2571 = vpack.c.bf16 %v2559, %v2558
        %v2572 = vpack.c.bf16 %v2561, %v2560
        %v2573 = vpack.c.bf16 %v2563, %v2562
        %v2574 = vpack.c.bf16 %v2565, %v2564
        %v2575 = vpack.c.bf16 %v2567, %v2566
        %s2576 = scalar_lea.vmem %s2, 128
        %v2577 = vld [vmem:[%s2576] sm:$0xf]
        %v2578 = vld [vmem:[%s2576 + $0x4] sm:$0xf]
        %v2579 = vld [vmem:[%s2576 + $0x8] sm:$0xf]
        %v2580 = vld [vmem:[%s2576 + $0xc] sm:$0xf]
        %v2581 = vld [vmem:[%s2576 + $0x10] sm:$0xf]
        %v2582 = vld [vmem:[%s2576 + $0x14] sm:$0xf]
        %v2583 = vld [vmem:[%s2576 + $0x18] sm:$0xf]
        %v2584 = vld [vmem:[%s2576 + $0x1c] sm:$0xf]
        %v2593 = vunpack.c.l.b16 %v2577
        %v2594 = vunpack.c.l.b16 %v2578
        %v2595 = vunpack.c.l.b16 %v2579
        %v2596 = vunpack.c.l.b16 %v2580
        %v2597 = vunpack.c.l.b16 %v2581
        %v2598 = vunpack.c.l.b16 %v2582
        %v2599 = vunpack.c.l.b16 %v2583
        %v2600 = vunpack.c.l.b16 %v2584
        %v2601 = vpack.c.b16 %v2594, %v2593
        %v2602 = vpack.c.b16 %v2596, %v2595
        %v2603 = vpack.c.b16 %v2598, %v2597
        %v2604 = vpack.c.b16 %v2600, %v2599
        %v2610 = vsel %vm1549, %v2568, 0
        %v2613 = vsel %vm1549, %v2569, 0
        %v2616 = vsel %vm1549, %v2570, 0
        %v2619 = vsel %vm1549, %v2571, 0
        %v2622 = vsel %vm1549, %v2572, 0
        %v2625 = vsel %vm1549, %v2573, 0
        %v2628 = vsel %vm1549, %v2574, 0
        %v2631 = vsel %vm1549, %v2575, 0
        %2633 = vmatpush.bf16.msra.mxu0 0
        %2634 = vmatpush.bf16.msra.mxu0 0
        %2635 = vmatpush.bf16.msra.mxu0 0
        %2636 = vmatpush.bf16.msra.mxu0 0
        %2637 = vmatpush.bf16.msra.mxu0 %v2604
        %2638 = vmatpush.bf16.msra.mxu0 %v2603
        %2639 = vmatpush.bf16.msra.mxu0 %v2602
        %2640 = vmatpush.bf16.msra.mxu0 %v2601
        %2641 = vmatmul.bf16.gmra.mxu0 %v2610
        %v2642 = vpop.f32.mrf.mxu0
        %v2643 = vadd.f32 0.0, %v2642
        %v2644 = vpop.f32.mrf.mxu0
        %v2645 = vadd.f32 0.0, %v2644
        %2646 = vmatmul.bf16.gmra.mxu0 %v2613
        %v2647 = vpop.f32.mrf.mxu0
        %v2648 = vadd.f32 0.0, %v2647
        %v2649 = vpop.f32.mrf.mxu0
        %v2650 = vadd.f32 0.0, %v2649
        %2651 = vmatmul.bf16.gmra.mxu0 %v2616
        %v2652 = vpop.f32.mrf.mxu0
        %v2653 = vadd.f32 0.0, %v2652
        %v2654 = vpop.f32.mrf.mxu0
        %v2655 = vadd.f32 0.0, %v2654
        %2656 = vmatmul.bf16.gmra.mxu0 %v2619
        %v2657 = vpop.f32.mrf.mxu0
        %v2658 = vadd.f32 0.0, %v2657
        %v2659 = vpop.f32.mrf.mxu0
        %v2660 = vadd.f32 0.0, %v2659
        %2661 = vmatmul.bf16.gmra.mxu0 %v2622
        %v2662 = vpop.f32.mrf.mxu0
        %v2663 = vadd.f32 0.0, %v2662
        %v2664 = vpop.f32.mrf.mxu0
        %v2665 = vadd.f32 0.0, %v2664
        %2666 = vmatmul.bf16.gmra.mxu0 %v2625
        %v2667 = vpop.f32.mrf.mxu0
        %v2668 = vadd.f32 0.0, %v2667
        %v2669 = vpop.f32.mrf.mxu0
        %v2670 = vadd.f32 0.0, %v2669
        %2671 = vmatmul.bf16.gmra.mxu0 %v2628
        %v2672 = vpop.f32.mrf.mxu0
        %v2673 = vadd.f32 0.0, %v2672
        %v2674 = vpop.f32.mrf.mxu0
        %v2675 = vadd.f32 0.0, %v2674
        %2676 = vmatmul.bf16.gmra.mxu0 %v2631
        %v2677 = vpop.f32.mrf.mxu0
        %v2678 = vadd.f32 0.0, %v2677
        %v2679 = vpop.f32.mrf.mxu0
        %v2680 = vadd.f32 0.0, %v2679
        %2681 = vdwg.mxu0
        %v2682 = vadd.f32 %v2536, %v2643
        %v2683 = vadd.f32 %v2537, %v2645
        %v2684 = vadd.f32 %v2538, %v2648
        %v2685 = vadd.f32 %v2539, %v2650
        %v2686 = vadd.f32 %v2540, %v2653
        %v2687 = vadd.f32 %v2541, %v2655
        %v2688 = vadd.f32 %v2542, %v2658
        %v2689 = vadd.f32 %v2543, %v2660
        %v2690 = vadd.f32 %v2544, %v2663
        %v2691 = vadd.f32 %v2545, %v2665
        %v2692 = vadd.f32 %v2546, %v2668
        %v2693 = vadd.f32 %v2547, %v2670
        %v2694 = vadd.f32 %v2548, %v2673
        %v2695 = vadd.f32 %v2549, %v2675
        %v2696 = vadd.f32 %v2550, %v2678
        %v2697 = vadd.f32 %v2551, %v2680
        %v2698 = vld [vmem:[%s1560 + $0x2] sm:$0xff]
        %v2699 = vld [vmem:[%s1560 + $0x12] sm:$0xff]
        %v2700 = vld [vmem:[%s1560 + $0x22] sm:$0xff]
        %v2701 = vld [vmem:[%s1560 + $0x32] sm:$0xff]
        %v2702 = vld [vmem:[%s1560 + $0x42] sm:$0xff]
        %v2703 = vld [vmem:[%s1560 + $0x52] sm:$0xff]
        %v2704 = vld [vmem:[%s1560 + $0x62] sm:$0xff]
        %v2705 = vld [vmem:[%s1560 + $0x72] sm:$0xff]
        %v2706 = vld [vmem:[%s1560 + $0xa2] sm:$0xff]
        %v2707 = vld [vmem:[%s1560 + $0xb2] sm:$0xff]
        %v2708 = vld [vmem:[%s1560 + $0xc2] sm:$0xff]
        %v2709 = vld [vmem:[%s1560 + $0xd2] sm:$0xff]
        %v2710 = vld [vmem:[%s1560 + $0xe2] sm:$0xff]
        %v2711 = vld [vmem:[%s1560 + $0xf2] sm:$0xff]
        %v2712 = vld [vmem:[%s1560 + $0x102] sm:$0xff]
        %v2713 = vld [vmem:[%s1560 + $0x112] sm:$0xff]
        %v2714 = vpack.c.bf16 %v2699, %v2698
        %v2715 = vpack.c.bf16 %v2701, %v2700
        %v2716 = vpack.c.bf16 %v2703, %v2702
        %v2717 = vpack.c.bf16 %v2705, %v2704
        %v2718 = vpack.c.bf16 %v2707, %v2706
        %v2719 = vpack.c.bf16 %v2709, %v2708
        %v2720 = vpack.c.bf16 %v2711, %v2710
        %v2721 = vpack.c.bf16 %v2713, %v2712
        %s2722 = scalar_lea.vmem %s2, 160
        %v2723 = vld [vmem:[%s2722] sm:$0xf]
        %v2724 = vld [vmem:[%s2722 + $0x4] sm:$0xf]
        %v2725 = vld [vmem:[%s2722 + $0x8] sm:$0xf]
        %v2726 = vld [vmem:[%s2722 + $0xc] sm:$0xf]
        %v2727 = vld [vmem:[%s2722 + $0x10] sm:$0xf]
        %v2728 = vld [vmem:[%s2722 + $0x14] sm:$0xf]
        %v2729 = vld [vmem:[%s2722 + $0x18] sm:$0xf]
        %v2730 = vld [vmem:[%s2722 + $0x1c] sm:$0xf]
        %v2739 = vunpack.c.l.b16 %v2723
        %v2740 = vunpack.c.l.b16 %v2724
        %v2741 = vunpack.c.l.b16 %v2725
        %v2742 = vunpack.c.l.b16 %v2726
        %v2743 = vunpack.c.l.b16 %v2727
        %v2744 = vunpack.c.l.b16 %v2728
        %v2745 = vunpack.c.l.b16 %v2729
        %v2746 = vunpack.c.l.b16 %v2730
        %v2747 = vpack.c.b16 %v2740, %v2739
        %v2748 = vpack.c.b16 %v2742, %v2741
        %v2749 = vpack.c.b16 %v2744, %v2743
        %v2750 = vpack.c.b16 %v2746, %v2745
        %v2756 = vsel %vm1549, %v2714, 0
        %v2759 = vsel %vm1549, %v2715, 0
        %v2762 = vsel %vm1549, %v2716, 0
        %v2765 = vsel %vm1549, %v2717, 0
        %v2768 = vsel %vm1549, %v2718, 0
        %v2771 = vsel %vm1549, %v2719, 0
        %v2774 = vsel %vm1549, %v2720, 0
        %v2777 = vsel %vm1549, %v2721, 0
        %2779 = vmatpush.bf16.msra.mxu0 0
        %2780 = vmatpush.bf16.msra.mxu0 0
        %2781 = vmatpush.bf16.msra.mxu0 0
        %2782 = vmatpush.bf16.msra.mxu0 0
        %2783 = vmatpush.bf16.msra.mxu0 %v2750
        %2784 = vmatpush.bf16.msra.mxu0 %v2749
        %2785 = vmatpush.bf16.msra.mxu0 %v2748
        %2786 = vmatpush.bf16.msra.mxu0 %v2747
        %2787 = vmatmul.bf16.gmra.mxu0 %v2756
        %v2788 = vpop.f32.mrf.mxu0
        %v2789 = vadd.f32 0.0, %v2788
        %v2790 = vpop.f32.mrf.mxu0
        %v2791 = vadd.f32 0.0, %v2790
        %2792 = vmatmul.bf16.gmra.mxu0 %v2759
        %v2793 = vpop.f32.mrf.mxu0
        %v2794 = vadd.f32 0.0, %v2793
        %v2795 = vpop.f32.mrf.mxu0
        %v2796 = vadd.f32 0.0, %v2795
        %2797 = vmatmul.bf16.gmra.mxu0 %v2762
        %v2798 = vpop.f32.mrf.mxu0
        %v2799 = vadd.f32 0.0, %v2798
        %v2800 = vpop.f32.mrf.mxu0
        %v2801 = vadd.f32 0.0, %v2800
        %2802 = vmatmul.bf16.gmra.mxu0 %v2765
        %v2803 = vpop.f32.mrf.mxu0
        %v2804 = vadd.f32 0.0, %v2803
        %v2805 = vpop.f32.mrf.mxu0
        %v2806 = vadd.f32 0.0, %v2805
        %2807 = vmatmul.bf16.gmra.mxu0 %v2768
        %v2808 = vpop.f32.mrf.mxu0
        %v2809 = vadd.f32 0.0, %v2808
        %v2810 = vpop.f32.mrf.mxu0
        %v2811 = vadd.f32 0.0, %v2810
        %2812 = vmatmul.bf16.gmra.mxu0 %v2771
        %v2813 = vpop.f32.mrf.mxu0
        %v2814 = vadd.f32 0.0, %v2813
        %v2815 = vpop.f32.mrf.mxu0
        %v2816 = vadd.f32 0.0, %v2815
        %2817 = vmatmul.bf16.gmra.mxu0 %v2774
        %v2818 = vpop.f32.mrf.mxu0
        %v2819 = vadd.f32 0.0, %v2818
        %v2820 = vpop.f32.mrf.mxu0
        %v2821 = vadd.f32 0.0, %v2820
        %2822 = vmatmul.bf16.gmra.mxu0 %v2777
        %v2823 = vpop.f32.mrf.mxu0
        %v2824 = vadd.f32 0.0, %v2823
        %v2825 = vpop.f32.mrf.mxu0
        %v2826 = vadd.f32 0.0, %v2825
        %2827 = vdwg.mxu0
        %v2828 = vadd.f32 %v2682, %v2789
        %v2829 = vadd.f32 %v2683, %v2791
        %v2830 = vadd.f32 %v2684, %v2794
        %v2831 = vadd.f32 %v2685, %v2796
        %v2832 = vadd.f32 %v2686, %v2799
        %v2833 = vadd.f32 %v2687, %v2801
        %v2834 = vadd.f32 %v2688, %v2804
        %v2835 = vadd.f32 %v2689, %v2806
        %v2836 = vadd.f32 %v2690, %v2809
        %v2837 = vadd.f32 %v2691, %v2811
        %v2838 = vadd.f32 %v2692, %v2814
        %v2839 = vadd.f32 %v2693, %v2816
        %v2840 = vadd.f32 %v2694, %v2819
        %v2841 = vadd.f32 %v2695, %v2821
        %v2842 = vadd.f32 %v2696, %v2824
        %v2843 = vadd.f32 %v2697, %v2826
        %s2844 = scalar_lea.vmem [#allocation2], 32
        %v2845 = vld [vmem:[%s2844] sm:$0xff]
        %v2846 = vld [vmem:[%s2844 + $0x10] sm:$0xff]
        %v2847 = vld [vmem:[%s2844 + $0x20] sm:$0xff]
        %v2848 = vld [vmem:[%s2844 + $0x30] sm:$0xff]
        %v2849 = vld [vmem:[%s2844 + $0x40] sm:$0xff]
        %v2850 = vld [vmem:[%s2844 + $0x50] sm:$0xff]
        %v2851 = vld [vmem:[%s2844 + $0x60] sm:$0xff]
        %v2852 = vld [vmem:[%s2844 + $0x70] sm:$0xff]
        %v2853 = vld [vmem:[%s2844 + $0xa0] sm:$0xff]
        %v2854 = vld [vmem:[%s2844 + $0xb0] sm:$0xff]
        %v2855 = vld [vmem:[%s2844 + $0xc0] sm:$0xff]
        %v2856 = vld [vmem:[%s2844 + $0xd0] sm:$0xff]
        %v2857 = vld [vmem:[%s2844 + $0xe0] sm:$0xff]
        %v2858 = vld [vmem:[%s2844 + $0xf0] sm:$0xff]
        %v2859 = vld [vmem:[%s2844 + $0x100] sm:$0xff]
        %v2860 = vld [vmem:[%s2844 + $0x110] sm:$0xff]
        %v2861 = vpack.c.bf16 %v2846, %v2845
        %v2862 = vpack.c.bf16 %v2848, %v2847
        %v2863 = vpack.c.bf16 %v2850, %v2849
        %v2864 = vpack.c.bf16 %v2852, %v2851
        %v2865 = vpack.c.bf16 %v2854, %v2853
        %v2866 = vpack.c.bf16 %v2856, %v2855
        %v2867 = vpack.c.bf16 %v2858, %v2857
        %v2868 = vpack.c.bf16 %v2860, %v2859
        %s2869 = scalar_lea.vmem %s2, 192
        %v2870 = vld [vmem:[%s2869] sm:$0xf]
        %v2871 = vld [vmem:[%s2869 + $0x4] sm:$0xf]
        %v2872 = vld [vmem:[%s2869 + $0x8] sm:$0xf]
        %v2873 = vld [vmem:[%s2869 + $0xc] sm:$0xf]
        %v2874 = vld [vmem:[%s2869 + $0x10] sm:$0xf]
        %v2875 = vld [vmem:[%s2869 + $0x14] sm:$0xf]
        %v2876 = vld [vmem:[%s2869 + $0x18] sm:$0xf]
        %v2877 = vld [vmem:[%s2869 + $0x1c] sm:$0xf]
        %v2886 = vunpack.c.l.b16 %v2870
        %v2887 = vunpack.c.l.b16 %v2871
        %v2888 = vunpack.c.l.b16 %v2872
        %v2889 = vunpack.c.l.b16 %v2873
        %v2890 = vunpack.c.l.b16 %v2874
        %v2891 = vunpack.c.l.b16 %v2875
        %v2892 = vunpack.c.l.b16 %v2876
        %v2893 = vunpack.c.l.b16 %v2877
        %v2894 = vpack.c.b16 %v2887, %v2886
        %v2895 = vpack.c.b16 %v2889, %v2888
        %v2896 = vpack.c.b16 %v2891, %v2890
        %v2897 = vpack.c.b16 %v2893, %v2892
        %v2903 = vsel %vm1549, %v2861, 0
        %v2906 = vsel %vm1549, %v2862, 0
        %v2909 = vsel %vm1549, %v2863, 0
        %v2912 = vsel %vm1549, %v2864, 0
        %v2915 = vsel %vm1549, %v2865, 0
        %v2918 = vsel %vm1549, %v2866, 0
        %v2921 = vsel %vm1549, %v2867, 0
        %v2924 = vsel %vm1549, %v2868, 0
        %2926 = vmatpush.bf16.msra.mxu0 0
        %2927 = vmatpush.bf16.msra.mxu0 0
        %2928 = vmatpush.bf16.msra.mxu0 0
        %2929 = vmatpush.bf16.msra.mxu0 0
        %2930 = vmatpush.bf16.msra.mxu0 %v2897
        %2931 = vmatpush.bf16.msra.mxu0 %v2896
        %2932 = vmatpush.bf16.msra.mxu0 %v2895
        %2933 = vmatpush.bf16.msra.mxu0 %v2894
        %2934 = vmatmul.bf16.gmra.mxu0 %v2903
        %v2935 = vpop.f32.mrf.mxu0
        %v2936 = vadd.f32 0.0, %v2935
        %v2937 = vpop.f32.mrf.mxu0
        %v2938 = vadd.f32 0.0, %v2937
        %2939 = vmatmul.bf16.gmra.mxu0 %v2906
        %v2940 = vpop.f32.mrf.mxu0
        %v2941 = vadd.f32 0.0, %v2940
        %v2942 = vpop.f32.mrf.mxu0
        %v2943 = vadd.f32 0.0, %v2942
        %2944 = vmatmul.bf16.gmra.mxu0 %v2909
        %v2945 = vpop.f32.mrf.mxu0
        %v2946 = vadd.f32 0.0, %v2945
        %v2947 = vpop.f32.mrf.mxu0
        %v2948 = vadd.f32 0.0, %v2947
        %2949 = vmatmul.bf16.gmra.mxu0 %v2912
        %v2950 = vpop.f32.mrf.mxu0
        %v2951 = vadd.f32 0.0, %v2950
        %v2952 = vpop.f32.mrf.mxu0
        %v2953 = vadd.f32 0.0, %v2952
        %2954 = vmatmul.bf16.gmra.mxu0 %v2915
        %v2955 = vpop.f32.mrf.mxu0
        %v2956 = vadd.f32 0.0, %v2955
        %v2957 = vpop.f32.mrf.mxu0
        %v2958 = vadd.f32 0.0, %v2957
        %2959 = vmatmul.bf16.gmra.mxu0 %v2918
        %v2960 = vpop.f32.mrf.mxu0
        %v2961 = vadd.f32 0.0, %v2960
        %v2962 = vpop.f32.mrf.mxu0
        %v2963 = vadd.f32 0.0, %v2962
        %2964 = vmatmul.bf16.gmra.mxu0 %v2921
        %v2965 = vpop.f32.mrf.mxu0
        %v2966 = vadd.f32 0.0, %v2965
        %v2967 = vpop.f32.mrf.mxu0
        %v2968 = vadd.f32 0.0, %v2967
        %2969 = vmatmul.bf16.gmra.mxu0 %v2924
        %v2970 = vpop.f32.mrf.mxu0
        %v2971 = vadd.f32 0.0, %v2970
        %v2972 = vpop.f32.mrf.mxu0
        %v2973 = vadd.f32 0.0, %v2972
        %2974 = vdwg.mxu0
        %v2975 = vadd.f32 %v2828, %v2936
        %v2976 = vadd.f32 %v2829, %v2938
        %v2977 = vadd.f32 %v2830, %v2941
        %v2978 = vadd.f32 %v2831, %v2943
        %v2979 = vadd.f32 %v2832, %v2946
        %v2980 = vadd.f32 %v2833, %v2948
        %v2981 = vadd.f32 %v2834, %v2951
        %v2982 = vadd.f32 %v2835, %v2953
        %v2983 = vadd.f32 %v2836, %v2956
        %v2984 = vadd.f32 %v2837, %v2958
        %v2985 = vadd.f32 %v2838, %v2961
        %v2986 = vadd.f32 %v2839, %v2963
        %v2987 = vadd.f32 %v2840, %v2966
        %v2988 = vadd.f32 %v2841, %v2968
        %v2989 = vadd.f32 %v2842, %v2971
        %v2990 = vadd.f32 %v2843, %v2973
        %v2991 = vld [vmem:[%s2844 + $0x1] sm:$0xff]
        %v2992 = vld [vmem:[%s2844 + $0x11] sm:$0xff]
        %v2993 = vld [vmem:[%s2844 + $0x21] sm:$0xff]
        %v2994 = vld [vmem:[%s2844 + $0x31] sm:$0xff]
        %v2995 = vld [vmem:[%s2844 + $0x41] sm:$0xff]
        %v2996 = vld [vmem:[%s2844 + $0x51] sm:$0xff]
        %v2997 = vld [vmem:[%s2844 + $0x61] sm:$0xff]
        %v2998 = vld [vmem:[%s2844 + $0x71] sm:$0xff]
        %v2999 = vld [vmem:[%s2844 + $0xa1] sm:$0xff]
        %v3000 = vld [vmem:[%s2844 + $0xb1] sm:$0xff]
        %v3001 = vld [vmem:[%s2844 + $0xc1] sm:$0xff]
        %v3002 = vld [vmem:[%s2844 + $0xd1] sm:$0xff]
        %v3003 = vld [vmem:[%s2844 + $0xe1] sm:$0xff]
        %v3004 = vld [vmem:[%s2844 + $0xf1] sm:$0xff]
        %v3005 = vld [vmem:[%s2844 + $0x101] sm:$0xff]
        %v3006 = vld [vmem:[%s2844 + $0x111] sm:$0xff]
        %v3007 = vpack.c.bf16 %v2992, %v2991
        %v3008 = vpack.c.bf16 %v2994, %v2993
        %v3009 = vpack.c.bf16 %v2996, %v2995
        %v3010 = vpack.c.bf16 %v2998, %v2997
        %v3011 = vpack.c.bf16 %v3000, %v2999
        %v3012 = vpack.c.bf16 %v3002, %v3001
        %v3013 = vpack.c.bf16 %v3004, %v3003
        %v3014 = vpack.c.bf16 %v3006, %v3005
        %s3015 = scalar_lea.vmem %s2, 224
        %v3016 = vld [vmem:[%s3015] sm:$0xf]
        %v3017 = vld [vmem:[%s3015 + $0x4] sm:$0xf]
        %v3018 = vld [vmem:[%s3015 + $0x8] sm:$0xf]
        %v3019 = vld [vmem:[%s3015 + $0xc] sm:$0xf]
        %v3020 = vld [vmem:[%s3015 + $0x10] sm:$0xf]
        %v3021 = vld [vmem:[%s3015 + $0x14] sm:$0xf]
        %v3022 = vld [vmem:[%s3015 + $0x18] sm:$0xf]
        %v3023 = vld [vmem:[%s3015 + $0x1c] sm:$0xf]
        %v3032 = vunpack.c.l.b16 %v3016
        %v3033 = vunpack.c.l.b16 %v3017
        %v3034 = vunpack.c.l.b16 %v3018
        %v3035 = vunpack.c.l.b16 %v3019
        %v3036 = vunpack.c.l.b16 %v3020
        %v3037 = vunpack.c.l.b16 %v3021
        %v3038 = vunpack.c.l.b16 %v3022
        %v3039 = vunpack.c.l.b16 %v3023
        %v3040 = vpack.c.b16 %v3033, %v3032
        %v3041 = vpack.c.b16 %v3035, %v3034
        %v3042 = vpack.c.b16 %v3037, %v3036
        %v3043 = vpack.c.b16 %v3039, %v3038
        %v3049 = vsel %vm1549, %v3007, 0
        %v3052 = vsel %vm1549, %v3008, 0
        %v3055 = vsel %vm1549, %v3009, 0
        %v3058 = vsel %vm1549, %v3010, 0
        %v3061 = vsel %vm1549, %v3011, 0
        %v3064 = vsel %vm1549, %v3012, 0
        %v3067 = vsel %vm1549, %v3013, 0
        %v3070 = vsel %vm1549, %v3014, 0
        %3072 = vmatpush.bf16.msra.mxu0 0
        %3073 = vmatpush.bf16.msra.mxu0 0
        %3074 = vmatpush.bf16.msra.mxu0 0
        %3075 = vmatpush.bf16.msra.mxu0 0
        %3076 = vmatpush.bf16.msra.mxu0 %v3043
        %3077 = vmatpush.bf16.msra.mxu0 %v3042
        %3078 = vmatpush.bf16.msra.mxu0 %v3041
        %3079 = vmatpush.bf16.msra.mxu0 %v3040
        %3080 = vmatmul.bf16.gmra.mxu0 %v3049
        %v3081 = vpop.f32.mrf.mxu0
        %v3082 = vadd.f32 0.0, %v3081
        %v3083 = vpop.f32.mrf.mxu0
        %v3084 = vadd.f32 0.0, %v3083
        %3085 = vmatmul.bf16.gmra.mxu0 %v3052
        %v3086 = vpop.f32.mrf.mxu0
        %v3087 = vadd.f32 0.0, %v3086
        %v3088 = vpop.f32.mrf.mxu0
        %v3089 = vadd.f32 0.0, %v3088
        %3090 = vmatmul.bf16.gmra.mxu0 %v3055
        %v3091 = vpop.f32.mrf.mxu0
        %v3092 = vadd.f32 0.0, %v3091
        %v3093 = vpop.f32.mrf.mxu0
        %v3094 = vadd.f32 0.0, %v3093
        %3095 = vmatmul.bf16.gmra.mxu0 %v3058
        %v3096 = vpop.f32.mrf.mxu0
        %v3097 = vadd.f32 0.0, %v3096
        %v3098 = vpop.f32.mrf.mxu0
        %v3099 = vadd.f32 0.0, %v3098
        %3100 = vmatmul.bf16.gmra.mxu0 %v3061
        %v3101 = vpop.f32.mrf.mxu0
        %v3102 = vadd.f32 0.0, %v3101
        %v3103 = vpop.f32.mrf.mxu0
        %v3104 = vadd.f32 0.0, %v3103
        %3105 = vmatmul.bf16.gmra.mxu0 %v3064
        %v3106 = vpop.f32.mrf.mxu0
        %v3107 = vadd.f32 0.0, %v3106
        %v3108 = vpop.f32.mrf.mxu0
        %v3109 = vadd.f32 0.0, %v3108
        %3110 = vmatmul.bf16.gmra.mxu0 %v3067
        %v3111 = vpop.f32.mrf.mxu0
        %v3112 = vadd.f32 0.0, %v3111
        %v3113 = vpop.f32.mrf.mxu0
        %v3114 = vadd.f32 0.0, %v3113
        %3115 = vmatmul.bf16.gmra.mxu0 %v3070
        %v3116 = vpop.f32.mrf.mxu0
        %v3117 = vadd.f32 0.0, %v3116
        %v3118 = vpop.f32.mrf.mxu0
        %v3119 = vadd.f32 0.0, %v3118
        %3120 = vdwg.mxu0
        %v3121 = vadd.f32 %v2975, %v3082
        %v3122 = vadd.f32 %v2976, %v3084
        %v3123 = vadd.f32 %v2977, %v3087
        %v3124 = vadd.f32 %v2978, %v3089
        %v3125 = vadd.f32 %v2979, %v3092
        %v3126 = vadd.f32 %v2980, %v3094
        %v3127 = vadd.f32 %v2981, %v3097
        %v3128 = vadd.f32 %v2982, %v3099
        %v3129 = vadd.f32 %v2983, %v3102
        %v3130 = vadd.f32 %v2984, %v3104
        %v3131 = vadd.f32 %v2985, %v3107
        %v3132 = vadd.f32 %v2986, %v3109
        %v3133 = vadd.f32 %v2987, %v3112
        %v3134 = vadd.f32 %v2988, %v3114
        %v3135 = vadd.f32 %v2989, %v3117
        %v3136 = vadd.f32 %v2990, %v3119
        %v3137 = vld [vmem:[%s2844 + $0x2] sm:$0xff]
        %v3138 = vld [vmem:[%s2844 + $0x12] sm:$0xff]
        %v3139 = vld [vmem:[%s2844 + $0x22] sm:$0xff]
        %v3140 = vld [vmem:[%s2844 + $0x32] sm:$0xff]
        %v3141 = vld [vmem:[%s2844 + $0x42] sm:$0xff]
        %v3142 = vld [vmem:[%s2844 + $0x52] sm:$0xff]
        %v3143 = vld [vmem:[%s2844 + $0x62] sm:$0xff]
        %v3144 = vld [vmem:[%s2844 + $0x72] sm:$0xff]
        %v3145 = vld [vmem:[%s2844 + $0xa2] sm:$0xff]
        %v3146 = vld [vmem:[%s2844 + $0xb2] sm:$0xff]
        %v3147 = vld [vmem:[%s2844 + $0xc2] sm:$0xff]
        %v3148 = vld [vmem:[%s2844 + $0xd2] sm:$0xff]
        %v3149 = vld [vmem:[%s2844 + $0xe2] sm:$0xff]
        %v3150 = vld [vmem:[%s2844 + $0xf2] sm:$0xff]
        %v3151 = vld [vmem:[%s2844 + $0x102] sm:$0xff]
        %v3152 = vld [vmem:[%s2844 + $0x112] sm:$0xff]
        %v3153 = vpack.c.bf16 %v3138, %v3137
        %v3154 = vpack.c.bf16 %v3140, %v3139
        %v3155 = vpack.c.bf16 %v3142, %v3141
        %v3156 = vpack.c.bf16 %v3144, %v3143
        %v3157 = vpack.c.bf16 %v3146, %v3145
        %v3158 = vpack.c.bf16 %v3148, %v3147
        %v3159 = vpack.c.bf16 %v3150, %v3149
        %v3160 = vpack.c.bf16 %v3152, %v3151
        %s3161 = scalar_lea.vmem %s2, 256
        %v3162 = vld [vmem:[%s3161] sm:$0xf]
        %v3163 = vld [vmem:[%s3161 + $0x4] sm:$0xf]
        %v3164 = vld [vmem:[%s3161 + $0x8] sm:$0xf]
        %v3165 = vld [vmem:[%s3161 + $0xc] sm:$0xf]
        %v3166 = vld [vmem:[%s3161 + $0x10] sm:$0xf]
        %v3167 = vld [vmem:[%s3161 + $0x14] sm:$0xf]
        %v3168 = vld [vmem:[%s3161 + $0x18] sm:$0xf]
        %v3169 = vld [vmem:[%s3161 + $0x1c] sm:$0xf]
        %v3178 = vunpack.c.l.b16 %v3162
        %v3179 = vunpack.c.l.b16 %v3163
        %v3180 = vunpack.c.l.b16 %v3164
        %v3181 = vunpack.c.l.b16 %v3165
        %v3182 = vunpack.c.l.b16 %v3166
        %v3183 = vunpack.c.l.b16 %v3167
        %v3184 = vunpack.c.l.b16 %v3168
        %v3185 = vunpack.c.l.b16 %v3169
        %v3186 = vpack.c.b16 %v3179, %v3178
        %v3187 = vpack.c.b16 %v3181, %v3180
        %v3188 = vpack.c.b16 %v3183, %v3182
        %v3189 = vpack.c.b16 %v3185, %v3184
        %v3195 = vsel %vm1549, %v3153, 0
        %v3198 = vsel %vm1549, %v3154, 0
        %v3201 = vsel %vm1549, %v3155, 0
        %v3204 = vsel %vm1549, %v3156, 0
        %v3207 = vsel %vm1549, %v3157, 0
        %v3210 = vsel %vm1549, %v3158, 0
        %v3213 = vsel %vm1549, %v3159, 0
        %v3216 = vsel %vm1549, %v3160, 0
        %3218 = vmatpush.bf16.msra.mxu0 0
        %3219 = vmatpush.bf16.msra.mxu0 0
        %3220 = vmatpush.bf16.msra.mxu0 0
        %3221 = vmatpush.bf16.msra.mxu0 0
        %3222 = vmatpush.bf16.msra.mxu0 %v3189
        %3223 = vmatpush.bf16.msra.mxu0 %v3188
        %3224 = vmatpush.bf16.msra.mxu0 %v3187
        %3225 = vmatpush.bf16.msra.mxu0 %v3186
        %3226 = vmatmul.bf16.gmra.mxu0 %v3195
        %v3227 = vpop.f32.mrf.mxu0
        %v3228 = vadd.f32 0.0, %v3227
        %v3229 = vpop.f32.mrf.mxu0
        %v3230 = vadd.f32 0.0, %v3229
        %3231 = vmatmul.bf16.gmra.mxu0 %v3198
        %v3232 = vpop.f32.mrf.mxu0
        %v3233 = vadd.f32 0.0, %v3232
        %v3234 = vpop.f32.mrf.mxu0
        %v3235 = vadd.f32 0.0, %v3234
        %3236 = vmatmul.bf16.gmra.mxu0 %v3201
        %v3237 = vpop.f32.mrf.mxu0
        %v3238 = vadd.f32 0.0, %v3237
        %v3239 = vpop.f32.mrf.mxu0
        %v3240 = vadd.f32 0.0, %v3239
        %3241 = vmatmul.bf16.gmra.mxu0 %v3204
        %v3242 = vpop.f32.mrf.mxu0
        %v3243 = vadd.f32 0.0, %v3242
        %v3244 = vpop.f32.mrf.mxu0
        %v3245 = vadd.f32 0.0, %v3244
        %3246 = vmatmul.bf16.gmra.mxu0 %v3207
        %v3247 = vpop.f32.mrf.mxu0
        %v3248 = vadd.f32 0.0, %v3247
        %v3249 = vpop.f32.mrf.mxu0
        %v3250 = vadd.f32 0.0, %v3249
        %3251 = vmatmul.bf16.gmra.mxu0 %v3210
        %v3252 = vpop.f32.mrf.mxu0
        %v3253 = vadd.f32 0.0, %v3252
        %v3254 = vpop.f32.mrf.mxu0
        %v3255 = vadd.f32 0.0, %v3254
        %3256 = vmatmul.bf16.gmra.mxu0 %v3213
        %v3257 = vpop.f32.mrf.mxu0
        %v3258 = vadd.f32 0.0, %v3257
        %v3259 = vpop.f32.mrf.mxu0
        %v3260 = vadd.f32 0.0, %v3259
        %3261 = vmatmul.bf16.gmra.mxu0 %v3216
        %v3262 = vpop.f32.mrf.mxu0
        %v3263 = vadd.f32 0.0, %v3262
        %v3264 = vpop.f32.mrf.mxu0
        %v3265 = vadd.f32 0.0, %v3264
        %3266 = vdwg.mxu0
        %v3267 = vadd.f32 %v3121, %v3228
        %v3268 = vadd.f32 %v3122, %v3230
        %v3269 = vadd.f32 %v3123, %v3233
        %v3270 = vadd.f32 %v3124, %v3235
        %v3271 = vadd.f32 %v3125, %v3238
        %v3272 = vadd.f32 %v3126, %v3240
        %v3273 = vadd.f32 %v3127, %v3243
        %v3274 = vadd.f32 %v3128, %v3245
        %v3275 = vadd.f32 %v3129, %v3248
        %v3276 = vadd.f32 %v3130, %v3250
        %v3277 = vadd.f32 %v3131, %v3253
        %v3278 = vadd.f32 %v3132, %v3255
        %v3279 = vadd.f32 %v3133, %v3258
        %v3280 = vadd.f32 %v3134, %v3260
        %v3281 = vadd.f32 %v3135, %v3263
        %v3282 = vadd.f32 %v3136, %v3265
        %v3283 = vld [vmem:[%s6] sm:$0x1]
        %v3285 = vperm.slane %v3283, 0
        %v3287 = vadd.f32 %v3267, %v3285
        %v3288 = vadd.f32 %v3268, %v3285
        %v3289 = vadd.f32 %v3269, %v3285
        %v3290 = vadd.f32 %v3270, %v3285
        %v3291 = vadd.f32 %v3271, %v3285
        %v3292 = vadd.f32 %v3272, %v3285
        %v3293 = vadd.f32 %v3273, %v3285
        %v3294 = vadd.f32 %v3274, %v3285
        %v3295 = vadd.f32 %v3275, %v3285
        %v3296 = vadd.f32 %v3276, %v3285
        %v3297 = vadd.f32 %v3277, %v3285
        %v3298 = vadd.f32 %v3278, %v3285
        %v3299 = vadd.f32 %v3279, %v3285
        %v3300 = vadd.f32 %v3280, %v3285
        %v3301 = vadd.f32 %v3281, %v3285
        %v3302 = vadd.f32 %v3282, %v3285
        %v3303 = vmax.f32 %v3287, 0.0
        %v3304 = vmax.f32 %v3288, 0.0
        %v3305 = vmax.f32 %v3289, 0.0
        %v3306 = vmax.f32 %v3290, 0.0
        %v3307 = vmax.f32 %v3291, 0.0
        %v3308 = vmax.f32 %v3292, 0.0
        %v3309 = vmax.f32 %v3293, 0.0
        %v3310 = vmax.f32 %v3294, 0.0
        %v3311 = vmax.f32 %v3295, 0.0
        %v3312 = vmax.f32 %v3296, 0.0
        %v3313 = vmax.f32 %v3297, 0.0
        %v3314 = vmax.f32 %v3298, 0.0
        %v3315 = vmax.f32 %v3299, 0.0
        %v3316 = vmax.f32 %v3300, 0.0
        %v3317 = vmax.f32 %v3301, 0.0
        %v3318 = vmax.f32 %v3302, 0.0
        %v3319 = vmax.f32 %v3303, %v3304
        %v3320 = vmax.f32 %v3305, %v3306
        %v3321 = vmax.f32 %v3307, %v3308
        %v3322 = vmax.f32 %v3309, %v3310
        %v3323 = vmax.f32 %v3311, %v3312
        %v3324 = vmax.f32 %v3313, %v3314
        %v3325 = vmax.f32 %v3315, %v3316
        %v3326 = vmax.f32 %v3317, %v3318
        %v3335 = vrot.slane %v3319, 2
        %v3336 = vrot.slane %v3319, 4
        %v3337 = vrot.slane %v3319, 6
        %v3338 = vrot.slane %v3320, 2
        %v3339 = vrot.slane %v3320, 4
        %v3340 = vrot.slane %v3320, 6
        %v3341 = vrot.slane %v3321, 2
        %v3342 = vrot.slane %v3321, 4
        %v3343 = vrot.slane %v3321, 6
        %v3344 = vrot.slane %v3322, 2
        %v3345 = vrot.slane %v3322, 4
        %v3346 = vrot.slane %v3322, 6
        %v3347 = vrot.slane %v3323, 2
        %v3348 = vrot.slane %v3323, 4
        %v3349 = vrot.slane %v3323, 6
        %v3350 = vrot.slane %v3324, 2
        %v3351 = vrot.slane %v3324, 4
        %v3352 = vrot.slane %v3324, 6
        %v3353 = vrot.slane %v3325, 2
        %v3354 = vrot.slane %v3325, 4
        %v3355 = vrot.slane %v3325, 6
        %v3356 = vrot.slane %v3326, 2
        %v3357 = vrot.slane %v3326, 4
        %v3358 = vrot.slane %v3326, 6
        %v3383 = vrot.slane %v3319, 7
        %v3384 = vrot.slane %v3383, 2
        %v3385 = vrot.slane %v3335, 7
        %v3386 = vrot.slane %v3385, 2
        %v3387 = vrot.slane %v3336, 7
        %v3388 = vrot.slane %v3387, 2
        %v3389 = vrot.slane %v3337, 7
        %v3390 = vrot.slane %v3389, 2
        %v3391 = vrot.slane %v3320, 7
        %v3392 = vrot.slane %v3391, 2
        %v3393 = vrot.slane %v3338, 7
        %v3394 = vrot.slane %v3393, 2
        %v3395 = vrot.slane %v3339, 7
        %v3396 = vrot.slane %v3395, 2
        %v3397 = vrot.slane %v3340, 7
        %v3398 = vrot.slane %v3397, 2
        %v3399 = vrot.slane %v3321, 7
        %v3400 = vrot.slane %v3399, 2
        %v3401 = vrot.slane %v3341, 7
        %v3402 = vrot.slane %v3401, 2
        %v3403 = vrot.slane %v3342, 7
        %v3404 = vrot.slane %v3403, 2
        %v3405 = vrot.slane %v3343, 7
        %v3406 = vrot.slane %v3405, 2
        %v3407 = vrot.slane %v3322, 7
        %v3408 = vrot.slane %v3407, 2
        %v3409 = vrot.slane %v3344, 7
        %v3410 = vrot.slane %v3409, 2
        %v3411 = vrot.slane %v3345, 7
        %v3412 = vrot.slane %v3411, 2
        %v3413 = vrot.slane %v3346, 7
        %v3414 = vrot.slane %v3413, 2
        %v3415 = vrot.slane %v3323, 7
        %v3416 = vrot.slane %v3415, 2
        %v3417 = vrot.slane %v3347, 7
        %v3418 = vrot.slane %v3417, 2
        %v3419 = vrot.slane %v3348, 7
        %v3420 = vrot.slane %v3419, 2
        %v3421 = vrot.slane %v3349, 7
        %v3422 = vrot.slane %v3421, 2
        %v3423 = vrot.slane %v3324, 7
        %v3424 = vrot.slane %v3423, 2
        %v3425 = vrot.slane %v3350, 7
        %v3426 = vrot.slane %v3425, 2
        %v3427 = vrot.slane %v3351, 7
        %v3428 = vrot.slane %v3427, 2
        %v3429 = vrot.slane %v3352, 7
        %v3430 = vrot.slane %v3429, 2
        %v3431 = vrot.slane %v3325, 7
        %v3432 = vrot.slane %v3431, 2
        %v3433 = vrot.slane %v3353, 7
        %v3434 = vrot.slane %v3433, 2
        %v3435 = vrot.slane %v3354, 7
        %v3436 = vrot.slane %v3435, 2
        %v3437 = vrot.slane %v3355, 7
        %v3438 = vrot.slane %v3437, 2
        %v3439 = vrot.slane %v3326, 7
        %v3440 = vrot.slane %v3439, 2
        %v3441 = vrot.slane %v3356, 7
        %v3442 = vrot.slane %v3441, 2
        %v3443 = vrot.slane %v3357, 7
        %v3444 = vrot.slane %v3443, 2
        %v3445 = vrot.slane %v3358, 7
        %v3446 = vrot.slane %v3445, 2
        %v3479 = vmax.f32 %v3319, %v3384
        %v3480 = vmax.f32 %v3335, %v3386
        %v3481 = vmax.f32 %v3336, %v3388
        %v3482 = vmax.f32 %v3337, %v3390
        %v3483 = vmax.f32 %v3320, %v3392
        %v3484 = vmax.f32 %v3338, %v3394
        %v3485 = vmax.f32 %v3339, %v3396
        %v3486 = vmax.f32 %v3340, %v3398
        %v3487 = vmax.f32 %v3321, %v3400
        %v3488 = vmax.f32 %v3341, %v3402
        %v3489 = vmax.f32 %v3342, %v3404
        %v3490 = vmax.f32 %v3343, %v3406
        %v3491 = vmax.f32 %v3322, %v3408
        %v3492 = vmax.f32 %v3344, %v3410
        %v3493 = vmax.f32 %v3345, %v3412
        %v3494 = vmax.f32 %v3346, %v3414
        %v3495 = vmax.f32 %v3323, %v3416
        %v3496 = vmax.f32 %v3347, %v3418
        %v3497 = vmax.f32 %v3348, %v3420
        %v3498 = vmax.f32 %v3349, %v3422
        %v3499 = vmax.f32 %v3324, %v3424
        %v3500 = vmax.f32 %v3350, %v3426
        %v3501 = vmax.f32 %v3351, %v3428
        %v3502 = vmax.f32 %v3352, %v3430
        %v3503 = vmax.f32 %v3325, %v3432
        %v3504 = vmax.f32 %v3353, %v3434
        %v3505 = vmax.f32 %v3354, %v3436
        %v3506 = vmax.f32 %v3355, %v3438
        %v3507 = vmax.f32 %v3326, %v3440
        %v3508 = vmax.f32 %v3356, %v3442
        %v3509 = vmax.f32 %v3357, %v3444
        %v3510 = vmax.f32 %v3358, %v3446
        %vm3511 = vcmask 521216
        %3512 = vst.msk [vmem:[#allocation3] sm:$0x3f] %vm3511, 0.0
        %3513 = vst.msk [vmem:[#allocation3 + $0x30] sm:$0x3f] %vm3511, 0.0
        %s3514 = scalar_lea.vmem [#allocation3], 40
        %3515 = vst.msk [vmem:[%s3514] sm:$0x3f] %vm3511, 0.0
        %3516 = vst.msk [vmem:[%s3514 + $0x30] sm:$0x3f] %vm3511, 0.0
        %s3517 = scalar_lea.vmem [#allocation3], 8
        %3518 = vst.msk [vmem:[%s3517] sm:$0x1] %vm1561, 0.0
        %3519 = vst.msk [vmem:[%s3517 + $0x8] sm:$0x1] %vm1561, 0.0
        %3520 = vst.msk [vmem:[%s3517 + $0x10] sm:$0x1] %vm1561, 0.0
        %3521 = vst.msk [vmem:[%s3517 + $0x18] sm:$0x1] %vm1561, 0.0
        %3522 = vst.msk [vmem:[%s3517 + $0x30] sm:$0x1] %vm1561, 0.0
        %3523 = vst.msk [vmem:[%s3517 + $0x38] sm:$0x1] %vm1561, 0.0
        %3524 = vst.msk [vmem:[%s3517 + $0x40] sm:$0x1] %vm1561, 0.0
        %3525 = vst.msk [vmem:[%s3517 + $0x48] sm:$0x1] %vm1561, 0.0
        %3526 = vst.msk [vmem:[%s3517 + $0x5] sm:$0x1] %vm1561, 0.0
        %3527 = vst.msk [vmem:[%s3517 + $0xd] sm:$0x1] %vm1561, 0.0
        %3528 = vst.msk [vmem:[%s3517 + $0x15] sm:$0x1] %vm1561, 0.0
        %3529 = vst.msk [vmem:[%s3517 + $0x1d] sm:$0x1] %vm1561, 0.0
        %3530 = vst.msk [vmem:[%s3517 + $0x35] sm:$0x1] %vm1561, 0.0
        %3531 = vst.msk [vmem:[%s3517 + $0x3d] sm:$0x1] %vm1561, 0.0
        %3532 = vst.msk [vmem:[%s3517 + $0x45] sm:$0x1] %vm1561, 0.0
        %3533 = vst.msk [vmem:[%s3517 + $0x4d] sm:$0x1] %vm1561, 0.0
        %v3566 = vperm.slane %v3479, 0
        %v3567 = vperm.slane %v3480, 0
        %v3568 = vperm.slane %v3481, 0
        %v3569 = vperm.slane %v3482, 0
        %v3570 = vperm.slane %v3483, 0
        %v3571 = vperm.slane %v3484, 0
        %v3572 = vperm.slane %v3485, 0
        %v3573 = vperm.slane %v3486, 0
        %v3574 = vperm.slane %v3487, 0
        %v3575 = vperm.slane %v3488, 0
        %v3576 = vperm.slane %v3489, 0
        %v3577 = vperm.slane %v3490, 0
        %v3578 = vperm.slane %v3491, 0
        %v3579 = vperm.slane %v3492, 0
        %v3580 = vperm.slane %v3493, 0
        %v3581 = vperm.slane %v3494, 0
        %v3582 = vperm.slane %v3495, 0
        %v3583 = vperm.slane %v3496, 0
        %v3584 = vperm.slane %v3497, 0
        %v3585 = vperm.slane %v3498, 0
        %v3586 = vperm.slane %v3499, 0
        %v3587 = vperm.slane %v3500, 0
        %v3588 = vperm.slane %v3501, 0
        %v3589 = vperm.slane %v3502, 0
        %v3590 = vperm.slane %v3503, 0
        %v3591 = vperm.slane %v3504, 0
        %v3592 = vperm.slane %v3505, 0
        %v3593 = vperm.slane %v3506, 0
        %v3594 = vperm.slane %v3507, 0
        %v3595 = vperm.slane %v3508, 0
        %v3596 = vperm.slane %v3509, 0
        %v3597 = vperm.slane %v3510, 0
        %v3598 = vsel %vm1850, %v3567, %v3566
        %v3599 = vsel %vm1852, %v3568, %v3598
        %v3600 = vsel %vm1854, %v3569, %v3599
        %v3601 = vsel %vm1850, %v3571, %v3570
        %v3602 = vsel %vm1852, %v3572, %v3601
        %v3603 = vsel %vm1854, %v3573, %v3602
        %v3604 = vsel %vm1850, %v3575, %v3574
        %v3605 = vsel %vm1852, %v3576, %v3604
        %v3606 = vsel %vm1854, %v3577, %v3605
        %v3607 = vsel %vm1850, %v3579, %v3578
        %v3608 = vsel %vm1852, %v3580, %v3607
        %v3609 = vsel %vm1854, %v3581, %v3608
        %v3610 = vsel %vm1850, %v3583, %v3582
        %v3611 = vsel %vm1852, %v3584, %v3610
        %v3612 = vsel %vm1854, %v3585, %v3611
        %v3613 = vsel %vm1850, %v3587, %v3586
        %v3614 = vsel %vm1852, %v3588, %v3613
        %v3615 = vsel %vm1854, %v3589, %v3614
        %v3616 = vsel %vm1850, %v3591, %v3590
        %v3617 = vsel %vm1852, %v3592, %v3616
        %v3618 = vsel %vm1854, %v3593, %v3617
        %v3619 = vsel %vm1850, %v3595, %v3594
        %v3620 = vsel %vm1852, %v3596, %v3619
        %v3621 = vsel %vm1854, %v3597, %v3620
        %vm3630 = vcmask 519168
        %3631 = vst.msk [vmem:[%s3517 + $0x1] sm:$0xf] %vm3630, %v3600
        %3632 = vst.msk [vmem:[%s3517 + $0x9] sm:$0xf] %vm3630, %v3603
        %3633 = vst.msk [vmem:[%s3517 + $0x11] sm:$0xf] %vm3630, %v3606
        %3634 = vst.msk [vmem:[%s3517 + $0x19] sm:$0xf] %vm3630, %v3609
        %3635 = vst.msk [vmem:[%s3517 + $0x31] sm:$0xf] %vm3630, %v3612
        %3636 = vst.msk [vmem:[%s3517 + $0x39] sm:$0xf] %vm3630, %v3615
        %3637 = vst.msk [vmem:[%s3517 + $0x41] sm:$0xf] %vm3630, %v3618
        %3638 = vst.msk [vmem:[%s3517 + $0x49] sm:$0xf] %vm3630, %v3621
        %v3639 = vld [vmem:[#allocation3] sm:$0xf]
        %v3640 = vld [vmem:[#allocation3 + $0x8] sm:$0xf]
        %v3641 = vld [vmem:[#allocation3 + $0x10] sm:$0xf]
        %v3642 = vld [vmem:[#allocation3 + $0x18] sm:$0xf]
        %v3643 = vld [vmem:[#allocation3 + $0x30] sm:$0xf]
        %v3644 = vld [vmem:[#allocation3 + $0x38] sm:$0xf]
        %v3645 = vld [vmem:[#allocation3 + $0x40] sm:$0xf]
        %v3646 = vld [vmem:[#allocation3 + $0x48] sm:$0xf]
        %3655 = vst [vmem:[#allocation1] ss:$2 sm:$0xff] %v3639
        %s3656 = scalar_lea.vmem [#allocation1], 1
        %3657 = vst [vmem:[%s3656] ss:$2 sm:$0xff] %v3640
        %s3658 = scalar_lea.vmem [#allocation1], 16
        %3659 = vst [vmem:[%s3658] ss:$2 sm:$0xff] %v3641
        %s3660 = scalar_lea.vmem [#allocation1], 17
        %3661 = vst [vmem:[%s3660] ss:$2 sm:$0xff] %v3642
        %s3662 = scalar_lea.vmem [#allocation1], 32
        %3663 = vst [vmem:[%s3662] ss:$2 sm:$0xff] %v3643
        %s3664 = scalar_lea.vmem [#allocation1], 33
        %3665 = vst [vmem:[%s3664] ss:$2 sm:$0xff] %v3644
        %s3666 = scalar_lea.vmem [#allocation1], 48
        %3667 = vst [vmem:[%s3666] ss:$2 sm:$0xff] %v3645
        %s3668 = scalar_lea.vmem [#allocation1], 49
        %3669 = vst [vmem:[%s3668] ss:$2 sm:$0xff] %v3646
        %v3670 = vld.sshfl [vmem:[#allocation1] sm:$0xff pattern:$0x75316420]
        %v3671 = vld.sshfl [vmem:[#allocation1 + $0x10] sm:$0xff pattern:$0x75316420]
        %v3672 = vld.sshfl [vmem:[#allocation1 + $0x20] sm:$0xff pattern:$0x75316420]
        %v3673 = vld.sshfl [vmem:[#allocation1 + $0x30] sm:$0xff pattern:$0x75316420]
        %v3678 = vpack.c.bf16 %v3671, %v3670
        %v3679 = vpack.c.bf16 %v3673, %v3672
        %v3680 = vld [vmem:[%s3] sm:$0xf]
        %v3681 = vld [vmem:[%s3 + $0x4] sm:$0xf]
        %v3682 = vld [vmem:[%s3 + $0x8] sm:$0xf]
        %v3683 = vld [vmem:[%s3 + $0xc] sm:$0xf]
        %v3684 = vld [vmem:[%s3 + $0x10] sm:$0xf]
        %v3685 = vld [vmem:[%s3 + $0x14] sm:$0xf]
        %v3686 = vld [vmem:[%s3 + $0x18] sm:$0xf]
        %v3687 = vld [vmem:[%s3 + $0x1c] sm:$0xf]
        %v3688 = vld [vmem:[#allocation3 + $0x1] sm:$0xf]
        %v3689 = vld [vmem:[#allocation3 + $0x9] sm:$0xf]
        %v3690 = vld [vmem:[#allocation3 + $0x11] sm:$0xf]
        %v3691 = vld [vmem:[#allocation3 + $0x19] sm:$0xf]
        %v3692 = vld [vmem:[#allocation3 + $0x31] sm:$0xf]
        %v3693 = vld [vmem:[#allocation3 + $0x39] sm:$0xf]
        %v3694 = vld [vmem:[#allocation3 + $0x41] sm:$0xf]
        %v3695 = vld [vmem:[#allocation3 + $0x49] sm:$0xf]
        %3704 = vst [vmem:[#allocation1] ss:$2 sm:$0xff] %v3688
        %s3705 = scalar_lea.vmem [#allocation1], 1
        %3706 = vst [vmem:[%s3705] ss:$2 sm:$0xff] %v3689
        %s3707 = scalar_lea.vmem [#allocation1], 16
        %3708 = vst [vmem:[%s3707] ss:$2 sm:$0xff] %v3690
        %s3709 = scalar_lea.vmem [#allocation1], 17
        %3710 = vst [vmem:[%s3709] ss:$2 sm:$0xff] %v3691
        %s3711 = scalar_lea.vmem [#allocation1], 32
        %3712 = vst [vmem:[%s3711] ss:$2 sm:$0xff] %v3692
        %s3713 = scalar_lea.vmem [#allocation1], 33
        %3714 = vst [vmem:[%s3713] ss:$2 sm:$0xff] %v3693
        %s3715 = scalar_lea.vmem [#allocation1], 48
        %3716 = vst [vmem:[%s3715] ss:$2 sm:$0xff] %v3694
        %s3717 = scalar_lea.vmem [#allocation1], 49
        %3718 = vst [vmem:[%s3717] ss:$2 sm:$0xff] %v3695
        %v3719 = vld.sshfl [vmem:[#allocation1] sm:$0xff pattern:$0x75316420]
        %v3720 = vld.sshfl [vmem:[#allocation1 + $0x10] sm:$0xff pattern:$0x75316420]
        %v3721 = vld.sshfl [vmem:[#allocation1 + $0x20] sm:$0xff pattern:$0x75316420]
        %v3722 = vld.sshfl [vmem:[#allocation1 + $0x30] sm:$0xff pattern:$0x75316420]
        %v3727 = vpack.c.bf16 %v3720, %v3719
        %v3728 = vpack.c.bf16 %v3722, %v3721
        %s3729 = scalar_lea.vmem %s3, 32
        %v3730 = vld [vmem:[%s3729] sm:$0xf]
        %v3731 = vld [vmem:[%s3729 + $0x4] sm:$0xf]
        %v3732 = vld [vmem:[%s3729 + $0x8] sm:$0xf]
        %v3733 = vld [vmem:[%s3729 + $0xc] sm:$0xf]
        %v3734 = vld [vmem:[%s3729 + $0x10] sm:$0xf]
        %v3735 = vld [vmem:[%s3729 + $0x14] sm:$0xf]
        %v3736 = vld [vmem:[%s3729 + $0x18] sm:$0xf]
        %v3737 = vld [vmem:[%s3729 + $0x1c] sm:$0xf]
        %v3746 = vunpack.c.l.b16 %v3730
        %v3747 = vunpack.c.l.b16 %v3731
        %v3748 = vunpack.c.l.b16 %v3732
        %v3749 = vunpack.c.l.b16 %v3733
        %v3750 = vunpack.c.l.b16 %v3734
        %v3751 = vunpack.c.l.b16 %v3735
        %v3752 = vunpack.c.l.b16 %v3736
        %v3753 = vunpack.c.l.b16 %v3737
        %v3754 = vpack.c.b16 %v3747, %v3746
        %v3755 = vpack.c.b16 %v3749, %v3748
        %v3756 = vpack.c.b16 %v3751, %v3750
        %v3757 = vpack.c.b16 %v3753, %v3752
        %v3763 = vsel %vm1549, %v3727, 0
        %v3766 = vsel %vm1549, %v3728, 0
        %3768 = vmatpush.bf16.msra.mxu0 0
        %3769 = vmatpush.bf16.msra.mxu0 0
        %3770 = vmatpush.bf16.msra.mxu0 0
        %3771 = vmatpush.bf16.msra.mxu0 0
        %3772 = vmatpush.bf16.msra.mxu0 %v3757
        %3773 = vmatpush.bf16.msra.mxu0 %v3756
        %3774 = vmatpush.bf16.msra.mxu0 %v3755
        %3775 = vmatpush.bf16.msra.mxu0 %v3754
        %3776 = vmatmul.bf16.gmra.mxu0 %v3763
        %v3777 = vpop.f32.mrf.mxu0
        %v3778 = vadd.f32 0.0, %v3777
        %v3779 = vpop.f32.mrf.mxu0
        %v3780 = vadd.f32 0.0, %v3779
        %3781 = vmatmul.bf16.gmra.mxu0 %v3766
        %v3782 = vpop.f32.mrf.mxu0
        %v3783 = vadd.f32 0.0, %v3782
        %v3784 = vpop.f32.mrf.mxu0
        %v3785 = vadd.f32 0.0, %v3784
        %3786 = vdwg.mxu0
        %v3795 = vunpack.c.l.b16 %v3680
        %v3796 = vunpack.c.l.b16 %v3681
        %v3797 = vunpack.c.l.b16 %v3682
        %v3798 = vunpack.c.l.b16 %v3683
        %v3799 = vunpack.c.l.b16 %v3684
        %v3800 = vunpack.c.l.b16 %v3685
        %v3801 = vunpack.c.l.b16 %v3686
        %v3802 = vunpack.c.l.b16 %v3687
        %v3803 = vpack.c.b16 %v3796, %v3795
        %v3804 = vpack.c.b16 %v3798, %v3797
        %v3805 = vpack.c.b16 %v3800, %v3799
        %v3806 = vpack.c.b16 %v3802, %v3801
        %v3812 = vsel %vm1549, %v3678, 0
        %v3815 = vsel %vm1549, %v3679, 0
        %3817 = vmatpush.bf16.msra.mxu0 0
        %3818 = vmatpush.bf16.msra.mxu0 0
        %3819 = vmatpush.bf16.msra.mxu0 0
        %3820 = vmatpush.bf16.msra.mxu0 0
        %3821 = vmatpush.bf16.msra.mxu0 %v3806
        %3822 = vmatpush.bf16.msra.mxu0 %v3805
        %3823 = vmatpush.bf16.msra.mxu0 %v3804
        %3824 = vmatpush.bf16.msra.mxu0 %v3803
        %3825 = vmatmul.bf16.gmra.mxu0 %v3812
        %v3826 = vpop.f32.mrf.mxu0
        %v3827 = vadd.f32 %v3778, %v3826
        %v3828 = vpop.f32.mrf.mxu0
        %v3829 = vadd.f32 %v3780, %v3828
        %3830 = vmatmul.bf16.gmra.mxu0 %v3815
        %v3831 = vpop.f32.mrf.mxu0
        %v3832 = vadd.f32 %v3783, %v3831
        %v3833 = vpop.f32.mrf.mxu0
        %v3834 = vadd.f32 %v3785, %v3833
        %3835 = vdwg.mxu0
        %v3836 = vld [vmem:[#allocation3 + $0x2] sm:$0xf]
        %v3837 = vld [vmem:[#allocation3 + $0xa] sm:$0xf]
        %v3838 = vld [vmem:[#allocation3 + $0x12] sm:$0xf]
        %v3839 = vld [vmem:[#allocation3 + $0x1a] sm:$0xf]
        %v3840 = vld [vmem:[#allocation3 + $0x32] sm:$0xf]
        %v3841 = vld [vmem:[#allocation3 + $0x3a] sm:$0xf]
        %v3842 = vld [vmem:[#allocation3 + $0x42] sm:$0xf]
        %v3843 = vld [vmem:[#allocation3 + $0x4a] sm:$0xf]
        %3852 = vst [vmem:[#allocation1] ss:$2 sm:$0xff] %v3836
        %s3853 = scalar_lea.vmem [#allocation1], 1
        %3854 = vst [vmem:[%s3853] ss:$2 sm:$0xff] %v3837
        %s3855 = scalar_lea.vmem [#allocation1], 16
        %3856 = vst [vmem:[%s3855] ss:$2 sm:$0xff] %v3838
        %s3857 = scalar_lea.vmem [#allocation1], 17
        %3858 = vst [vmem:[%s3857] ss:$2 sm:$0xff] %v3839
        %s3859 = scalar_lea.vmem [#allocation1], 32
        %3860 = vst [vmem:[%s3859] ss:$2 sm:$0xff] %v3840
        %s3861 = scalar_lea.vmem [#allocation1], 33
        %3862 = vst [vmem:[%s3861] ss:$2 sm:$0xff] %v3841
        %s3863 = scalar_lea.vmem [#allocation1], 48
        %3864 = vst [vmem:[%s3863] ss:$2 sm:$0xff] %v3842
        %s3865 = scalar_lea.vmem [#allocation1], 49
        %3866 = vst [vmem:[%s3865] ss:$2 sm:$0xff] %v3843
        %v3867 = vld.sshfl [vmem:[#allocation1] sm:$0xff pattern:$0x75316420]
        %v3868 = vld.sshfl [vmem:[#allocation1 + $0x10] sm:$0xff pattern:$0x75316420]
        %v3869 = vld.sshfl [vmem:[#allocation1 + $0x20] sm:$0xff pattern:$0x75316420]
        %v3870 = vld.sshfl [vmem:[#allocation1 + $0x30] sm:$0xff pattern:$0x75316420]
        %v3875 = vpack.c.bf16 %v3868, %v3867
        %v3876 = vpack.c.bf16 %v3870, %v3869
        %s3877 = scalar_lea.vmem %s3, 64
        %v3878 = vld [vmem:[%s3877] sm:$0xf]
        %v3879 = vld [vmem:[%s3877 + $0x4] sm:$0xf]
        %v3880 = vld [vmem:[%s3877 + $0x8] sm:$0xf]
        %v3881 = vld [vmem:[%s3877 + $0xc] sm:$0xf]
        %v3882 = vld [vmem:[%s3877 + $0x10] sm:$0xf]
        %v3883 = vld [vmem:[%s3877 + $0x14] sm:$0xf]
        %v3884 = vld [vmem:[%s3877 + $0x18] sm:$0xf]
        %v3885 = vld [vmem:[%s3877 + $0x1c] sm:$0xf]
        %v3894 = vunpack.c.l.b16 %v3878
        %v3895 = vunpack.c.l.b16 %v3879
        %v3896 = vunpack.c.l.b16 %v3880
        %v3897 = vunpack.c.l.b16 %v3881
        %v3898 = vunpack.c.l.b16 %v3882
        %v3899 = vunpack.c.l.b16 %v3883
        %v3900 = vunpack.c.l.b16 %v3884
        %v3901 = vunpack.c.l.b16 %v3885
        %v3902 = vpack.c.b16 %v3895, %v3894
        %v3903 = vpack.c.b16 %v3897, %v3896
        %v3904 = vpack.c.b16 %v3899, %v3898
        %v3905 = vpack.c.b16 %v3901, %v3900
        %v3911 = vsel %vm1549, %v3875, 0
        %v3914 = vsel %vm1549, %v3876, 0
        %3916 = vmatpush.bf16.msra.mxu0 0
        %3917 = vmatpush.bf16.msra.mxu0 0
        %3918 = vmatpush.bf16.msra.mxu0 0
        %3919 = vmatpush.bf16.msra.mxu0 0
        %3920 = vmatpush.bf16.msra.mxu0 %v3905
        %3921 = vmatpush.bf16.msra.mxu0 %v3904
        %3922 = vmatpush.bf16.msra.mxu0 %v3903
        %3923 = vmatpush.bf16.msra.mxu0 %v3902
        %3924 = vmatmul.bf16.gmra.mxu0 %v3911
        %v3925 = vpop.f32.mrf.mxu0
        %v3926 = vadd.f32 0.0, %v3925
        %v3927 = vpop.f32.mrf.mxu0
        %v3928 = vadd.f32 0.0, %v3927
        %3929 = vmatmul.bf16.gmra.mxu0 %v3914
        %v3930 = vpop.f32.mrf.mxu0
        %v3931 = vadd.f32 0.0, %v3930
        %v3932 = vpop.f32.mrf.mxu0
        %v3933 = vadd.f32 0.0, %v3932
        %3934 = vdwg.mxu0
        %v3935 = vadd.f32 %v3827, %v3926
        %v3936 = vadd.f32 %v3829, %v3928
        %v3937 = vadd.f32 %v3832, %v3931
        %v3938 = vadd.f32 %v3834, %v3933
        %v3939 = vld [vmem:[%s3517] sm:$0xf]
        %v3940 = vld [vmem:[%s3517 + $0x8] sm:$0xf]
        %v3941 = vld [vmem:[%s3517 + $0x10] sm:$0xf]
        %v3942 = vld [vmem:[%s3517 + $0x18] sm:$0xf]
        %v3943 = vld [vmem:[%s3517 + $0x30] sm:$0xf]
        %v3944 = vld [vmem:[%s3517 + $0x38] sm:$0xf]
        %v3945 = vld [vmem:[%s3517 + $0x40] sm:$0xf]
        %v3946 = vld [vmem:[%s3517 + $0x48] sm:$0xf]
        %3955 = vst [vmem:[#allocation1] ss:$2 sm:$0xff] %v3939
        %s3956 = scalar_lea.vmem [#allocation1], 1
        %3957 = vst [vmem:[%s3956] ss:$2 sm:$0xff] %v3940
        %s3958 = scalar_lea.vmem [#allocation1], 16
        %3959 = vst [vmem:[%s3958] ss:$2 sm:$0xff] %v3941
        %s3960 = scalar_lea.vmem [#allocation1], 17
        %3961 = vst [vmem:[%s3960] ss:$2 sm:$0xff] %v3942
        %s3962 = scalar_lea.vmem [#allocation1], 32
        %3963 = vst [vmem:[%s3962] ss:$2 sm:$0xff] %v3943
        %s3964 = scalar_lea.vmem [#allocation1], 33
        %3965 = vst [vmem:[%s3964] ss:$2 sm:$0xff] %v3944
        %s3966 = scalar_lea.vmem [#allocation1], 48
        %3967 = vst [vmem:[%s3966] ss:$2 sm:$0xff] %v3945
        %s3968 = scalar_lea.vmem [#allocation1], 49
        %3969 = vst [vmem:[%s3968] ss:$2 sm:$0xff] %v3946
        %v3970 = vld.sshfl [vmem:[#allocation1] sm:$0xff pattern:$0x75316420]
        %v3971 = vld.sshfl [vmem:[#allocation1 + $0x10] sm:$0xff pattern:$0x75316420]
        %v3972 = vld.sshfl [vmem:[#allocation1 + $0x20] sm:$0xff pattern:$0x75316420]
        %v3973 = vld.sshfl [vmem:[#allocation1 + $0x30] sm:$0xff pattern:$0x75316420]
        %v3978 = vpack.c.bf16 %v3971, %v3970
        %v3979 = vpack.c.bf16 %v3973, %v3972
        %s3980 = scalar_lea.vmem %s3, 96
        %v3981 = vld [vmem:[%s3980] sm:$0xf]
        %v3982 = vld [vmem:[%s3980 + $0x4] sm:$0xf]
        %v3983 = vld [vmem:[%s3980 + $0x8] sm:$0xf]
        %v3984 = vld [vmem:[%s3980 + $0xc] sm:$0xf]
        %v3985 = vld [vmem:[%s3980 + $0x10] sm:$0xf]
        %v3986 = vld [vmem:[%s3980 + $0x14] sm:$0xf]
        %v3987 = vld [vmem:[%s3980 + $0x18] sm:$0xf]
        %v3988 = vld [vmem:[%s3980 + $0x1c] sm:$0xf]
        %v3997 = vunpack.c.l.b16 %v3981
        %v3998 = vunpack.c.l.b16 %v3982
        %v3999 = vunpack.c.l.b16 %v3983
        %v4000 = vunpack.c.l.b16 %v3984
        %v4001 = vunpack.c.l.b16 %v3985
        %v4002 = vunpack.c.l.b16 %v3986
        %v4003 = vunpack.c.l.b16 %v3987
        %v4004 = vunpack.c.l.b16 %v3988
        %v4005 = vpack.c.b16 %v3998, %v3997
        %v4006 = vpack.c.b16 %v4000, %v3999
        %v4007 = vpack.c.b16 %v4002, %v4001
        %v4008 = vpack.c.b16 %v4004, %v4003
        %v4014 = vsel %vm1549, %v3978, 0
        %v4017 = vsel %vm1549, %v3979, 0
        %4019 = vmatpush.bf16.msra.mxu0 0
        %4020 = vmatpush.bf16.msra.mxu0 0
        %4021 = vmatpush.bf16.msra.mxu0 0
        %4022 = vmatpush.bf16.msra.mxu0 0
        %4023 = vmatpush.bf16.msra.mxu0 %v4008
        %4024 = vmatpush.bf16.msra.mxu0 %v4007
        %4025 = vmatpush.bf16.msra.mxu0 %v4006
        %4026 = vmatpush.bf16.msra.mxu0 %v4005
        %4027 = vmatmul.bf16.gmra.mxu0 %v4014
        %v4028 = vpop.f32.mrf.mxu0
        %v4029 = vadd.f32 0.0, %v4028
        %v4030 = vpop.f32.mrf.mxu0
        %v4031 = vadd.f32 0.0, %v4030
        %4032 = vmatmul.bf16.gmra.mxu0 %v4017
        %v4033 = vpop.f32.mrf.mxu0
        %v4034 = vadd.f32 0.0, %v4033
        %v4035 = vpop.f32.mrf.mxu0
        %v4036 = vadd.f32 0.0, %v4035
        %4037 = vdwg.mxu0
        %v4038 = vadd.f32 %v3935, %v4029
        %v4039 = vadd.f32 %v3936, %v4031
        %v4040 = vadd.f32 %v3937, %v4034
        %v4041 = vadd.f32 %v3938, %v4036
        %v4042 = vld [vmem:[%s3517 + $0x1] sm:$0xf]
        %v4043 = vld [vmem:[%s3517 + $0x9] sm:$0xf]
        %v4044 = vld [vmem:[%s3517 + $0x11] sm:$0xf]
        %v4045 = vld [vmem:[%s3517 + $0x19] sm:$0xf]
        %v4046 = vld [vmem:[%s3517 + $0x31] sm:$0xf]
        %v4047 = vld [vmem:[%s3517 + $0x39] sm:$0xf]
        %v4048 = vld [vmem:[%s3517 + $0x41] sm:$0xf]
        %v4049 = vld [vmem:[%s3517 + $0x49] sm:$0xf]
        %4058 = vst [vmem:[#allocation1] ss:$2 sm:$0xff] %v4042
        %s4059 = scalar_lea.vmem [#allocation1], 1
        %4060 = vst [vmem:[%s4059] ss:$2 sm:$0xff] %v4043
        %s4061 = scalar_lea.vmem [#allocation1], 16
        %4062 = vst [vmem:[%s4061] ss:$2 sm:$0xff] %v4044
        %s4063 = scalar_lea.vmem [#allocation1], 17
        %4064 = vst [vmem:[%s4063] ss:$2 sm:$0xff] %v4045
        %s4065 = scalar_lea.vmem [#allocation1], 32
        %4066 = vst [vmem:[%s4065] ss:$2 sm:$0xff] %v4046
        %s4067 = scalar_lea.vmem [#allocation1], 33
        %4068 = vst [vmem:[%s4067] ss:$2 sm:$0xff] %v4047
        %s4069 = scalar_lea.vmem [#allocation1], 48
        %4070 = vst [vmem:[%s4069] ss:$2 sm:$0xff] %v4048
        %s4071 = scalar_lea.vmem [#allocation1], 49
        %4072 = vst [vmem:[%s4071] ss:$2 sm:$0xff] %v4049
        %v4073 = vld.sshfl [vmem:[#allocation1] sm:$0xff pattern:$0x75316420]
        %v4074 = vld.sshfl [vmem:[#allocation1 + $0x10] sm:$0xff pattern:$0x75316420]
        %v4075 = vld.sshfl [vmem:[#allocation1 + $0x20] sm:$0xff pattern:$0x75316420]
        %v4076 = vld.sshfl [vmem:[#allocation1 + $0x30] sm:$0xff pattern:$0x75316420]
        %v4081 = vpack.c.bf16 %v4074, %v4073
        %v4082 = vpack.c.bf16 %v4076, %v4075
        %s4083 = scalar_lea.vmem %s3, 128
        %v4084 = vld [vmem:[%s4083] sm:$0xf]
        %v4085 = vld [vmem:[%s4083 + $0x4] sm:$0xf]
        %v4086 = vld [vmem:[%s4083 + $0x8] sm:$0xf]
        %v4087 = vld [vmem:[%s4083 + $0xc] sm:$0xf]
        %v4088 = vld [vmem:[%s4083 + $0x10] sm:$0xf]
        %v4089 = vld [vmem:[%s4083 + $0x14] sm:$0xf]
        %v4090 = vld [vmem:[%s4083 + $0x18] sm:$0xf]
        %v4091 = vld [vmem:[%s4083 + $0x1c] sm:$0xf]
        %v4100 = vunpack.c.l.b16 %v4084
        %v4101 = vunpack.c.l.b16 %v4085
        %v4102 = vunpack.c.l.b16 %v4086
        %v4103 = vunpack.c.l.b16 %v4087
        %v4104 = vunpack.c.l.b16 %v4088
        %v4105 = vunpack.c.l.b16 %v4089
        %v4106 = vunpack.c.l.b16 %v4090
        %v4107 = vunpack.c.l.b16 %v4091
        %v4108 = vpack.c.b16 %v4101, %v4100
        %v4109 = vpack.c.b16 %v4103, %v4102
        %v4110 = vpack.c.b16 %v4105, %v4104
        %v4111 = vpack.c.b16 %v4107, %v4106
        %v4117 = vsel %vm1549, %v4081, 0
        %v4120 = vsel %vm1549, %v4082, 0
        %4122 = vmatpush.bf16.msra.mxu0 0
        %4123 = vmatpush.bf16.msra.mxu0 0
        %4124 = vmatpush.bf16.msra.mxu0 0
        %4125 = vmatpush.bf16.msra.mxu0 0
        %4126 = vmatpush.bf16.msra.mxu0 %v4111
        %4127 = vmatpush.bf16.msra.mxu0 %v4110
        %4128 = vmatpush.bf16.msra.mxu0 %v4109
        %4129 = vmatpush.bf16.msra.mxu0 %v4108
        %4130 = vmatmul.bf16.gmra.mxu0 %v4117
        %v4131 = vpop.f32.mrf.mxu0
        %v4132 = vadd.f32 0.0, %v4131
        %v4133 = vpop.f32.mrf.mxu0
        %v4134 = vadd.f32 0.0, %v4133
        %4135 = vmatmul.bf16.gmra.mxu0 %v4120
        %v4136 = vpop.f32.mrf.mxu0
        %v4137 = vadd.f32 0.0, %v4136
        %v4138 = vpop.f32.mrf.mxu0
        %v4139 = vadd.f32 0.0, %v4138
        %4140 = vdwg.mxu0
        %v4141 = vadd.f32 %v4038, %v4132
        %v4142 = vadd.f32 %v4039, %v4134
        %v4143 = vadd.f32 %v4040, %v4137
        %v4144 = vadd.f32 %v4041, %v4139
        %v4145 = vld [vmem:[%s3517 + $0x2] sm:$0xf]
        %v4146 = vld [vmem:[%s3517 + $0xa] sm:$0xf]
        %v4147 = vld [vmem:[%s3517 + $0x12] sm:$0xf]
        %v4148 = vld [vmem:[%s3517 + $0x1a] sm:$0xf]
        %v4149 = vld [vmem:[%s3517 + $0x32] sm:$0xf]
        %v4150 = vld [vmem:[%s3517 + $0x3a] sm:$0xf]
        %v4151 = vld [vmem:[%s3517 + $0x42] sm:$0xf]
        %v4152 = vld [vmem:[%s3517 + $0x4a] sm:$0xf]
        %4161 = vst [vmem:[#allocation1] ss:$2 sm:$0xff] %v4145
        %s4162 = scalar_lea.vmem [#allocation1], 1
        %4163 = vst [vmem:[%s4162] ss:$2 sm:$0xff] %v4146
        %s4164 = scalar_lea.vmem [#allocation1], 16
        %4165 = vst [vmem:[%s4164] ss:$2 sm:$0xff] %v4147
        %s4166 = scalar_lea.vmem [#allocation1], 17
        %4167 = vst [vmem:[%s4166] ss:$2 sm:$0xff] %v4148
        %s4168 = scalar_lea.vmem [#allocation1], 32
        %4169 = vst [vmem:[%s4168] ss:$2 sm:$0xff] %v4149
        %s4170 = scalar_lea.vmem [#allocation1], 33
        %4171 = vst [vmem:[%s4170] ss:$2 sm:$0xff] %v4150
        %s4172 = scalar_lea.vmem [#allocation1], 48
        %4173 = vst [vmem:[%s4172] ss:$2 sm:$0xff] %v4151
        %s4174 = scalar_lea.vmem [#allocation1], 49
        %4175 = vst [vmem:[%s4174] ss:$2 sm:$0xff] %v4152
        %v4176 = vld.sshfl [vmem:[#allocation1] sm:$0xff pattern:$0x75316420]
        %v4177 = vld.sshfl [vmem:[#allocation1 + $0x10] sm:$0xff pattern:$0x75316420]
        %v4178 = vld.sshfl [vmem:[#allocation1 + $0x20] sm:$0xff pattern:$0x75316420]
        %v4179 = vld.sshfl [vmem:[#allocation1 + $0x30] sm:$0xff pattern:$0x75316420]
        %v4184 = vpack.c.bf16 %v4177, %v4176
        %v4185 = vpack.c.bf16 %v4179, %v4178
        %s4186 = scalar_lea.vmem %s3, 160
        %v4187 = vld [vmem:[%s4186] sm:$0xf]
        %v4188 = vld [vmem:[%s4186 + $0x4] sm:$0xf]
        %v4189 = vld [vmem:[%s4186 + $0x8] sm:$0xf]
        %v4190 = vld [vmem:[%s4186 + $0xc] sm:$0xf]
        %v4191 = vld [vmem:[%s4186 + $0x10] sm:$0xf]
        %v4192 = vld [vmem:[%s4186 + $0x14] sm:$0xf]
        %v4193 = vld [vmem:[%s4186 + $0x18] sm:$0xf]
        %v4194 = vld [vmem:[%s4186 + $0x1c] sm:$0xf]
        %v4203 = vunpack.c.l.b16 %v4187
        %v4204 = vunpack.c.l.b16 %v4188
        %v4205 = vunpack.c.l.b16 %v4189
        %v4206 = vunpack.c.l.b16 %v4190
        %v4207 = vunpack.c.l.b16 %v4191
        %v4208 = vunpack.c.l.b16 %v4192
        %v4209 = vunpack.c.l.b16 %v4193
        %v4210 = vunpack.c.l.b16 %v4194
        %v4211 = vpack.c.b16 %v4204, %v4203
        %v4212 = vpack.c.b16 %v4206, %v4205
        %v4213 = vpack.c.b16 %v4208, %v4207
        %v4214 = vpack.c.b16 %v4210, %v4209
        %v4220 = vsel %vm1549, %v4184, 0
        %v4223 = vsel %vm1549, %v4185, 0
        %4225 = vmatpush.bf16.msra.mxu0 0
        %4226 = vmatpush.bf16.msra.mxu0 0
        %4227 = vmatpush.bf16.msra.mxu0 0
        %4228 = vmatpush.bf16.msra.mxu0 0
        %4229 = vmatpush.bf16.msra.mxu0 %v4214
        %4230 = vmatpush.bf16.msra.mxu0 %v4213
        %4231 = vmatpush.bf16.msra.mxu0 %v4212
        %4232 = vmatpush.bf16.msra.mxu0 %v4211
        %4233 = vmatmul.bf16.gmra.mxu0 %v4220
        %v4234 = vpop.f32.mrf.mxu0
        %v4235 = vadd.f32 0.0, %v4234
        %v4236 = vpop.f32.mrf.mxu0
        %v4237 = vadd.f32 0.0, %v4236
        %4238 = vmatmul.bf16.gmra.mxu0 %v4223
        %v4239 = vpop.f32.mrf.mxu0
        %v4240 = vadd.f32 0.0, %v4239
        %v4241 = vpop.f32.mrf.mxu0
        %v4242 = vadd.f32 0.0, %v4241
        %4243 = vdwg.mxu0
        %v4244 = vadd.f32 %v4141, %v4235
        %v4245 = vadd.f32 %v4142, %v4237
        %v4246 = vadd.f32 %v4143, %v4240
        %v4247 = vadd.f32 %v4144, %v4242
        %s4248 = scalar_lea.vmem [#allocation3], 16
        %v4249 = vld [vmem:[%s4248] sm:$0xf]
        %v4250 = vld [vmem:[%s4248 + $0x8] sm:$0xf]
        %v4251 = vld [vmem:[%s4248 + $0x10] sm:$0xf]
        %v4252 = vld [vmem:[%s4248 + $0x18] sm:$0xf]
        %v4253 = vld [vmem:[%s4248 + $0x30] sm:$0xf]
        %v4254 = vld [vmem:[%s4248 + $0x38] sm:$0xf]
        %v4255 = vld [vmem:[%s4248 + $0x40] sm:$0xf]
        %v4256 = vld [vmem:[%s4248 + $0x48] sm:$0xf]
        %4265 = vst [vmem:[#allocation1] ss:$2 sm:$0xff] %v4249
        %s4266 = scalar_lea.vmem [#allocation1], 1
        %4267 = vst [vmem:[%s4266] ss:$2 sm:$0xff] %v4250
        %s4268 = scalar_lea.vmem [#allocation1], 16
        %4269 = vst [vmem:[%s4268] ss:$2 sm:$0xff] %v4251
        %s4270 = scalar_lea.vmem [#allocation1], 17
        %4271 = vst [vmem:[%s4270] ss:$2 sm:$0xff] %v4252
        %s4272 = scalar_lea.vmem [#allocation1], 32
        %4273 = vst [vmem:[%s4272] ss:$2 sm:$0xff] %v4253
        %s4274 = scalar_lea.vmem [#allocation1], 33
        %4275 = vst [vmem:[%s4274] ss:$2 sm:$0xff] %v4254
        %s4276 = scalar_lea.vmem [#allocation1], 48
        %4277 = vst [vmem:[%s4276] ss:$2 sm:$0xff] %v4255
        %s4278 = scalar_lea.vmem [#allocation1], 49
        %4279 = vst [vmem:[%s4278] ss:$2 sm:$0xff] %v4256
        %v4280 = vld.sshfl [vmem:[#allocation1] sm:$0xff pattern:$0x75316420]
        %v4281 = vld.sshfl [vmem:[#allocation1 + $0x10] sm:$0xff pattern:$0x75316420]
        %v4282 = vld.sshfl [vmem:[#allocation1 + $0x20] sm:$0xff pattern:$0x75316420]
        %v4283 = vld.sshfl [vmem:[#allocation1 + $0x30] sm:$0xff pattern:$0x75316420]
        %v4288 = vpack.c.bf16 %v4281, %v4280
        %v4289 = vpack.c.bf16 %v4283, %v4282
        %s4290 = scalar_lea.vmem %s3, 192
        %v4291 = vld [vmem:[%s4290] sm:$0xf]
        %v4292 = vld [vmem:[%s4290 + $0x4] sm:$0xf]
        %v4293 = vld [vmem:[%s4290 + $0x8] sm:$0xf]
        %v4294 = vld [vmem:[%s4290 + $0xc] sm:$0xf]
        %v4295 = vld [vmem:[%s4290 + $0x10] sm:$0xf]
        %v4296 = vld [vmem:[%s4290 + $0x14] sm:$0xf]
        %v4297 = vld [vmem:[%s4290 + $0x18] sm:$0xf]
        %v4298 = vld [vmem:[%s4290 + $0x1c] sm:$0xf]
        %v4307 = vunpack.c.l.b16 %v4291
        %v4308 = vunpack.c.l.b16 %v4292
        %v4309 = vunpack.c.l.b16 %v4293
        %v4310 = vunpack.c.l.b16 %v4294
        %v4311 = vunpack.c.l.b16 %v4295
        %v4312 = vunpack.c.l.b16 %v4296
        %v4313 = vunpack.c.l.b16 %v4297
        %v4314 = vunpack.c.l.b16 %v4298
        %v4315 = vpack.c.b16 %v4308, %v4307
        %v4316 = vpack.c.b16 %v4310, %v4309
        %v4317 = vpack.c.b16 %v4312, %v4311
        %v4318 = vpack.c.b16 %v4314, %v4313
        %v4324 = vsel %vm1549, %v4288, 0
        %v4327 = vsel %vm1549, %v4289, 0
        %4329 = vmatpush.bf16.msra.mxu0 0
        %4330 = vmatpush.bf16.msra.mxu0 0
        %4331 = vmatpush.bf16.msra.mxu0 0
        %4332 = vmatpush.bf16.msra.mxu0 0
        %4333 = vmatpush.bf16.msra.mxu0 %v4318
        %4334 = vmatpush.bf16.msra.mxu0 %v4317
        %4335 = vmatpush.bf16.msra.mxu0 %v4316
        %4336 = vmatpush.bf16.msra.mxu0 %v4315
        %4337 = vmatmul.bf16.gmra.mxu0 %v4324
        %v4338 = vpop.f32.mrf.mxu0
        %v4339 = vadd.f32 0.0, %v4338
        %v4340 = vpop.f32.mrf.mxu0
        %v4341 = vadd.f32 0.0, %v4340
        %4342 = vmatmul.bf16.gmra.mxu0 %v4327
        %v4343 = vpop.f32.mrf.mxu0
        %v4344 = vadd.f32 0.0, %v4343
        %v4345 = vpop.f32.mrf.mxu0
        %v4346 = vadd.f32 0.0, %v4345
        %4347 = vdwg.mxu0
        %v4348 = vadd.f32 %v4244, %v4339
        %v4349 = vadd.f32 %v4245, %v4341
        %v4350 = vadd.f32 %v4246, %v4344
        %v4351 = vadd.f32 %v4247, %v4346
        %v4352 = vld [vmem:[%s4248 + $0x1] sm:$0xf]
        %v4353 = vld [vmem:[%s4248 + $0x9] sm:$0xf]
        %v4354 = vld [vmem:[%s4248 + $0x11] sm:$0xf]
        %v4355 = vld [vmem:[%s4248 + $0x19] sm:$0xf]
        %v4356 = vld [vmem:[%s4248 + $0x31] sm:$0xf]
        %v4357 = vld [vmem:[%s4248 + $0x39] sm:$0xf]
        %v4358 = vld [vmem:[%s4248 + $0x41] sm:$0xf]
        %v4359 = vld [vmem:[%s4248 + $0x49] sm:$0xf]
        %4368 = vst [vmem:[#allocation1] ss:$2 sm:$0xff] %v4352
        %s4369 = scalar_lea.vmem [#allocation1], 1
        %4370 = vst [vmem:[%s4369] ss:$2 sm:$0xff] %v4353
        %s4371 = scalar_lea.vmem [#allocation1], 16
        %4372 = vst [vmem:[%s4371] ss:$2 sm:$0xff] %v4354
        %s4373 = scalar_lea.vmem [#allocation1], 17
        %4374 = vst [vmem:[%s4373] ss:$2 sm:$0xff] %v4355
        %s4375 = scalar_lea.vmem [#allocation1], 32
        %4376 = vst [vmem:[%s4375] ss:$2 sm:$0xff] %v4356
        %s4377 = scalar_lea.vmem [#allocation1], 33
        %4378 = vst [vmem:[%s4377] ss:$2 sm:$0xff] %v4357
        %s4379 = scalar_lea.vmem [#allocation1], 48
        %4380 = vst [vmem:[%s4379] ss:$2 sm:$0xff] %v4358
        %s4381 = scalar_lea.vmem [#allocation1], 49
        %4382 = vst [vmem:[%s4381] ss:$2 sm:$0xff] %v4359
        %v4383 = vld.sshfl [vmem:[#allocation1] sm:$0xff pattern:$0x75316420]
        %v4384 = vld.sshfl [vmem:[#allocation1 + $0x10] sm:$0xff pattern:$0x75316420]
        %v4385 = vld.sshfl [vmem:[#allocation1 + $0x20] sm:$0xff pattern:$0x75316420]
        %v4386 = vld.sshfl [vmem:[#allocation1 + $0x30] sm:$0xff pattern:$0x75316420]
        %v4391 = vpack.c.bf16 %v4384, %v4383
        %v4392 = vpack.c.bf16 %v4386, %v4385
        %s4393 = scalar_lea.vmem %s3, 224
        %v4394 = vld [vmem:[%s4393] sm:$0xf]
        %v4395 = vld [vmem:[%s4393 + $0x4] sm:$0xf]
        %v4396 = vld [vmem:[%s4393 + $0x8] sm:$0xf]
        %v4397 = vld [vmem:[%s4393 + $0xc] sm:$0xf]
        %v4398 = vld [vmem:[%s4393 + $0x10] sm:$0xf]
        %v4399 = vld [vmem:[%s4393 + $0x14] sm:$0xf]
        %v4400 = vld [vmem:[%s4393 + $0x18] sm:$0xf]
        %v4401 = vld [vmem:[%s4393 + $0x1c] sm:$0xf]
        %v4410 = vunpack.c.l.b16 %v4394
        %v4411 = vunpack.c.l.b16 %v4395
        %v4412 = vunpack.c.l.b16 %v4396
        %v4413 = vunpack.c.l.b16 %v4397
        %v4414 = vunpack.c.l.b16 %v4398
        %v4415 = vunpack.c.l.b16 %v4399
        %v4416 = vunpack.c.l.b16 %v4400
        %v4417 = vunpack.c.l.b16 %v4401
        %v4418 = vpack.c.b16 %v4411, %v4410
        %v4419 = vpack.c.b16 %v4413, %v4412
        %v4420 = vpack.c.b16 %v4415, %v4414
        %v4421 = vpack.c.b16 %v4417, %v4416
        %v4427 = vsel %vm1549, %v4391, 0
        %v4430 = vsel %vm1549, %v4392, 0
        %4432 = vmatpush.bf16.msra.mxu0 0
        %4433 = vmatpush.bf16.msra.mxu0 0
        %4434 = vmatpush.bf16.msra.mxu0 0
        %4435 = vmatpush.bf16.msra.mxu0 0
        %4436 = vmatpush.bf16.msra.mxu0 %v4421
        %4437 = vmatpush.bf16.msra.mxu0 %v4420
        %4438 = vmatpush.bf16.msra.mxu0 %v4419
        %4439 = vmatpush.bf16.msra.mxu0 %v4418
        %4440 = vmatmul.bf16.gmra.mxu0 %v4427
        %v4441 = vpop.f32.mrf.mxu0
        %v4442 = vadd.f32 0.0, %v4441
        %v4443 = vpop.f32.mrf.mxu0
        %v4444 = vadd.f32 0.0, %v4443
        %4445 = vmatmul.bf16.gmra.mxu0 %v4430
        %v4446 = vpop.f32.mrf.mxu0
        %v4447 = vadd.f32 0.0, %v4446
        %v4448 = vpop.f32.mrf.mxu0
        %v4449 = vadd.f32 0.0, %v4448
        %4450 = vdwg.mxu0
        %v4451 = vadd.f32 %v4348, %v4442
        %v4452 = vadd.f32 %v4349, %v4444
        %v4453 = vadd.f32 %v4350, %v4447
        %v4454 = vadd.f32 %v4351, %v4449
        %v4455 = vld [vmem:[%s4248 + $0x2] sm:$0xf]
        %v4456 = vld [vmem:[%s4248 + $0xa] sm:$0xf]
        %v4457 = vld [vmem:[%s4248 + $0x12] sm:$0xf]
        %v4458 = vld [vmem:[%s4248 + $0x1a] sm:$0xf]
        %v4459 = vld [vmem:[%s4248 + $0x32] sm:$0xf]
        %v4460 = vld [vmem:[%s4248 + $0x3a] sm:$0xf]
        %v4461 = vld [vmem:[%s4248 + $0x42] sm:$0xf]
        %v4462 = vld [vmem:[%s4248 + $0x4a] sm:$0xf]
        %4471 = vst [vmem:[#allocation1] ss:$2 sm:$0xff] %v4455
        %s4472 = scalar_lea.vmem [#allocation1], 1
        %4473 = vst [vmem:[%s4472] ss:$2 sm:$0xff] %v4456
        %s4474 = scalar_lea.vmem [#allocation1], 16
        %4475 = vst [vmem:[%s4474] ss:$2 sm:$0xff] %v4457
        %s4476 = scalar_lea.vmem [#allocation1], 17
        %4477 = vst [vmem:[%s4476] ss:$2 sm:$0xff] %v4458
        %s4478 = scalar_lea.vmem [#allocation1], 32
        %4479 = vst [vmem:[%s4478] ss:$2 sm:$0xff] %v4459
        %s4480 = scalar_lea.vmem [#allocation1], 33
        %4481 = vst [vmem:[%s4480] ss:$2 sm:$0xff] %v4460
        %s4482 = scalar_lea.vmem [#allocation1], 48
        %4483 = vst [vmem:[%s4482] ss:$2 sm:$0xff] %v4461
        %s4484 = scalar_lea.vmem [#allocation1], 49
        %4485 = vst [vmem:[%s4484] ss:$2 sm:$0xff] %v4462
        %v4486 = vld.sshfl [vmem:[#allocation1] sm:$0xff pattern:$0x75316420]
        %v4487 = vld.sshfl [vmem:[#allocation1 + $0x10] sm:$0xff pattern:$0x75316420]
        %v4488 = vld.sshfl [vmem:[#allocation1 + $0x20] sm:$0xff pattern:$0x75316420]
        %v4489 = vld.sshfl [vmem:[#allocation1 + $0x30] sm:$0xff pattern:$0x75316420]
        %v4494 = vpack.c.bf16 %v4487, %v4486
        %v4495 = vpack.c.bf16 %v4489, %v4488
        %s4496 = scalar_lea.vmem %s3, 256
        %v4497 = vld [vmem:[%s4496] sm:$0xf]
        %v4498 = vld [vmem:[%s4496 + $0x4] sm:$0xf]
        %v4499 = vld [vmem:[%s4496 + $0x8] sm:$0xf]
        %v4500 = vld [vmem:[%s4496 + $0xc] sm:$0xf]
        %v4501 = vld [vmem:[%s4496 + $0x10] sm:$0xf]
        %v4502 = vld [vmem:[%s4496 + $0x14] sm:$0xf]
        %v4503 = vld [vmem:[%s4496 + $0x18] sm:$0xf]
        %v4504 = vld [vmem:[%s4496 + $0x1c] sm:$0xf]
        %v4513 = vunpack.c.l.b16 %v4497
        %v4514 = vunpack.c.l.b16 %v4498
        %v4515 = vunpack.c.l.b16 %v4499
        %v4516 = vunpack.c.l.b16 %v4500
        %v4517 = vunpack.c.l.b16 %v4501
        %v4518 = vunpack.c.l.b16 %v4502
        %v4519 = vunpack.c.l.b16 %v4503
        %v4520 = vunpack.c.l.b16 %v4504
        %v4521 = vpack.c.b16 %v4514, %v4513
        %v4522 = vpack.c.b16 %v4516, %v4515
        %v4523 = vpack.c.b16 %v4518, %v4517
        %v4524 = vpack.c.b16 %v4520, %v4519
        %v4530 = vsel %vm1549, %v4494, 0
        %v4533 = vsel %vm1549, %v4495, 0
        %4535 = vmatpush.bf16.msra.mxu0 0
        %4536 = vmatpush.bf16.msra.mxu0 0
        %4537 = vmatpush.bf16.msra.mxu0 0
        %4538 = vmatpush.bf16.msra.mxu0 0
        %4539 = vmatpush.bf16.msra.mxu0 %v4524
        %4540 = vmatpush.bf16.msra.mxu0 %v4523
        %4541 = vmatpush.bf16.msra.mxu0 %v4522
        %4542 = vmatpush.bf16.msra.mxu0 %v4521
        %4543 = vmatmul.bf16.gmra.mxu0 %v4530
        %v4544 = vpop.f32.mrf.mxu0
        %v4545 = vadd.f32 0.0, %v4544
        %v4546 = vpop.f32.mrf.mxu0
        %v4547 = vadd.f32 0.0, %v4546
        %4548 = vmatmul.bf16.gmra.mxu0 %v4533
        %v4549 = vpop.f32.mrf.mxu0
        %v4550 = vadd.f32 0.0, %v4549
        %v4551 = vpop.f32.mrf.mxu0
        %v4552 = vadd.f32 0.0, %v4551
        %4553 = vdwg.mxu0
        %v4554 = vadd.f32 %v4451, %v4545
        %v4555 = vadd.f32 %v4452, %v4547
        %v4556 = vadd.f32 %v4453, %v4550
        %v4557 = vadd.f32 %v4454, %v4552
        %v4558 = vld [vmem:[%s7] sm:$0x1]
        %v4560 = vperm.slane %v4558, 0
        %v4562 = vadd.f32 %v4554, %v4560
        %v4563 = vadd.f32 %v4555, %v4560
        %v4564 = vadd.f32 %v4556, %v4560
        %v4565 = vadd.f32 %v4557, %v4560
        %v4566 = vmax.f32 %v4562, 0.0
        %v4567 = vmax.f32 %v4563, 0.0
        %v4568 = vmax.f32 %v4564, 0.0
        %v4569 = vmax.f32 %v4565, 0.0
        %v4574 = vrot.slane %v4566, 4
        %v4575 = vrot.slane %v4567, 4
        %v4576 = vrot.slane %v4568, 4
        %v4577 = vrot.slane %v4569, 4
        %v4582 = vmax.f32 %v4566, %v4574
        %v4583 = vmax.f32 %v4567, %v4575
        %v4584 = vmax.f32 %v4568, %v4576
        %v4585 = vmax.f32 %v4569, %v4577
        %v4590 = vrot.slane %v4582, 2
        %v4591 = vrot.slane %v4583, 2
        %v4592 = vrot.slane %v4584, 2
        %v4593 = vrot.slane %v4585, 2
        %vm4594 = vcmask 1041408
        %v4595 = vsel %vm4594, %v4582, %v4590
        %vm4596 = vcmask 1043458
        %v4597 = vsel %vm4596, %v4582, %v4590
        %v4598 = vrot.slane %v4597, 2
        %v4599 = vsel %vm4594, %v4583, %v4591
        %v4600 = vsel %vm4596, %v4583, %v4591
        %v4601 = vrot.slane %v4600, 2
        %v4602 = vsel %vm4594, %v4584, %v4592
        %v4603 = vsel %vm4596, %v4584, %v4592
        %v4604 = vrot.slane %v4603, 2
        %v4605 = vsel %vm4594, %v4585, %v4593
        %v4606 = vsel %vm4596, %v4585, %v4593
        %v4607 = vrot.slane %v4606, 2
        %v4616 = vrot.slane %v4595, 7
        %v4617 = vrot.slane %v4616, 2
        %v4618 = vrot.slane %v4598, 7
        %v4619 = vrot.slane %v4618, 2
        %v4620 = vrot.slane %v4599, 7
        %v4621 = vrot.slane %v4620, 2
        %v4622 = vrot.slane %v4601, 7
        %v4623 = vrot.slane %v4622, 2
        %v4624 = vrot.slane %v4602, 7
        %v4625 = vrot.slane %v4624, 2
        %v4626 = vrot.slane %v4604, 7
        %v4627 = vrot.slane %v4626, 2
        %v4628 = vrot.slane %v4605, 7
        %v4629 = vrot.slane %v4628, 2
        %v4630 = vrot.slane %v4607, 7
        %v4631 = vrot.slane %v4630, 2
        %v4640 = vmax.f32 %v4595, %v4617
        %v4641 = vmax.f32 %v4598, %v4619
        %v4642 = vmax.f32 %v4599, %v4621
        %v4643 = vmax.f32 %v4601, %v4623
        %v4644 = vmax.f32 %v4602, %v4625
        %v4645 = vmax.f32 %v4604, %v4627
        %v4646 = vmax.f32 %v4605, %v4629
        %v4647 = vmax.f32 %v4607, %v4631
        %4648 = vst.msk [vmem:[#allocation4] sm:$0xf] %vm3630, 0.0
        %4649 = vst.msk [vmem:[#allocation4 + $0x10] sm:$0xf] %vm3630, 0.0
        %s4650 = scalar_lea.vmem [#allocation4], 12
        %4651 = vst.msk [vmem:[%s4650] sm:$0xf] %vm3630, 0.0
        %4652 = vst.msk [vmem:[%s4650 + $0x10] sm:$0xf] %vm3630, 0.0
        %s4653 = scalar_lea.vmem [#allocation4], 4
        %4654 = vst.msk [vmem:[%s4653] sm:$0x1] %vm1561, 0.0
        %4655 = vst.msk [vmem:[%s4653 + $0x4] sm:$0x1] %vm1561, 0.0
        %4656 = vst.msk [vmem:[%s4653 + $0x10] sm:$0x1] %vm1561, 0.0
        %4657 = vst.msk [vmem:[%s4653 + $0x14] sm:$0x1] %vm1561, 0.0
        %4658 = vst.msk [vmem:[%s4653 + $0x3] sm:$0x1] %vm1561, 0.0
        %4659 = vst.msk [vmem:[%s4653 + $0x7] sm:$0x1] %vm1561, 0.0
        %4660 = vst.msk [vmem:[%s4653 + $0x13] sm:$0x1] %vm1561, 0.0
        %4661 = vst.msk [vmem:[%s4653 + $0x17] sm:$0x1] %vm1561, 0.0
        %v4670 = vperm.slane %v4640, 0
        %v4671 = vperm.slane %v4641, 0
        %v4672 = vperm.slane %v4642, 0
        %v4673 = vperm.slane %v4643, 0
        %v4674 = vperm.slane %v4644, 0
        %v4675 = vperm.slane %v4645, 0
        %v4676 = vperm.slane %v4646, 0
        %v4677 = vperm.slane %v4647, 0
        %v4678 = vsel %vm1850, %v4671, %v4670
        %v4679 = vsel %vm1850, %v4673, %v4672
        %v4680 = vsel %vm1850, %v4675, %v4674
        %v4681 = vsel %vm1850, %v4677, %v4676
        %4686 = vst.msk [vmem:[%s4653 + $0x1] sm:$0x3] %vm1551, %v4678
        %4687 = vst.msk [vmem:[%s4653 + $0x5] sm:$0x3] %vm1551, %v4679
        %4688 = vst.msk [vmem:[%s4653 + $0x11] sm:$0x3] %vm1551, %v4680
        %4689 = vst.msk [vmem:[%s4653 + $0x15] sm:$0x3] %vm1551, %v4681
        %v4690 = vld [vmem:[#allocation4] sm:$0x3]
        %v4691 = vld [vmem:[#allocation4 + $0x4] sm:$0x3]
        %v4692 = vld [vmem:[#allocation4 + $0x10] sm:$0x3]
        %v4693 = vld [vmem:[#allocation4 + $0x14] sm:$0x3]
        %4698 = vst [vmem:[#allocation1] ss:$4 sm:$0xff] %v4690
        %s4699 = scalar_lea.vmem [#allocation1], 1
        %4700 = vst [vmem:[%s4699] ss:$4 sm:$0xff] %v4691
        %s4701 = scalar_lea.vmem [#allocation1], 2
        %4702 = vst [vmem:[%s4701] ss:$4 sm:$0xff] %v4692
        %s4703 = scalar_lea.vmem [#allocation1], 3
        %4704 = vst [vmem:[%s4703] ss:$4 sm:$0xff] %v4693
        %v4705 = vld.sshfl [vmem:[#allocation1] sm:$0xff pattern:$0x73625140]
        %v4707 = vpack.c.bf16 %v4705, %v4705
        %v4708 = vld [vmem:[%s4] sm:$0xff]
        %v4709 = vld [vmem:[%s4 + $0x8] sm:$0xff]
        %v4710 = vld [vmem:[%s4 + $0x10] sm:$0xf]
        %v4711 = vld [vmem:[%s4 + $0x14] sm:$0xff]
        %v4712 = vld [vmem:[%s4 + $0x1c] sm:$0xff]
        %v4713 = vld [vmem:[%s4 + $0x24] sm:$0xf]
        %v4714 = vld [vmem:[%s4 + $0x28] sm:$0xff]
        %v4715 = vld [vmem:[%s4 + $0x30] sm:$0xff]
        %v4716 = vld [vmem:[%s4 + $0x38] sm:$0xf]
        %v4717 = vld [vmem:[%s4 + $0x3c] sm:$0xff]
        %v4718 = vld [vmem:[%s4 + $0x44] sm:$0xff]
        %v4719 = vld [vmem:[%s4 + $0x4c] sm:$0xf]
        %v4720 = vld [vmem:[%s4 + $0x50] sm:$0xff]
        %v4721 = vld [vmem:[%s4 + $0x58] sm:$0xff]
        %v4722 = vld [vmem:[%s4 + $0x60] sm:$0xf]
        %v4723 = vld [vmem:[%s4 + $0x64] sm:$0xff]
        %v4724 = vld [vmem:[%s4 + $0x6c] sm:$0xff]
        %v4725 = vld [vmem:[%s4 + $0x74] sm:$0xf]
        %v4726 = vld [vmem:[%s4 + $0x78] sm:$0xff]
        %v4727 = vld [vmem:[%s4 + $0x80] sm:$0xff]
        %v4728 = vld [vmem:[%s4 + $0x88] sm:$0xf]
        %v4729 = vld [vmem:[%s4 + $0x8c] sm:$0xff]
        %v4730 = vld [vmem:[%s4 + $0x94] sm:$0xff]
        %v4731 = vld [vmem:[%s4 + $0x9c] sm:$0xf]
        %v4732 = vld [vmem:[#allocation4 + $0x1] sm:$0x3]
        %v4733 = vld [vmem:[#allocation4 + $0x5] sm:$0x3]
        %v4734 = vld [vmem:[#allocation4 + $0x11] sm:$0x3]
        %v4735 = vld [vmem:[#allocation4 + $0x15] sm:$0x3]
        %4740 = vst [vmem:[#allocation1] ss:$4 sm:$0xff] %v4732
        %s4741 = scalar_lea.vmem [#allocation1], 1
        %4742 = vst [vmem:[%s4741] ss:$4 sm:$0xff] %v4733
        %s4743 = scalar_lea.vmem [#allocation1], 2
        %4744 = vst [vmem:[%s4743] ss:$4 sm:$0xff] %v4734
        %s4745 = scalar_lea.vmem [#allocation1], 3
        %4746 = vst [vmem:[%s4745] ss:$4 sm:$0xff] %v4735
        %v4747 = vld.sshfl [vmem:[#allocation1] sm:$0xff pattern:$0x73625140]
        %v4749 = vpack.c.bf16 %v4747, %v4747
        %s4750 = scalar_lea.vmem %s4, 160
        %v4751 = vld [vmem:[%s4750] sm:$0xff]
        %v4752 = vld [vmem:[%s4750 + $0x8] sm:$0xff]
        %v4753 = vld [vmem:[%s4750 + $0x10] sm:$0xf]
        %v4754 = vld [vmem:[%s4750 + $0x14] sm:$0xff]
        %v4755 = vld [vmem:[%s4750 + $0x1c] sm:$0xff]
        %v4756 = vld [vmem:[%s4750 + $0x24] sm:$0xf]
        %v4757 = vld [vmem:[%s4750 + $0x28] sm:$0xff]
        %v4758 = vld [vmem:[%s4750 + $0x30] sm:$0xff]
        %v4759 = vld [vmem:[%s4750 + $0x38] sm:$0xf]
        %v4760 = vld [vmem:[%s4750 + $0x3c] sm:$0xff]
        %v4761 = vld [vmem:[%s4750 + $0x44] sm:$0xff]
        %v4762 = vld [vmem:[%s4750 + $0x4c] sm:$0xf]
        %v4763 = vld [vmem:[%s4750 + $0x50] sm:$0xff]
        %v4764 = vld [vmem:[%s4750 + $0x58] sm:$0xff]
        %v4765 = vld [vmem:[%s4750 + $0x60] sm:$0xf]
        %v4766 = vld [vmem:[%s4750 + $0x64] sm:$0xff]
        %v4767 = vld [vmem:[%s4750 + $0x6c] sm:$0xff]
        %v4768 = vld [vmem:[%s4750 + $0x74] sm:$0xf]
        %v4769 = vld [vmem:[%s4750 + $0x78] sm:$0xff]
        %v4770 = vld [vmem:[%s4750 + $0x80] sm:$0xff]
        %v4771 = vld [vmem:[%s4750 + $0x88] sm:$0xf]
        %v4772 = vld [vmem:[%s4750 + $0x8c] sm:$0xff]
        %v4773 = vld [vmem:[%s4750 + $0x94] sm:$0xff]
        %v4774 = vld [vmem:[%s4750 + $0x9c] sm:$0xf]
        %v4799 = vunpack.c.l.b16 %v4751
        %v4800 = vunpack.c.h.b16 %v4751
        %v4801 = vunpack.c.l.b16 %v4752
        %v4802 = vunpack.c.h.b16 %v4752
        %v4803 = vunpack.c.l.b16 %v4753
        %v4804 = vunpack.c.l.b16 %v4754
        %v4805 = vunpack.c.h.b16 %v4754
        %v4806 = vunpack.c.l.b16 %v4755
        %v4807 = vunpack.c.h.b16 %v4755
        %v4808 = vunpack.c.l.b16 %v4756
        %v4809 = vunpack.c.l.b16 %v4757
        %v4810 = vunpack.c.h.b16 %v4757
        %v4811 = vunpack.c.l.b16 %v4758
        %v4812 = vunpack.c.h.b16 %v4758
        %v4813 = vunpack.c.l.b16 %v4759
        %v4814 = vunpack.c.l.b16 %v4760
        %v4815 = vunpack.c.h.b16 %v4760
        %v4816 = vunpack.c.l.b16 %v4761
        %v4817 = vunpack.c.h.b16 %v4761
        %v4818 = vunpack.c.l.b16 %v4762
        %v4819 = vunpack.c.l.b16 %v4763
        %v4820 = vunpack.c.h.b16 %v4763
        %v4821 = vunpack.c.l.b16 %v4764
        %v4822 = vunpack.c.h.b16 %v4764
        %v4823 = vunpack.c.l.b16 %v4765
        %v4824 = vunpack.c.l.b16 %v4766
        %v4825 = vunpack.c.h.b16 %v4766
        %v4826 = vunpack.c.l.b16 %v4767
        %v4827 = vunpack.c.h.b16 %v4767
        %v4828 = vunpack.c.l.b16 %v4768
        %v4829 = vunpack.c.l.b16 %v4769
        %v4830 = vunpack.c.h.b16 %v4769
        %v4831 = vunpack.c.l.b16 %v4770
        %v4832 = vunpack.c.h.b16 %v4770
        %v4833 = vunpack.c.l.b16 %v4771
        %v4834 = vunpack.c.l.b16 %v4772
        %v4835 = vunpack.c.h.b16 %v4772
        %v4836 = vunpack.c.l.b16 %v4773
        %v4837 = vunpack.c.h.b16 %v4773
        %v4838 = vunpack.c.l.b16 %v4774
        %v4839 = vpack.c.b16 %v4804, %v4799
        %v4840 = vpack.c.b16 %v4805, %v4800
        %v4841 = vpack.c.b16 %v4806, %v4801
        %v4842 = vpack.c.b16 %v4807, %v4802
        %v4843 = vpack.c.b16 %v4808, %v4803
        %v4844 = vpack.c.b16 %v4814, %v4809
        %v4845 = vpack.c.b16 %v4815, %v4810
        %v4846 = vpack.c.b16 %v4816, %v4811
        %v4847 = vpack.c.b16 %v4817, %v4812
        %v4848 = vpack.c.b16 %v4818, %v4813
        %v4849 = vpack.c.b16 %v4824, %v4819
        %v4850 = vpack.c.b16 %v4825, %v4820
        %v4851 = vpack.c.b16 %v4826, %v4821
        %v4852 = vpack.c.b16 %v4827, %v4822
        %v4853 = vpack.c.b16 %v4828, %v4823
        %v4854 = vpack.c.b16 %v4834, %v4829
        %v4855 = vpack.c.b16 %v4835, %v4830
        %v4856 = vpack.c.b16 %v4836, %v4831
        %v4857 = vpack.c.b16 %v4837, %v4832
        %v4858 = vpack.c.b16 %v4838, %v4833
        %v4880 = vsel %vm1549, %v4749, 0
        %4882 = vmatpush.bf16.msra.mxu0 0
        %4883 = vmatpush.bf16.msra.mxu0 0
        %4884 = vmatpush.bf16.msra.mxu0 0
        %4885 = vmatpush.bf16.msra.mxu0 0
        %4886 = vmatpush.bf16.msra.mxu0 %v4854
        %4887 = vmatpush.bf16.msra.mxu0 %v4849
        %4888 = vmatpush.bf16.msra.mxu0 %v4844
        %4889 = vmatpush.bf16.msra.mxu0 %v4839
        %4890 = vmatmul.bf16.gmra.mxu0 %v4880
        %v4891 = vpop.f32.mrf.mxu0
        %v4892 = vadd.f32 0.0, %v4891
        %v4893 = vpop.f32.mrf.mxu0
        %4894 = vdwg.mxu0
        %4895 = vmatpush.bf16.msra.mxu0 0
        %4896 = vmatpush.bf16.msra.mxu0 0
        %4897 = vmatpush.bf16.msra.mxu0 0
        %4898 = vmatpush.bf16.msra.mxu0 0
        %4899 = vmatpush.bf16.msra.mxu0 %v4855
        %4900 = vmatpush.bf16.msra.mxu0 %v4850
        %4901 = vmatpush.bf16.msra.mxu0 %v4845
        %4902 = vmatpush.bf16.msra.mxu0 %v4840
        %4903 = vmatmul.bf16.gmra.mxu0 %v4880
        %v4904 = vpop.f32.mrf.mxu0
        %v4905 = vadd.f32 0.0, %v4904
        %v4906 = vpop.f32.mrf.mxu0
        %4907 = vdwg.mxu0
        %4908 = vmatpush.bf16.msra.mxu0 0
        %4909 = vmatpush.bf16.msra.mxu0 0
        %4910 = vmatpush.bf16.msra.mxu0 0
        %4911 = vmatpush.bf16.msra.mxu0 0
        %4912 = vmatpush.bf16.msra.mxu0 %v4856
        %4913 = vmatpush.bf16.msra.mxu0 %v4851
        %4914 = vmatpush.bf16.msra.mxu0 %v4846
        %4915 = vmatpush.bf16.msra.mxu0 %v4841
        %4916 = vmatmul.bf16.gmra.mxu0 %v4880
        %v4917 = vpop.f32.mrf.mxu0
        %v4918 = vadd.f32 0.0, %v4917
        %v4919 = vpop.f32.mrf.mxu0
        %4920 = vdwg.mxu0
        %4921 = vmatpush.bf16.msra.mxu0 0
        %4922 = vmatpush.bf16.msra.mxu0 0
        %4923 = vmatpush.bf16.msra.mxu0 0
        %4924 = vmatpush.bf16.msra.mxu0 0
        %4925 = vmatpush.bf16.msra.mxu0 %v4857
        %4926 = vmatpush.bf16.msra.mxu0 %v4852
        %4927 = vmatpush.bf16.msra.mxu0 %v4847
        %4928 = vmatpush.bf16.msra.mxu0 %v4842
        %4929 = vmatmul.bf16.gmra.mxu0 %v4880
        %v4930 = vpop.f32.mrf.mxu0
        %v4931 = vadd.f32 0.0, %v4930
        %v4932 = vpop.f32.mrf.mxu0
        %4933 = vdwg.mxu0
        %4934 = vmatpush.bf16.msra.mxu0 0
        %4935 = vmatpush.bf16.msra.mxu0 0
        %4936 = vmatpush.bf16.msra.mxu0 0
        %4937 = vmatpush.bf16.msra.mxu0 0
        %4938 = vmatpush.bf16.msra.mxu0 %v4858
        %4939 = vmatpush.bf16.msra.mxu0 %v4853
        %4940 = vmatpush.bf16.msra.mxu0 %v4848
        %4941 = vmatpush.bf16.msra.mxu0 %v4843
        %4942 = vmatmul.bf16.gmra.mxu0 %v4880
        %v4943 = vpop.f32.mrf.mxu0
        %v4944 = vadd.f32 0.0, %v4943
        %v4945 = vpop.f32.mrf.mxu0
        %4946 = vdwg.mxu0
        %v4971 = vunpack.c.l.b16 %v4708
        %v4972 = vunpack.c.h.b16 %v4708
        %v4973 = vunpack.c.l.b16 %v4709
        %v4974 = vunpack.c.h.b16 %v4709
        %v4975 = vunpack.c.l.b16 %v4710
        %v4976 = vunpack.c.l.b16 %v4711
        %v4977 = vunpack.c.h.b16 %v4711
        %v4978 = vunpack.c.l.b16 %v4712
        %v4979 = vunpack.c.h.b16 %v4712
        %v4980 = vunpack.c.l.b16 %v4713
        %v4981 = vunpack.c.l.b16 %v4714
        %v4982 = vunpack.c.h.b16 %v4714
        %v4983 = vunpack.c.l.b16 %v4715
        %v4984 = vunpack.c.h.b16 %v4715
        %v4985 = vunpack.c.l.b16 %v4716
        %v4986 = vunpack.c.l.b16 %v4717
        %v4987 = vunpack.c.h.b16 %v4717
        %v4988 = vunpack.c.l.b16 %v4718
        %v4989 = vunpack.c.h.b16 %v4718
        %v4990 = vunpack.c.l.b16 %v4719
        %v4991 = vunpack.c.l.b16 %v4720
        %v4992 = vunpack.c.h.b16 %v4720
        %v4993 = vunpack.c.l.b16 %v4721
        %v4994 = vunpack.c.h.b16 %v4721
        %v4995 = vunpack.c.l.b16 %v4722
        %v4996 = vunpack.c.l.b16 %v4723
        %v4997 = vunpack.c.h.b16 %v4723
        %v4998 = vunpack.c.l.b16 %v4724
        %v4999 = vunpack.c.h.b16 %v4724
        %v5000 = vunpack.c.l.b16 %v4725
        %v5001 = vunpack.c.l.b16 %v4726
        %v5002 = vunpack.c.h.b16 %v4726
        %v5003 = vunpack.c.l.b16 %v4727
        %v5004 = vunpack.c.h.b16 %v4727
        %v5005 = vunpack.c.l.b16 %v4728
        %v5006 = vunpack.c.l.b16 %v4729
        %v5007 = vunpack.c.h.b16 %v4729
        %v5008 = vunpack.c.l.b16 %v4730
        %v5009 = vunpack.c.h.b16 %v4730
        %v5010 = vunpack.c.l.b16 %v4731
        %v5011 = vpack.c.b16 %v4976, %v4971
        %v5012 = vpack.c.b16 %v4977, %v4972
        %v5013 = vpack.c.b16 %v4978, %v4973
        %v5014 = vpack.c.b16 %v4979, %v4974
        %v5015 = vpack.c.b16 %v4980, %v4975
        %v5016 = vpack.c.b16 %v4986, %v4981
        %v5017 = vpack.c.b16 %v4987, %v4982
        %v5018 = vpack.c.b16 %v4988, %v4983
        %v5019 = vpack.c.b16 %v4989, %v4984
        %v5020 = vpack.c.b16 %v4990, %v4985
        %v5021 = vpack.c.b16 %v4996, %v4991
        %v5022 = vpack.c.b16 %v4997, %v4992
        %v5023 = vpack.c.b16 %v4998, %v4993
        %v5024 = vpack.c.b16 %v4999, %v4994
        %v5025 = vpack.c.b16 %v5000, %v4995
        %v5026 = vpack.c.b16 %v5006, %v5001
        %v5027 = vpack.c.b16 %v5007, %v5002
        %v5028 = vpack.c.b16 %v5008, %v5003
        %v5029 = vpack.c.b16 %v5009, %v5004
        %v5030 = vpack.c.b16 %v5010, %v5005
        %v5052 = vsel %vm1549, %v4707, 0
        %5054 = vmatpush.bf16.msra.mxu0 0
        %5055 = vmatpush.bf16.msra.mxu0 0
        %5056 = vmatpush.bf16.msra.mxu0 0
        %5057 = vmatpush.bf16.msra.mxu0 0
        %5058 = vmatpush.bf16.msra.mxu0 %v5026
        %5059 = vmatpush.bf16.msra.mxu0 %v5021
        %5060 = vmatpush.bf16.msra.mxu0 %v5016
        %5061 = vmatpush.bf16.msra.mxu0 %v5011
        %5062 = vmatmul.bf16.gmra.mxu0 %v5052
        %v5063 = vpop.f32.mrf.mxu0
        %v5064 = vadd.f32 %v4892, %v5063
        %v5065 = vpop.f32.mrf.mxu0
        %5066 = vdwg.mxu0
        %5067 = vmatpush.bf16.msra.mxu0 0
        %5068 = vmatpush.bf16.msra.mxu0 0
        %5069 = vmatpush.bf16.msra.mxu0 0
        %5070 = vmatpush.bf16.msra.mxu0 0
        %5071 = vmatpush.bf16.msra.mxu0 %v5027
        %5072 = vmatpush.bf16.msra.mxu0 %v5022
        %5073 = vmatpush.bf16.msra.mxu0 %v5017
        %5074 = vmatpush.bf16.msra.mxu0 %v5012
        %5075 = vmatmul.bf16.gmra.mxu0 %v5052
        %v5076 = vpop.f32.mrf.mxu0
        %v5077 = vadd.f32 %v4905, %v5076
        %v5078 = vpop.f32.mrf.mxu0
        %5079 = vdwg.mxu0
        %5080 = vmatpush.bf16.msra.mxu0 0
        %5081 = vmatpush.bf16.msra.mxu0 0
        %5082 = vmatpush.bf16.msra.mxu0 0
        %5083 = vmatpush.bf16.msra.mxu0 0
        %5084 = vmatpush.bf16.msra.mxu0 %v5028
        %5085 = vmatpush.bf16.msra.mxu0 %v5023
        %5086 = vmatpush.bf16.msra.mxu0 %v5018
        %5087 = vmatpush.bf16.msra.mxu0 %v5013
        %5088 = vmatmul.bf16.gmra.mxu0 %v5052
        %v5089 = vpop.f32.mrf.mxu0
        %v5090 = vadd.f32 %v4918, %v5089
        %v5091 = vpop.f32.mrf.mxu0
        %5092 = vdwg.mxu0
        %5093 = vmatpush.bf16.msra.mxu0 0
        %5094 = vmatpush.bf16.msra.mxu0 0
        %5095 = vmatpush.bf16.msra.mxu0 0
        %5096 = vmatpush.bf16.msra.mxu0 0
        %5097 = vmatpush.bf16.msra.mxu0 %v5029
        %5098 = vmatpush.bf16.msra.mxu0 %v5024
        %5099 = vmatpush.bf16.msra.mxu0 %v5019
        %5100 = vmatpush.bf16.msra.mxu0 %v5014
        %5101 = vmatmul.bf16.gmra.mxu0 %v5052
        %v5102 = vpop.f32.mrf.mxu0
        %v5103 = vadd.f32 %v4931, %v5102
        %v5104 = vpop.f32.mrf.mxu0
        %5105 = vdwg.mxu0
        %5106 = vmatpush.bf16.msra.mxu0 0
        %5107 = vmatpush.bf16.msra.mxu0 0
        %5108 = vmatpush.bf16.msra.mxu0 0
        %5109 = vmatpush.bf16.msra.mxu0 0
        %5110 = vmatpush.bf16.msra.mxu0 %v5030
        %5111 = vmatpush.bf16.msra.mxu0 %v5025
        %5112 = vmatpush.bf16.msra.mxu0 %v5020
        %5113 = vmatpush.bf16.msra.mxu0 %v5015
        %5114 = vmatmul.bf16.gmra.mxu0 %v5052
        %v5115 = vpop.f32.mrf.mxu0
        %v5116 = vadd.f32 %v4944, %v5115
        %v5117 = vpop.f32.mrf.mxu0
        %5118 = vdwg.mxu0
        %v5119 = vld [vmem:[#allocation4 + $0x2] sm:$0x3]
        %v5120 = vld [vmem:[#allocation4 + $0x6] sm:$0x3]
        %v5121 = vld [vmem:[#allocation4 + $0x12] sm:$0x3]
        %v5122 = vld [vmem:[#allocation4 + $0x16] sm:$0x3]
        %5127 = vst [vmem:[#allocation1] ss:$4 sm:$0xff] %v5119
        %s5128 = scalar_lea.vmem [#allocation1], 1
        %5129 = vst [vmem:[%s5128] ss:$4 sm:$0xff] %v5120
        %s5130 = scalar_lea.vmem [#allocation1], 2
        %5131 = vst [vmem:[%s5130] ss:$4 sm:$0xff] %v5121
        %s5132 = scalar_lea.vmem [#allocation1], 3
        %5133 = vst [vmem:[%s5132] ss:$4 sm:$0xff] %v5122
        %v5134 = vld.sshfl [vmem:[#allocation1] sm:$0xff pattern:$0x73625140]
        %v5136 = vpack.c.bf16 %v5134, %v5134
        %s5137 = scalar_lea.vmem %s4, 320
        %v5138 = vld [vmem:[%s5137] sm:$0xff]
        %v5139 = vld [vmem:[%s5137 + $0x8] sm:$0xff]
        %v5140 = vld [vmem:[%s5137 + $0x10] sm:$0xf]
        %v5141 = vld [vmem:[%s5137 + $0x14] sm:$0xff]
        %v5142 = vld [vmem:[%s5137 + $0x1c] sm:$0xff]
        %v5143 = vld [vmem:[%s5137 + $0x24] sm:$0xf]
        %v5144 = vld [vmem:[%s5137 + $0x28] sm:$0xff]
        %v5145 = vld [vmem:[%s5137 + $0x30] sm:$0xff]
        %v5146 = vld [vmem:[%s5137 + $0x38] sm:$0xf]
        %v5147 = vld [vmem:[%s5137 + $0x3c] sm:$0xff]
        %v5148 = vld [vmem:[%s5137 + $0x44] sm:$0xff]
        %v5149 = vld [vmem:[%s5137 + $0x4c] sm:$0xf]
        %v5150 = vld [vmem:[%s5137 + $0x50] sm:$0xff]
        %v5151 = vld [vmem:[%s5137 + $0x58] sm:$0xff]
        %v5152 = vld [vmem:[%s5137 + $0x60] sm:$0xf]
        %v5153 = vld [vmem:[%s5137 + $0x64] sm:$0xff]
        %v5154 = vld [vmem:[%s5137 + $0x6c] sm:$0xff]
        %v5155 = vld [vmem:[%s5137 + $0x74] sm:$0xf]
        %v5156 = vld [vmem:[%s5137 + $0x78] sm:$0xff]
        %v5157 = vld [vmem:[%s5137 + $0x80] sm:$0xff]
        %v5158 = vld [vmem:[%s5137 + $0x88] sm:$0xf]
        %v5159 = vld [vmem:[%s5137 + $0x8c] sm:$0xff]
        %v5160 = vld [vmem:[%s5137 + $0x94] sm:$0xff]
        %v5161 = vld [vmem:[%s5137 + $0x9c] sm:$0xf]
        %v5186 = vunpack.c.l.b16 %v5138
        %v5187 = vunpack.c.h.b16 %v5138
        %v5188 = vunpack.c.l.b16 %v5139
        %v5189 = vunpack.c.h.b16 %v5139
        %v5190 = vunpack.c.l.b16 %v5140
        %v5191 = vunpack.c.l.b16 %v5141
        %v5192 = vunpack.c.h.b16 %v5141
        %v5193 = vunpack.c.l.b16 %v5142
        %v5194 = vunpack.c.h.b16 %v5142
        %v5195 = vunpack.c.l.b16 %v5143
        %v5196 = vunpack.c.l.b16 %v5144
        %v5197 = vunpack.c.h.b16 %v5144
        %v5198 = vunpack.c.l.b16 %v5145
        %v5199 = vunpack.c.h.b16 %v5145
        %v5200 = vunpack.c.l.b16 %v5146
        %v5201 = vunpack.c.l.b16 %v5147
        %v5202 = vunpack.c.h.b16 %v5147
        %v5203 = vunpack.c.l.b16 %v5148
        %v5204 = vunpack.c.h.b16 %v5148
        %v5205 = vunpack.c.l.b16 %v5149
        %v5206 = vunpack.c.l.b16 %v5150
        %v5207 = vunpack.c.h.b16 %v5150
        %v5208 = vunpack.c.l.b16 %v5151
        %v5209 = vunpack.c.h.b16 %v5151
        %v5210 = vunpack.c.l.b16 %v5152
        %v5211 = vunpack.c.l.b16 %v5153
        %v5212 = vunpack.c.h.b16 %v5153
        %v5213 = vunpack.c.l.b16 %v5154
        %v5214 = vunpack.c.h.b16 %v5154
        %v5215 = vunpack.c.l.b16 %v5155
        %v5216 = vunpack.c.l.b16 %v5156
        %v5217 = vunpack.c.h.b16 %v5156
        %v5218 = vunpack.c.l.b16 %v5157
        %v5219 = vunpack.c.h.b16 %v5157
        %v5220 = vunpack.c.l.b16 %v5158
        %v5221 = vunpack.c.l.b16 %v5159
        %v5222 = vunpack.c.h.b16 %v5159
        %v5223 = vunpack.c.l.b16 %v5160
        %v5224 = vunpack.c.h.b16 %v5160
        %v5225 = vunpack.c.l.b16 %v5161
        %v5226 = vpack.c.b16 %v5191, %v5186
        %v5227 = vpack.c.b16 %v5192, %v5187
        %v5228 = vpack.c.b16 %v5193, %v5188
        %v5229 = vpack.c.b16 %v5194, %v5189
        %v5230 = vpack.c.b16 %v5195, %v5190
        %v5231 = vpack.c.b16 %v5201, %v5196
        %v5232 = vpack.c.b16 %v5202, %v5197
        %v5233 = vpack.c.b16 %v5203, %v5198
        %v5234 = vpack.c.b16 %v5204, %v5199
        %v5235 = vpack.c.b16 %v5205, %v5200
        %v5236 = vpack.c.b16 %v5211, %v5206
        %v5237 = vpack.c.b16 %v5212, %v5207
        %v5238 = vpack.c.b16 %v5213, %v5208
        %v5239 = vpack.c.b16 %v5214, %v5209
        %v5240 = vpack.c.b16 %v5215, %v5210
        %v5241 = vpack.c.b16 %v5221, %v5216
        %v5242 = vpack.c.b16 %v5222, %v5217
        %v5243 = vpack.c.b16 %v5223, %v5218
        %v5244 = vpack.c.b16 %v5224, %v5219
        %v5245 = vpack.c.b16 %v5225, %v5220
        %v5267 = vsel %vm1549, %v5136, 0
        %5269 = vmatpush.bf16.msra.mxu0 0
        %5270 = vmatpush.bf16.msra.mxu0 0
        %5271 = vmatpush.bf16.msra.mxu0 0
        %5272 = vmatpush.bf16.msra.mxu0 0
        %5273 = vmatpush.bf16.msra.mxu0 %v5241
        %5274 = vmatpush.bf16.msra.mxu0 %v5236
        %5275 = vmatpush.bf16.msra.mxu0 %v5231
        %5276 = vmatpush.bf16.msra.mxu0 %v5226
        %5277 = vmatmul.bf16.gmra.mxu0 %v5267
        %v5278 = vpop.f32.mrf.mxu0
        %v5279 = vadd.f32 0.0, %v5278
        %v5280 = vpop.f32.mrf.mxu0
        %5281 = vdwg.mxu0
        %5282 = vmatpush.bf16.msra.mxu0 0
        %5283 = vmatpush.bf16.msra.mxu0 0
        %5284 = vmatpush.bf16.msra.mxu0 0
        %5285 = vmatpush.bf16.msra.mxu0 0
        %5286 = vmatpush.bf16.msra.mxu0 %v5242
        %5287 = vmatpush.bf16.msra.mxu0 %v5237
        %5288 = vmatpush.bf16.msra.mxu0 %v5232
        %5289 = vmatpush.bf16.msra.mxu0 %v5227
        %5290 = vmatmul.bf16.gmra.mxu0 %v5267
        %v5291 = vpop.f32.mrf.mxu0
        %v5292 = vadd.f32 0.0, %v5291
        %v5293 = vpop.f32.mrf.mxu0
        %5294 = vdwg.mxu0
        %5295 = vmatpush.bf16.msra.mxu0 0
        %5296 = vmatpush.bf16.msra.mxu0 0
        %5297 = vmatpush.bf16.msra.mxu0 0
        %5298 = vmatpush.bf16.msra.mxu0 0
        %5299 = vmatpush.bf16.msra.mxu0 %v5243
        %5300 = vmatpush.bf16.msra.mxu0 %v5238
        %5301 = vmatpush.bf16.msra.mxu0 %v5233
        %5302 = vmatpush.bf16.msra.mxu0 %v5228
        %5303 = vmatmul.bf16.gmra.mxu0 %v5267
        %v5304 = vpop.f32.mrf.mxu0
        %v5305 = vadd.f32 0.0, %v5304
        %v5306 = vpop.f32.mrf.mxu0
        %5307 = vdwg.mxu0
        %5308 = vmatpush.bf16.msra.mxu0 0
        %5309 = vmatpush.bf16.msra.mxu0 0
        %5310 = vmatpush.bf16.msra.mxu0 0
        %5311 = vmatpush.bf16.msra.mxu0 0
        %5312 = vmatpush.bf16.msra.mxu0 %v5244
        %5313 = vmatpush.bf16.msra.mxu0 %v5239
        %5314 = vmatpush.bf16.msra.mxu0 %v5234
        %5315 = vmatpush.bf16.msra.mxu0 %v5229
        %5316 = vmatmul.bf16.gmra.mxu0 %v5267
        %v5317 = vpop.f32.mrf.mxu0
        %v5318 = vadd.f32 0.0, %v5317
        %v5319 = vpop.f32.mrf.mxu0
        %5320 = vdwg.mxu0
        %5321 = vmatpush.bf16.msra.mxu0 0
        %5322 = vmatpush.bf16.msra.mxu0 0
        %5323 = vmatpush.bf16.msra.mxu0 0
        %5324 = vmatpush.bf16.msra.mxu0 0
        %5325 = vmatpush.bf16.msra.mxu0 %v5245
        %5326 = vmatpush.bf16.msra.mxu0 %v5240
        %5327 = vmatpush.bf16.msra.mxu0 %v5235
        %5328 = vmatpush.bf16.msra.mxu0 %v5230
        %5329 = vmatmul.bf16.gmra.mxu0 %v5267
        %v5330 = vpop.f32.mrf.mxu0
        %v5331 = vadd.f32 0.0, %v5330
        %v5332 = vpop.f32.mrf.mxu0
        %5333 = vdwg.mxu0
        %v5334 = vadd.f32 %v5064, %v5279
        %v5335 = vadd.f32 %v5077, %v5292
        %v5336 = vadd.f32 %v5090, %v5305
        %v5337 = vadd.f32 %v5103, %v5318
        %v5338 = vadd.f32 %v5116, %v5331
        %v5339 = vld [vmem:[%s4653] sm:$0x3]
        %v5340 = vld [vmem:[%s4653 + $0x4] sm:$0x3]
        %v5341 = vld [vmem:[%s4653 + $0x10] sm:$0x3]
        %v5342 = vld [vmem:[%s4653 + $0x14] sm:$0x3]
        %5347 = vst [vmem:[#allocation1] ss:$4 sm:$0xff] %v5339
        %s5348 = scalar_lea.vmem [#allocation1], 1
        %5349 = vst [vmem:[%s5348] ss:$4 sm:$0xff] %v5340
        %s5350 = scalar_lea.vmem [#allocation1], 2
        %5351 = vst [vmem:[%s5350] ss:$4 sm:$0xff] %v5341
        %s5352 = scalar_lea.vmem [#allocation1], 3
        %5353 = vst [vmem:[%s5352] ss:$4 sm:$0xff] %v5342
        %v5354 = vld.sshfl [vmem:[#allocation1] sm:$0xff pattern:$0x73625140]
        %v5356 = vpack.c.bf16 %v5354, %v5354
        %s5357 = scalar_lea.vmem %s4, 480
        %v5358 = vld [vmem:[%s5357] sm:$0xff]
        %v5359 = vld [vmem:[%s5357 + $0x8] sm:$0xff]
        %v5360 = vld [vmem:[%s5357 + $0x10] sm:$0xf]
        %v5361 = vld [vmem:[%s5357 + $0x14] sm:$0xff]
        %v5362 = vld [vmem:[%s5357 + $0x1c] sm:$0xff]
        %v5363 = vld [vmem:[%s5357 + $0x24] sm:$0xf]
        %v5364 = vld [vmem:[%s5357 + $0x28] sm:$0xff]
        %v5365 = vld [vmem:[%s5357 + $0x30] sm:$0xff]
        %v5366 = vld [vmem:[%s5357 + $0x38] sm:$0xf]
        %v5367 = vld [vmem:[%s5357 + $0x3c] sm:$0xff]
        %v5368 = vld [vmem:[%s5357 + $0x44] sm:$0xff]
        %v5369 = vld [vmem:[%s5357 + $0x4c] sm:$0xf]
        %v5370 = vld [vmem:[%s5357 + $0x50] sm:$0xff]
        %v5371 = vld [vmem:[%s5357 + $0x58] sm:$0xff]
        %v5372 = vld [vmem:[%s5357 + $0x60] sm:$0xf]
        %v5373 = vld [vmem:[%s5357 + $0x64] sm:$0xff]
        %v5374 = vld [vmem:[%s5357 + $0x6c] sm:$0xff]
        %v5375 = vld [vmem:[%s5357 + $0x74] sm:$0xf]
        %v5376 = vld [vmem:[%s5357 + $0x78] sm:$0xff]
        %v5377 = vld [vmem:[%s5357 + $0x80] sm:$0xff]
        %v5378 = vld [vmem:[%s5357 + $0x88] sm:$0xf]
        %v5379 = vld [vmem:[%s5357 + $0x8c] sm:$0xff]
        %v5380 = vld [vmem:[%s5357 + $0x94] sm:$0xff]
        %v5381 = vld [vmem:[%s5357 + $0x9c] sm:$0xf]
        %v5406 = vunpack.c.l.b16 %v5358
        %v5407 = vunpack.c.h.b16 %v5358
        %v5408 = vunpack.c.l.b16 %v5359
        %v5409 = vunpack.c.h.b16 %v5359
        %v5410 = vunpack.c.l.b16 %v5360
        %v5411 = vunpack.c.l.b16 %v5361
        %v5412 = vunpack.c.h.b16 %v5361
        %v5413 = vunpack.c.l.b16 %v5362
        %v5414 = vunpack.c.h.b16 %v5362
        %v5415 = vunpack.c.l.b16 %v5363
        %v5416 = vunpack.c.l.b16 %v5364
        %v5417 = vunpack.c.h.b16 %v5364
        %v5418 = vunpack.c.l.b16 %v5365
        %v5419 = vunpack.c.h.b16 %v5365
        %v5420 = vunpack.c.l.b16 %v5366
        %v5421 = vunpack.c.l.b16 %v5367
        %v5422 = vunpack.c.h.b16 %v5367
        %v5423 = vunpack.c.l.b16 %v5368
        %v5424 = vunpack.c.h.b16 %v5368
        %v5425 = vunpack.c.l.b16 %v5369
        %v5426 = vunpack.c.l.b16 %v5370
        %v5427 = vunpack.c.h.b16 %v5370
        %v5428 = vunpack.c.l.b16 %v5371
        %v5429 = vunpack.c.h.b16 %v5371
        %v5430 = vunpack.c.l.b16 %v5372
        %v5431 = vunpack.c.l.b16 %v5373
        %v5432 = vunpack.c.h.b16 %v5373
        %v5433 = vunpack.c.l.b16 %v5374
        %v5434 = vunpack.c.h.b16 %v5374
        %v5435 = vunpack.c.l.b16 %v5375
        %v5436 = vunpack.c.l.b16 %v5376
        %v5437 = vunpack.c.h.b16 %v5376
        %v5438 = vunpack.c.l.b16 %v5377
        %v5439 = vunpack.c.h.b16 %v5377
        %v5440 = vunpack.c.l.b16 %v5378
        %v5441 = vunpack.c.l.b16 %v5379
        %v5442 = vunpack.c.h.b16 %v5379
        %v5443 = vunpack.c.l.b16 %v5380
        %v5444 = vunpack.c.h.b16 %v5380
        %v5445 = vunpack.c.l.b16 %v5381
        %v5446 = vpack.c.b16 %v5411, %v5406
        %v5447 = vpack.c.b16 %v5412, %v5407
        %v5448 = vpack.c.b16 %v5413, %v5408
        %v5449 = vpack.c.b16 %v5414, %v5409
        %v5450 = vpack.c.b16 %v5415, %v5410
        %v5451 = vpack.c.b16 %v5421, %v5416
        %v5452 = vpack.c.b16 %v5422, %v5417
        %v5453 = vpack.c.b16 %v5423, %v5418
        %v5454 = vpack.c.b16 %v5424, %v5419
        %v5455 = vpack.c.b16 %v5425, %v5420
        %v5456 = vpack.c.b16 %v5431, %v5426
        %v5457 = vpack.c.b16 %v5432, %v5427
        %v5458 = vpack.c.b16 %v5433, %v5428
        %v5459 = vpack.c.b16 %v5434, %v5429
        %v5460 = vpack.c.b16 %v5435, %v5430
        %v5461 = vpack.c.b16 %v5441, %v5436
        %v5462 = vpack.c.b16 %v5442, %v5437
        %v5463 = vpack.c.b16 %v5443, %v5438
        %v5464 = vpack.c.b16 %v5444, %v5439
        %v5465 = vpack.c.b16 %v5445, %v5440
        %v5487 = vsel %vm1549, %v5356, 0
        %5489 = vmatpush.bf16.msra.mxu0 0
        %5490 = vmatpush.bf16.msra.mxu0 0
        %5491 = vmatpush.bf16.msra.mxu0 0
        %5492 = vmatpush.bf16.msra.mxu0 0
        %5493 = vmatpush.bf16.msra.mxu0 %v5461
        %5494 = vmatpush.bf16.msra.mxu0 %v5456
        %5495 = vmatpush.bf16.msra.mxu0 %v5451
        %5496 = vmatpush.bf16.msra.mxu0 %v5446
        %5497 = vmatmul.bf16.gmra.mxu0 %v5487
        %v5498 = vpop.f32.mrf.mxu0
        %v5499 = vadd.f32 0.0, %v5498
        %v5500 = vpop.f32.mrf.mxu0
        %5501 = vdwg.mxu0
        %5502 = vmatpush.bf16.msra.mxu0 0
        %5503 = vmatpush.bf16.msra.mxu0 0
        %5504 = vmatpush.bf16.msra.mxu0 0
        %5505 = vmatpush.bf16.msra.mxu0 0
        %5506 = vmatpush.bf16.msra.mxu0 %v5462
        %5507 = vmatpush.bf16.msra.mxu0 %v5457
        %5508 = vmatpush.bf16.msra.mxu0 %v5452
        %5509 = vmatpush.bf16.msra.mxu0 %v5447
        %5510 = vmatmul.bf16.gmra.mxu0 %v5487
        %v5511 = vpop.f32.mrf.mxu0
        %v5512 = vadd.f32 0.0, %v5511
        %v5513 = vpop.f32.mrf.mxu0
        %5514 = vdwg.mxu0
        %5515 = vmatpush.bf16.msra.mxu0 0
        %5516 = vmatpush.bf16.msra.mxu0 0
        %5517 = vmatpush.bf16.msra.mxu0 0
        %5518 = vmatpush.bf16.msra.mxu0 0
        %5519 = vmatpush.bf16.msra.mxu0 %v5463
        %5520 = vmatpush.bf16.msra.mxu0 %v5458
        %5521 = vmatpush.bf16.msra.mxu0 %v5453
        %5522 = vmatpush.bf16.msra.mxu0 %v5448
        %5523 = vmatmul.bf16.gmra.mxu0 %v5487
        %v5524 = vpop.f32.mrf.mxu0
        %v5525 = vadd.f32 0.0, %v5524
        %v5526 = vpop.f32.mrf.mxu0
        %5527 = vdwg.mxu0
        %5528 = vmatpush.bf16.msra.mxu0 0
        %5529 = vmatpush.bf16.msra.mxu0 0
        %5530 = vmatpush.bf16.msra.mxu0 0
        %5531 = vmatpush.bf16.msra.mxu0 0
        %5532 = vmatpush.bf16.msra.mxu0 %v5464
        %5533 = vmatpush.bf16.msra.mxu0 %v5459
        %5534 = vmatpush.bf16.msra.mxu0 %v5454
        %5535 = vmatpush.bf16.msra.mxu0 %v5449
        %5536 = vmatmul.bf16.gmra.mxu0 %v5487
        %v5537 = vpop.f32.mrf.mxu0
        %v5538 = vadd.f32 0.0, %v5537
        %v5539 = vpop.f32.mrf.mxu0
        %5540 = vdwg.mxu0
        %5541 = vmatpush.bf16.msra.mxu0 0
        %5542 = vmatpush.bf16.msra.mxu0 0
        %5543 = vmatpush.bf16.msra.mxu0 0
        %5544 = vmatpush.bf16.msra.mxu0 0
        %5545 = vmatpush.bf16.msra.mxu0 %v5465
        %5546 = vmatpush.bf16.msra.mxu0 %v5460
        %5547 = vmatpush.bf16.msra.mxu0 %v5455
        %5548 = vmatpush.bf16.msra.mxu0 %v5450
        %5549 = vmatmul.bf16.gmra.mxu0 %v5487
        %v5550 = vpop.f32.mrf.mxu0
        %v5551 = vadd.f32 0.0, %v5550
        %v5552 = vpop.f32.mrf.mxu0
        %5553 = vdwg.mxu0
        %v5554 = vadd.f32 %v5334, %v5499
        %v5555 = vadd.f32 %v5335, %v5512
        %v5556 = vadd.f32 %v5336, %v5525
        %v5557 = vadd.f32 %v5337, %v5538
        %v5558 = vadd.f32 %v5338, %v5551
        %v5559 = vld [vmem:[%s4653 + $0x1] sm:$0x3]
        %v5560 = vld [vmem:[%s4653 + $0x5] sm:$0x3]
        %v5561 = vld [vmem:[%s4653 + $0x11] sm:$0x3]
        %v5562 = vld [vmem:[%s4653 + $0x15] sm:$0x3]
        %5567 = vst [vmem:[#allocation1] ss:$4 sm:$0xff] %v5559
        %s5568 = scalar_lea.vmem [#allocation1], 1
        %5569 = vst [vmem:[%s5568] ss:$4 sm:$0xff] %v5560
        %s5570 = scalar_lea.vmem [#allocation1], 2
        %5571 = vst [vmem:[%s5570] ss:$4 sm:$0xff] %v5561
        %s5572 = scalar_lea.vmem [#allocation1], 3
        %5573 = vst [vmem:[%s5572] ss:$4 sm:$0xff] %v5562
        %v5574 = vld.sshfl [vmem:[#allocation1] sm:$0xff pattern:$0x73625140]
        %v5576 = vpack.c.bf16 %v5574, %v5574
        %s5577 = scalar_lea.vmem %s4, 640
        %v5578 = vld [vmem:[%s5577] sm:$0xff]
        %v5579 = vld [vmem:[%s5577 + $0x8] sm:$0xff]
        %v5580 = vld [vmem:[%s5577 + $0x10] sm:$0xf]
        %v5581 = vld [vmem:[%s5577 + $0x14] sm:$0xff]
        %v5582 = vld [vmem:[%s5577 + $0x1c] sm:$0xff]
        %v5583 = vld [vmem:[%s5577 + $0x24] sm:$0xf]
        %v5584 = vld [vmem:[%s5577 + $0x28] sm:$0xff]
        %v5585 = vld [vmem:[%s5577 + $0x30] sm:$0xff]
        %v5586 = vld [vmem:[%s5577 + $0x38] sm:$0xf]
        %v5587 = vld [vmem:[%s5577 + $0x3c] sm:$0xff]
        %v5588 = vld [vmem:[%s5577 + $0x44] sm:$0xff]
        %v5589 = vld [vmem:[%s5577 + $0x4c] sm:$0xf]
        %v5590 = vld [vmem:[%s5577 + $0x50] sm:$0xff]
        %v5591 = vld [vmem:[%s5577 + $0x58] sm:$0xff]
        %v5592 = vld [vmem:[%s5577 + $0x60] sm:$0xf]
        %v5593 = vld [vmem:[%s5577 + $0x64] sm:$0xff]
        %v5594 = vld [vmem:[%s5577 + $0x6c] sm:$0xff]
        %v5595 = vld [vmem:[%s5577 + $0x74] sm:$0xf]
        %v5596 = vld [vmem:[%s5577 + $0x78] sm:$0xff]
        %v5597 = vld [vmem:[%s5577 + $0x80] sm:$0xff]
        %v5598 = vld [vmem:[%s5577 + $0x88] sm:$0xf]
        %v5599 = vld [vmem:[%s5577 + $0x8c] sm:$0xff]
        %v5600 = vld [vmem:[%s5577 + $0x94] sm:$0xff]
        %v5601 = vld [vmem:[%s5577 + $0x9c] sm:$0xf]
        %v5626 = vunpack.c.l.b16 %v5578
        %v5627 = vunpack.c.h.b16 %v5578
        %v5628 = vunpack.c.l.b16 %v5579
        %v5629 = vunpack.c.h.b16 %v5579
        %v5630 = vunpack.c.l.b16 %v5580
        %v5631 = vunpack.c.l.b16 %v5581
        %v5632 = vunpack.c.h.b16 %v5581
        %v5633 = vunpack.c.l.b16 %v5582
        %v5634 = vunpack.c.h.b16 %v5582
        %v5635 = vunpack.c.l.b16 %v5583
        %v5636 = vunpack.c.l.b16 %v5584
        %v5637 = vunpack.c.h.b16 %v5584
        %v5638 = vunpack.c.l.b16 %v5585
        %v5639 = vunpack.c.h.b16 %v5585
        %v5640 = vunpack.c.l.b16 %v5586
        %v5641 = vunpack.c.l.b16 %v5587
        %v5642 = vunpack.c.h.b16 %v5587
        %v5643 = vunpack.c.l.b16 %v5588
        %v5644 = vunpack.c.h.b16 %v5588
        %v5645 = vunpack.c.l.b16 %v5589
        %v5646 = vunpack.c.l.b16 %v5590
        %v5647 = vunpack.c.h.b16 %v5590
        %v5648 = vunpack.c.l.b16 %v5591
        %v5649 = vunpack.c.h.b16 %v5591
        %v5650 = vunpack.c.l.b16 %v5592
        %v5651 = vunpack.c.l.b16 %v5593
        %v5652 = vunpack.c.h.b16 %v5593
        %v5653 = vunpack.c.l.b16 %v5594
        %v5654 = vunpack.c.h.b16 %v5594
        %v5655 = vunpack.c.l.b16 %v5595
        %v5656 = vunpack.c.l.b16 %v5596
        %v5657 = vunpack.c.h.b16 %v5596
        %v5658 = vunpack.c.l.b16 %v5597
        %v5659 = vunpack.c.h.b16 %v5597
        %v5660 = vunpack.c.l.b16 %v5598
        %v5661 = vunpack.c.l.b16 %v5599
        %v5662 = vunpack.c.h.b16 %v5599
        %v5663 = vunpack.c.l.b16 %v5600
        %v5664 = vunpack.c.h.b16 %v5600
        %v5665 = vunpack.c.l.b16 %v5601
        %v5666 = vpack.c.b16 %v5631, %v5626
        %v5667 = vpack.c.b16 %v5632, %v5627
        %v5668 = vpack.c.b16 %v5633, %v5628
        %v5669 = vpack.c.b16 %v5634, %v5629
        %v5670 = vpack.c.b16 %v5635, %v5630
        %v5671 = vpack.c.b16 %v5641, %v5636
        %v5672 = vpack.c.b16 %v5642, %v5637
        %v5673 = vpack.c.b16 %v5643, %v5638
        %v5674 = vpack.c.b16 %v5644, %v5639
        %v5675 = vpack.c.b16 %v5645, %v5640
        %v5676 = vpack.c.b16 %v5651, %v5646
        %v5677 = vpack.c.b16 %v5652, %v5647
        %v5678 = vpack.c.b16 %v5653, %v5648
        %v5679 = vpack.c.b16 %v5654, %v5649
        %v5680 = vpack.c.b16 %v5655, %v5650
        %v5681 = vpack.c.b16 %v5661, %v5656
        %v5682 = vpack.c.b16 %v5662, %v5657
        %v5683 = vpack.c.b16 %v5663, %v5658
        %v5684 = vpack.c.b16 %v5664, %v5659
        %v5685 = vpack.c.b16 %v5665, %v5660
        %v5707 = vsel %vm1549, %v5576, 0
        %5709 = vmatpush.bf16.msra.mxu0 0
        %5710 = vmatpush.bf16.msra.mxu0 0
        %5711 = vmatpush.bf16.msra.mxu0 0
        %5712 = vmatpush.bf16.msra.mxu0 0
        %5713 = vmatpush.bf16.msra.mxu0 %v5681
        %5714 = vmatpush.bf16.msra.mxu0 %v5676
        %5715 = vmatpush.bf16.msra.mxu0 %v5671
        %5716 = vmatpush.bf16.msra.mxu0 %v5666
        %5717 = vmatmul.bf16.gmra.mxu0 %v5707
        %v5718 = vpop.f32.mrf.mxu0
        %v5719 = vadd.f32 0.0, %v5718
        %v5720 = vpop.f32.mrf.mxu0
        %5721 = vdwg.mxu0
        %5722 = vmatpush.bf16.msra.mxu0 0
        %5723 = vmatpush.bf16.msra.mxu0 0
        %5724 = vmatpush.bf16.msra.mxu0 0
        %5725 = vmatpush.bf16.msra.mxu0 0
        %5726 = vmatpush.bf16.msra.mxu0 %v5682
        %5727 = vmatpush.bf16.msra.mxu0 %v5677
        %5728 = vmatpush.bf16.msra.mxu0 %v5672
        %5729 = vmatpush.bf16.msra.mxu0 %v5667
        %5730 = vmatmul.bf16.gmra.mxu0 %v5707
        %v5731 = vpop.f32.mrf.mxu0
        %v5732 = vadd.f32 0.0, %v5731
        %v5733 = vpop.f32.mrf.mxu0
        %5734 = vdwg.mxu0
        %5735 = vmatpush.bf16.msra.mxu0 0
        %5736 = vmatpush.bf16.msra.mxu0 0
        %5737 = vmatpush.bf16.msra.mxu0 0
        %5738 = vmatpush.bf16.msra.mxu0 0
        %5739 = vmatpush.bf16.msra.mxu0 %v5683
        %5740 = vmatpush.bf16.msra.mxu0 %v5678
        %5741 = vmatpush.bf16.msra.mxu0 %v5673
        %5742 = vmatpush.bf16.msra.mxu0 %v5668
        %5743 = vmatmul.bf16.gmra.mxu0 %v5707
        %v5744 = vpop.f32.mrf.mxu0
        %v5745 = vadd.f32 0.0, %v5744
        %v5746 = vpop.f32.mrf.mxu0
        %5747 = vdwg.mxu0
        %5748 = vmatpush.bf16.msra.mxu0 0
        %5749 = vmatpush.bf16.msra.mxu0 0
        %5750 = vmatpush.bf16.msra.mxu0 0
        %5751 = vmatpush.bf16.msra.mxu0 0
        %5752 = vmatpush.bf16.msra.mxu0 %v5684
        %5753 = vmatpush.bf16.msra.mxu0 %v5679
        %5754 = vmatpush.bf16.msra.mxu0 %v5674
        %5755 = vmatpush.bf16.msra.mxu0 %v5669
        %5756 = vmatmul.bf16.gmra.mxu0 %v5707
        %v5757 = vpop.f32.mrf.mxu0
        %v5758 = vadd.f32 0.0, %v5757
        %v5759 = vpop.f32.mrf.mxu0
        %5760 = vdwg.mxu0
        %5761 = vmatpush.bf16.msra.mxu0 0
        %5762 = vmatpush.bf16.msra.mxu0 0
        %5763 = vmatpush.bf16.msra.mxu0 0
        %5764 = vmatpush.bf16.msra.mxu0 0
        %5765 = vmatpush.bf16.msra.mxu0 %v5685
        %5766 = vmatpush.bf16.msra.mxu0 %v5680
        %5767 = vmatpush.bf16.msra.mxu0 %v5675
        %5768 = vmatpush.bf16.msra.mxu0 %v5670
        %5769 = vmatmul.bf16.gmra.mxu0 %v5707
        %v5770 = vpop.f32.mrf.mxu0
        %v5771 = vadd.f32 0.0, %v5770
        %v5772 = vpop.f32.mrf.mxu0
        %5773 = vdwg.mxu0
        %v5774 = vadd.f32 %v5554, %v5719
        %v5775 = vadd.f32 %v5555, %v5732
        %v5776 = vadd.f32 %v5556, %v5745
        %v5777 = vadd.f32 %v5557, %v5758
        %v5778 = vadd.f32 %v5558, %v5771
        %v5779 = vld [vmem:[%s4653 + $0x2] sm:$0x3]
        %v5780 = vld [vmem:[%s4653 + $0x6] sm:$0x3]
        %v5781 = vld [vmem:[%s4653 + $0x12] sm:$0x3]
        %v5782 = vld [vmem:[%s4653 + $0x16] sm:$0x3]
        %5787 = vst [vmem:[#allocation1] ss:$4 sm:$0xff] %v5779
        %s5788 = scalar_lea.vmem [#allocation1], 1
        %5789 = vst [vmem:[%s5788] ss:$4 sm:$0xff] %v5780
        %s5790 = scalar_lea.vmem [#allocation1], 2
        %5791 = vst [vmem:[%s5790] ss:$4 sm:$0xff] %v5781
        %s5792 = scalar_lea.vmem [#allocation1], 3
        %5793 = vst [vmem:[%s5792] ss:$4 sm:$0xff] %v5782
        %v5794 = vld.sshfl [vmem:[#allocation1] sm:$0xff pattern:$0x73625140]
        %v5796 = vpack.c.bf16 %v5794, %v5794
        %s5797 = scalar_lea.vmem %s4, 800
        %v5798 = vld [vmem:[%s5797] sm:$0xff]
        %v5799 = vld [vmem:[%s5797 + $0x8] sm:$0xff]
        %v5800 = vld [vmem:[%s5797 + $0x10] sm:$0xf]
        %v5801 = vld [vmem:[%s5797 + $0x14] sm:$0xff]
        %v5802 = vld [vmem:[%s5797 + $0x1c] sm:$0xff]
        %v5803 = vld [vmem:[%s5797 + $0x24] sm:$0xf]
        %v5804 = vld [vmem:[%s5797 + $0x28] sm:$0xff]
        %v5805 = vld [vmem:[%s5797 + $0x30] sm:$0xff]
        %v5806 = vld [vmem:[%s5797 + $0x38] sm:$0xf]
        %v5807 = vld [vmem:[%s5797 + $0x3c] sm:$0xff]
        %v5808 = vld [vmem:[%s5797 + $0x44] sm:$0xff]
        %v5809 = vld [vmem:[%s5797 + $0x4c] sm:$0xf]
        %v5810 = vld [vmem:[%s5797 + $0x50] sm:$0xff]
        %v5811 = vld [vmem:[%s5797 + $0x58] sm:$0xff]
        %v5812 = vld [vmem:[%s5797 + $0x60] sm:$0xf]
        %v5813 = vld [vmem:[%s5797 + $0x64] sm:$0xff]
        %v5814 = vld [vmem:[%s5797 + $0x6c] sm:$0xff]
        %v5815 = vld [vmem:[%s5797 + $0x74] sm:$0xf]
        %v5816 = vld [vmem:[%s5797 + $0x78] sm:$0xff]
        %v5817 = vld [vmem:[%s5797 + $0x80] sm:$0xff]
        %v5818 = vld [vmem:[%s5797 + $0x88] sm:$0xf]
        %v5819 = vld [vmem:[%s5797 + $0x8c] sm:$0xff]
        %v5820 = vld [vmem:[%s5797 + $0x94] sm:$0xff]
        %v5821 = vld [vmem:[%s5797 + $0x9c] sm:$0xf]
        %v5846 = vunpack.c.l.b16 %v5798
        %v5847 = vunpack.c.h.b16 %v5798
        %v5848 = vunpack.c.l.b16 %v5799
        %v5849 = vunpack.c.h.b16 %v5799
        %v5850 = vunpack.c.l.b16 %v5800
        %v5851 = vunpack.c.l.b16 %v5801
        %v5852 = vunpack.c.h.b16 %v5801
        %v5853 = vunpack.c.l.b16 %v5802
        %v5854 = vunpack.c.h.b16 %v5802
        %v5855 = vunpack.c.l.b16 %v5803
        %v5856 = vunpack.c.l.b16 %v5804
        %v5857 = vunpack.c.h.b16 %v5804
        %v5858 = vunpack.c.l.b16 %v5805
        %v5859 = vunpack.c.h.b16 %v5805
        %v5860 = vunpack.c.l.b16 %v5806
        %v5861 = vunpack.c.l.b16 %v5807
        %v5862 = vunpack.c.h.b16 %v5807
        %v5863 = vunpack.c.l.b16 %v5808
        %v5864 = vunpack.c.h.b16 %v5808
        %v5865 = vunpack.c.l.b16 %v5809
        %v5866 = vunpack.c.l.b16 %v5810
        %v5867 = vunpack.c.h.b16 %v5810
        %v5868 = vunpack.c.l.b16 %v5811
        %v5869 = vunpack.c.h.b16 %v5811
        %v5870 = vunpack.c.l.b16 %v5812
        %v5871 = vunpack.c.l.b16 %v5813
        %v5872 = vunpack.c.h.b16 %v5813
        %v5873 = vunpack.c.l.b16 %v5814
        %v5874 = vunpack.c.h.b16 %v5814
        %v5875 = vunpack.c.l.b16 %v5815
        %v5876 = vunpack.c.l.b16 %v5816
        %v5877 = vunpack.c.h.b16 %v5816
        %v5878 = vunpack.c.l.b16 %v5817
        %v5879 = vunpack.c.h.b16 %v5817
        %v5880 = vunpack.c.l.b16 %v5818
        %v5881 = vunpack.c.l.b16 %v5819
        %v5882 = vunpack.c.h.b16 %v5819
        %v5883 = vunpack.c.l.b16 %v5820
        %v5884 = vunpack.c.h.b16 %v5820
        %v5885 = vunpack.c.l.b16 %v5821
        %v5886 = vpack.c.b16 %v5851, %v5846
        %v5887 = vpack.c.b16 %v5852, %v5847
        %v5888 = vpack.c.b16 %v5853, %v5848
        %v5889 = vpack.c.b16 %v5854, %v5849
        %v5890 = vpack.c.b16 %v5855, %v5850
        %v5891 = vpack.c.b16 %v5861, %v5856
        %v5892 = vpack.c.b16 %v5862, %v5857
        %v5893 = vpack.c.b16 %v5863, %v5858
        %v5894 = vpack.c.b16 %v5864, %v5859
        %v5895 = vpack.c.b16 %v5865, %v5860
        %v5896 = vpack.c.b16 %v5871, %v5866
        %v5897 = vpack.c.b16 %v5872, %v5867
        %v5898 = vpack.c.b16 %v5873, %v5868
        %v5899 = vpack.c.b16 %v5874, %v5869
        %v5900 = vpack.c.b16 %v5875, %v5870
        %v5901 = vpack.c.b16 %v5881, %v5876
        %v5902 = vpack.c.b16 %v5882, %v5877
        %v5903 = vpack.c.b16 %v5883, %v5878
        %v5904 = vpack.c.b16 %v5884, %v5879
        %v5905 = vpack.c.b16 %v5885, %v5880
        %v5927 = vsel %vm1549, %v5796, 0
        %5929 = vmatpush.bf16.msra.mxu0 0
        %5930 = vmatpush.bf16.msra.mxu0 0
        %5931 = vmatpush.bf16.msra.mxu0 0
        %5932 = vmatpush.bf16.msra.mxu0 0
        %5933 = vmatpush.bf16.msra.mxu0 %v5901
        %5934 = vmatpush.bf16.msra.mxu0 %v5896
        %5935 = vmatpush.bf16.msra.mxu0 %v5891
        %5936 = vmatpush.bf16.msra.mxu0 %v5886
        %5937 = vmatmul.bf16.gmra.mxu0 %v5927
        %v5938 = vpop.f32.mrf.mxu0
        %v5939 = vadd.f32 0.0, %v5938
        %v5940 = vpop.f32.mrf.mxu0
        %5941 = vdwg.mxu0
        %5942 = vmatpush.bf16.msra.mxu0 0
        %5943 = vmatpush.bf16.msra.mxu0 0
        %5944 = vmatpush.bf16.msra.mxu0 0
        %5945 = vmatpush.bf16.msra.mxu0 0
        %5946 = vmatpush.bf16.msra.mxu0 %v5902
        %5947 = vmatpush.bf16.msra.mxu0 %v5897
        %5948 = vmatpush.bf16.msra.mxu0 %v5892
        %5949 = vmatpush.bf16.msra.mxu0 %v5887
        %5950 = vmatmul.bf16.gmra.mxu0 %v5927
        %v5951 = vpop.f32.mrf.mxu0
        %v5952 = vadd.f32 0.0, %v5951
        %v5953 = vpop.f32.mrf.mxu0
        %5954 = vdwg.mxu0
        %5955 = vmatpush.bf16.msra.mxu0 0
        %5956 = vmatpush.bf16.msra.mxu0 0
        %5957 = vmatpush.bf16.msra.mxu0 0
        %5958 = vmatpush.bf16.msra.mxu0 0
        %5959 = vmatpush.bf16.msra.mxu0 %v5903
        %5960 = vmatpush.bf16.msra.mxu0 %v5898
        %5961 = vmatpush.bf16.msra.mxu0 %v5893
        %5962 = vmatpush.bf16.msra.mxu0 %v5888
        %5963 = vmatmul.bf16.gmra.mxu0 %v5927
        %v5964 = vpop.f32.mrf.mxu0
        %v5965 = vadd.f32 0.0, %v5964
        %v5966 = vpop.f32.mrf.mxu0
        %5967 = vdwg.mxu0
        %5968 = vmatpush.bf16.msra.mxu0 0
        %5969 = vmatpush.bf16.msra.mxu0 0
        %5970 = vmatpush.bf16.msra.mxu0 0
        %5971 = vmatpush.bf16.msra.mxu0 0
        %5972 = vmatpush.bf16.msra.mxu0 %v5904
        %5973 = vmatpush.bf16.msra.mxu0 %v5899
        %5974 = vmatpush.bf16.msra.mxu0 %v5894
        %5975 = vmatpush.bf16.msra.mxu0 %v5889
        %5976 = vmatmul.bf16.gmra.mxu0 %v5927
        %v5977 = vpop.f32.mrf.mxu0
        %v5978 = vadd.f32 0.0, %v5977
        %v5979 = vpop.f32.mrf.mxu0
        %5980 = vdwg.mxu0
        %5981 = vmatpush.bf16.msra.mxu0 0
        %5982 = vmatpush.bf16.msra.mxu0 0
        %5983 = vmatpush.bf16.msra.mxu0 0
        %5984 = vmatpush.bf16.msra.mxu0 0
        %5985 = vmatpush.bf16.msra.mxu0 %v5905
        %5986 = vmatpush.bf16.msra.mxu0 %v5900
        %5987 = vmatpush.bf16.msra.mxu0 %v5895
        %5988 = vmatpush.bf16.msra.mxu0 %v5890
        %5989 = vmatmul.bf16.gmra.mxu0 %v5927
        %v5990 = vpop.f32.mrf.mxu0
        %v5991 = vadd.f32 0.0, %v5990
        %v5992 = vpop.f32.mrf.mxu0
        %5993 = vdwg.mxu0
        %v5994 = vadd.f32 %v5774, %v5939
        %v5995 = vadd.f32 %v5775, %v5952
        %v5996 = vadd.f32 %v5776, %v5965
        %v5997 = vadd.f32 %v5777, %v5978
        %v5998 = vadd.f32 %v5778, %v5991
        %s5999 = scalar_lea.vmem [#allocation4], 8
        %v6000 = vld [vmem:[%s5999] sm:$0x3]
        %v6001 = vld [vmem:[%s5999 + $0x4] sm:$0x3]
        %v6002 = vld [vmem:[%s5999 + $0x10] sm:$0x3]
        %v6003 = vld [vmem:[%s5999 + $0x14] sm:$0x3]
        %6008 = vst [vmem:[#allocation1] ss:$4 sm:$0xff] %v6000
        %s6009 = scalar_lea.vmem [#allocation1], 1
        %6010 = vst [vmem:[%s6009] ss:$4 sm:$0xff] %v6001
        %s6011 = scalar_lea.vmem [#allocation1], 2
        %6012 = vst [vmem:[%s6011] ss:$4 sm:$0xff] %v6002
        %s6013 = scalar_lea.vmem [#allocation1], 3
        %6014 = vst [vmem:[%s6013] ss:$4 sm:$0xff] %v6003
        %v6015 = vld.sshfl [vmem:[#allocation1] sm:$0xff pattern:$0x73625140]
        %v6017 = vpack.c.bf16 %v6015, %v6015
        %s6018 = scalar_lea.vmem %s4, 960
        %v6019 = vld [vmem:[%s6018] sm:$0xff]
        %v6020 = vld [vmem:[%s6018 + $0x8] sm:$0xff]
        %v6021 = vld [vmem:[%s6018 + $0x10] sm:$0xf]
        %v6022 = vld [vmem:[%s6018 + $0x14] sm:$0xff]
        %v6023 = vld [vmem:[%s6018 + $0x1c] sm:$0xff]
        %v6024 = vld [vmem:[%s6018 + $0x24] sm:$0xf]
        %v6025 = vld [vmem:[%s6018 + $0x28] sm:$0xff]
        %v6026 = vld [vmem:[%s6018 + $0x30] sm:$0xff]
        %v6027 = vld [vmem:[%s6018 + $0x38] sm:$0xf]
        %v6028 = vld [vmem:[%s6018 + $0x3c] sm:$0xff]
        %v6029 = vld [vmem:[%s6018 + $0x44] sm:$0xff]
        %v6030 = vld [vmem:[%s6018 + $0x4c] sm:$0xf]
        %v6031 = vld [vmem:[%s6018 + $0x50] sm:$0xff]
        %v6032 = vld [vmem:[%s6018 + $0x58] sm:$0xff]
        %v6033 = vld [vmem:[%s6018 + $0x60] sm:$0xf]
        %v6034 = vld [vmem:[%s6018 + $0x64] sm:$0xff]
        %v6035 = vld [vmem:[%s6018 + $0x6c] sm:$0xff]
        %v6036 = vld [vmem:[%s6018 + $0x74] sm:$0xf]
        %v6037 = vld [vmem:[%s6018 + $0x78] sm:$0xff]
        %v6038 = vld [vmem:[%s6018 + $0x80] sm:$0xff]
        %v6039 = vld [vmem:[%s6018 + $0x88] sm:$0xf]
        %v6040 = vld [vmem:[%s6018 + $0x8c] sm:$0xff]
        %v6041 = vld [vmem:[%s6018 + $0x94] sm:$0xff]
        %v6042 = vld [vmem:[%s6018 + $0x9c] sm:$0xf]
        %v6067 = vunpack.c.l.b16 %v6019
        %v6068 = vunpack.c.h.b16 %v6019
        %v6069 = vunpack.c.l.b16 %v6020
        %v6070 = vunpack.c.h.b16 %v6020
        %v6071 = vunpack.c.l.b16 %v6021
        %v6072 = vunpack.c.l.b16 %v6022
        %v6073 = vunpack.c.h.b16 %v6022
        %v6074 = vunpack.c.l.b16 %v6023
        %v6075 = vunpack.c.h.b16 %v6023
        %v6076 = vunpack.c.l.b16 %v6024
        %v6077 = vunpack.c.l.b16 %v6025
        %v6078 = vunpack.c.h.b16 %v6025
        %v6079 = vunpack.c.l.b16 %v6026
        %v6080 = vunpack.c.h.b16 %v6026
        %v6081 = vunpack.c.l.b16 %v6027
        %v6082 = vunpack.c.l.b16 %v6028
        %v6083 = vunpack.c.h.b16 %v6028
        %v6084 = vunpack.c.l.b16 %v6029
        %v6085 = vunpack.c.h.b16 %v6029
        %v6086 = vunpack.c.l.b16 %v6030
        %v6087 = vunpack.c.l.b16 %v6031
        %v6088 = vunpack.c.h.b16 %v6031
        %v6089 = vunpack.c.l.b16 %v6032
        %v6090 = vunpack.c.h.b16 %v6032
        %v6091 = vunpack.c.l.b16 %v6033
        %v6092 = vunpack.c.l.b16 %v6034
        %v6093 = vunpack.c.h.b16 %v6034
        %v6094 = vunpack.c.l.b16 %v6035
        %v6095 = vunpack.c.h.b16 %v6035
        %v6096 = vunpack.c.l.b16 %v6036
        %v6097 = vunpack.c.l.b16 %v6037
        %v6098 = vunpack.c.h.b16 %v6037
        %v6099 = vunpack.c.l.b16 %v6038
        %v6100 = vunpack.c.h.b16 %v6038
        %v6101 = vunpack.c.l.b16 %v6039
        %v6102 = vunpack.c.l.b16 %v6040
        %v6103 = vunpack.c.h.b16 %v6040
        %v6104 = vunpack.c.l.b16 %v6041
        %v6105 = vunpack.c.h.b16 %v6041
        %v6106 = vunpack.c.l.b16 %v6042
        %v6107 = vpack.c.b16 %v6072, %v6067
        %v6108 = vpack.c.b16 %v6073, %v6068
        %v6109 = vpack.c.b16 %v6074, %v6069
        %v6110 = vpack.c.b16 %v6075, %v6070
        %v6111 = vpack.c.b16 %v6076, %v6071
        %v6112 = vpack.c.b16 %v6082, %v6077
        %v6113 = vpack.c.b16 %v6083, %v6078
        %v6114 = vpack.c.b16 %v6084, %v6079
        %v6115 = vpack.c.b16 %v6085, %v6080
        %v6116 = vpack.c.b16 %v6086, %v6081
        %v6117 = vpack.c.b16 %v6092, %v6087
        %v6118 = vpack.c.b16 %v6093, %v6088
        %v6119 = vpack.c.b16 %v6094, %v6089
        %v6120 = vpack.c.b16 %v6095, %v6090
        %v6121 = vpack.c.b16 %v6096, %v6091
        %v6122 = vpack.c.b16 %v6102, %v6097
        %v6123 = vpack.c.b16 %v6103, %v6098
        %v6124 = vpack.c.b16 %v6104, %v6099
        %v6125 = vpack.c.b16 %v6105, %v6100
        %v6126 = vpack.c.b16 %v6106, %v6101
        %v6148 = vsel %vm1549, %v6017, 0
        %6150 = vmatpush.bf16.msra.mxu0 0
        %6151 = vmatpush.bf16.msra.mxu0 0
        %6152 = vmatpush.bf16.msra.mxu0 0
        %6153 = vmatpush.bf16.msra.mxu0 0
        %6154 = vmatpush.bf16.msra.mxu0 %v6122
        %6155 = vmatpush.bf16.msra.mxu0 %v6117
        %6156 = vmatpush.bf16.msra.mxu0 %v6112
        %6157 = vmatpush.bf16.msra.mxu0 %v6107
        %6158 = vmatmul.bf16.gmra.mxu0 %v6148
        %v6159 = vpop.f32.mrf.mxu0
        %v6160 = vadd.f32 0.0, %v6159
        %v6161 = vpop.f32.mrf.mxu0
        %6162 = vdwg.mxu0
        %6163 = vmatpush.bf16.msra.mxu0 0
        %6164 = vmatpush.bf16.msra.mxu0 0
        %6165 = vmatpush.bf16.msra.mxu0 0
        %6166 = vmatpush.bf16.msra.mxu0 0
        %6167 = vmatpush.bf16.msra.mxu0 %v6123
        %6168 = vmatpush.bf16.msra.mxu0 %v6118
        %6169 = vmatpush.bf16.msra.mxu0 %v6113
        %6170 = vmatpush.bf16.msra.mxu0 %v6108
        %6171 = vmatmul.bf16.gmra.mxu0 %v6148
        %v6172 = vpop.f32.mrf.mxu0
        %v6173 = vadd.f32 0.0, %v6172
        %v6174 = vpop.f32.mrf.mxu0
        %6175 = vdwg.mxu0
        %6176 = vmatpush.bf16.msra.mxu0 0
        %6177 = vmatpush.bf16.msra.mxu0 0
        %6178 = vmatpush.bf16.msra.mxu0 0
        %6179 = vmatpush.bf16.msra.mxu0 0
        %6180 = vmatpush.bf16.msra.mxu0 %v6124
        %6181 = vmatpush.bf16.msra.mxu0 %v6119
        %6182 = vmatpush.bf16.msra.mxu0 %v6114
        %6183 = vmatpush.bf16.msra.mxu0 %v6109
        %6184 = vmatmul.bf16.gmra.mxu0 %v6148
        %v6185 = vpop.f32.mrf.mxu0
        %v6186 = vadd.f32 0.0, %v6185
        %v6187 = vpop.f32.mrf.mxu0
        %6188 = vdwg.mxu0
        %6189 = vmatpush.bf16.msra.mxu0 0
        %6190 = vmatpush.bf16.msra.mxu0 0
        %6191 = vmatpush.bf16.msra.mxu0 0
        %6192 = vmatpush.bf16.msra.mxu0 0
        %6193 = vmatpush.bf16.msra.mxu0 %v6125
        %6194 = vmatpush.bf16.msra.mxu0 %v6120
        %6195 = vmatpush.bf16.msra.mxu0 %v6115
        %6196 = vmatpush.bf16.msra.mxu0 %v6110
        %6197 = vmatmul.bf16.gmra.mxu0 %v6148
        %v6198 = vpop.f32.mrf.mxu0
        %v6199 = vadd.f32 0.0, %v6198
        %v6200 = vpop.f32.mrf.mxu0
        %6201 = vdwg.mxu0
        %6202 = vmatpush.bf16.msra.mxu0 0
        %6203 = vmatpush.bf16.msra.mxu0 0
        %6204 = vmatpush.bf16.msra.mxu0 0
        %6205 = vmatpush.bf16.msra.mxu0 0
        %6206 = vmatpush.bf16.msra.mxu0 %v6126
        %6207 = vmatpush.bf16.msra.mxu0 %v6121
        %6208 = vmatpush.bf16.msra.mxu0 %v6116
        %6209 = vmatpush.bf16.msra.mxu0 %v6111
        %6210 = vmatmul.bf16.gmra.mxu0 %v6148
        %v6211 = vpop.f32.mrf.mxu0
        %v6212 = vadd.f32 0.0, %v6211
        %v6213 = vpop.f32.mrf.mxu0
        %6214 = vdwg.mxu0
        %v6215 = vadd.f32 %v5994, %v6160
        %v6216 = vadd.f32 %v5995, %v6173
        %v6217 = vadd.f32 %v5996, %v6186
        %v6218 = vadd.f32 %v5997, %v6199
        %v6219 = vadd.f32 %v5998, %v6212
        %v6220 = vld [vmem:[%s5999 + $0x1] sm:$0x3]
        %v6221 = vld [vmem:[%s5999 + $0x5] sm:$0x3]
        %v6222 = vld [vmem:[%s5999 + $0x11] sm:$0x3]
        %v6223 = vld [vmem:[%s5999 + $0x15] sm:$0x3]
        %6228 = vst [vmem:[#allocation1] ss:$4 sm:$0xff] %v6220
        %s6229 = scalar_lea.vmem [#allocation1], 1
        %6230 = vst [vmem:[%s6229] ss:$4 sm:$0xff] %v6221
        %s6231 = scalar_lea.vmem [#allocation1], 2
        %6232 = vst [vmem:[%s6231] ss:$4 sm:$0xff] %v6222
        %s6233 = scalar_lea.vmem [#allocation1], 3
        %6234 = vst [vmem:[%s6233] ss:$4 sm:$0xff] %v6223
        %v6235 = vld.sshfl [vmem:[#allocation1] sm:$0xff pattern:$0x73625140]
        %v6237 = vpack.c.bf16 %v6235, %v6235
        %s6238 = scalar_lea.vmem %s4, 1120
        %v6239 = vld [vmem:[%s6238] sm:$0xff]
        %v6240 = vld [vmem:[%s6238 + $0x8] sm:$0xff]
        %v6241 = vld [vmem:[%s6238 + $0x10] sm:$0xf]
        %v6242 = vld [vmem:[%s6238 + $0x14] sm:$0xff]
        %v6243 = vld [vmem:[%s6238 + $0x1c] sm:$0xff]
        %v6244 = vld [vmem:[%s6238 + $0x24] sm:$0xf]
        %v6245 = vld [vmem:[%s6238 + $0x28] sm:$0xff]
        %v6246 = vld [vmem:[%s6238 + $0x30] sm:$0xff]
        %v6247 = vld [vmem:[%s6238 + $0x38] sm:$0xf]
        %v6248 = vld [vmem:[%s6238 + $0x3c] sm:$0xff]
        %v6249 = vld [vmem:[%s6238 + $0x44] sm:$0xff]
        %v6250 = vld [vmem:[%s6238 + $0x4c] sm:$0xf]
        %v6251 = vld [vmem:[%s6238 + $0x50] sm:$0xff]
        %v6252 = vld [vmem:[%s6238 + $0x58] sm:$0xff]
        %v6253 = vld [vmem:[%s6238 + $0x60] sm:$0xf]
        %v6254 = vld [vmem:[%s6238 + $0x64] sm:$0xff]
        %v6255 = vld [vmem:[%s6238 + $0x6c] sm:$0xff]
        %v6256 = vld [vmem:[%s6238 + $0x74] sm:$0xf]
        %v6257 = vld [vmem:[%s6238 + $0x78] sm:$0xff]
        %v6258 = vld [vmem:[%s6238 + $0x80] sm:$0xff]
        %v6259 = vld [vmem:[%s6238 + $0x88] sm:$0xf]
        %v6260 = vld [vmem:[%s6238 + $0x8c] sm:$0xff]
        %v6261 = vld [vmem:[%s6238 + $0x94] sm:$0xff]
        %v6262 = vld [vmem:[%s6238 + $0x9c] sm:$0xf]
        %v6287 = vunpack.c.l.b16 %v6239
        %v6288 = vunpack.c.h.b16 %v6239
        %v6289 = vunpack.c.l.b16 %v6240
        %v6290 = vunpack.c.h.b16 %v6240
        %v6291 = vunpack.c.l.b16 %v6241
        %v6292 = vunpack.c.l.b16 %v6242
        %v6293 = vunpack.c.h.b16 %v6242
        %v6294 = vunpack.c.l.b16 %v6243
        %v6295 = vunpack.c.h.b16 %v6243
        %v6296 = vunpack.c.l.b16 %v6244
        %v6297 = vunpack.c.l.b16 %v6245
        %v6298 = vunpack.c.h.b16 %v6245
        %v6299 = vunpack.c.l.b16 %v6246
        %v6300 = vunpack.c.h.b16 %v6246
        %v6301 = vunpack.c.l.b16 %v6247
        %v6302 = vunpack.c.l.b16 %v6248
        %v6303 = vunpack.c.h.b16 %v6248
        %v6304 = vunpack.c.l.b16 %v6249
        %v6305 = vunpack.c.h.b16 %v6249
        %v6306 = vunpack.c.l.b16 %v6250
        %v6307 = vunpack.c.l.b16 %v6251
        %v6308 = vunpack.c.h.b16 %v6251
        %v6309 = vunpack.c.l.b16 %v6252
        %v6310 = vunpack.c.h.b16 %v6252
        %v6311 = vunpack.c.l.b16 %v6253
        %v6312 = vunpack.c.l.b16 %v6254
        %v6313 = vunpack.c.h.b16 %v6254
        %v6314 = vunpack.c.l.b16 %v6255
        %v6315 = vunpack.c.h.b16 %v6255
        %v6316 = vunpack.c.l.b16 %v6256
        %v6317 = vunpack.c.l.b16 %v6257
        %v6318 = vunpack.c.h.b16 %v6257
        %v6319 = vunpack.c.l.b16 %v6258
        %v6320 = vunpack.c.h.b16 %v6258
        %v6321 = vunpack.c.l.b16 %v6259
        %v6322 = vunpack.c.l.b16 %v6260
        %v6323 = vunpack.c.h.b16 %v6260
        %v6324 = vunpack.c.l.b16 %v6261
        %v6325 = vunpack.c.h.b16 %v6261
        %v6326 = vunpack.c.l.b16 %v6262
        %v6327 = vpack.c.b16 %v6292, %v6287
        %v6328 = vpack.c.b16 %v6293, %v6288
        %v6329 = vpack.c.b16 %v6294, %v6289
        %v6330 = vpack.c.b16 %v6295, %v6290
        %v6331 = vpack.c.b16 %v6296, %v6291
        %v6332 = vpack.c.b16 %v6302, %v6297
        %v6333 = vpack.c.b16 %v6303, %v6298
        %v6334 = vpack.c.b16 %v6304, %v6299
        %v6335 = vpack.c.b16 %v6305, %v6300
        %v6336 = vpack.c.b16 %v6306, %v6301
        %v6337 = vpack.c.b16 %v6312, %v6307
        %v6338 = vpack.c.b16 %v6313, %v6308
        %v6339 = vpack.c.b16 %v6314, %v6309
        %v6340 = vpack.c.b16 %v6315, %v6310
        %v6341 = vpack.c.b16 %v6316, %v6311
        %v6342 = vpack.c.b16 %v6322, %v6317
        %v6343 = vpack.c.b16 %v6323, %v6318
        %v6344 = vpack.c.b16 %v6324, %v6319
        %v6345 = vpack.c.b16 %v6325, %v6320
        %v6346 = vpack.c.b16 %v6326, %v6321
        %v6368 = vsel %vm1549, %v6237, 0
        %6370 = vmatpush.bf16.msra.mxu0 0
        %6371 = vmatpush.bf16.msra.mxu0 0
        %6372 = vmatpush.bf16.msra.mxu0 0
        %6373 = vmatpush.bf16.msra.mxu0 0
        %6374 = vmatpush.bf16.msra.mxu0 %v6342
        %6375 = vmatpush.bf16.msra.mxu0 %v6337
        %6376 = vmatpush.bf16.msra.mxu0 %v6332
        %6377 = vmatpush.bf16.msra.mxu0 %v6327
        %6378 = vmatmul.bf16.gmra.mxu0 %v6368
        %v6379 = vpop.f32.mrf.mxu0
        %v6380 = vadd.f32 0.0, %v6379
        %v6381 = vpop.f32.mrf.mxu0
        %6382 = vdwg.mxu0
        %6383 = vmatpush.bf16.msra.mxu0 0
        %6384 = vmatpush.bf16.msra.mxu0 0
        %6385 = vmatpush.bf16.msra.mxu0 0
        %6386 = vmatpush.bf16.msra.mxu0 0
        %6387 = vmatpush.bf16.msra.mxu0 %v6343
        %6388 = vmatpush.bf16.msra.mxu0 %v6338
        %6389 = vmatpush.bf16.msra.mxu0 %v6333
        %6390 = vmatpush.bf16.msra.mxu0 %v6328
        %6391 = vmatmul.bf16.gmra.mxu0 %v6368
        %v6392 = vpop.f32.mrf.mxu0
        %v6393 = vadd.f32 0.0, %v6392
        %v6394 = vpop.f32.mrf.mxu0
        %6395 = vdwg.mxu0
        %6396 = vmatpush.bf16.msra.mxu0 0
        %6397 = vmatpush.bf16.msra.mxu0 0
        %6398 = vmatpush.bf16.msra.mxu0 0
        %6399 = vmatpush.bf16.msra.mxu0 0
        %6400 = vmatpush.bf16.msra.mxu0 %v6344
        %6401 = vmatpush.bf16.msra.mxu0 %v6339
        %6402 = vmatpush.bf16.msra.mxu0 %v6334
        %6403 = vmatpush.bf16.msra.mxu0 %v6329
        %6404 = vmatmul.bf16.gmra.mxu0 %v6368
        %v6405 = vpop.f32.mrf.mxu0
        %v6406 = vadd.f32 0.0, %v6405
        %v6407 = vpop.f32.mrf.mxu0
        %6408 = vdwg.mxu0
        %6409 = vmatpush.bf16.msra.mxu0 0
        %6410 = vmatpush.bf16.msra.mxu0 0
        %6411 = vmatpush.bf16.msra.mxu0 0
        %6412 = vmatpush.bf16.msra.mxu0 0
        %6413 = vmatpush.bf16.msra.mxu0 %v6345
        %6414 = vmatpush.bf16.msra.mxu0 %v6340
        %6415 = vmatpush.bf16.msra.mxu0 %v6335
        %6416 = vmatpush.bf16.msra.mxu0 %v6330
        %6417 = vmatmul.bf16.gmra.mxu0 %v6368
        %v6418 = vpop.f32.mrf.mxu0
        %v6419 = vadd.f32 0.0, %v6418
        %v6420 = vpop.f32.mrf.mxu0
        %6421 = vdwg.mxu0
        %6422 = vmatpush.bf16.msra.mxu0 0
        %6423 = vmatpush.bf16.msra.mxu0 0
        %6424 = vmatpush.bf16.msra.mxu0 0
        %6425 = vmatpush.bf16.msra.mxu0 0
        %6426 = vmatpush.bf16.msra.mxu0 %v6346
        %6427 = vmatpush.bf16.msra.mxu0 %v6341
        %6428 = vmatpush.bf16.msra.mxu0 %v6336
        %6429 = vmatpush.bf16.msra.mxu0 %v6331
        %6430 = vmatmul.bf16.gmra.mxu0 %v6368
        %v6431 = vpop.f32.mrf.mxu0
        %v6432 = vadd.f32 0.0, %v6431
        %v6433 = vpop.f32.mrf.mxu0
        %6434 = vdwg.mxu0
        %v6435 = vadd.f32 %v6215, %v6380
        %v6436 = vadd.f32 %v6216, %v6393
        %v6437 = vadd.f32 %v6217, %v6406
        %v6438 = vadd.f32 %v6218, %v6419
        %v6439 = vadd.f32 %v6219, %v6432
        %v6440 = vld [vmem:[%s5999 + $0x2] sm:$0x3]
        %v6441 = vld [vmem:[%s5999 + $0x6] sm:$0x3]
        %v6442 = vld [vmem:[%s5999 + $0x12] sm:$0x3]
        %v6443 = vld [vmem:[%s5999 + $0x16] sm:$0x3]
        %6448 = vst [vmem:[#allocation1] ss:$4 sm:$0xff] %v6440
        %s6449 = scalar_lea.vmem [#allocation1], 1
        %6450 = vst [vmem:[%s6449] ss:$4 sm:$0xff] %v6441
        %s6451 = scalar_lea.vmem [#allocation1], 2
        %6452 = vst [vmem:[%s6451] ss:$4 sm:$0xff] %v6442
        %s6453 = scalar_lea.vmem [#allocation1], 3
        %6454 = vst [vmem:[%s6453] ss:$4 sm:$0xff] %v6443
        %v6455 = vld.sshfl [vmem:[#allocation1] sm:$0xff pattern:$0x73625140]
        %v6457 = vpack.c.bf16 %v6455, %v6455
        %s6458 = scalar_lea.vmem %s4, 1280
        %v6459 = vld [vmem:[%s6458] sm:$0xff]
        %v6460 = vld [vmem:[%s6458 + $0x8] sm:$0xff]
        %v6461 = vld [vmem:[%s6458 + $0x10] sm:$0xf]
        %v6462 = vld [vmem:[%s6458 + $0x14] sm:$0xff]
        %v6463 = vld [vmem:[%s6458 + $0x1c] sm:$0xff]
        %v6464 = vld [vmem:[%s6458 + $0x24] sm:$0xf]
        %v6465 = vld [vmem:[%s6458 + $0x28] sm:$0xff]
        %v6466 = vld [vmem:[%s6458 + $0x30] sm:$0xff]
        %v6467 = vld [vmem:[%s6458 + $0x38] sm:$0xf]
        %v6468 = vld [vmem:[%s6458 + $0x3c] sm:$0xff]
        %v6469 = vld [vmem:[%s6458 + $0x44] sm:$0xff]
        %v6470 = vld [vmem:[%s6458 + $0x4c] sm:$0xf]
        %v6471 = vld [vmem:[%s6458 + $0x50] sm:$0xff]
        %v6472 = vld [vmem:[%s6458 + $0x58] sm:$0xff]
        %v6473 = vld [vmem:[%s6458 + $0x60] sm:$0xf]
        %v6474 = vld [vmem:[%s6458 + $0x64] sm:$0xff]
        %v6475 = vld [vmem:[%s6458 + $0x6c] sm:$0xff]
        %v6476 = vld [vmem:[%s6458 + $0x74] sm:$0xf]
        %v6477 = vld [vmem:[%s6458 + $0x78] sm:$0xff]
        %v6478 = vld [vmem:[%s6458 + $0x80] sm:$0xff]
        %v6479 = vld [vmem:[%s6458 + $0x88] sm:$0xf]
        %v6480 = vld [vmem:[%s6458 + $0x8c] sm:$0xff]
        %v6481 = vld [vmem:[%s6458 + $0x94] sm:$0xff]
        %v6482 = vld [vmem:[%s6458 + $0x9c] sm:$0xf]
        %v6507 = vunpack.c.l.b16 %v6459
        %v6508 = vunpack.c.h.b16 %v6459
        %v6509 = vunpack.c.l.b16 %v6460
        %v6510 = vunpack.c.h.b16 %v6460
        %v6511 = vunpack.c.l.b16 %v6461
        %v6512 = vunpack.c.l.b16 %v6462
        %v6513 = vunpack.c.h.b16 %v6462
        %v6514 = vunpack.c.l.b16 %v6463
        %v6515 = vunpack.c.h.b16 %v6463
        %v6516 = vunpack.c.l.b16 %v6464
        %v6517 = vunpack.c.l.b16 %v6465
        %v6518 = vunpack.c.h.b16 %v6465
        %v6519 = vunpack.c.l.b16 %v6466
        %v6520 = vunpack.c.h.b16 %v6466
        %v6521 = vunpack.c.l.b16 %v6467
        %v6522 = vunpack.c.l.b16 %v6468
        %v6523 = vunpack.c.h.b16 %v6468
        %v6524 = vunpack.c.l.b16 %v6469
        %v6525 = vunpack.c.h.b16 %v6469
        %v6526 = vunpack.c.l.b16 %v6470
        %v6527 = vunpack.c.l.b16 %v6471
        %v6528 = vunpack.c.h.b16 %v6471
        %v6529 = vunpack.c.l.b16 %v6472
        %v6530 = vunpack.c.h.b16 %v6472
        %v6531 = vunpack.c.l.b16 %v6473
        %v6532 = vunpack.c.l.b16 %v6474
        %v6533 = vunpack.c.h.b16 %v6474
        %v6534 = vunpack.c.l.b16 %v6475
        %v6535 = vunpack.c.h.b16 %v6475
        %v6536 = vunpack.c.l.b16 %v6476
        %v6537 = vunpack.c.l.b16 %v6477
        %v6538 = vunpack.c.h.b16 %v6477
        %v6539 = vunpack.c.l.b16 %v6478
        %v6540 = vunpack.c.h.b16 %v6478
        %v6541 = vunpack.c.l.b16 %v6479
        %v6542 = vunpack.c.l.b16 %v6480
        %v6543 = vunpack.c.h.b16 %v6480
        %v6544 = vunpack.c.l.b16 %v6481
        %v6545 = vunpack.c.h.b16 %v6481
        %v6546 = vunpack.c.l.b16 %v6482
        %v6547 = vpack.c.b16 %v6512, %v6507
        %v6548 = vpack.c.b16 %v6513, %v6508
        %v6549 = vpack.c.b16 %v6514, %v6509
        %v6550 = vpack.c.b16 %v6515, %v6510
        %v6551 = vpack.c.b16 %v6516, %v6511
        %v6552 = vpack.c.b16 %v6522, %v6517
        %v6553 = vpack.c.b16 %v6523, %v6518
        %v6554 = vpack.c.b16 %v6524, %v6519
        %v6555 = vpack.c.b16 %v6525, %v6520
        %v6556 = vpack.c.b16 %v6526, %v6521
        %v6557 = vpack.c.b16 %v6532, %v6527
        %v6558 = vpack.c.b16 %v6533, %v6528
        %v6559 = vpack.c.b16 %v6534, %v6529
        %v6560 = vpack.c.b16 %v6535, %v6530
        %v6561 = vpack.c.b16 %v6536, %v6531
        %v6562 = vpack.c.b16 %v6542, %v6537
        %v6563 = vpack.c.b16 %v6543, %v6538
        %v6564 = vpack.c.b16 %v6544, %v6539
        %v6565 = vpack.c.b16 %v6545, %v6540
        %v6566 = vpack.c.b16 %v6546, %v6541
        %v6588 = vsel %vm1549, %v6457, 0
        %6590 = vmatpush.bf16.msra.mxu0 0
        %6591 = vmatpush.bf16.msra.mxu0 0
        %6592 = vmatpush.bf16.msra.mxu0 0
        %6593 = vmatpush.bf16.msra.mxu0 0
        %6594 = vmatpush.bf16.msra.mxu0 %v6562
        %6595 = vmatpush.bf16.msra.mxu0 %v6557
        %6596 = vmatpush.bf16.msra.mxu0 %v6552
        %6597 = vmatpush.bf16.msra.mxu0 %v6547
        %6598 = vmatmul.bf16.gmra.mxu0 %v6588
        %v6599 = vpop.f32.mrf.mxu0
        %v6600 = vadd.f32 0.0, %v6599
        %v6601 = vpop.f32.mrf.mxu0
        %6602 = vdwg.mxu0
        %6603 = vmatpush.bf16.msra.mxu0 0
        %6604 = vmatpush.bf16.msra.mxu0 0
        %6605 = vmatpush.bf16.msra.mxu0 0
        %6606 = vmatpush.bf16.msra.mxu0 0
        %6607 = vmatpush.bf16.msra.mxu0 %v6563
        %6608 = vmatpush.bf16.msra.mxu0 %v6558
        %6609 = vmatpush.bf16.msra.mxu0 %v6553
        %6610 = vmatpush.bf16.msra.mxu0 %v6548
        %6611 = vmatmul.bf16.gmra.mxu0 %v6588
        %v6612 = vpop.f32.mrf.mxu0
        %v6613 = vadd.f32 0.0, %v6612
        %v6614 = vpop.f32.mrf.mxu0
        %6615 = vdwg.mxu0
        %6616 = vmatpush.bf16.msra.mxu0 0
        %6617 = vmatpush.bf16.msra.mxu0 0
        %6618 = vmatpush.bf16.msra.mxu0 0
        %6619 = vmatpush.bf16.msra.mxu0 0
        %6620 = vmatpush.bf16.msra.mxu0 %v6564
        %6621 = vmatpush.bf16.msra.mxu0 %v6559
        %6622 = vmatpush.bf16.msra.mxu0 %v6554
        %6623 = vmatpush.bf16.msra.mxu0 %v6549
        %6624 = vmatmul.bf16.gmra.mxu0 %v6588
        %v6625 = vpop.f32.mrf.mxu0
        %v6626 = vadd.f32 0.0, %v6625
        %v6627 = vpop.f32.mrf.mxu0
        %6628 = vdwg.mxu0
        %6629 = vmatpush.bf16.msra.mxu0 0
        %6630 = vmatpush.bf16.msra.mxu0 0
        %6631 = vmatpush.bf16.msra.mxu0 0
        %6632 = vmatpush.bf16.msra.mxu0 0
        %6633 = vmatpush.bf16.msra.mxu0 %v6565
        %6634 = vmatpush.bf16.msra.mxu0 %v6560
        %6635 = vmatpush.bf16.msra.mxu0 %v6555
        %6636 = vmatpush.bf16.msra.mxu0 %v6550
        %6637 = vmatmul.bf16.gmra.mxu0 %v6588
        %v6638 = vpop.f32.mrf.mxu0
        %v6639 = vadd.f32 0.0, %v6638
        %v6640 = vpop.f32.mrf.mxu0
        %6641 = vdwg.mxu0
        %6642 = vmatpush.bf16.msra.mxu0 0
        %6643 = vmatpush.bf16.msra.mxu0 0
        %6644 = vmatpush.bf16.msra.mxu0 0
        %6645 = vmatpush.bf16.msra.mxu0 0
        %6646 = vmatpush.bf16.msra.mxu0 %v6566
        %6647 = vmatpush.bf16.msra.mxu0 %v6561
        %6648 = vmatpush.bf16.msra.mxu0 %v6556
        %6649 = vmatpush.bf16.msra.mxu0 %v6551
        %6650 = vmatmul.bf16.gmra.mxu0 %v6588
        %v6651 = vpop.f32.mrf.mxu0
        %v6652 = vadd.f32 0.0, %v6651
        %v6653 = vpop.f32.mrf.mxu0
        %6654 = vdwg.mxu0
        %v6655 = vadd.f32 %v6435, %v6600
        %v6656 = vadd.f32 %v6436, %v6613
        %v6657 = vadd.f32 %v6437, %v6626
        %v6658 = vadd.f32 %v6438, %v6639
        %v6659 = vadd.f32 %v6439, %v6652
        %v6660 = vld [vmem:[%s8] sm:$0x1f]
        %v6662 = vperm.slane %v6660, 0
        %v6663 = vperm.slane %v6660, 1
        %v6664 = vperm.slane %v6660, 2
        %v6665 = vperm.slane %v6660, 3
        %v6666 = vperm.slane %v6660, 4
        %v6672 = vadd.f32 %v6655, %v6662
        %v6673 = vadd.f32 %v6656, %v6663
        %v6674 = vadd.f32 %v6657, %v6664
        %v6675 = vadd.f32 %v6658, %v6665
        %v6676 = vadd.f32 %v6659, %v6666
        %v6677 = vmax.f32 %v6672, 0.0
        %v6678 = vmax.f32 %v6673, 0.0
        %v6679 = vmax.f32 %v6674, 0.0
        %v6680 = vmax.f32 %v6675, 0.0
        %v6681 = vmax.f32 %v6676, 0.0
        %v6687 = vrot.slane %v6678, 6
        %v6688 = vrot.slane %v6679, 4
        %v6689 = vrot.slane %v6680, 2
        %v6690 = vsel %vm4594, %v6677, %v6687
        %vm6691 = vcmask 1045508
        %v6692 = vsel %vm6691, %v6688, %v6689
        %vm6693 = vcmask 1043456
        %v6694 = vsel %vm6693, %v6690, %v6692
        %v6695 = vsel %vm4596, %v6677, %v6687
        %vm6696 = vcmask 1045504
        %v6697 = vsel %vm6696, %v6689, %v6688
        %vm6698 = vcmask 1045506
        %v6699 = vsel %vm6698, %v6695, %v6697
        %v6700 = vrot.slane %v6699, 2
        %v6701 = vrot.slane %v6681, 2
        %v6702 = vsel %vm6691, %v6677, %v6687
        %v6703 = vsel %vm4594, %v6688, %v6689
        %v6704 = vsel %vm6693, %v6703, %v6702
        %v6705 = vrot.slane %v6704, 4
        %v6706 = vrot.slane %v6681, 4
        %v6707 = vsel %vm6696, %v6687, %v6677
        %v6708 = vsel %vm4596, %v6688, %v6689
        %v6709 = vsel %vm6698, %v6708, %v6707
        %v6710 = vrot.slane %v6709, 6
        %v6711 = vrot.slane %v6681, 6
        %v6719 = vmax.f32 %v6694, %v6700
        %v6720 = vmax.f32 %v6681, %v6701
        %v6721 = vmax.f32 %v6705, %v6710
        %v6722 = vmax.f32 %v6706, %v6711
        %v6727 = vrot.slane %v6719, 7
        %v6728 = vrot.slane %v6727, 2
        %v6729 = vrot.slane %v6720, 7
        %v6730 = vrot.slane %v6729, 2
        %v6731 = vrot.slane %v6721, 7
        %v6732 = vrot.slane %v6731, 2
        %v6733 = vrot.slane %v6722, 7
        %v6734 = vrot.slane %v6733, 2
        %v6739 = vmax.f32 %v6719, %v6728
        %v6740 = vmax.f32 %v6720, %v6730
        %v6741 = vmax.f32 %v6721, %v6732
        %v6742 = vmax.f32 %v6722, %v6734
        %v6747 = vrot.slane %v6739, 1
        %v6748 = vrot.slane %v6739, 2
        %v6749 = vrot.slane %v6739, 3
        %v6750 = vrot.slane %v6740, 4
        %v6751 = vrot.slane %v6740, 5
        %v6752 = vrot.slane %v6740, 6
        %v6753 = vrot.slane %v6740, 7
        %v6754 = vrot.slane %v6741, 1
        %v6755 = vrot.slane %v6741, 2
        %v6756 = vrot.slane %v6741, 3
        %v6757 = vrot.slane %v6742, 4
        %v6758 = vrot.slane %v6742, 5
        %v6759 = vrot.slane %v6742, 6
        %v6760 = vrot.slane %v6742, 7
        %vm6761 = vcmask 1040384
        %v6762 = vsel %vm6761, %v6739, %v6747
        %v6763 = vsel %vm1852, %v6748, %v6749
        %v6764 = vsel %vm4594, %v6762, %v6763
        %v6765 = vsel %vm1856, %v6750, %v6751
        %v6766 = vsel %vm1860, %v6752, %v6753
        %v6767 = vsel %vm6691, %v6765, %v6766
        %v6768 = vsel %vm6693, %v6764, %v6767
        %v6769 = vsel %vm6761, %v6741, %v6754
        %v6770 = vsel %vm1852, %v6755, %v6756
        %v6771 = vsel %vm4594, %v6769, %v6770
        %v6772 = vsel %vm1856, %v6757, %v6758
        %v6773 = vsel %vm1860, %v6759, %v6760
        %v6774 = vsel %vm6691, %v6772, %v6773
        %v6775 = vsel %vm6693, %v6771, %v6774
        %v6778 = vlaneseq
        %vm6779 = vcmp.ge.s32.totalorder %v6778, 0
        %vm6780 = vcmp.lt.s32.totalorder %v6778, 640
        %vm6781 = vmand %vm6779, %vm6780
        %6782 = vst.msk [vmem:[%s326] sm:$0x1f] %vm6781, %v6768
        %6783 = vst.msk [vmem:[%s326 + $0x5] sm:$0x1f] %vm6781, %v6775
        %s6784 = sand.u32 %s225, 1
        %s6785 = scalar_lea.sflag [#allocation6], %s6784
        %s6786 = sand.u32 %s225, 1
        %s6787 = smul.addr %s6786, 10
        %s6788 = scalar_lea.vmem [#allocation5], %s6787
        // Predicated region
        $region57: #{convnet4_forward.1} parent=55 // pred_check
          %p6789 = pneg %p235
        $region58: #{convnet4_forward.1} parent=55 // pred_check_branch
          %6791 = sbr.rel (%p6789) target = $region60
        $region59: #{convnet4_forward.1} parent=55 // pred_region
          %s6792 = smul.u32 2, %s23
          %6794 = vsyncadd %s6785, 0
          %s6795 = smul.addr %s6792, 5
          %s6796 = scalar_lea.hbm %s9, %s6795
          %s6797 = sshll.u32 %s6788, 4
          %s6798 = int_to_ptr.vmem [resolvable:$true] %s6797
          %s6799 = sshll.u32 %s6796, 4
          %s6800 = int_to_ptr.hbm [resolvable:$true] %s6799
          %6805 = dma.vmem_to_hbm [thread:$0]  %s6798, 160, %s6800, %s6785, 80, 80, 5
        $region60: #{convnet4_forward.1} parent=55 // pred_fallthru
          _
      $region56: #{convnet4_forward.1} parent=5 // pred_fallthru
        _
      %p6806 = scmp.le.s32.totalorder 2, %s18
      // Predicated region
      $region61: #{convnet4_forward.1} parent=5 // pred_check
        %p6807 = pneg %p6806
      $region62: #{convnet4_forward.1} parent=5 // pred_check_branch
        %6809 = sbr.rel (%p6807) target = $region64
      $region63: #{convnet4_forward.1} parent=5 // pred_region
        %s6810 = ssub.s32 %s18, 2
        // Predicated region
        $region65: #{convnet4_forward.1} parent=63 // pred_check
          %p6811 = pneg %p241
        $region66: #{convnet4_forward.1} parent=63 // pred_check_branch
          %6813 = sbr.rel (%p6811) target = $region68
        $region67: #{convnet4_forward.1} parent=63 // pred_region
          %s6814 = sand.u32 %s226, 1
          %s6815 = scalar_lea.sflag [#allocation6], %s6814
          %s6816 = sand.u32 %s226, 1
          %s6817 = smul.addr %s6816, 10
          %s6818 = scalar_lea.vmem [#allocation5], %s6817
          %6820 = dma.done %s6815, 160
        $region68: #{convnet4_forward.1} parent=63 // pred_fallthru
          _
      $region64: #{convnet4_forward.1} parent=5 // pred_fallthru
        _
    $region6: #{convnet4_forward.1} parent=1 // loop_footer
      %s22 = sadd.s32 1, %s18
    $region7: #{convnet4_forward.1} parent=1 // loop_footer_branch
      %17 = sbr.rel target = $region3
    $region8: #{convnet4_forward.1} parent=1 // loop_exit
      _
    %6821 = vsyncpa [#allocation6], 1
    %s6822 = scalar_lea.sflag [#allocation6], 1
    %6823 = vsyncpa %s6822, 1

</llo_original>
